<compile_context>
chip_gen: v7x
topology: tpu7x:2x2x1
jax: 0.10.0
libtpu: 0.0.40
codegen_flags: <defaults>
</compile_context>

<pallas_src>
import functools

import jax
import jax.numpy as jnp
from jax.experimental import pallas as pl
from jax.experimental.pallas import tpu as pltpu

K_CHAR = 3  # char-CNN kernel width
_VMEM_LIMIT = 32 * 1024 * 1024  # conservative: <= scoped default on v6e/v7x


def _round_up(x, m):
    return (x + m - 1) // m * m


def _cparams(n_axes=1):
    return pltpu.CompilerParams(
        dimension_semantics=("parallel",) * n_axes,
        vmem_limit_bytes=_VMEM_LIMIT,
    )


def _pad_rows(x, target_rows):
    if x.shape[0] == target_rows:
        return x
    pad = [(0, target_rows - x.shape[0])] + [(0, 0)] * (x.ndim - 1)
    return jnp.pad(x, pad)


# ----------------------------------------------------------------------------
# Tiled linear: out = x @ w + b   (M-tiled grid, bf16 MXU operands, f32 acc)
# ----------------------------------------------------------------------------
def _linear_kernel(x_ref, w_ref, b_ref, o_ref):
    acc = (
        jnp.dot(
            x_ref[...].astype(jnp.bfloat16),
            w_ref[...].astype(jnp.bfloat16),
            preferred_element_type=jnp.float32,
        )
        + b_ref[...]
    )
    o_ref[...] = acc.astype(o_ref.dtype)


def linear(x, w, b, out_dtype=jnp.float32, tile_m=512):
    m, k = x.shape
    n = w.shape[1]
    tm = m if m <= tile_m else tile_m
    pm = _round_up(m, tm)
    xp = _pad_rows(x, pm)
    out = pl.pallas_call(
        _linear_kernel,
        out_shape=jax.ShapeDtypeStruct((pm, n), out_dtype),
        grid=(pm // tm,),
        in_specs=[
            pl.BlockSpec((tm, k), lambda i: (i, 0)),
            pl.BlockSpec((k, n), lambda i: (0, 0)),
            pl.BlockSpec((1, n), lambda i: (0, 0)),
        ],
        out_specs=pl.BlockSpec((tm, n), lambda i: (i, 0)),
        compiler_params=_cparams(1),
    )(xp, w, b.reshape(1, n))
    return out if pm == m else out[:m]


# ----------------------------------------------------------------------------
# Char CNN: per-tap matmuls over static window slices, relu, max over windows.
# Input is char-position-major (C, N, Dc) so windows are leading-axis slices.
# ----------------------------------------------------------------------------
def _charcnn_kernel(ce_ref, w_ref, b_ref, o_ref):
    n_char = ce_ref.shape[0]
    out = None
    for i in range(n_char - K_CHAR + 1):  # static unroll over window positions
        acc = b_ref[...]
        for j in range(K_CHAR):  # static unroll over taps
            acc = acc + jnp.dot(
                ce_ref[i + j].astype(jnp.bfloat16),
                w_ref[j].astype(jnp.bfloat16),
                preferred_element_type=jnp.float32,
            )
        y = jax.nn.relu(acc)
        out = y if out is None else jnp.maximum(out, y)
    o_ref[...] = out


def char_cnn(ce_t, w, b, tile_n=256):
    # ce_t: (C, N, Dc), w: (K, Dc, h)
    c, n, dc = ce_t.shape
    h = w.shape[-1]
    tn = n if n <= tile_n else tile_n
    pn = _round_up(n, tn)
    ce_p = ce_t if pn == n else jnp.pad(ce_t, ((0, 0), (0, pn - n), (0, 0)))
    out = pl.pallas_call(
        _charcnn_kernel,
        out_shape=jax.ShapeDtypeStruct((pn, h), jnp.float32),
        grid=(pn // tn,),
        in_specs=[
            pl.BlockSpec((c, tn, dc), lambda i: (0, i, 0)),
            pl.BlockSpec((K_CHAR, dc, h), lambda i: (0, 0, 0)),
            pl.BlockSpec((1, h), lambda i: (0, 0)),
        ],
        out_specs=pl.BlockSpec((tn, h), lambda i: (i, 0)),
        compiler_params=_cparams(1),
    )(ce_p, w, b.reshape(1, h))
    return out if pn == n else out[:n]


# ----------------------------------------------------------------------------
# Highway encoder (2 layers fused), tiled over rows.
# ----------------------------------------------------------------------------
def _highway_kernel(x_ref, wg_ref, bg_ref, wt_ref, bt_ref, o_ref):
    x = x_ref[...]
    for l in range(wg_ref.shape[0]):  # static unroll over layers
        xb = x.astype(jnp.bfloat16)
        g = jax.nn.sigmoid(
            jnp.dot(xb, wg_ref[l].astype(jnp.bfloat16),
                    preferred_element_type=jnp.float32) + bg_ref[l]
        )
        t = jax.nn.relu(
            jnp.dot(xb, wt_ref[l].astype(jnp.bfloat16),
                    preferred_element_type=jnp.float32) + bt_ref[l]
        )
        x = g * t + (1.0 - g) * x
    o_ref[...] = x


def highway(x, p, tile_m=512):
    m, d = x.shape
    tm = m if m <= tile_m else tile_m
    pm = _round_up(m, tm)
    xp = _pad_rows(x, pm)
    out = pl.pallas_call(
        _highway_kernel,
        out_shape=jax.ShapeDtypeStruct((pm, d), jnp.float32),
        grid=(pm // tm,),
        in_specs=[
            pl.BlockSpec((tm, d), lambda i: (i, 0)),
            pl.BlockSpec(p["wg"].shape, lambda i: (0, 0, 0)),
            pl.BlockSpec(p["bg"].shape, lambda i: (0, 0, 0)),
            pl.BlockSpec(p["wt"].shape, lambda i: (0, 0, 0)),
            pl.BlockSpec(p["bt"].shape, lambda i: (0, 0, 0)),
        ],
        out_specs=pl.BlockSpec((tm, d), lambda i: (i, 0)),
        compiler_params=_cparams(1),
    )(xp, p["wg"], p["bg"], p["wt"], p["bt"])
    return out if pm == m else out[:m]


# ----------------------------------------------------------------------------
# Masked bidirectional LSTM (pack_padded semantics: padded steps don't update
# state, padded outputs are zero).  Time-major; fwd/bwd steps interleaved in
# one fori_loop body; batch chunked via a "parallel" grid axis.
# ----------------------------------------------------------------------------
def _bilstm_kernel(xp_ref, whh_ref, mask_ref, out_ref):
    seq_len = xp_ref.shape[1]
    bb = xp_ref.shape[2]
    h = xp_ref.shape[3] // 4

    def gates_to_hc(g, cst):
        # TODO(synk): gate boundaries are not 128-lane aligned for arbitrary H;
        # padding H to a multiple of 128 would avoid per-step relayouts.
        i = jax.nn.sigmoid(g[:, 0 * h:1 * h])
        f = jax.nn.sigmoid(g[:, 1 * h:2 * h])
        gg = jnp.tanh(g[:, 2 * h:3 * h])
        o = jax.nn.sigmoid(g[:, 3 * h:4 * h])
        c_new = f * cst + i * gg
        h_new = o * jnp.tanh(c_new)
        return h_new, c_new

    zeros = jnp.zeros((bb, h), jnp.float32)

    def step(t, carry):
        hf, cf, hb, cb = carry
        tb = seq_len - 1 - t
        mf = mask_ref[t]   # (bb, 1)
        mb = mask_ref[tb]
        gf = xp_ref[0, t].astype(jnp.float32) + jnp.dot(
            hf.astype(jnp.bfloat16), whh_ref[0].astype(jnp.bfloat16),
            preferred_element_type=jnp.float32)
        gb = xp_ref[1, tb].astype(jnp.float32) + jnp.dot(
            hb.astype(jnp.bfloat16), whh_ref[1].astype(jnp.bfloat16),
            preferred_element_type=jnp.float32)
        hf_n, cf_n = gates_to_hc(gf, cf)
        hb_n, cb_n = gates_to_hc(gb, cb)
        hf = jnp.where(mf > 0, hf_n, hf)
        cf = jnp.where(mf > 0, cf_n, cf)
        hb = jnp.where(mb > 0, hb_n, hb)
        cb = jnp.where(mb > 0, cb_n, cb)
        out_ref[0, t] = hf * mf
        out_ref[1, tb] = hb * mb
        return hf, cf, hb, cb

    jax.lax.fori_loop(0, seq_len, step, (zeros, zeros, zeros, zeros))


def bilstm_layer(x, mask_t, p):
    # x: (B, L, Din); mask_t: (L, B, 1) float32
    bsz, seq_len, din = x.shape
    h = p["whh_f"].shape[0]

    # Fused fwd|bwd input projection: one (N, Din) @ (Din, 8H) matmul, bf16 out.
    wih = jnp.concatenate([p["wih_f"], p["wih_b"]], axis=1)   # (Din, 8H)
    bih = jnp.concatenate([p["b_f"], p["b_b"]], axis=0)        # (8H,)
    whh = jnp.stack([p["whh_f"], p["whh_b"]], axis=0)          # (2, H, 4H)

    xp = linear(x.reshape(bsz * seq_len, din), wih, bih, out_dtype=jnp.bfloat16)
    xp = xp.reshape(bsz, seq_len, 2, 4 * h)
    xp = jnp.transpose(xp, (2, 1, 0, 3))                        # (2, L, B, 4H)

    bb = 8 if bsz % 8 == 0 else bsz
    out = pl.pallas_call(
        _bilstm_kernel,
        out_shape=jax.ShapeDtypeStruct((2, seq_len, bsz, h), jnp.float32),
        grid=(bsz // bb,),
        in_specs=[
            pl.BlockSpec((2, seq_len, bb, 4 * h), lambda i: (0, 0, i, 0)),
            pl.BlockSpec((2, h, 4 * h), lambda i: (0, 0, 0)),
            pl.BlockSpec((seq_len, bb, 1), lambda i: (0, i, 0)),
        ],
        out_specs=pl.BlockSpec((2, seq_len, bb, h), lambda i: (0, 0, i, 0)),
        compiler_params=_cparams(1),
    )(xp, whh, mask_t)
    # (2, L, B, H) -> (B, L, 2H) with [hf | hb] feature order
    return jnp.transpose(out, (2, 1, 0, 3)).reshape(bsz, seq_len, 2 * h)


def rnn_encoder(x, mask, layer_params):
    mask_t = jnp.transpose(mask, (1, 0))[:, :, None]  # (L, B, 1)
    out = x
    for p in layer_params:
        out = bilstm_layer(out, mask_t, p)
    return out


# ----------------------------------------------------------------------------
# BiDAF attention (trilinear similarity + bidirectional masked softmax)
# ----------------------------------------------------------------------------
def _bidaf_att_kernel(c_ref, q_ref, cmask_ref, qmask_ref,
                      wc_ref, wq_ref, wcq_ref, bias_ref, o_ref):
    c = c_ref[0]        # (Lc, D)
    q = q_ref[0]        # (Lq, D)
    cm = cmask_ref[0]   # (Lc, 1) column mask
    qm = qmask_ref[0]   # (1, Lq) row mask
    cb = c.astype(jnp.bfloat16)
    qb = q.astype(jnp.bfloat16)

    # N=1 projections done as VPU reductions (MXU kept for the big matmuls).
    s0 = jnp.sum(c * wc_ref[...], axis=-1, keepdims=True)   # (Lc, 1)
    s1 = jnp.sum(q * wq_ref[...], axis=-1, keepdims=True)   # (Lq, 1)
    s2 = jnp.dot((c * wcq_ref[...]).astype(jnp.bfloat16), q.T.astype(jnp.bfloat16),
                 preferred_element_type=jnp.float32)          # (Lc, Lq)
    s = s0 + s1.T + s2 + bias_ref[...]

    s_q = jnp.where(qm > 0, s, -1e30)
    mq = jnp.max(s_q, axis=-1, keepdims=True)
    eq = jnp.exp(s_q - mq)
    p_q = eq * pl.reciprocal(jnp.sum(eq, axis=-1, keepdims=True), approx=True)

    s_c = jnp.where(cm > 0, s, -1e30)
    mc = jnp.max(s_c, axis=0, keepdims=True)
    ec = jnp.exp(s_c - mc)
    p_c = ec * pl.reciprocal(jnp.sum(ec, axis=0, keepdims=True), approx=True)

    a = jnp.dot(p_q.astype(jnp.bfloat16), qb, preferred_element_type=jnp.float32)
    qq = jnp.dot(p_q.astype(jnp.bfloat16), p_c.T.astype(jnp.bfloat16),
                 preferred_element_type=jnp.float32)           # (Lc, Lc)
    b = jnp.dot(qq.astype(jnp.bfloat16), cb, preferred_element_type=jnp.float32)
    o_ref[0] = jnp.concatenate([c, a, c * a, c * b], axis=-1)


def bidaf_attention(c, q, c_mask, q_mask, p):
    bsz, lc, d = c.shape
    lq = q.shape[1]
    cm = c_mask[:, :, None]   # (B, Lc, 1)
    qm = q_mask[:, None, :]   # (B, 1, Lq)
    return pl.pallas_call(
        _bidaf_att_kernel,
        out_shape=jax.ShapeDtypeStruct((bsz, lc, 4 * d), jnp.float32),
        grid=(bsz,),
        in_specs=[
            pl.BlockSpec((1, lc, d), lambda b: (b, 0, 0)),
            pl.BlockSpec((1, lq, d), lambda b: (b, 0, 0)),
            pl.BlockSpec((1, lc, 1), lambda b: (b, 0, 0)),
            pl.BlockSpec((1, 1, lq), lambda b: (b, 0, 0)),
            pl.BlockSpec((1, d), lambda b: (0, 0)),
            pl.BlockSpec((1, d), lambda b: (0, 0)),
            pl.BlockSpec((1, d), lambda b: (0, 0)),
            pl.BlockSpec((1, 1), lambda b: (0, 0)),
        ],
        out_specs=pl.BlockSpec((1, lc, 4 * d), lambda b: (b, 0, 0)),
        compiler_params=_cparams(1),
    )(c, q, cm, qm, p["wc"], p["wq"], p["wcq"], p["bias"])


# ----------------------------------------------------------------------------
# Self attention over the context (residual scaled-dot self-attention)
# TODO(synk): layers.SelfAtt definition is not provided; this implements a
# dimension-preserving residual self-attention (scores masked over keys).
# ----------------------------------------------------------------------------
def _self_att_kernel(x_ref, mask_ref, ws_ref, o_ref):
    x = x_ref[0]       # (Lc, D)
    mk = mask_ref[0]   # (1, Lc)
    d = x.shape[-1]
    xb = x.astype(jnp.bfloat16)
    proj = jnp.dot(xb, ws_ref[...].astype(jnp.bfloat16),
                   preferred_element_type=jnp.float32)
    scores = jnp.dot(proj.astype(jnp.bfloat16), x.T.astype(jnp.bfloat16),
                     preferred_element_type=jnp.float32) * (1.0 / (d ** 0.5))
    scores = jnp.where(mk > 0, scores, -1e30)
    mx = jnp.max(scores, axis=-1, keepdims=True)
    e = jnp.exp(scores - mx)
    p = e * pl.reciprocal(jnp.sum(e, axis=-1, keepdims=True), approx=True)
    o_ref[0] = x + jnp.dot(p.astype(jnp.bfloat16), xb,
                           preferred_element_type=jnp.float32)


def self_attention(x, c_mask, p):
    bsz, lc, d = x.shape
    mk = c_mask[:, None, :]   # (B, 1, Lc) lane-dense
    return pl.pallas_call(
        _self_att_kernel,
        out_shape=jax.ShapeDtypeStruct((bsz, lc, d), jnp.float32),
        grid=(bsz,),
        in_specs=[
            pl.BlockSpec((1, lc, d), lambda b: (b, 0, 0)),
            pl.BlockSpec((1, 1, lc), lambda b: (b, 0, 0)),
            pl.BlockSpec((d, d), lambda b: (0, 0)),
        ],
        out_specs=pl.BlockSpec((1, lc, d), lambda b: (b, 0, 0)),
        compiler_params=_cparams(1),
    )(x, mk, p["ws"])


# ----------------------------------------------------------------------------
# Output head: fused (att·w_att + mod·w_mod + b) -> mask -> log-softmax
# ----------------------------------------------------------------------------
def _output_head_kernel(att_ref, mod_ref, mask_ref, watt_ref, wmod_ref, b_ref,
                        o_ref):
    a = att_ref[0]     # (Lc, Da)
    m = mod_ref[0]     # (Lc, Dm)
    mk = mask_ref[0]   # (1, Lc)
    sa = jnp.sum(a * watt_ref[...], axis=-1, keepdims=True)   # (Lc, 1) VPU
    sm = jnp.sum(m * wmod_ref[...], axis=-1, keepdims=True)   # (Lc, 1)
    s = (sa + sm).T + b_ref[...]                                # (1, Lc)
    s = jnp.where(mk > 0, s, -1e30)
    mx = jnp.max(s, axis=-1, keepdims=True)
    z = s - mx
    lse = jnp.log(jnp.sum(jnp.exp(z), axis=-1, keepdims=True))
    o_ref[0] = z - lse


def output_head(att, mod, mask_row, w_att, w_mod, bias):
    bsz, lc, da = att.shape
    dm = mod.shape[-1]
    out = pl.pallas_call(
        _output_head_kernel,
        out_shape=jax.ShapeDtypeStruct((bsz, 1, lc), jnp.float32),
        grid=(bsz,),
        in_specs=[
            pl.BlockSpec((1, lc, da), lambda b: (b, 0, 0)),
            pl.BlockSpec((1, lc, dm), lambda b: (b, 0, 0)),
            pl.BlockSpec((1, 1, lc), lambda b: (b, 0, 0)),
            pl.BlockSpec((1, da), lambda b: (0, 0)),
            pl.BlockSpec((1, dm), lambda b: (0, 0)),
            pl.BlockSpec((1, 1), lambda b: (0, 0)),
        ],
        out_specs=pl.BlockSpec((1, 1, lc), lambda b: (b, 0, 0)),
        compiler_params=_cparams(1),
    )(att, mod, mask_row, w_att, w_mod, bias)
    return out.reshape(bsz, lc)


# ----------------------------------------------------------------------------
# Layers built from the kernels
# ----------------------------------------------------------------------------
def embedding(char_idxs, word_idxs, p, hidden):
    bsz, seq_len = word_idxs.shape
    n_char = char_idxs.shape[-1]
    n = bsz * seq_len

    w = p["word_vectors"][word_idxs.reshape(n)]                  # (N, Dw) gather
    w = linear(w, p["word_proj_w"], p["word_proj_b"])            # (N, h)

    ci = char_idxs.reshape(n, n_char).T                          # (C, N) cheap
    ce_t = p["char_vectors"][ci]                                 # (C, N, Dc)
    cf = char_cnn(ce_t, p["char_conv_w"], p["char_conv_b"])      # (N, h)

    emb = jnp.concatenate([w, cf], axis=-1)                      # (N, 2h)
    emb = highway(emb, p["hwy"])
    emb = emb.reshape(bsz, seq_len, 2 * hidden)
    # TODO(synk): layers.Embedding appends 2 extra per-token features (encoder
    # input size is self.hidden_size + 2); feature definition lives in the
    # unprovided layers.py, so zeros are used for those 2 channels.
    extra = jnp.zeros((bsz, seq_len, 2), jnp.float32)
    return jnp.concatenate([emb, extra], axis=-1)                # (B, L, 2h+2)


def bidaf_output(att, mod, c_mask, p):
    mask_row = c_mask[:, None, :]   # (B, 1, Lc)
    log_p1 = output_head(att, mod, mask_row, p["att_w1"], p["mod_w1"], p["b1"])
    mod_2 = rnn_encoder(mod, c_mask, p["rnn"])
    log_p2 = output_head(att, mod_2, mask_row, p["att_w2"], p["mod_w2"], p["b2"])
    return log_p1, log_p2


def bidaf_forward(params, cc_idxs, qc_idxs, cw_idxs, qw_idxs, hidden):
    c_mask = (cw_idxs != 0).astype(jnp.float32)
    q_mask = (qw_idxs != 0).astype(jnp.float32)
    c_emb = embedding(cc_idxs, cw_idxs, params["emb"], hidden)
    q_emb = embedding(qc_idxs, qw_idxs, params["emb"], hidden)
    c_enc = rnn_encoder(c_emb, c_mask, params["enc"])
    q_enc = rnn_encoder(q_emb, q_mask, params["enc"])
    att = bidaf_attention(c_enc, q_enc, c_mask, q_mask, params["att"])
    att = self_attention(att, c_mask, params["self_att"])
    mod = rnn_encoder(att, c_mask, params["mod"])
    return bidaf_output(att, mod, c_mask, params["out"])


# ----------------------------------------------------------------------------
# Deterministic parameter init (synthetic; matches module's implied shapes)
# ----------------------------------------------------------------------------
def _init(key, shape, scale=0.1):
    return jax.random.normal(key, shape, jnp.float32) * scale


def init_params(key, hidden, dw, dc, vocab_w, vocab_c):
    keys = iter(jax.random.split(key, 128))
    nxt = lambda: next(keys)
    H = 2 * hidden  # == self.hidden_size in the PyTorch module

    def lstm(din, h):
        return dict(
            wih_f=_init(nxt(), (din, 4 * h)), whh_f=_init(nxt(), (h, 4 * h)),
            b_f=_init(nxt(), (4 * h,)),
            wih_b=_init(nxt(), (din, 4 * h)), whh_b=_init(nxt(), (h, 4 * h)),
            b_b=_init(nxt(), (4 * h,)),
        )

    word_vectors = _init(nxt(), (vocab_w, dw), 1.0).at[0].set(0.0)  # padding_idx=0
    char_vectors = _init(nxt(), (vocab_c, dc), 1.0).at[0].set(0.0)  # padding_idx=0

    return dict(
        emb=dict(
            word_vectors=word_vectors,
            char_vectors=char_vectors,
            word_proj_w=_init(nxt(), (dw, hidden)),
            word_proj_b=jnp.zeros((hidden,), jnp.float32),
            char_conv_w=_init(nxt(), (K_CHAR, dc, hidden)),
            char_conv_b=jnp.zeros((hidden,), jnp.float32),
            hwy=dict(
                wg=_init(nxt(), (2, 2 * hidden, 2 * hidden)),
                bg=jnp.zeros((2, 1, 2 * hidden), jnp.float32),
                wt=_init(nxt(), (2, 2 * hidden, 2 * hidden)),
                bt=jnp.zeros((2, 1, 2 * hidden), jnp.float32),
            ),
        ),
        enc=[lstm(H + 2, H)],
        att=dict(
            wc=_init(nxt(), (1, 2 * H)),
            wq=_init(nxt(), (1, 2 * H)),
            wcq=_init(nxt(), (1, 2 * H)),
            bias=jnp.zeros((1, 1), jnp.float32),
        ),
        self_att=dict(ws=_init(nxt(), (8 * H, 8 * H))),
        mod=[lstm(8 * H, H), lstm(2 * H, H)],
        out=dict(
            att_w1=_init(nxt(), (1, 8 * H)), mod_w1=_init(nxt(), (1, 2 * H)),
            b1=jnp.zeros((1, 1), jnp.float32),
            att_w2=_init(nxt(), (1, 8 * H)), mod_w2=_init(nxt(), (1, 2 * H)),
            b2=jnp.zeros((1, 1), jnp.float32),
            rnn=[lstm(2 * H, H)],
        ),
    )


if __name__ == "__main__":
    hidden = 8          # hidden_size arg to BiDAF -> self.hidden_size = 16
    B, Lc, Lq, C = 2, 16, 8, 8
    DW, DC = 24, 8
    VW, VC = 50, 30

    key = jax.random.PRNGKey(0)
    k_par, k_cw, k_qw, k_cc, k_qc = jax.random.split(key, 5)
    params = init_params(k_par, hidden, DW, DC, VW, VC)

    c_lens = jnp.array([Lc, Lc - 4])
    q_lens = jnp.array([Lq, Lq - 3])
    cw = jax.random.randint(k_cw, (B, Lc), 1, VW)
    qw = jax.random.randint(k_qw, (B, Lq), 1, VW)
    cw = jnp.where(jnp.arange(Lc)[None, :] < c_lens[:, None], cw, 0)
    qw = jnp.where(jnp.arange(Lq)[None, :] < q_lens[:, None], qw, 0)
    cc = jax.random.randint(k_cc, (B, Lc, C), 1, VC)
    qc = jax.random.randint(k_qc, (B, Lq, C), 1, VC)
    cc = jnp.where((cw != 0)[:, :, None], cc, 0)
    qc = jnp.where((qw != 0)[:, :, None], qc, 0)

    fwd = jax.jit(functools.partial(bidaf_forward, hidden=hidden))
    log_p1, log_p2 = fwd(params, cc, qc, cw, qw)
    jax.block_until_ready((log_p1, log_p2))

    assert log_p1.shape == (B, Lc) and log_p2.shape == (B, Lc)
    assert bool(jnp.all(jnp.isfinite(log_p1))) and bool(jnp.all(jnp.isfinite(log_p2)))
    print("KERNEL_OK")
</pallas_src>

<mosaic_0001>
module attributes {stable_mosaic.version = 11 : i64} {
  func.func @_linear_kernel(%arg0: i32, %arg1: memref<32x24xf32, #tpu.memory_space<vmem>>, %arg2: memref<24x8xf32, #tpu.memory_space<vmem>>, %arg3: memref<1x8xf32, #tpu.memory_space<vmem>>, %arg4: memref<32x8xf32, #tpu.memory_space<vmem>>) attributes {dimension_semantics = [#tpu.dimension_semantics<parallel>], iteration_bounds = array<i64: 1>, scalar_prefetch = 0 : i64, scratch_operands = 0 : i64, tpu.core_type = #tpu.core_type<tc>, window_params = [{transform_indices = @transform_0, window_bounds = array<i64: 32, 24>}, {pipeline_mode = #tpu.pipeline_mode<synchronous>, transform_indices = @transform_1, window_bounds = array<i64: 24, 8>}, {pipeline_mode = #tpu.pipeline_mode<synchronous>, transform_indices = @transform_2, window_bounds = array<i64: 1, 8>}, {transform_indices = @transform_3, window_bounds = array<i64: 32, 8>}]} {
    %c0 = arith.constant 0 : index
    %c0_0 = arith.constant 0 : index
    %0 = vector.load %arg1[%c0, %c0_0] : memref<32x24xf32, #tpu.memory_space<vmem>>, vector<32x24xf32>
    %1 = arith.truncf %0 : vector<32x24xf32> to vector<32x24xbf16>
    %c0_1 = arith.constant 0 : index
    %c0_2 = arith.constant 0 : index
    %2 = vector.load %arg2[%c0_1, %c0_2] : memref<24x8xf32, #tpu.memory_space<vmem>>, vector<24x8xf32>
    %3 = arith.truncf %2 : vector<24x8xf32> to vector<24x8xbf16>
    %cst = arith.constant dense<0.000000e+00> : vector<32x8xf32>
    %4 = tpu.matmul %1, %3, %cst {dimension_numbers = #tpu.dot_dimension_numbers<[1], [0], [0], [1], [0, 0, 1, 1], [], []>} : vector<32x24xbf16>, vector<24x8xbf16>, vector<32x8xf32> -> vector<32x8xf32>
    %c0_3 = arith.constant 0 : index
    %c0_4 = arith.constant 0 : index
    %5 = vector.load %arg3[%c0_3, %c0_4] : memref<1x8xf32, #tpu.memory_space<vmem>>, vector<1x8xf32>
    %6 = vector.broadcast %5 : vector<1x8xf32> to vector<32x8xf32>
    %7 = arith.addf %4, %6 : vector<32x8xf32>
    %c0_5 = arith.constant 0 : index
    %c0_6 = arith.constant 0 : index
    %8 = vector.load %arg4[%c0_5, %c0_6] : memref<32x8xf32, #tpu.memory_space<vmem>>, vector<32x8xf32>
    tpu.vector_store %arg4[%c0_5, %c0_6], %7 {strides = array<i32>} : memref<32x8xf32, #tpu.memory_space<vmem>>, vector<32x8xf32>,
    return
  }
  func.func @transform_0(%arg0: i32) -> (i32, i32) {
    %c0_i32 = arith.constant 0 : i32
    %c0_i32_0 = arith.constant 0 : i32
    return %arg0, %c0_i32 : i32, i32
  }
  func.func @transform_1(%arg0: i32) -> (i32, i32) {
    %c0_i32 = arith.constant 0 : i32
    %c0_i32_0 = arith.constant 0 : i32
    %c0_i32_1 = arith.constant 0 : i32
    return %c0_i32, %c0_i32_0 : i32, i32
  }
  func.func @transform_2(%arg0: i32) -> (i32, i32) {
    %c0_i32 = arith.constant 0 : i32
    %c0_i32_0 = arith.constant 0 : i32
    %c0_i32_1 = arith.constant 0 : i32
    return %c0_i32, %c0_i32_0 : i32, i32
  }
  func.func @transform_3(%arg0: i32) -> (i32, i32) {
    %c0_i32 = arith.constant 0 : i32
    %c0_i32_0 = arith.constant 0 : i32
    return %arg0, %c0_i32 : i32, i32
  }
}

module attributes {stable_mosaic.version = 11 : i64} {
  func.func @_charcnn_kernel(%arg0: i32, %arg1: memref<8x32x8xf32, #tpu.memory_space<vmem>>, %arg2: memref<3x8x8xf32, #tpu.memory_space<vmem>>, %arg3: memref<1x8xf32, #tpu.memory_space<vmem>>, %arg4: memref<32x8xf32, #tpu.memory_space<vmem>>) attributes {dimension_semantics = [#tpu.dimension_semantics<parallel>], iteration_bounds = array<i64: 1>, scalar_prefetch = 0 : i64, scratch_operands = 0 : i64, tpu.core_type = #tpu.core_type<tc>, window_params = [{transform_indices = @transform_0, window_bounds = array<i64: 8, 32, 8>}, {pipeline_mode = #tpu.pipeline_mode<synchronous>, transform_indices = @transform_1, window_bounds = array<i64: 3, 8, 8>}, {pipeline_mode = #tpu.pipeline_mode<synchronous>, transform_indices = @transform_2, window_bounds = array<i64: 1, 8>}, {transform_indices = @transform_3, window_bounds = array<i64: 32, 8>}]} {
    %c0 = arith.constant 0 : index
    %c0_0 = arith.constant 0 : index
    %0 = vector.load %arg3[%c0, %c0_0] : memref<1x8xf32, #tpu.memory_space<vmem>>, vector<1x8xf32>
    %c0_1 = arith.constant 0 : index
    %c0_2 = arith.constant 0 : index
    %c0_3 = arith.constant 0 : index
    %1 = vector.load %arg1[%c0_1, %c0_2, %c0_3] : memref<8x32x8xf32, #tpu.memory_space<vmem>>, vector<1x32x8xf32>
    %2 = vector.shape_cast %1 : vector<1x32x8xf32> to vector<32x8xf32>
    %3 = arith.truncf %2 : vector<32x8xf32> to vector<32x8xbf16>
    %c0_4 = arith.constant 0 : index
    %c0_5 = arith.constant 0 : index
    %c0_6 = arith.constant 0 : index
    %4 = vector.load %arg2[%c0_4, %c0_5, %c0_6] : memref<3x8x8xf32, #tpu.memory_space<vmem>>, vector<1x8x8xf32>
    %5 = vector.shape_cast %4 : vector<1x8x8xf32> to vector<8x8xf32>
    %6 = arith.truncf %5 : vector<8x8xf32> to vector<8x8xbf16>
    %cst = arith.constant dense<0.000000e+00> : vector<32x8xf32>
    %7 = tpu.matmul %3, %6, %cst {dimension_numbers = #tpu.dot_dimension_numbers<[1], [0], [0], [1], [0, 0, 1, 1], [], []>} : vector<32x8xbf16>, vector<8x8xbf16>, vector<32x8xf32> -> vector<32x8xf32>
    %8 = vector.broadcast %0 : vector<1x8xf32> to vector<32x8xf32>
    %9 = arith.addf %8, %7 : vector<32x8xf32>
    %c1 = arith.constant 1 : index
    %c0_7 = arith.constant 0 : index
    %c0_8 = arith.constant 0 : index
    %10 = vector.load %arg1[%c1, %c0_7, %c0_8] : memref<8x32x8xf32, #tpu.memory_space<vmem>>, vector<1x32x8xf32>
    %11 = vector.shape_cast %10 : vector<1x32x8xf32> to vector<32x8xf32>
    %12 = arith.truncf %11 : vector<32x8xf32> to vector<32x8xbf16>
    %c1_9 = arith.constant 1 : index
    %c0_10 = arith.constant 0 : index
    %c0_11 = arith.constant 0 : index
    %13 = vector.load %arg2[%c1_9, %c0_10, %c0_11] : memref<3x8x8xf32, #tpu.memory_space<vmem>>, vector<1x8x8xf32>
    %14 = vector.shape_cast %13 : vector<1x8x8xf32> to vector<8x8xf32>
    %15 = arith.truncf %14 : vector<8x8xf32> to vector<8x8xbf16>
    %cst_12 = arith.constant dense<0.000000e+00> : vector<32x8xf32>
    %16 = tpu.matmul %12, %15, %cst_12 {dimension_numbers = #tpu.dot_dimension_numbers<[1], [0], [0], [1], [0, 0, 1, 1], [], []>} : vector<32x8xbf16>, vector<8x8xbf16>, vector<32x8xf32> -> vector<32x8xf32>
    %17 = arith.addf %9, %16 : vector<32x8xf32>
    %c2 = arith.constant 2 : index
    %c0_13 = arith.constant 0 : index
    %c0_14 = arith.constant 0 : index
    %18 = vector.load %arg1[%c2, %c0_13, %c0_14] : memref<8x32x8xf32, #tpu.memory_space<vmem>>, vector<1x32x8xf32>
    %19 = vector.shape_cast %18 : vector<1x32x8xf32> to vector<32x8xf32>
    %20 = arith.truncf %19 : vector<32x8xf32> to vector<32x8xbf16>
    %c2_15 = arith.constant 2 : index
    %c0_16 = arith.constant 0 : index
    %c0_17 = arith.constant 0 : index
    %21 = vector.load %arg2[%c2_15, %c0_16, %c0_17] : memref<3x8x8xf32, #tpu.memory_space<vmem>>, vector<1x8x8xf32>
    %22 = vector.shape_cast %21 : vector<1x8x8xf32> to vector<8x8xf32>
    %23 = arith.truncf %22 : vector<8x8xf32> to vector<8x8xbf16>
    %cst_18 = arith.constant dense<0.000000e+00> : vector<32x8xf32>
    %24 = tpu.matmul %20, %23, %cst_18 {dimension_numbers = #tpu.dot_dimension_numbers<[1], [0], [0], [1], [0, 0, 1, 1], [], []>} : vector<32x8xbf16>, vector<8x8xbf16>, vector<32x8xf32> -> vector<32x8xf32>
    %25 = arith.addf %17, %24 : vector<32x8xf32>
    %cst_19 = arith.constant 0.000000e+00 : f32
    %26 = vector.broadcast %cst_19 : f32 to vector<32x8xf32>
    %27 = arith.maximumf %25, %26 : vector<32x8xf32>
    %c0_20 = arith.constant 0 : index
    %c0_21 = arith.constant 0 : index
    %28 = vector.load %arg3[%c0_20, %c0_21] : memref<1x8xf32, #tpu.memory_space<vmem>>, vector<1x8xf32>
    %c1_22 = arith.constant 1 : index
    %c0_23 = arith.constant 0 : index
    %c0_24 = arith.constant 0 : index
    %29 = vector.load %arg1[%c1_22, %c0_23, %c0_24] : memref<8x32x8xf32, #tpu.memory_space<vmem>>, vector<1x32x8xf32>
    %30 = vector.shape_cast %29 : vector<1x32x8xf32> to vector<32x8xf32>
    %31 = arith.truncf %30 : vector<32x8xf32> to vector<32x8xbf16>
    %c0_25 = arith.constant 0 : index
    %c0_26 = arith.constant 0 : index
    %c0_27 = arith.constant 0 : index
    %32 = vector.load %arg2[%c0_25, %c0_26, %c0_27] : memref<3x8x8xf32, #tpu.memory_space<vmem>>, vector<1x8x8xf32>
    %33 = vector.shape_cast %32 : vector<1x8x8xf32> to vector<8x8xf32>
    %34 = arith.truncf %33 : vector<8x8xf32> to vector<8x8xbf16>
    %cst_28 = arith.constant dense<0.000000e+00> : vector<32x8xf32>
    %35 = tpu.matmul %31, %34, %cst_28 {dimension_numbers = #tpu.dot_dimension_numbers<[1], [0], [0], [1], [0, 0, 1, 1], [], []>} : vector<32x8xbf16>, vector<8x8xbf16>, vector<32x8xf32> -> vector<32x8xf32>
    %36 = vector.broadcast %28 : vector<1x8xf32> to vector<32x8xf32>
    %37 = arith.addf %36, %35 : vector<32x8xf32>
    %c2_29 = arith.constant 2 : index
    %c0_30 = arith.constant 0 : index
    %c0_31 = arith.constant 0 : index
    %38 = vector.load %arg1[%c2_29, %c0_30, %c0_31] : memref<8x32x8xf32, #tpu.memory_space<vmem>>, vector<1x32x8xf32>
    %39 = vector.shape_cast %38 : vector<1x32x8xf32> to vector<32x8xf32>
    %40 = arith.truncf %39 : vector<32x8xf32> to vector<32x8xbf16>
    %c1_32 = arith.constant 1 : index
    %c0_33 = arith.constant 0 : index
    %c0_34 = arith.constant 0 : index
    %41 = vector.load %arg2[%c1_32, %c0_33, %c0_34] : memref<3x8x8xf32, #tpu.memory_space<vmem>>, vector<1x8x8xf32>
    %42 = vector.shape_cast %41 : vector<1x8x8xf32> to vector<8x8xf32>
    %43 = arith.truncf %42 : vector<8x8xf32> to vector<8x8xbf16>
    %cst_35 = arith.constant dense<0.000000e+00> : vector<32x8xf32>
    %44 = tpu.matmul %40, %43, %cst_35 {dimension_numbers = #tpu.dot_dimension_numbers<[1], [0], [0], [1], [0, 0, 1, 1], [], []>} : vector<32x8xbf16>, vector<8x8xbf16>, vector<32x8xf32> -> vector<32x8xf32>
    %45 = arith.addf %37, %44 : vector<32x8xf32>
    %c3 = arith.constant 3 : index
    %c0_36 = arith.constant 0 : index
    %c0_37 = arith.constant 0 : index
    %46 = vector.load %arg1[%c3, %c0_36, %c0_37] : memref<8x32x8xf32, #tpu.memory_space<vmem>>, vector<1x32x8xf32>
    %47 = vector.shape_cast %46 : vector<1x32x8xf32> to vector<32x8xf32>
    %48 = arith.truncf %47 : vector<32x8xf32> to vector<32x8xbf16>
    %c2_38 = arith.constant 2 : index
    %c0_39 = arith.constant 0 : index
    %c0_40 = arith.constant 0 : index
    %49 = vector.load %arg2[%c2_38, %c0_39, %c0_40] : memref<3x8x8xf32, #tpu.memory_space<vmem>>, vector<1x8x8xf32>
    %50 = vector.shape_cast %49 : vector<1x8x8xf32> to vector<8x8xf32>
    %51 = arith.truncf %50 : vector<8x8xf32> to vector<8x8xbf16>
    %cst_41 = arith.constant dense<0.000000e+00> : vector<32x8xf32>
    %52 = tpu.matmul %48, %51, %cst_41 {dimension_numbers = #tpu.dot_dimension_numbers<[1], [0], [0], [1], [0, 0, 1, 1], [], []>} : vector<32x8xbf16>, vector<8x8xbf16>, vector<32x8xf32> -> vector<32x8xf32>
    %53 = arith.addf %45, %52 : vector<32x8xf32>
    %cst_42 = arith.constant 0.000000e+00 : f32
    %54 = vector.broadcast %cst_42 : f32 to vector<32x8xf32>
    %55 = arith.maximumf %53, %54 : vector<32x8xf32>
    %56 = arith.maximumf %27, %55 : vector<32x8xf32>
    %c0_43 = arith.constant 0 : index
    %c0_44 = arith.constant 0 : index
    %57 = vector.load %arg3[%c0_43, %c0_44] : memref<1x8xf32, #tpu.memory_space<vmem>>, vector<1x8xf32>
    %c2_45 = arith.constant 2 : index
    %c0_46 = arith.constant 0 : index
    %c0_47 = arith.constant 0 : index
    %58 = vector.load %arg1[%c2_45, %c0_46, %c0_47] : memref<8x32x8xf32, #tpu.memory_space<vmem>>, vector<1x32x8xf32>
    %59 = vector.shape_cast %58 : vector<1x32x8xf32> to vector<32x8xf32>
    %60 = arith.truncf %59 : vector<32x8xf32> to vector<32x8xbf16>
    %c0_48 = arith.constant 0 : index
    %c0_49 = arith.constant 0 : index
    %c0_50 = arith.constant 0 : index
    %61 = vector.load %arg2[%c0_48, %c0_49, %c0_50] : memref<3x8x8xf32, #tpu.memory_space<vmem>>, vector<1x8x8xf32>
    %62 = vector.shape_cast %61 : vector<1x8x8xf32> to vector<8x8xf32>
    %63 = arith.truncf %62 : vector<8x8xf32> to vector<8x8xbf16>
    %cst_51 = arith.constant dense<0.000000e+00> : vector<32x8xf32>
    %64 = tpu.matmul %60, %63, %cst_51 {dimension_numbers = #tpu.dot_dimension_numbers<[1], [0], [0], [1], [0, 0, 1, 1], [], []>} : vector<32x8xbf16>, vector<8x8xbf16>, vector<32x8xf32> -> vector<32x8xf32>
    %65 = vector.broadcast %57 : vector<1x8xf32> to vector<32x8xf32>
    %66 = arith.addf %65, %64 : vector<32x8xf32>
    %c3_52 = arith.constant 3 : index
    %c0_53 = arith.constant 0 : index
    %c0_54 = arith.constant 0 : index
    %67 = vector.load %arg1[%c3_52, %c0_53, %c0_54] : memref<8x32x8xf32, #tpu.memory_space<vmem>>, vector<1x32x8xf32>
    %68 = vector.shape_cast %67 : vector<1x32x8xf32> to vector<32x8xf32>
    %69 = arith.truncf %68 : vector<32x8xf32> to vector<32x8xbf16>
    %c1_55 = arith.constant 1 : index
    %c0_56 = arith.constant 0 : index
    %c0_57 = arith.constant 0 : index
    %70 = vector.load %arg2[%c1_55, %c0_56, %c0_57] : memref<3x8x8xf32, #tpu.memory_space<vmem>>, vector<1x8x8xf32>
    %71 = vector.shape_cast %70 : vector<1x8x8xf32> to vector<8x8xf32>
    %72 = arith.truncf %71 : vector<8x8xf32> to vector<8x8xbf16>
    %cst_58 = arith.constant dense<0.000000e+00> : vector<32x8xf32>
    %73 = tpu.matmul %69, %72, %cst_58 {dimension_numbers = #tpu.dot_dimension_numbers<[1], [0], [0], [1], [0, 0, 1, 1], [], []>} : vector<32x8xbf16>, vector<8x8xbf16>, vector<32x8xf32> -> vector<32x8xf32>
    %74 = arith.addf %66, %73 : vector<32x8xf32>
    %c4 = arith.constant 4 : index
    %c0_59 = arith.constant 0 : index
    %c0_60 = arith.constant 0 : index
    %75 = vector.load %arg1[%c4, %c0_59, %c0_60] : memref<8x32x8xf32, #tpu.memory_space<vmem>>, vector<1x32x8xf32>
    %76 = vector.shape_cast %75 : vector<1x32x8xf32> to vector<32x8xf32>
    %77 = arith.truncf %76 : vector<32x8xf32> to vector<32x8xbf16>
    %c2_61 = arith.constant 2 : index
    %c0_62 = arith.constant 0 : index
    %c0_63 = arith.constant 0 : index
    %78 = vector.load %arg2[%c2_61, %c0_62, %c0_63] : memref<3x8x8xf32, #tpu.memory_space<vmem>>, vector<1x8x8xf32>
    %79 = vector.shape_cast %78 : vector<1x8x8xf32> to vector<8x8xf32>
    %80 = arith.truncf %79 : vector<8x8xf32> to vector<8x8xbf16>
    %cst_64 = arith.constant dense<0.000000e+00> : vector<32x8xf32>
    %81 = tpu.matmul %77, %80, %cst_64 {dimension_numbers = #tpu.dot_dimension_numbers<[1], [0], [0], [1], [0, 0, 1, 1], [], []>} : vector<32x8xbf16>, vector<8x8xbf16>, vector<32x8xf32> -> vector<32x8xf32>
    %82 = arith.addf %74, %81 : vector<32x8xf32>
    %cst_65 = arith.constant 0.000000e+00 : f32
    %83 = vector.broadcast %cst_65 : f32 to vector<32x8xf32>
    %84 = arith.maximumf %82, %83 : vector<32x8xf32>
    %85 = arith.maximumf %56, %84 : vector<32x8xf32>
    %c0_66 = arith.constant 0 : index
    %c0_67 = arith.constant 0 : index
    %86 = vector.load %arg3[%c0_66, %c0_67] : memref<1x8xf32, #tpu.memory_space<vmem>>, vector<1x8xf32>
    %c3_68 = arith.constant 3 : index
    %c0_69 = arith.constant 0 : index
    %c0_70 = arith.constant 0 : index
    %87 = vector.load %arg1[%c3_68, %c0_69, %c0_70] : memref<8x32x8xf32, #tpu.memory_space<vmem>>, vector<1x32x8xf32>
    %88 = vector.shape_cast %87 : vector<1x32x8xf32> to vector<32x8xf32>
    %89 = arith.truncf %88 : vector<32x8xf32> to vector<32x8xbf16>
    %c0_71 = arith.constant 0 : index
    %c0_72 = arith.constant 0 : index
    %c0_73 = arith.constant 0 : index
    %90 = vector.load %arg2[%c0_71, %c0_72, %c0_73] : memref<3x8x8xf32, #tpu.memory_space<vmem>>, vector<1x8x8xf32>
    %91 = vector.shape_cast %90 : vector<1x8x8xf32> to vector<8x8xf32>
    %92 = arith.truncf %91 : vector<8x8xf32> to vector<8x8xbf16>
    %cst_74 = arith.constant dense<0.000000e+00> : vector<32x8xf32>
    %93 = tpu.matmul %89, %92, %cst_74 {dimension_numbers = #tpu.dot_dimension_numbers<[1], [0], [0], [1], [0, 0, 1, 1], [], []>} : vector<32x8xbf16>, vector<8x8xbf16>, vector<32x8xf32> -> vector<32x8xf32>
    %94 = vector.broadcast %86 : vector<1x8xf32> to vector<32x8xf32>
    %95 = arith.addf %94, %93 : vector<32x8xf32>
    %c4_75 = arith.constant 4 : index
    %c0_76 = arith.constant 0 : index
    %c0_77 = arith.constant 0 : index
    %96 = vector.load %arg1[%c4_75, %c0_76, %c0_77] : memref<8x32x8xf32, #tpu.memory_space<vmem>>, vector<1x32x8xf32>
    %97 = vector.shape_cast %96 : vector<1x32x8xf32> to vector<32x8xf32>
    %98 = arith.truncf %97 : vector<32x8xf32> to vector<32x8xbf16>
    %c1_78 = arith.constant 1 : index
    %c0_79 = arith.constant 0 : index
    %c0_80 = arith.constant 0 : index
    %99 = vector.load %arg2[%c1_78, %c0_79, %c0_80] : memref<3x8x8xf32, #tpu.memory_space<vmem>>, vector<1x8x8xf32>
    %100 = vector.shape_cast %99 : vector<1x8x8xf32> to vector<8x8xf32>
    %101 = arith.truncf %100 : vector<8x8xf32> to vector<8x8xbf16>
    %cst_81 = arith.constant dense<0.000000e+00> : vector<32x8xf32>
    %102 = tpu.matmul %98, %101, %cst_81 {dimension_numbers = #tpu.dot_dimension_numbers<[1], [0], [0], [1], [0, 0, 1, 1], [], []>} : vector<32x8xbf16>, vector<8x8xbf16>, vector<32x8xf32> -> vector<32x8xf32>
    %103 = arith.addf %95, %102 : vector<32x8xf32>
    %c5 = arith.constant 5 : index
    %c0_82 = arith.constant 0 : index
    %c0_83 = arith.constant 0 : index
    %104 = vector.load %arg1[%c5, %c0_82, %c0_83] : memref<8x32x8xf32, #tpu.memory_space<vmem>>, vector<1x32x8xf32>
    %105 = vector.shape_cast %104 : vector<1x32x8xf32> to vector<32x8xf32>
    %106 = arith.truncf %105 : vector<32x8xf32> to vector<32x8xbf16>
    %c2_84 = arith.constant 2 : index
    %c0_85 = arith.constant 0 : index
    %c0_86 = arith.constant 0 : index
    %107 = vector.load %arg2[%c2_84, %c0_85, %c0_86] : memref<3x8x8xf32, #tpu.memory_space<vmem>>, vector<1x8x8xf32>
    %108 = vector.shape_cast %107 : vector<1x8x8xf32> to vector<8x8xf32>
    %109 = arith.truncf %108 : vector<8x8xf32> to vector<8x8xbf16>
    %cst_87 = arith.constant dense<0.000000e+00> : vector<32x8xf32>
    %110 = tpu.matmul %106, %109, %cst_87 {dimension_numbers = #tpu.dot_dimension_numbers<[1], [0], [0], [1], [0, 0, 1, 1], [], []>} : vector<32x8xbf16>, vector<8x8xbf16>, vector<32x8xf32> -> vector<32x8xf32>
    %111 = arith.addf %103, %110 : vector<32x8xf32>
    %cst_88 = arith.constant 0.000000e+00 : f32
    %112 = vector.broadcast %cst_88 : f32 to vector<32x8xf32>
    %113 = arith.maximumf %111, %112 : vector<32x8xf32>
    %114 = arith.maximumf %85, %113 : vector<32x8xf32>
    %c0_89 = arith.constant 0 : index
    %c0_90 = arith.constant 0 : index
    %115 = vector.load %arg3[%c0_89, %c0_90] : memref<1x8xf32, #tpu.memory_space<vmem>>, vector<1x8xf32>
    %c4_91 = arith.constant 4 : index
    %c0_92 = arith.constant 0 : index
    %c0_93 = arith.constant 0 : index
    %116 = vector.load %arg1[%c4_91, %c0_92, %c0_93] : memref<8x32x8xf32, #tpu.memory_space<vmem>>, vector<1x32x8xf32>
    %117 = vector.shape_cast %116 : vector<1x32x8xf32> to vector<32x8xf32>
    %118 = arith.truncf %117 : vector<32x8xf32> to vector<32x8xbf16>
    %c0_94 = arith.constant 0 : index
    %c0_95 = arith.constant 0 : index
    %c0_96 = arith.constant 0 : index
    %119 = vector.load %arg2[%c0_94, %c0_95, %c0_96] : memref<3x8x8xf32, #tpu.memory_space<vmem>>, vector<1x8x8xf32>
    %120 = vector.shape_cast %119 : vector<1x8x8xf32> to vector<8x8xf32>
    %121 = arith.truncf %120 : vector<8x8xf32> to vector<8x8xbf16>
    %cst_97 = arith.constant dense<0.000000e+00> : vector<32x8xf32>
    %122 = tpu.matmul %118, %121, %cst_97 {dimension_numbers = #tpu.dot_dimension_numbers<[1], [0], [0], [1], [0, 0, 1, 1], [], []>} : vector<32x8xbf16>, vector<8x8xbf16>, vector<32x8xf32> -> vector<32x8xf32>
    %123 = vector.broadcast %115 : vector<1x8xf32> to vector<32x8xf32>
    %124 = arith.addf %123, %122 : vector<32x8xf32>
    %c5_98 = arith.constant 5 : index
    %c0_99 = arith.constant 0 : index
    %c0_100 = arith.constant 0 : index
    %125 = vector.load %arg1[%c5_98, %c0_99, %c0_100] : memref<8x32x8xf32, #tpu.memory_space<vmem>>, vector<1x32x8xf32>
    %126 = vector.shape_cast %125 : vector<1x32x8xf32> to vector<32x8xf32>
    %127 = arith.truncf %126 : vector<32x8xf32> to vector<32x8xbf16>
    %c1_101 = arith.constant 1 : index
    %c0_102 = arith.constant 0 : index
    %c0_103 = arith.constant 0 : index
    %128 = vector.load %arg2[%c1_101, %c0_102, %c0_103] : memref<3x8x8xf32, #tpu.memory_space<vmem>>, vector<1x8x8xf32>
    %129 = vector.shape_cast %128 : vector<1x8x8xf32> to vector<8x8xf32>
    %130 = arith.truncf %129 : vector<8x8xf32> to vector<8x8xbf16>
    %cst_104 = arith.constant dense<0.000000e+00> : vector<32x8xf32>
    %131 = tpu.matmul %127, %130, %cst_104 {dimension_numbers = #tpu.dot_dimension_numbers<[1], [0], [0], [1], [0, 0, 1, 1], [], []>} : vector<32x8xbf16>, vector<8x8xbf16>, vector<32x8xf32> -> vector<32x8xf32>
    %132 = arith.addf %124, %131 : vector<32x8xf32>
    %c6 = arith.constant 6 : index
    %c0_105 = arith.constant 0 : index
    %c0_106 = arith.constant 0 : index
    %133 = vector.load %arg1[%c6, %c0_105, %c0_106] : memref<8x32x8xf32, #tpu.memory_space<vmem>>, vector<1x32x8xf32>
    %134 = vector.shape_cast %133 : vector<1x32x8xf32> to vector<32x8xf32>
    %135 = arith.truncf %134 : vector<32x8xf32> to vector<32x8xbf16>
    %c2_107 = arith.constant 2 : index
    %c0_108 = arith.constant 0 : index
    %c0_109 = arith.constant 0 : index
    %136 = vector.load %arg2[%c2_107, %c0_108, %c0_109] : memref<3x8x8xf32, #tpu.memory_space<vmem>>, vector<1x8x8xf32>
    %137 = vector.shape_cast %136 : vector<1x8x8xf32> to vector<8x8xf32>
    %138 = arith.truncf %137 : vector<8x8xf32> to vector<8x8xbf16>
    %cst_110 = arith.constant dense<0.000000e+00> : vector<32x8xf32>
    %139 = tpu.matmul %135, %138, %cst_110 {dimension_numbers = #tpu.dot_dimension_numbers<[1], [0], [0], [1], [0, 0, 1, 1], [], []>} : vector<32x8xbf16>, vector<8x8xbf16>, vector<32x8xf32> -> vector<32x8xf32>
    %140 = arith.addf %132, %139 : vector<32x8xf32>
    %cst_111 = arith.constant 0.000000e+00 : f32
    %141 = vector.broadcast %cst_111 : f32 to vector<32x8xf32>
    %142 = arith.maximumf %140, %141 : vector<32x8xf32>
    %143 = arith.maximumf %114, %142 : vector<32x8xf32>
    %c0_112 = arith.constant 0 : index
    %c0_113 = arith.constant 0 : index
    %144 = vector.load %arg3[%c0_112, %c0_113] : memref<1x8xf32, #tpu.memory_space<vmem>>, vector<1x8xf32>
    %c5_114 = arith.constant 5 : index
    %c0_115 = arith.constant 0 : index
    %c0_116 = arith.constant 0 : index
    %145 = vector.load %arg1[%c5_114, %c0_115, %c0_116] : memref<8x32x8xf32, #tpu.memory_space<vmem>>, vector<1x32x8xf32>
    %146 = vector.shape_cast %145 : vector<1x32x8xf32> to vector<32x8xf32>
    %147 = arith.truncf %146 : vector<32x8xf32> to vector<32x8xbf16>
    %c0_117 = arith.constant 0 : index
    %c0_118 = arith.constant 0 : index
    %c0_119 = arith.constant 0 : index
    %148 = vector.load %arg2[%c0_117, %c0_118, %c0_119] : memref<3x8x8xf32, #tpu.memory_space<vmem>>, vector<1x8x8xf32>
    %149 = vector.shape_cast %148 : vector<1x8x8xf32> to vector<8x8xf32>
    %150 = arith.truncf %149 : vector<8x8xf32> to vector<8x8xbf16>
    %cst_120 = arith.constant dense<0.000000e+00> : vector<32x8xf32>
    %151 = tpu.matmul %147, %150, %cst_120 {dimension_numbers = #tpu.dot_dimension_numbers<[1], [0], [0], [1], [0, 0, 1, 1], [], []>} : vector<32x8xbf16>, vector<8x8xbf16>, vector<32x8xf32> -> vector<32x8xf32>
    %152 = vector.broadcast %144 : vector<1x8xf32> to vector<32x8xf32>
    %153 = arith.addf %152, %151 : vector<32x8xf32>
    %c6_121 = arith.constant 6 : index
    %c0_122 = arith.constant 0 : index
    %c0_123 = arith.constant 0 : index
    %154 = vector.load %arg1[%c6_121, %c0_122, %c0_123] : memref<8x32x8xf32, #tpu.memory_space<vmem>>, vector<1x32x8xf32>
    %155 = vector.shape_cast %154 : vector<1x32x8xf32> to vector<32x8xf32>
    %156 = arith.truncf %155 : vector<32x8xf32> to vector<32x8xbf16>
    %c1_124 = arith.constant 1 : index
    %c0_125 = arith.constant 0 : index
    %c0_126 = arith.constant 0 : index
    %157 = vector.load %arg2[%c1_124, %c0_125, %c0_126] : memref<3x8x8xf32, #tpu.memory_space<vmem>>, vector<1x8x8xf32>
    %158 = vector.shape_cast %157 : vector<1x8x8xf32> to vector<8x8xf32>
    %159 = arith.truncf %158 : vector<8x8xf32> to vector<8x8xbf16>
    %cst_127 = arith.constant dense<0.000000e+00> : vector<32x8xf32>
    %160 = tpu.matmul %156, %159, %cst_127 {dimension_numbers = #tpu.dot_dimension_numbers<[1], [0], [0], [1], [0, 0, 1, 1], [], []>} : vector<32x8xbf16>, vector<8x8xbf16>, vector<32x8xf32> -> vector<32x8xf32>
    %161 = arith.addf %153, %160 : vector<32x8xf32>
    %c7 = arith.constant 7 : index
    %c0_128 = arith.constant 0 : index
    %c0_129 = arith.constant 0 : index
    %162 = vector.load %arg1[%c7, %c0_128, %c0_129] : memref<8x32x8xf32, #tpu.memory_space<vmem>>, vector<1x32x8xf32>
    %163 = vector.shape_cast %162 : vector<1x32x8xf32> to vector<32x8xf32>
    %164 = arith.truncf %163 : vector<32x8xf32> to vector<32x8xbf16>
    %c2_130 = arith.constant 2 : index
    %c0_131 = arith.constant 0 : index
    %c0_132 = arith.constant 0 : index
    %165 = vector.load %arg2[%c2_130, %c0_131, %c0_132] : memref<3x8x8xf32, #tpu.memory_space<vmem>>, vector<1x8x8xf32>
    %166 = vector.shape_cast %165 : vector<1x8x8xf32> to vector<8x8xf32>
    %167 = arith.truncf %166 : vector<8x8xf32> to vector<8x8xbf16>
    %cst_133 = arith.constant dense<0.000000e+00> : vector<32x8xf32>
    %168 = tpu.matmul %164, %167, %cst_133 {dimension_numbers = #tpu.dot_dimension_numbers<[1], [0], [0], [1], [0, 0, 1, 1], [], []>} : vector<32x8xbf16>, vector<8x8xbf16>, vector<32x8xf32> -> vector<32x8xf32>
    %169 = arith.addf %161, %168 : vector<32x8xf32>
    %cst_134 = arith.constant 0.000000e+00 : f32
    %170 = vector.broadcast %cst_134 : f32 to vector<32x8xf32>
    %171 = arith.maximumf %169, %170 : vector<32x8xf32>
    %172 = arith.maximumf %143, %171 : vector<32x8xf32>
    %c0_135 = arith.constant 0 : index
    %c0_136 = arith.constant 0 : index
    %173 = vector.load %arg4[%c0_135, %c0_136] : memref<32x8xf32, #tpu.memory_space<vmem>>, vector<32x8xf32>
    tpu.vector_store %arg4[%c0_135, %c0_136], %172 {strides = array<i32>} : memref<32x8xf32, #tpu.memory_space<vmem>>, vector<32x8xf32>,
    return
  }
  func.func @transform_0(%arg0: i32) -> (i32, i32, i32) {
    %c0_i32 = arith.constant 0 : i32
    %c0_i32_0 = arith.constant 0 : i32
    %c0_i32_1 = arith.constant 0 : i32
    return %c0_i32, %arg0, %c0_i32_0 : i32, i32, i32
  }
  func.func @transform_1(%arg0: i32) -> (i32, i32, i32) {
    %c0_i32 = arith.constant 0 : i32
    %c0_i32_0 = arith.constant 0 : i32
    %c0_i32_1 = arith.constant 0 : i32
    %c0_i32_2 = arith.constant 0 : i32
    return %c0_i32, %c0_i32_0, %c0_i32_1 : i32, i32, i32
  }
  func.func @transform_2(%arg0: i32) -> (i32, i32) {
    %c0_i32 = arith.constant 0 : i32
    %c0_i32_0 = arith.constant 0 : i32
    %c0_i32_1 = arith.constant 0 : i32
    return %c0_i32, %c0_i32_0 : i32, i32
  }
  func.func @transform_3(%arg0: i32) -> (i32, i32) {
    %c0_i32 = arith.constant 0 : i32
    %c0_i32_0 = arith.constant 0 : i32
    return %arg0, %c0_i32 : i32, i32
  }
}

module attributes {stable_mosaic.version = 11 : i64} {
  func.func @_highway_kernel(%arg0: i32, %arg1: memref<32x16xf32, #tpu.memory_space<vmem>>, %arg2: memref<2x16x16xf32, #tpu.memory_space<vmem>>, %arg3: memref<2x1x16xf32, #tpu.memory_space<vmem>>, %arg4: memref<2x16x16xf32, #tpu.memory_space<vmem>>, %arg5: memref<2x1x16xf32, #tpu.memory_space<vmem>>, %arg6: memref<32x16xf32, #tpu.memory_space<vmem>>) attributes {dimension_semantics = [#tpu.dimension_semantics<parallel>], iteration_bounds = array<i64: 1>, scalar_prefetch = 0 : i64, scratch_operands = 0 : i64, tpu.core_type = #tpu.core_type<tc>, window_params = [{transform_indices = @transform_0, window_bounds = array<i64: 32, 16>}, {pipeline_mode = #tpu.pipeline_mode<synchronous>, transform_indices = @transform_1, window_bounds = array<i64: 2, 16, 16>}, {pipeline_mode = #tpu.pipeline_mode<synchronous>, transform_indices = @transform_2, window_bounds = array<i64: 2, 1, 16>}, {pipeline_mode = #tpu.pipeline_mode<synchronous>, transform_indices = @transform_3, window_bounds = array<i64: 2, 16, 16>}, {pipeline_mode = #tpu.pipeline_mode<synchronous>, transform_indices = @transform_4, window_bounds = array<i64: 2, 1, 16>}, {transform_indices = @transform_5, window_bounds = array<i64: 32, 16>}]} {
    %c0 = arith.constant 0 : index
    %c0_0 = arith.constant 0 : index
    %0 = vector.load %arg1[%c0, %c0_0] : memref<32x16xf32, #tpu.memory_space<vmem>>, vector<32x16xf32>
    %1 = arith.truncf %0 : vector<32x16xf32> to vector<32x16xbf16>
    %c0_1 = arith.constant 0 : index
    %c0_2 = arith.constant 0 : index
    %c0_3 = arith.constant 0 : index
    %2 = vector.load %arg2[%c0_1, %c0_2, %c0_3] : memref<2x16x16xf32, #tpu.memory_space<vmem>>, vector<1x16x16xf32>
    %3 = vector.shape_cast %2 : vector<1x16x16xf32> to vector<16x16xf32>
    %4 = arith.truncf %3 : vector<16x16xf32> to vector<16x16xbf16>
    %cst = arith.constant dense<0.000000e+00> : vector<32x16xf32>
    %5 = tpu.matmul %1, %4, %cst {dimension_numbers = #tpu.dot_dimension_numbers<[1], [0], [0], [1], [0, 0, 1, 1], [], []>} : vector<32x16xbf16>, vector<16x16xbf16>, vector<32x16xf32> -> vector<32x16xf32>
    %c0_4 = arith.constant 0 : index
    %c0_5 = arith.constant 0 : index
    %c0_6 = arith.constant 0 : index
    %6 = vector.load %arg3[%c0_4, %c0_5, %c0_6] : memref<2x1x16xf32, #tpu.memory_space<vmem>>, vector<1x1x16xf32>
    %7 = vector.shape_cast %6 : vector<1x1x16xf32> to vector<1x16xf32>
    %8 = vector.broadcast %7 : vector<1x16xf32> to vector<32x16xf32>
    %9 = arith.addf %5, %8 : vector<32x16xf32>
    %10 = arith.negf %9 : vector<32x16xf32>
    %11 = math.exp %10 : vector<32x16xf32>
    %cst_7 = arith.constant 1.000000e+00 : f32
    %12 = vector.broadcast %cst_7 : f32 to vector<32x16xf32>
    %13 = arith.addf %12, %11 : vector<32x16xf32>
    %14 = arith.divf %12, %13 : vector<32x16xf32>
    %c0_8 = arith.constant 0 : index
    %c0_9 = arith.constant 0 : index
    %c0_10 = arith.constant 0 : index
    %15 = vector.load %arg4[%c0_8, %c0_9, %c0_10] : memref<2x16x16xf32, #tpu.memory_space<vmem>>, vector<1x16x16xf32>
    %16 = vector.shape_cast %15 : vector<1x16x16xf32> to vector<16x16xf32>
    %17 = arith.truncf %16 : vector<16x16xf32> to vector<16x16xbf16>
    %cst_11 = arith.constant dense<0.000000e+00> : vector<32x16xf32>
    %18 = tpu.matmul %1, %17, %cst_11 {dimension_numbers = #tpu.dot_dimension_numbers<[1], [0], [0], [1], [0, 0, 1, 1], [], []>} : vector<32x16xbf16>, vector<16x16xbf16>, vector<32x16xf32> -> vector<32x16xf32>
    %c0_12 = arith.constant 0 : index
    %c0_13 = arith.constant 0 : index
    %c0_14 = arith.constant 0 : index
    %19 = vector.load %arg5[%c0_12, %c0_13, %c0_14] : memref<2x1x16xf32, #tpu.memory_space<vmem>>, vector<1x1x16xf32>
    %20 = vector.shape_cast %19 : vector<1x1x16xf32> to vector<1x16xf32>
    %21 = vector.broadcast %20 : vector<1x16xf32> to vector<32x16xf32>
    %22 = arith.addf %18, %21 : vector<32x16xf32>
    %cst_15 = arith.constant 0.000000e+00 : f32
    %23 = vector.broadcast %cst_15 : f32 to vector<32x16xf32>
    %24 = arith.maximumf %22, %23 : vector<32x16xf32>
    %25 = arith.mulf %14, %24 : vector<32x16xf32>
    %cst_16 = arith.constant 1.000000e+00 : f32
    %26 = vector.broadcast %cst_16 : f32 to vector<32x16xf32>
    %27 = arith.subf %26, %14 : vector<32x16xf32>
    %28 = arith.mulf %27, %0 : vector<32x16xf32>
    %29 = arith.addf %25, %28 : vector<32x16xf32>
    %30 = arith.truncf %29 : vector<32x16xf32> to vector<32x16xbf16>
    %c1 = arith.constant 1 : index
    %c0_17 = arith.constant 0 : index
    %c0_18 = arith.constant 0 : index
    %31 = vector.load %arg2[%c1, %c0_17, %c0_18] : memref<2x16x16xf32, #tpu.memory_space<vmem>>, vector<1x16x16xf32>
    %32 = vector.shape_cast %31 : vector<1x16x16xf32> to vector<16x16xf32>
    %33 = arith.truncf %32 : vector<16x16xf32> to vector<16x16xbf16>
    %cst_19 = arith.constant dense<0.000000e+00> : vector<32x16xf32>
    %34 = tpu.matmul %30, %33, %cst_19 {dimension_numbers = #tpu.dot_dimension_numbers<[1], [0], [0], [1], [0, 0, 1, 1], [], []>} : vector<32x16xbf16>, vector<16x16xbf16>, vector<32x16xf32> -> vector<32x16xf32>
    %c1_20 = arith.constant 1 : index
    %c0_21 = arith.constant 0 : index
    %c0_22 = arith.constant 0 : index
    %35 = vector.load %arg3[%c1_20, %c0_21, %c0_22] : memref<2x1x16xf32, #tpu.memory_space<vmem>>, vector<1x1x16xf32>
    %36 = vector.shape_cast %35 : vector<1x1x16xf32> to vector<1x16xf32>
    %37 = vector.broadcast %36 : vector<1x16xf32> to vector<32x16xf32>
    %38 = arith.addf %34, %37 : vector<32x16xf32>
    %39 = arith.negf %38 : vector<32x16xf32>
    %40 = math.exp %39 : vector<32x16xf32>
    %cst_23 = arith.constant 1.000000e+00 : f32
    %41 = vector.broadcast %cst_23 : f32 to vector<32x16xf32>
    %42 = arith.addf %41, %40 : vector<32x16xf32>
    %43 = arith.divf %41, %42 : vector<32x16xf32>
    %c1_24 = arith.constant 1 : index
    %c0_25 = arith.constant 0 : index
    %c0_26 = arith.constant 0 : index
    %44 = vector.load %arg4[%c1_24, %c0_25, %c0_26] : memref<2x16x16xf32, #tpu.memory_space<vmem>>, vector<1x16x16xf32>
    %45 = vector.shape_cast %44 : vector<1x16x16xf32> to vector<16x16xf32>
    %46 = arith.truncf %45 : vector<16x16xf32> to vector<16x16xbf16>
    %cst_27 = arith.constant dense<0.000000e+00> : vector<32x16xf32>
    %47 = tpu.matmul %30, %46, %cst_27 {dimension_numbers = #tpu.dot_dimension_numbers<[1], [0], [0], [1], [0, 0, 1, 1], [], []>} : vector<32x16xbf16>, vector<16x16xbf16>, vector<32x16xf32> -> vector<32x16xf32>
    %c1_28 = arith.constant 1 : index
    %c0_29 = arith.constant 0 : index
    %c0_30 = arith.constant 0 : index
    %48 = vector.load %arg5[%c1_28, %c0_29, %c0_30] : memref<2x1x16xf32, #tpu.memory_space<vmem>>, vector<1x1x16xf32>
    %49 = vector.shape_cast %48 : vector<1x1x16xf32> to vector<1x16xf32>
    %50 = vector.broadcast %49 : vector<1x16xf32> to vector<32x16xf32>
    %51 = arith.addf %47, %50 : vector<32x16xf32>
    %cst_31 = arith.constant 0.000000e+00 : f32
    %52 = vector.broadcast %cst_31 : f32 to vector<32x16xf32>
    %53 = arith.maximumf %51, %52 : vector<32x16xf32>
    %54 = arith.mulf %43, %53 : vector<32x16xf32>
    %cst_32 = arith.constant 1.000000e+00 : f32
    %55 = vector.broadcast %cst_32 : f32 to vector<32x16xf32>
    %56 = arith.subf %55, %43 : vector<32x16xf32>
    %57 = arith.mulf %56, %29 : vector<32x16xf32>
    %58 = arith.addf %54, %57 : vector<32x16xf32>
    %c0_33 = arith.constant 0 : index
    %c0_34 = arith.constant 0 : index
    %59 = vector.load %arg6[%c0_33, %c0_34] : memref<32x16xf32, #tpu.memory_space<vmem>>, vector<32x16xf32>
    tpu.vector_store %arg6[%c0_33, %c0_34], %58 {strides = array<i32>} : memref<32x16xf32, #tpu.memory_space<vmem>>, vector<32x16xf32>,
    return
  }
  func.func @transform_0(%arg0: i32) -> (i32, i32) {
    %c0_i32 = arith.constant 0 : i32
    %c0_i32_0 = arith.constant 0 : i32
    return %arg0, %c0_i32 : i32, i32
  }
  func.func @transform_1(%arg0: i32) -> (i32, i32, i32) {
    %c0_i32 = arith.constant 0 : i32
    %c0_i32_0 = arith.constant 0 : i32
    %c0_i32_1 = arith.constant 0 : i32
    %c0_i32_2 = arith.constant 0 : i32
    return %c0_i32, %c0_i32_0, %c0_i32_1 : i32, i32, i32
  }
  func.func @transform_2(%arg0: i32) -> (i32, i32, i32) {
    %c0_i32 = arith.constant 0 : i32
    %c0_i32_0 = arith.constant 0 : i32
    %c0_i32_1 = arith.constant 0 : i32
    %c0_i32_2 = arith.constant 0 : i32
    return %c0_i32, %c0_i32_0, %c0_i32_1 : i32, i32, i32
  }
  func.func @transform_3(%arg0: i32) -> (i32, i32, i32) {
    %c0_i32 = arith.constant 0 : i32
    %c0_i32_0 = arith.constant 0 : i32
    %c0_i32_1 = arith.constant 0 : i32
    %c0_i32_2 = arith.constant 0 : i32
    return %c0_i32, %c0_i32_0, %c0_i32_1 : i32, i32, i32
  }
  func.func @transform_4(%arg0: i32) -> (i32, i32, i32) {
    %c0_i32 = arith.constant 0 : i32
    %c0_i32_0 = arith.constant 0 : i32
    %c0_i32_1 = arith.constant 0 : i32
    %c0_i32_2 = arith.constant 0 : i32
    return %c0_i32, %c0_i32_0, %c0_i32_1 : i32, i32, i32
  }
  func.func @transform_5(%arg0: i32) -> (i32, i32) {
    %c0_i32 = arith.constant 0 : i32
    %c0_i32_0 = arith.constant 0 : i32
    return %arg0, %c0_i32 : i32, i32
  }
}

module attributes {stable_mosaic.version = 11 : i64} {
  func.func @_linear_kernel(%arg0: i32, %arg1: memref<32x18xf32, #tpu.memory_space<vmem>>, %arg2: memref<18x128xf32, #tpu.memory_space<vmem>>, %arg3: memref<1x128xf32, #tpu.memory_space<vmem>>, %arg4: memref<32x128xbf16, #tpu.memory_space<vmem>>) attributes {dimension_semantics = [#tpu.dimension_semantics<parallel>], iteration_bounds = array<i64: 1>, scalar_prefetch = 0 : i64, scratch_operands = 0 : i64, tpu.core_type = #tpu.core_type<tc>, window_params = [{transform_indices = @transform_0, window_bounds = array<i64: 32, 18>}, {pipeline_mode = #tpu.pipeline_mode<synchronous>, transform_indices = @transform_1, window_bounds = array<i64: 18, 128>}, {pipeline_mode = #tpu.pipeline_mode<synchronous>, transform_indices = @transform_2, window_bounds = array<i64: 1, 128>}, {transform_indices = @transform_3, window_bounds = array<i64: 32, 128>}]} {
    %c0 = arith.constant 0 : index
    %c0_0 = arith.constant 0 : index
    %0 = vector.load %arg1[%c0, %c0_0] : memref<32x18xf32, #tpu.memory_space<vmem>>, vector<32x18xf32>
    %1 = arith.truncf %0 : vector<32x18xf32> to vector<32x18xbf16>
    %c0_1 = arith.constant 0 : index
    %c0_2 = arith.constant 0 : index
    %2 = vector.load %arg2[%c0_1, %c0_2] : memref<18x128xf32, #tpu.memory_space<vmem>>, vector<18x128xf32>
    %3 = arith.truncf %2 : vector<18x128xf32> to vector<18x128xbf16>
    %cst = arith.constant dense<0.000000e+00> : vector<32x128xf32>
    %4 = tpu.matmul %1, %3, %cst {dimension_numbers = #tpu.dot_dimension_numbers<[1], [0], [0], [1], [0, 0, 1, 1], [], []>} : vector<32x18xbf16>, vector<18x128xbf16>, vector<32x128xf32> -> vector<32x128xf32>
    %c0_3 = arith.constant 0 : index
    %c0_4 = arith.constant 0 : index
    %5 = vector.load %arg3[%c0_3, %c0_4] : memref<1x128xf32, #tpu.memory_space<vmem>>, vector<1x128xf32>
    %6 = vector.broadcast %5 : vector<1x128xf32> to vector<32x128xf32>
    %7 = arith.addf %4, %6 : vector<32x128xf32>
    %8 = arith.truncf %7 : vector<32x128xf32> to vector<32x128xbf16>
    %c0_5 = arith.constant 0 : index
    %c0_6 = arith.constant 0 : index
    %9 = vector.load %arg4[%c0_5, %c0_6] : memref<32x128xbf16, #tpu.memory_space<vmem>>, vector<32x128xbf16>
    tpu.vector_store %arg4[%c0_5, %c0_6], %8 {strides = array<i32>} : memref<32x128xbf16, #tpu.memory_space<vmem>>, vector<32x128xbf16>,
    return
  }
  func.func @transform_0(%arg0: i32) -> (i32, i32) {
    %c0_i32 = arith.constant 0 : i32
    %c0_i32_0 = arith.constant 0 : i32
    return %arg0, %c0_i32 : i32, i32
  }
  func.func @transform_1(%arg0: i32) -> (i32, i32) {
    %c0_i32 = arith.constant 0 : i32
    %c0_i32_0 = arith.constant 0 : i32
    %c0_i32_1 = arith.constant 0 : i32
    return %c0_i32, %c0_i32_0 : i32, i32
  }
  func.func @transform_2(%arg0: i32) -> (i32, i32) {
    %c0_i32 = arith.constant 0 : i32
    %c0_i32_0 = arith.constant 0 : i32
    %c0_i32_1 = arith.constant 0 : i32
    return %c0_i32, %c0_i32_0 : i32, i32
  }
  func.func @transform_3(%arg0: i32) -> (i32, i32) {
    %c0_i32 = arith.constant 0 : i32
    %c0_i32_0 = arith.constant 0 : i32
    return %arg0, %c0_i32 : i32, i32
  }
}

module attributes {stable_mosaic.version = 11 : i64} {
  func.func @_bilstm_kernel(%arg0: i32, %arg1: memref<2x16x2x64xbf16, #tpu.memory_space<vmem>>, %arg2: memref<2x16x64xf32, #tpu.memory_space<vmem>>, %arg3: memref<16x2x1xf32, #tpu.memory_space<vmem>>, %arg4: memref<2x16x2x16xf32, #tpu.memory_space<vmem>>) attributes {dimension_semantics = [#tpu.dimension_semantics<parallel>], iteration_bounds = array<i64: 1>, scalar_prefetch = 0 : i64, scratch_operands = 0 : i64, tpu.core_type = #tpu.core_type<tc>, window_params = [{transform_indices = @transform_0, window_bounds = array<i64: 2, 16, 2, 64>}, {pipeline_mode = #tpu.pipeline_mode<synchronous>, transform_indices = @transform_1, window_bounds = array<i64: 2, 16, 64>}, {transform_indices = @transform_2, window_bounds = array<i64: 16, 2, 1>}, {transform_indices = @transform_3, window_bounds = array<i64: 2, 16, 2, 16>}]} {
    %cst = arith.constant 0.000000e+00 : f32
    %0 = vector.broadcast %cst : f32 to vector<2x16xf32>
    %c0_i32 = arith.constant 0 : i32
    %c16_i32 = arith.constant 16 : i32
    %1 = arith.addi %c0_i32, %c16_i32 : i32
    %c1_i32 = arith.constant 1 : i32
    %2:4 = scf.for %arg5 = %c0_i32 to %1 step %c1_i32 iter_args(%arg6 = %0, %arg7 = %0, %arg8 = %0, %arg9 = %0) -> (vector<2x16xf32>, vector<2x16xf32>, vector<2x16xf32>, vector<2x16xf32>)  : i32 {
      %c15_i32 = arith.constant 15 : i32
      %3 = arith.subi %c15_i32, %arg5 : i32
      %4 = arith.index_cast %arg5 : i32 to index
      %c0 = arith.constant 0 : index
      %c0_1 = arith.constant 0 : index
      %5 = vector.load %arg3[%4, %c0, %c0_1] : memref<16x2x1xf32, #tpu.memory_space<vmem>>, vector<1x2x1xf32>
      %6 = vector.shape_cast %5 : vector<1x2x1xf32> to vector<2x1xf32>
      %7 = arith.index_cast %3 : i32 to index
      %c0_2 = arith.constant 0 : index
      %c0_3 = arith.constant 0 : index
      %8 = vector.load %arg3[%7, %c0_2, %c0_3] : memref<16x2x1xf32, #tpu.memory_space<vmem>>, vector<1x2x1xf32>
      %9 = vector.shape_cast %8 : vector<1x2x1xf32> to vector<2x1xf32>
      %c0_4 = arith.constant 0 : index
      %10 = arith.index_cast %arg5 : i32 to index
      %c0_5 = arith.constant 0 : index
      %c0_6 = arith.constant 0 : index
      %11 = vector.load %arg1[%c0_4, %10, %c0_5, %c0_6] : memref<2x16x2x64xbf16, #tpu.memory_space<vmem>>, vector<1x1x2x64xbf16>
      %12 = vector.shape_cast %11 : vector<1x1x2x64xbf16> to vector<2x64xbf16>
      %13 = arith.extf %12 : vector<2x64xbf16> to vector<2x64xf32>
      %14 = arith.truncf %arg6 : vector<2x16xf32> to vector<2x16xbf16>
      %c0_7 = arith.constant 0 : index
      %c0_8 = arith.constant 0 : index
      %c0_9 = arith.constant 0 : index
      %15 = vector.load %arg2[%c0_7, %c0_8, %c0_9] : memref<2x16x64xf32, #tpu.memory_space<vmem>>, vector<1x16x64xf32>
      %16 = vector.shape_cast %15 : vector<1x16x64xf32> to vector<16x64xf32>
      %17 = arith.truncf %16 : vector<16x64xf32> to vector<16x64xbf16>
      %cst_10 = arith.constant dense<0.000000e+00> : vector<2x64xf32>
      %18 = tpu.matmul %14, %17, %cst_10 {dimension_numbers = #tpu.dot_dimension_numbers<[1], [0], [0], [1], [0, 0, 1, 1], [], []>} : vector<2x16xbf16>, vector<16x64xbf16>, vector<2x64xf32> -> vector<2x64xf32>
      %19 = arith.addf %13, %18 : vector<2x64xf32>
      %c1 = arith.constant 1 : index
      %20 = arith.index_cast %3 : i32 to index
      %c0_11 = arith.constant 0 : index
      %c0_12 = arith.constant 0 : index
      %21 = vector.load %arg1[%c1, %20, %c0_11, %c0_12] : memref<2x16x2x64xbf16, #tpu.memory_space<vmem>>, vector<1x1x2x64xbf16>
      %22 = vector.shape_cast %21 : vector<1x1x2x64xbf16> to vector<2x64xbf16>
      %23 = arith.extf %22 : vector<2x64xbf16> to vector<2x64xf32>
      %24 = arith.truncf %arg8 : vector<2x16xf32> to vector<2x16xbf16>
      %c1_13 = arith.constant 1 : index
      %c0_14 = arith.constant 0 : index
      %c0_15 = arith.constant 0 : index
      %25 = vector.load %arg2[%c1_13, %c0_14, %c0_15] : memref<2x16x64xf32, #tpu.memory_space<vmem>>, vector<1x16x64xf32>
      %26 = vector.shape_cast %25 : vector<1x16x64xf32> to vector<16x64xf32>
      %27 = arith.truncf %26 : vector<16x64xf32> to vector<16x64xbf16>
      %cst_16 = arith.constant dense<0.000000e+00> : vector<2x64xf32>
      %28 = tpu.matmul %24, %27, %cst_16 {dimension_numbers = #tpu.dot_dimension_numbers<[1], [0], [0], [1], [0, 0, 1, 1], [], []>} : vector<2x16xbf16>, vector<16x64xbf16>, vector<2x64xf32> -> vector<2x64xf32>
      %29 = arith.addf %23, %28 : vector<2x64xf32>
      %30 = vector.extract_strided_slice %19 {offsets = [0, 0], sizes = [2, 16], strides = [1, 1]} : vector<2x64xf32> to vector<2x16xf32>
      %31 = arith.negf %30 : vector<2x16xf32>
      %32 = math.exp %31 : vector<2x16xf32>
      %cst_17 = arith.constant 1.000000e+00 : f32
      %33 = vector.broadcast %cst_17 : f32 to vector<2x16xf32>
      %34 = arith.addf %33, %32 : vector<2x16xf32>
      %35 = arith.divf %33, %34 : vector<2x16xf32>
      %36 = vector.extract_strided_slice %19 {offsets = [0, 16], sizes = [2, 16], strides = [1, 1]} : vector<2x64xf32> to vector<2x16xf32>
      %37 = arith.negf %36 : vector<2x16xf32>
      %38 = math.exp %37 : vector<2x16xf32>
      %cst_18 = arith.constant 1.000000e+00 : f32
      %39 = vector.broadcast %cst_18 : f32 to vector<2x16xf32>
      %40 = arith.addf %39, %38 : vector<2x16xf32>
      %41 = arith.divf %39, %40 : vector<2x16xf32>
      %42 = vector.extract_strided_slice %19 {offsets = [0, 32], sizes = [2, 16], strides = [1, 1]} : vector<2x64xf32> to vector<2x16xf32>
      %43 = math.tanh %42 : vector<2x16xf32>
      %44 = vector.extract_strided_slice %19 {offsets = [0, 48], sizes = [2, 16], strides = [1, 1]} : vector<2x64xf32> to vector<2x16xf32>
      %45 = arith.negf %44 : vector<2x16xf32>
      %46 = math.exp %45 : vector<2x16xf32>
      %cst_19 = arith.constant 1.000000e+00 : f32
      %47 = vector.broadcast %cst_19 : f32 to vector<2x16xf32>
      %48 = arith.addf %47, %46 : vector<2x16xf32>
      %49 = arith.divf %47, %48 : vector<2x16xf32>
      %50 = arith.mulf %41, %arg7 : vector<2x16xf32>
      %51 = arith.mulf %35, %43 : vector<2x16xf32>
      %52 = arith.addf %50, %51 : vector<2x16xf32>
      %53 = math.tanh %52 : vector<2x16xf32>
      %54 = arith.mulf %49, %53 : vector<2x16xf32>
      %55 = vector.extract_strided_slice %29 {offsets = [0, 0], sizes = [2, 16], strides = [1, 1]} : vector<2x64xf32> to vector<2x16xf32>
      %56 = arith.negf %55 : vector<2x16xf32>
      %57 = math.exp %56 : vector<2x16xf32>
      %cst_20 = arith.constant 1.000000e+00 : f32
      %58 = vector.broadcast %cst_20 : f32 to vector<2x16xf32>
      %59 = arith.addf %58, %57 : vector<2x16xf32>
      %60 = arith.divf %58, %59 : vector<2x16xf32>
      %61 = vector.extract_strided_slice %29 {offsets = [0, 16], sizes = [2, 16], strides = [1, 1]} : vector<2x64xf32> to vector<2x16xf32>
      %62 = arith.negf %61 : vector<2x16xf32>
      %63 = math.exp %62 : vector<2x16xf32>
      %cst_21 = arith.constant 1.000000e+00 : f32
      %64 = vector.broadcast %cst_21 : f32 to vector<2x16xf32>
      %65 = arith.addf %64, %63 : vector<2x16xf32>
      %66 = arith.divf %64, %65 : vector<2x16xf32>
      %67 = vector.extract_strided_slice %29 {offsets = [0, 32], sizes = [2, 16], strides = [1, 1]} : vector<2x64xf32> to vector<2x16xf32>
      %68 = math.tanh %67 : vector<2x16xf32>
      %69 = vector.extract_strided_slice %29 {offsets = [0, 48], sizes = [2, 16], strides = [1, 1]} : vector<2x64xf32> to vector<2x16xf32>
      %70 = arith.negf %69 : vector<2x16xf32>
      %71 = math.exp %70 : vector<2x16xf32>
      %cst_22 = arith.constant 1.000000e+00 : f32
      %72 = vector.broadcast %cst_22 : f32 to vector<2x16xf32>
      %73 = arith.addf %72, %71 : vector<2x16xf32>
      %74 = arith.divf %72, %73 : vector<2x16xf32>
      %75 = arith.mulf %66, %arg9 : vector<2x16xf32>
      %76 = arith.mulf %60, %68 : vector<2x16xf32>
      %77 = arith.addf %75, %76 : vector<2x16xf32>
      %78 = math.tanh %77 : vector<2x16xf32>
      %79 = arith.mulf %74, %78 : vector<2x16xf32>
      %cst_23 = arith.constant 0.000000e+00 : f32
      %80 = vector.broadcast %cst_23 : f32 to vector<2x1xf32>
      %81 = arith.cmpf ogt, %6, %80 : vector<2x1xf32>
      %82 = vector.shape_cast %81 : vector<2x1xi1> to vector<2x1xi1>
      %83 = vector.broadcast %82 : vector<2x1xi1> to vector<2x16xi1>
      %84 = arith.select %83, %54, %arg6 : vector<2x16xi1>, vector<2x16xf32>
      %cst_24 = arith.constant 0.000000e+00 : f32
      %85 = vector.broadcast %cst_24 : f32 to vector<2x1xf32>
      %86 = arith.cmpf ogt, %6, %85 : vector<2x1xf32>
      %87 = vector.shape_cast %86 : vector<2x1xi1> to vector<2x1xi1>
      %88 = vector.broadcast %87 : vector<2x1xi1> to vector<2x16xi1>
      %89 = arith.select %88, %52, %arg7 : vector<2x16xi1>, vector<2x16xf32>
      %cst_25 = arith.constant 0.000000e+00 : f32
      %90 = vector.broadcast %cst_25 : f32 to vector<2x1xf32>
      %91 = arith.cmpf ogt, %9, %90 : vector<2x1xf32>
      %92 = vector.shape_cast %91 : vector<2x1xi1> to vector<2x1xi1>
      %93 = vector.broadcast %92 : vector<2x1xi1> to vector<2x16xi1>
      %94 = arith.select %93, %79, %arg8 : vector<2x16xi1>, vector<2x16xf32>
      %cst_26 = arith.constant 0.000000e+00 : f32
      %95 = vector.broadcast %cst_26 : f32 to vector<2x1xf32>
      %96 = arith.cmpf ogt, %9, %95 : vector<2x1xf32>
      %97 = vector.shape_cast %96 : vector<2x1xi1> to vector<2x1xi1>
      %98 = vector.broadcast %97 : vector<2x1xi1> to vector<2x16xi1>
      %99 = arith.select %98, %77, %arg9 : vector<2x16xi1>, vector<2x16xf32>
      %100 = vector.broadcast %6 : vector<2x1xf32> to vector<2x16xf32>
      %101 = arith.mulf %84, %100 : vector<2x16xf32>
      %c0_27 = arith.constant 0 : index
      %102 = arith.index_cast %arg5 : i32 to index
      %c0_28 = arith.constant 0 : index
      %c0_29 = arith.constant 0 : index
      %103 = vector.load %arg4[%c0_27, %102, %c0_28, %c0_29] : memref<2x16x2x16xf32, #tpu.memory_space<vmem>>, vector<1x1x2x16xf32>
      %104 = vector.shape_cast %103 : vector<1x1x2x16xf32> to vector<2x16xf32>
      %105 = vector.shape_cast %101 : vector<2x16xf32> to vector<1x1x2x16xf32>
      tpu.vector_store %arg4[%c0_27, %102, %c0_28, %c0_29], %105 {strides = array<i32>} : memref<2x16x2x16xf32, #tpu.memory_space<vmem>>, vector<1x1x2x16xf32>,
      %106 = vector.broadcast %9 : vector<2x1xf32> to vector<2x16xf32>
      %107 = arith.mulf %94, %106 : vector<2x16xf32>
      %c1_30 = arith.constant 1 : index
      %108 = arith.index_cast %3 : i32 to index
      %c0_31 = arith.constant 0 : index
      %c0_32 = arith.constant 0 : index
      %109 = vector.load %arg4[%c1_30, %108, %c0_31, %c0_32] : memref<2x16x2x16xf32, #tpu.memory_space<vmem>>, vector<1x1x2x16xf32>
      %110 = vector.shape_cast %109 : vector<1x1x2x16xf32> to vector<2x16xf32>
      %111 = vector.shape_cast %107 : vector<2x16xf32> to vector<1x1x2x16xf32>
      tpu.vector_store %arg4[%c1_30, %108, %c0_31, %c0_32], %111 {strides = array<i32>} : memref<2x16x2x16xf32, #tpu.memory_space<vmem>>, vector<1x1x2x16xf32>,
      scf.yield %84, %89, %94, %99 : vector<2x16xf32>, vector<2x16xf32>, vector<2x16xf32>, vector<2x16xf32>
    }
    %c16_i32_0 = arith.constant 16 : i32
    return
  }
  func.func @transform_0(%arg0: i32) -> (i32, i32, i32, i32) {
    %c0_i32 = arith.constant 0 : i32
    %c0_i32_0 = arith.constant 0 : i32
    %c0_i32_1 = arith.constant 0 : i32
    %c0_i32_2 = arith.constant 0 : i32
    return %c0_i32, %c0_i32_0, %arg0, %c0_i32_1 : i32, i32, i32, i32
  }
  func.func @transform_1(%arg0: i32) -> (i32, i32, i32) {
    %c0_i32 = arith.constant 0 : i32
    %c0_i32_0 = arith.constant 0 : i32
    %c0_i32_1 = arith.constant 0 : i32
    %c0_i32_2 = arith.constant 0 : i32
    return %c0_i32, %c0_i32_0, %c0_i32_1 : i32, i32, i32
  }
  func.func @transform_2(%arg0: i32) -> (i32, i32, i32) {
    %c0_i32 = arith.constant 0 : i32
    %c0_i32_0 = arith.constant 0 : i32
    %c0_i32_1 = arith.constant 0 : i32
    return %c0_i32, %arg0, %c0_i32_0 : i32, i32, i32
  }
  func.func @transform_3(%arg0: i32) -> (i32, i32, i32, i32) {
    %c0_i32 = arith.constant 0 : i32
    %c0_i32_0 = arith.constant 0 : i32
    %c0_i32_1 = arith.constant 0 : i32
    %c0_i32_2 = arith.constant 0 : i32
    return %c0_i32, %c0_i32_0, %arg0, %c0_i32_1 : i32, i32, i32, i32
  }
}

module attributes {stable_mosaic.version = 11 : i64} {
  func.func @_linear_kernel(%arg0: i32, %arg1: memref<16x24xf32, #tpu.memory_space<vmem>>, %arg2: memref<24x8xf32, #tpu.memory_space<vmem>>, %arg3: memref<1x8xf32, #tpu.memory_space<vmem>>, %arg4: memref<16x8xf32, #tpu.memory_space<vmem>>) attributes {dimension_semantics = [#tpu.dimension_semantics<parallel>], iteration_bounds = array<i64: 1>, scalar_prefetch = 0 : i64, scratch_operands = 0 : i64, tpu.core_type = #tpu.core_type<tc>, window_params = [{transform_indices = @transform_0, window_bounds = array<i64: 16, 24>}, {pipeline_mode = #tpu.pipeline_mode<synchronous>, transform_indices = @transform_1, window_bounds = array<i64: 24, 8>}, {pipeline_mode = #tpu.pipeline_mode<synchronous>, transform_indices = @transform_2, window_bounds = array<i64: 1, 8>}, {transform_indices = @transform_3, window_bounds = array<i64: 16, 8>}]} {
    %c0 = arith.constant 0 : index
    %c0_0 = arith.constant 0 : index
    %0 = vector.load %arg1[%c0, %c0_0] : memref<16x24xf32, #tpu.memory_space<vmem>>, vector<16x24xf32>
    %1 = arith.truncf %0 : vector<16x24xf32> to vector<16x24xbf16>
    %c0_1 = arith.constant 0 : index
    %c0_2 = arith.constant 0 : index
    %2 = vector.load %arg2[%c0_1, %c0_2] : memref<24x8xf32, #tpu.memory_space<vmem>>, vector<24x8xf32>
    %3 = arith.truncf %2 : vector<24x8xf32> to vector<24x8xbf16>
    %cst = arith.constant dense<0.000000e+00> : vector<16x8xf32>
    %4 = tpu.matmul %1, %3, %cst {dimension_numbers = #tpu.dot_dimension_numbers<[1], [0], [0], [1], [0, 0, 1, 1], [], []>} : vector<16x24xbf16>, vector<24x8xbf16>, vector<16x8xf32> -> vector<16x8xf32>
    %c0_3 = arith.constant 0 : index
    %c0_4 = arith.constant 0 : index
    %5 = vector.load %arg3[%c0_3, %c0_4] : memref<1x8xf32, #tpu.memory_space<vmem>>, vector<1x8xf32>
    %6 = vector.broadcast %5 : vector<1x8xf32> to vector<16x8xf32>
    %7 = arith.addf %4, %6 : vector<16x8xf32>
    %c0_5 = arith.constant 0 : index
    %c0_6 = arith.constant 0 : index
    %8 = vector.load %arg4[%c0_5, %c0_6] : memref<16x8xf32, #tpu.memory_space<vmem>>, vector<16x8xf32>
    tpu.vector_store %arg4[%c0_5, %c0_6], %7 {strides = array<i32>} : memref<16x8xf32, #tpu.memory_space<vmem>>, vector<16x8xf32>,
    return
  }
  func.func @transform_0(%arg0: i32) -> (i32, i32) {
    %c0_i32 = arith.constant 0 : i32
    %c0_i32_0 = arith.constant 0 : i32
    return %arg0, %c0_i32 : i32, i32
  }
  func.func @transform_1(%arg0: i32) -> (i32, i32) {
    %c0_i32 = arith.constant 0 : i32
    %c0_i32_0 = arith.constant 0 : i32
    %c0_i32_1 = arith.constant 0 : i32
    return %c0_i32, %c0_i32_0 : i32, i32
  }
  func.func @transform_2(%arg0: i32) -> (i32, i32) {
    %c0_i32 = arith.constant 0 : i32
    %c0_i32_0 = arith.constant 0 : i32
    %c0_i32_1 = arith.constant 0 : i32
    return %c0_i32, %c0_i32_0 : i32, i32
  }
  func.func @transform_3(%arg0: i32) -> (i32, i32) {
    %c0_i32 = arith.constant 0 : i32
    %c0_i32_0 = arith.constant 0 : i32
    return %arg0, %c0_i32 : i32, i32
  }
}

module attributes {stable_mosaic.version = 11 : i64} {
  func.func @_charcnn_kernel(%arg0: i32, %arg1: memref<8x16x8xf32, #tpu.memory_space<vmem>>, %arg2: memref<3x8x8xf32, #tpu.memory_space<vmem>>, %arg3: memref<1x8xf32, #tpu.memory_space<vmem>>, %arg4: memref<16x8xf32, #tpu.memory_space<vmem>>) attributes {dimension_semantics = [#tpu.dimension_semantics<parallel>], iteration_bounds = array<i64: 1>, scalar_prefetch = 0 : i64, scratch_operands = 0 : i64, tpu.core_type = #tpu.core_type<tc>, window_params = [{transform_indices = @transform_0, window_bounds = array<i64: 8, 16, 8>}, {pipeline_mode = #tpu.pipeline_mode<synchronous>, transform_indices = @transform_1, window_bounds = array<i64: 3, 8, 8>}, {pipeline_mode = #tpu.pipeline_mode<synchronous>, transform_indices = @transform_2, window_bounds = array<i64: 1, 8>}, {transform_indices = @transform_3, window_bounds = array<i64: 16, 8>}]} {
    %c0 = arith.constant 0 : index
    %c0_0 = arith.constant 0 : index
    %0 = vector.load %arg3[%c0, %c0_0] : memref<1x8xf32, #tpu.memory_space<vmem>>, vector<1x8xf32>
    %c0_1 = arith.constant 0 : index
    %c0_2 = arith.constant 0 : index
    %c0_3 = arith.constant 0 : index
    %1 = vector.load %arg1[%c0_1, %c0_2, %c0_3] : memref<8x16x8xf32, #tpu.memory_space<vmem>>, vector<1x16x8xf32>
    %2 = vector.shape_cast %1 : vector<1x16x8xf32> to vector<16x8xf32>
    %3 = arith.truncf %2 : vector<16x8xf32> to vector<16x8xbf16>
    %c0_4 = arith.constant 0 : index
    %c0_5 = arith.constant 0 : index
    %c0_6 = arith.constant 0 : index
    %4 = vector.load %arg2[%c0_4, %c0_5, %c0_6] : memref<3x8x8xf32, #tpu.memory_space<vmem>>, vector<1x8x8xf32>
    %5 = vector.shape_cast %4 : vector<1x8x8xf32> to vector<8x8xf32>
    %6 = arith.truncf %5 : vector<8x8xf32> to vector<8x8xbf16>
    %cst = arith.constant dense<0.000000e+00> : vector<16x8xf32>
    %7 = tpu.matmul %3, %6, %cst {dimension_numbers = #tpu.dot_dimension_numbers<[1], [0], [0], [1], [0, 0, 1, 1], [], []>} : vector<16x8xbf16>, vector<8x8xbf16>, vector<16x8xf32> -> vector<16x8xf32>
    %8 = vector.broadcast %0 : vector<1x8xf32> to vector<16x8xf32>
    %9 = arith.addf %8, %7 : vector<16x8xf32>
    %c1 = arith.constant 1 : index
    %c0_7 = arith.constant 0 : index
    %c0_8 = arith.constant 0 : index
    %10 = vector.load %arg1[%c1, %c0_7, %c0_8] : memref<8x16x8xf32, #tpu.memory_space<vmem>>, vector<1x16x8xf32>
    %11 = vector.shape_cast %10 : vector<1x16x8xf32> to vector<16x8xf32>
    %12 = arith.truncf %11 : vector<16x8xf32> to vector<16x8xbf16>
    %c1_9 = arith.constant 1 : index
    %c0_10 = arith.constant 0 : index
    %c0_11 = arith.constant 0 : index
    %13 = vector.load %arg2[%c1_9, %c0_10, %c0_11] : memref<3x8x8xf32, #tpu.memory_space<vmem>>, vector<1x8x8xf32>
    %14 = vector.shape_cast %13 : vector<1x8x8xf32> to vector<8x8xf32>
    %15 = arith.truncf %14 : vector<8x8xf32> to vector<8x8xbf16>
    %cst_12 = arith.constant dense<0.000000e+00> : vector<16x8xf32>
    %16 = tpu.matmul %12, %15, %cst_12 {dimension_numbers = #tpu.dot_dimension_numbers<[1], [0], [0], [1], [0, 0, 1, 1], [], []>} : vector<16x8xbf16>, vector<8x8xbf16>, vector<16x8xf32> -> vector<16x8xf32>
    %17 = arith.addf %9, %16 : vector<16x8xf32>
    %c2 = arith.constant 2 : index
    %c0_13 = arith.constant 0 : index
    %c0_14 = arith.constant 0 : index
    %18 = vector.load %arg1[%c2, %c0_13, %c0_14] : memref<8x16x8xf32, #tpu.memory_space<vmem>>, vector<1x16x8xf32>
    %19 = vector.shape_cast %18 : vector<1x16x8xf32> to vector<16x8xf32>
    %20 = arith.truncf %19 : vector<16x8xf32> to vector<16x8xbf16>
    %c2_15 = arith.constant 2 : index
    %c0_16 = arith.constant 0 : index
    %c0_17 = arith.constant 0 : index
    %21 = vector.load %arg2[%c2_15, %c0_16, %c0_17] : memref<3x8x8xf32, #tpu.memory_space<vmem>>, vector<1x8x8xf32>
    %22 = vector.shape_cast %21 : vector<1x8x8xf32> to vector<8x8xf32>
    %23 = arith.truncf %22 : vector<8x8xf32> to vector<8x8xbf16>
    %cst_18 = arith.constant dense<0.000000e+00> : vector<16x8xf32>
    %24 = tpu.matmul %20, %23, %cst_18 {dimension_numbers = #tpu.dot_dimension_numbers<[1], [0], [0], [1], [0, 0, 1, 1], [], []>} : vector<16x8xbf16>, vector<8x8xbf16>, vector<16x8xf32> -> vector<16x8xf32>
    %25 = arith.addf %17, %24 : vector<16x8xf32>
    %cst_19 = arith.constant 0.000000e+00 : f32
    %26 = vector.broadcast %cst_19 : f32 to vector<16x8xf32>
    %27 = arith.maximumf %25, %26 : vector<16x8xf32>
    %c0_20 = arith.constant 0 : index
    %c0_21 = arith.constant 0 : index
    %28 = vector.load %arg3[%c0_20, %c0_21] : memref<1x8xf32, #tpu.memory_space<vmem>>, vector<1x8xf32>
    %c1_22 = arith.constant 1 : index
    %c0_23 = arith.constant 0 : index
    %c0_24 = arith.constant 0 : index
    %29 = vector.load %arg1[%c1_22, %c0_23, %c0_24] : memref<8x16x8xf32, #tpu.memory_space<vmem>>, vector<1x16x8xf32>
    %30 = vector.shape_cast %29 : vector<1x16x8xf32> to vector<16x8xf32>
    %31 = arith.truncf %30 : vector<16x8xf32> to vector<16x8xbf16>
    %c0_25 = arith.constant 0 : index
    %c0_26 = arith.constant 0 : index
    %c0_27 = arith.constant 0 : index
    %32 = vector.load %arg2[%c0_25, %c0_26, %c0_27] : memref<3x8x8xf32, #tpu.memory_space<vmem>>, vector<1x8x8xf32>
    %33 = vector.shape_cast %32 : vector<1x8x8xf32> to vector<8x8xf32>
    %34 = arith.truncf %33 : vector<8x8xf32> to vector<8x8xbf16>
    %cst_28 = arith.constant dense<0.000000e+00> : vector<16x8xf32>
    %35 = tpu.matmul %31, %34, %cst_28 {dimension_numbers = #tpu.dot_dimension_numbers<[1], [0], [0], [1], [0, 0, 1, 1], [], []>} : vector<16x8xbf16>, vector<8x8xbf16>, vector<16x8xf32> -> vector<16x8xf32>
    %36 = vector.broadcast %28 : vector<1x8xf32> to vector<16x8xf32>
    %37 = arith.addf %36, %35 : vector<16x8xf32>
    %c2_29 = arith.constant 2 : index
    %c0_30 = arith.constant 0 : index
    %c0_31 = arith.constant 0 : index
    %38 = vector.load %arg1[%c2_29, %c0_30, %c0_31] : memref<8x16x8xf32, #tpu.memory_space<vmem>>, vector<1x16x8xf32>
    %39 = vector.shape_cast %38 : vector<1x16x8xf32> to vector<16x8xf32>
    %40 = arith.truncf %39 : vector<16x8xf32> to vector<16x8xbf16>
    %c1_32 = arith.constant 1 : index
    %c0_33 = arith.constant 0 : index
    %c0_34 = arith.constant 0 : index
    %41 = vector.load %arg2[%c1_32, %c0_33, %c0_34] : memref<3x8x8xf32, #tpu.memory_space<vmem>>, vector<1x8x8xf32>
    %42 = vector.shape_cast %41 : vector<1x8x8xf32> to vector<8x8xf32>
    %43 = arith.truncf %42 : vector<8x8xf32> to vector<8x8xbf16>
    %cst_35 = arith.constant dense<0.000000e+00> : vector<16x8xf32>
    %44 = tpu.matmul %40, %43, %cst_35 {dimension_numbers = #tpu.dot_dimension_numbers<[1], [0], [0], [1], [0, 0, 1, 1], [], []>} : vector<16x8xbf16>, vector<8x8xbf16>, vector<16x8xf32> -> vector<16x8xf32>
    %45 = arith.addf %37, %44 : vector<16x8xf32>
    %c3 = arith.constant 3 : index
    %c0_36 = arith.constant 0 : index
    %c0_37 = arith.constant 0 : index
    %46 = vector.load %arg1[%c3, %c0_36, %c0_37] : memref<8x16x8xf32, #tpu.memory_space<vmem>>, vector<1x16x8xf32>
    %47 = vector.shape_cast %46 : vector<1x16x8xf32> to vector<16x8xf32>
    %48 = arith.truncf %47 : vector<16x8xf32> to vector<16x8xbf16>
    %c2_38 = arith.constant 2 : index
    %c0_39 = arith.constant 0 : index
    %c0_40 = arith.constant 0 : index
    %49 = vector.load %arg2[%c2_38, %c0_39, %c0_40] : memref<3x8x8xf32, #tpu.memory_space<vmem>>, vector<1x8x8xf32>
    %50 = vector.shape_cast %49 : vector<1x8x8xf32> to vector<8x8xf32>
    %51 = arith.truncf %50 : vector<8x8xf32> to vector<8x8xbf16>
    %cst_41 = arith.constant dense<0.000000e+00> : vector<16x8xf32>
    %52 = tpu.matmul %48, %51, %cst_41 {dimension_numbers = #tpu.dot_dimension_numbers<[1], [0], [0], [1], [0, 0, 1, 1], [], []>} : vector<16x8xbf16>, vector<8x8xbf16>, vector<16x8xf32> -> vector<16x8xf32>
    %53 = arith.addf %45, %52 : vector<16x8xf32>
    %cst_42 = arith.constant 0.000000e+00 : f32
    %54 = vector.broadcast %cst_42 : f32 to vector<16x8xf32>
    %55 = arith.maximumf %53, %54 : vector<16x8xf32>
    %56 = arith.maximumf %27, %55 : vector<16x8xf32>
    %c0_43 = arith.constant 0 : index
    %c0_44 = arith.constant 0 : index
    %57 = vector.load %arg3[%c0_43, %c0_44] : memref<1x8xf32, #tpu.memory_space<vmem>>, vector<1x8xf32>
    %c2_45 = arith.constant 2 : index
    %c0_46 = arith.constant 0 : index
    %c0_47 = arith.constant 0 : index
    %58 = vector.load %arg1[%c2_45, %c0_46, %c0_47] : memref<8x16x8xf32, #tpu.memory_space<vmem>>, vector<1x16x8xf32>
    %59 = vector.shape_cast %58 : vector<1x16x8xf32> to vector<16x8xf32>
    %60 = arith.truncf %59 : vector<16x8xf32> to vector<16x8xbf16>
    %c0_48 = arith.constant 0 : index
    %c0_49 = arith.constant 0 : index
    %c0_50 = arith.constant 0 : index
    %61 = vector.load %arg2[%c0_48, %c0_49, %c0_50] : memref<3x8x8xf32, #tpu.memory_space<vmem>>, vector<1x8x8xf32>
    %62 = vector.shape_cast %61 : vector<1x8x8xf32> to vector<8x8xf32>
    %63 = arith.truncf %62 : vector<8x8xf32> to vector<8x8xbf16>
    %cst_51 = arith.constant dense<0.000000e+00> : vector<16x8xf32>
    %64 = tpu.matmul %60, %63, %cst_51 {dimension_numbers = #tpu.dot_dimension_numbers<[1], [0], [0], [1], [0, 0, 1, 1], [], []>} : vector<16x8xbf16>, vector<8x8xbf16>, vector<16x8xf32> -> vector<16x8xf32>
    %65 = vector.broadcast %57 : vector<1x8xf32> to vector<16x8xf32>
    %66 = arith.addf %65, %64 : vector<16x8xf32>
    %c3_52 = arith.constant 3 : index
    %c0_53 = arith.constant 0 : index
    %c0_54 = arith.constant 0 : index
    %67 = vector.load %arg1[%c3_52, %c0_53, %c0_54] : memref<8x16x8xf32, #tpu.memory_space<vmem>>, vector<1x16x8xf32>
    %68 = vector.shape_cast %67 : vector<1x16x8xf32> to vector<16x8xf32>
    %69 = arith.truncf %68 : vector<16x8xf32> to vector<16x8xbf16>
    %c1_55 = arith.constant 1 : index
    %c0_56 = arith.constant 0 : index
    %c0_57 = arith.constant 0 : index
    %70 = vector.load %arg2[%c1_55, %c0_56, %c0_57] : memref<3x8x8xf32, #tpu.memory_space<vmem>>, vector<1x8x8xf32>
    %71 = vector.shape_cast %70 : vector<1x8x8xf32> to vector<8x8xf32>
    %72 = arith.truncf %71 : vector<8x8xf32> to vector<8x8xbf16>
    %cst_58 = arith.constant dense<0.000000e+00> : vector<16x8xf32>
    %73 = tpu.matmul %69, %72, %cst_58 {dimension_numbers = #tpu.dot_dimension_numbers<[1], [0], [0], [1], [0, 0, 1, 1], [], []>} : vector<16x8xbf16>, vector<8x8xbf16>, vector<16x8xf32> -> vector<16x8xf32>
    %74 = arith.addf %66, %73 : vector<16x8xf32>
    %c4 = arith.constant 4 : index
    %c0_59 = arith.constant 0 : index
    %c0_60 = arith.constant 0 : index
    %75 = vector.load %arg1[%c4, %c0_59, %c0_60] : memref<8x16x8xf32, #tpu.memory_space<vmem>>, vector<1x16x8xf32>
    %76 = vector.shape_cast %75 : vector<1x16x8xf32> to vector<16x8xf32>
    %77 = arith.truncf %76 : vector<16x8xf32> to vector<16x8xbf16>
    %c2_61 = arith.constant 2 : index
    %c0_62 = arith.constant 0 : index
    %c0_63 = arith.constant 0 : index
    %78 = vector.load %arg2[%c2_61, %c0_62, %c0_63] : memref<3x8x8xf32, #tpu.memory_space<vmem>>, vector<1x8x8xf32>
    %79 = vector.shape_cast %78 : vector<1x8x8xf32> to vector<8x8xf32>
    %80 = arith.truncf %79 : vector<8x8xf32> to vector<8x8xbf16>
    %cst_64 = arith.constant dense<0.000000e+00> : vector<16x8xf32>
    %81 = tpu.matmul %77, %80, %cst_64 {dimension_numbers = #tpu.dot_dimension_numbers<[1], [0], [0], [1], [0, 0, 1, 1], [], []>} : vector<16x8xbf16>, vector<8x8xbf16>, vector<16x8xf32> -> vector<16x8xf32>
    %82 = arith.addf %74, %81 : vector<16x8xf32>
    %cst_65 = arith.constant 0.000000e+00 : f32
    %83 = vector.broadcast %cst_65 : f32 to vector<16x8xf32>
    %84 = arith.maximumf %82, %83 : vector<16x8xf32>
    %85 = arith.maximumf %56, %84 : vector<16x8xf32>
    %c0_66 = arith.constant 0 : index
    %c0_67 = arith.constant 0 : index
    %86 = vector.load %arg3[%c0_66, %c0_67] : memref<1x8xf32, #tpu.memory_space<vmem>>, vector<1x8xf32>
    %c3_68 = arith.constant 3 : index
    %c0_69 = arith.constant 0 : index
    %c0_70 = arith.constant 0 : index
    %87 = vector.load %arg1[%c3_68, %c0_69, %c0_70] : memref<8x16x8xf32, #tpu.memory_space<vmem>>, vector<1x16x8xf32>
    %88 = vector.shape_cast %87 : vector<1x16x8xf32> to vector<16x8xf32>
    %89 = arith.truncf %88 : vector<16x8xf32> to vector<16x8xbf16>
    %c0_71 = arith.constant 0 : index
    %c0_72 = arith.constant 0 : index
    %c0_73 = arith.constant 0 : index
    %90 = vector.load %arg2[%c0_71, %c0_72, %c0_73] : memref<3x8x8xf32, #tpu.memory_space<vmem>>, vector<1x8x8xf32>
    %91 = vector.shape_cast %90 : vector<1x8x8xf32> to vector<8x8xf32>
    %92 = arith.truncf %91 : vector<8x8xf32> to vector<8x8xbf16>
    %cst_74 = arith.constant dense<0.000000e+00> : vector<16x8xf32>
    %93 = tpu.matmul %89, %92, %cst_74 {dimension_numbers = #tpu.dot_dimension_numbers<[1], [0], [0], [1], [0, 0, 1, 1], [], []>} : vector<16x8xbf16>, vector<8x8xbf16>, vector<16x8xf32> -> vector<16x8xf32>
    %94 = vector.broadcast %86 : vector<1x8xf32> to vector<16x8xf32>
    %95 = arith.addf %94, %93 : vector<16x8xf32>
    %c4_75 = arith.constant 4 : index
    %c0_76 = arith.constant 0 : index
    %c0_77 = arith.constant 0 : index
    %96 = vector.load %arg1[%c4_75, %c0_76, %c0_77] : memref<8x16x8xf32, #tpu.memory_space<vmem>>, vector<1x16x8xf32>
    %97 = vector.shape_cast %96 : vector<1x16x8xf32> to vector<16x8xf32>
    %98 = arith.truncf %97 : vector<16x8xf32> to vector<16x8xbf16>
    %c1_78 = arith.constant 1 : index
    %c0_79 = arith.constant 0 : index
    %c0_80 = arith.constant 0 : index
    %99 = vector.load %arg2[%c1_78, %c0_79, %c0_80] : memref<3x8x8xf32, #tpu.memory_space<vmem>>, vector<1x8x8xf32>
    %100 = vector.shape_cast %99 : vector<1x8x8xf32> to vector<8x8xf32>
    %101 = arith.truncf %100 : vector<8x8xf32> to vector<8x8xbf16>
    %cst_81 = arith.constant dense<0.000000e+00> : vector<16x8xf32>
    %102 = tpu.matmul %98, %101, %cst_81 {dimension_numbers = #tpu.dot_dimension_numbers<[1], [0], [0], [1], [0, 0, 1, 1], [], []>} : vector<16x8xbf16>, vector<8x8xbf16>, vector<16x8xf32> -> vector<16x8xf32>
    %103 = arith.addf %95, %102 : vector<16x8xf32>
    %c5 = arith.constant 5 : index
    %c0_82 = arith.constant 0 : index
    %c0_83 = arith.constant 0 : index
    %104 = vector.load %arg1[%c5, %c0_82, %c0_83] : memref<8x16x8xf32, #tpu.memory_space<vmem>>, vector<1x16x8xf32>
    %105 = vector.shape_cast %104 : vector<1x16x8xf32> to vector<16x8xf32>
    %106 = arith.truncf %105 : vector<16x8xf32> to vector<16x8xbf16>
    %c2_84 = arith.constant 2 : index
    %c0_85 = arith.constant 0 : index
    %c0_86 = arith.constant 0 : index
    %107 = vector.load %arg2[%c2_84, %c0_85, %c0_86] : memref<3x8x8xf32, #tpu.memory_space<vmem>>, vector<1x8x8xf32>
    %108 = vector.shape_cast %107 : vector<1x8x8xf32> to vector<8x8xf32>
    %109 = arith.truncf %108 : vector<8x8xf32> to vector<8x8xbf16>
    %cst_87 = arith.constant dense<0.000000e+00> : vector<16x8xf32>
    %110 = tpu.matmul %106, %109, %cst_87 {dimension_numbers = #tpu.dot_dimension_numbers<[1], [0], [0], [1], [0, 0, 1, 1], [], []>} : vector<16x8xbf16>, vector<8x8xbf16>, vector<16x8xf32> -> vector<16x8xf32>
    %111 = arith.addf %103, %110 : vector<16x8xf32>
    %cst_88 = arith.constant 0.000000e+00 : f32
    %112 = vector.broadcast %cst_88 : f32 to vector<16x8xf32>
    %113 = arith.maximumf %111, %112 : vector<16x8xf32>
    %114 = arith.maximumf %85, %113 : vector<16x8xf32>
    %c0_89 = arith.constant 0 : index
    %c0_90 = arith.constant 0 : index
    %115 = vector.load %arg3[%c0_89, %c0_90] : memref<1x8xf32, #tpu.memory_space<vmem>>, vector<1x8xf32>
    %c4_91 = arith.constant 4 : index
    %c0_92 = arith.constant 0 : index
    %c0_93 = arith.constant 0 : index
    %116 = vector.load %arg1[%c4_91, %c0_92, %c0_93] : memref<8x16x8xf32, #tpu.memory_space<vmem>>, vector<1x16x8xf32>
    %117 = vector.shape_cast %116 : vector<1x16x8xf32> to vector<16x8xf32>
    %118 = arith.truncf %117 : vector<16x8xf32> to vector<16x8xbf16>
    %c0_94 = arith.constant 0 : index
    %c0_95 = arith.constant 0 : index
    %c0_96 = arith.constant 0 : index
    %119 = vector.load %arg2[%c0_94, %c0_95, %c0_96] : memref<3x8x8xf32, #tpu.memory_space<vmem>>, vector<1x8x8xf32>
    %120 = vector.shape_cast %119 : vector<1x8x8xf32> to vector<8x8xf32>
    %121 = arith.truncf %120 : vector<8x8xf32> to vector<8x8xbf16>
    %cst_97 = arith.constant dense<0.000000e+00> : vector<16x8xf32>
    %122 = tpu.matmul %118, %121, %cst_97 {dimension_numbers = #tpu.dot_dimension_numbers<[1], [0], [0], [1], [0, 0, 1, 1], [], []>} : vector<16x8xbf16>, vector<8x8xbf16>, vector<16x8xf32> -> vector<16x8xf32>
    %123 = vector.broadcast %115 : vector<1x8xf32> to vector<16x8xf32>
    %124 = arith.addf %123, %122 : vector<16x8xf32>
    %c5_98 = arith.constant 5 : index
    %c0_99 = arith.constant 0 : index
    %c0_100 = arith.constant 0 : index
    %125 = vector.load %arg1[%c5_98, %c0_99, %c0_100] : memref<8x16x8xf32, #tpu.memory_space<vmem>>, vector<1x16x8xf32>
    %126 = vector.shape_cast %125 : vector<1x16x8xf32> to vector<16x8xf32>
    %127 = arith.truncf %126 : vector<16x8xf32> to vector<16x8xbf16>
    %c1_101 = arith.constant 1 : index
    %c0_102 = arith.constant 0 : index
    %c0_103 = arith.constant 0 : index
    %128 = vector.load %arg2[%c1_101, %c0_102, %c0_103] : memref<3x8x8xf32, #tpu.memory_space<vmem>>, vector<1x8x8xf32>
    %129 = vector.shape_cast %128 : vector<1x8x8xf32> to vector<8x8xf32>
    %130 = arith.truncf %129 : vector<8x8xf32> to vector<8x8xbf16>
    %cst_104 = arith.constant dense<0.000000e+00> : vector<16x8xf32>
    %131 = tpu.matmul %127, %130, %cst_104 {dimension_numbers = #tpu.dot_dimension_numbers<[1], [0], [0], [1], [0, 0, 1, 1], [], []>} : vector<16x8xbf16>, vector<8x8xbf16>, vector<16x8xf32> -> vector<16x8xf32>
    %132 = arith.addf %124, %131 : vector<16x8xf32>
    %c6 = arith.constant 6 : index
    %c0_105 = arith.constant 0 : index
    %c0_106 = arith.constant 0 : index
    %133 = vector.load %arg1[%c6, %c0_105, %c0_106] : memref<8x16x8xf32, #tpu.memory_space<vmem>>, vector<1x16x8xf32>
    %134 = vector.shape_cast %133 : vector<1x16x8xf32> to vector<16x8xf32>
    %135 = arith.truncf %134 : vector<16x8xf32> to vector<16x8xbf16>
    %c2_107 = arith.constant 2 : index
    %c0_108 = arith.constant 0 : index
    %c0_109 = arith.constant 0 : index
    %136 = vector.load %arg2[%c2_107, %c0_108, %c0_109] : memref<3x8x8xf32, #tpu.memory_space<vmem>>, vector<1x8x8xf32>
    %137 = vector.shape_cast %136 : vector<1x8x8xf32> to vector<8x8xf32>
    %138 = arith.truncf %137 : vector<8x8xf32> to vector<8x8xbf16>
    %cst_110 = arith.constant dense<0.000000e+00> : vector<16x8xf32>
    %139 = tpu.matmul %135, %138, %cst_110 {dimension_numbers = #tpu.dot_dimension_numbers<[1], [0], [0], [1], [0, 0, 1, 1], [], []>} : vector<16x8xbf16>, vector<8x8xbf16>, vector<16x8xf32> -> vector<16x8xf32>
    %140 = arith.addf %132, %139 : vector<16x8xf32>
    %cst_111 = arith.constant 0.000000e+00 : f32
    %141 = vector.broadcast %cst_111 : f32 to vector<16x8xf32>
    %142 = arith.maximumf %140, %141 : vector<16x8xf32>
    %143 = arith.maximumf %114, %142 : vector<16x8xf32>
    %c0_112 = arith.constant 0 : index
    %c0_113 = arith.constant 0 : index
    %144 = vector.load %arg3[%c0_112, %c0_113] : memref<1x8xf32, #tpu.memory_space<vmem>>, vector<1x8xf32>
    %c5_114 = arith.constant 5 : index
    %c0_115 = arith.constant 0 : index
    %c0_116 = arith.constant 0 : index
    %145 = vector.load %arg1[%c5_114, %c0_115, %c0_116] : memref<8x16x8xf32, #tpu.memory_space<vmem>>, vector<1x16x8xf32>
    %146 = vector.shape_cast %145 : vector<1x16x8xf32> to vector<16x8xf32>
    %147 = arith.truncf %146 : vector<16x8xf32> to vector<16x8xbf16>
    %c0_117 = arith.constant 0 : index
    %c0_118 = arith.constant 0 : index
    %c0_119 = arith.constant 0 : index
    %148 = vector.load %arg2[%c0_117, %c0_118, %c0_119] : memref<3x8x8xf32, #tpu.memory_space<vmem>>, vector<1x8x8xf32>
    %149 = vector.shape_cast %148 : vector<1x8x8xf32> to vector<8x8xf32>
    %150 = arith.truncf %149 : vector<8x8xf32> to vector<8x8xbf16>
    %cst_120 = arith.constant dense<0.000000e+00> : vector<16x8xf32>
    %151 = tpu.matmul %147, %150, %cst_120 {dimension_numbers = #tpu.dot_dimension_numbers<[1], [0], [0], [1], [0, 0, 1, 1], [], []>} : vector<16x8xbf16>, vector<8x8xbf16>, vector<16x8xf32> -> vector<16x8xf32>
    %152 = vector.broadcast %144 : vector<1x8xf32> to vector<16x8xf32>
    %153 = arith.addf %152, %151 : vector<16x8xf32>
    %c6_121 = arith.constant 6 : index
    %c0_122 = arith.constant 0 : index
    %c0_123 = arith.constant 0 : index
    %154 = vector.load %arg1[%c6_121, %c0_122, %c0_123] : memref<8x16x8xf32, #tpu.memory_space<vmem>>, vector<1x16x8xf32>
    %155 = vector.shape_cast %154 : vector<1x16x8xf32> to vector<16x8xf32>
    %156 = arith.truncf %155 : vector<16x8xf32> to vector<16x8xbf16>
    %c1_124 = arith.constant 1 : index
    %c0_125 = arith.constant 0 : index
    %c0_126 = arith.constant 0 : index
    %157 = vector.load %arg2[%c1_124, %c0_125, %c0_126] : memref<3x8x8xf32, #tpu.memory_space<vmem>>, vector<1x8x8xf32>
    %158 = vector.shape_cast %157 : vector<1x8x8xf32> to vector<8x8xf32>
    %159 = arith.truncf %158 : vector<8x8xf32> to vector<8x8xbf16>
    %cst_127 = arith.constant dense<0.000000e+00> : vector<16x8xf32>
    %160 = tpu.matmul %156, %159, %cst_127 {dimension_numbers = #tpu.dot_dimension_numbers<[1], [0], [0], [1], [0, 0, 1, 1], [], []>} : vector<16x8xbf16>, vector<8x8xbf16>, vector<16x8xf32> -> vector<16x8xf32>
    %161 = arith.addf %153, %160 : vector<16x8xf32>
    %c7 = arith.constant 7 : index
    %c0_128 = arith.constant 0 : index
    %c0_129 = arith.constant 0 : index
    %162 = vector.load %arg1[%c7, %c0_128, %c0_129] : memref<8x16x8xf32, #tpu.memory_space<vmem>>, vector<1x16x8xf32>
    %163 = vector.shape_cast %162 : vector<1x16x8xf32> to vector<16x8xf32>
    %164 = arith.truncf %163 : vector<16x8xf32> to vector<16x8xbf16>
    %c2_130 = arith.constant 2 : index
    %c0_131 = arith.constant 0 : index
    %c0_132 = arith.constant 0 : index
    %165 = vector.load %arg2[%c2_130, %c0_131, %c0_132] : memref<3x8x8xf32, #tpu.memory_space<vmem>>, vector<1x8x8xf32>
    %166 = vector.shape_cast %165 : vector<1x8x8xf32> to vector<8x8xf32>
    %167 = arith.truncf %166 : vector<8x8xf32> to vector<8x8xbf16>
    %cst_133 = arith.constant dense<0.000000e+00> : vector<16x8xf32>
    %168 = tpu.matmul %164, %167, %cst_133 {dimension_numbers = #tpu.dot_dimension_numbers<[1], [0], [0], [1], [0, 0, 1, 1], [], []>} : vector<16x8xbf16>, vector<8x8xbf16>, vector<16x8xf32> -> vector<16x8xf32>
    %169 = arith.addf %161, %168 : vector<16x8xf32>
    %cst_134 = arith.constant 0.000000e+00 : f32
    %170 = vector.broadcast %cst_134 : f32 to vector<16x8xf32>
    %171 = arith.maximumf %169, %170 : vector<16x8xf32>
    %172 = arith.maximumf %143, %171 : vector<16x8xf32>
    %c0_135 = arith.constant 0 : index
    %c0_136 = arith.constant 0 : index
    %173 = vector.load %arg4[%c0_135, %c0_136] : memref<16x8xf32, #tpu.memory_space<vmem>>, vector<16x8xf32>
    tpu.vector_store %arg4[%c0_135, %c0_136], %172 {strides = array<i32>} : memref<16x8xf32, #tpu.memory_space<vmem>>, vector<16x8xf32>,
    return
  }
  func.func @transform_0(%arg0: i32) -> (i32, i32, i32) {
    %c0_i32 = arith.constant 0 : i32
    %c0_i32_0 = arith.constant 0 : i32
    %c0_i32_1 = arith.constant 0 : i32
    return %c0_i32, %arg0, %c0_i32_0 : i32, i32, i32
  }
  func.func @transform_1(%arg0: i32) -> (i32, i32, i32) {
    %c0_i32 = arith.constant 0 : i32
    %c0_i32_0 = arith.constant 0 : i32
    %c0_i32_1 = arith.constant 0 : i32
    %c0_i32_2 = arith.constant 0 : i32
    return %c0_i32, %c0_i32_0, %c0_i32_1 : i32, i32, i32
  }
  func.func @transform_2(%arg0: i32) -> (i32, i32) {
    %c0_i32 = arith.constant 0 : i32
    %c0_i32_0 = arith.constant 0 : i32
    %c0_i32_1 = arith.constant 0 : i32
    return %c0_i32, %c0_i32_0 : i32, i32
  }
  func.func @transform_3(%arg0: i32) -> (i32, i32) {
    %c0_i32 = arith.constant 0 : i32
    %c0_i32_0 = arith.constant 0 : i32
    return %arg0, %c0_i32 : i32, i32
  }
}

module attributes {stable_mosaic.version = 11 : i64} {
  func.func @_highway_kernel(%arg0: i32, %arg1: memref<16x16xf32, #tpu.memory_space<vmem>>, %arg2: memref<2x16x16xf32, #tpu.memory_space<vmem>>, %arg3: memref<2x1x16xf32, #tpu.memory_space<vmem>>, %arg4: memref<2x16x16xf32, #tpu.memory_space<vmem>>, %arg5: memref<2x1x16xf32, #tpu.memory_space<vmem>>, %arg6: memref<16x16xf32, #tpu.memory_space<vmem>>) attributes {dimension_semantics = [#tpu.dimension_semantics<parallel>], iteration_bounds = array<i64: 1>, scalar_prefetch = 0 : i64, scratch_operands = 0 : i64, tpu.core_type = #tpu.core_type<tc>, window_params = [{transform_indices = @transform_0, window_bounds = array<i64: 16, 16>}, {pipeline_mode = #tpu.pipeline_mode<synchronous>, transform_indices = @transform_1, window_bounds = array<i64: 2, 16, 16>}, {pipeline_mode = #tpu.pipeline_mode<synchronous>, transform_indices = @transform_2, window_bounds = array<i64: 2, 1, 16>}, {pipeline_mode = #tpu.pipeline_mode<synchronous>, transform_indices = @transform_3, window_bounds = array<i64: 2, 16, 16>}, {pipeline_mode = #tpu.pipeline_mode<synchronous>, transform_indices = @transform_4, window_bounds = array<i64: 2, 1, 16>}, {transform_indices = @transform_5, window_bounds = array<i64: 16, 16>}]} {
    %c0 = arith.constant 0 : index
    %c0_0 = arith.constant 0 : index
    %0 = vector.load %arg1[%c0, %c0_0] : memref<16x16xf32, #tpu.memory_space<vmem>>, vector<16x16xf32>
    %1 = arith.truncf %0 : vector<16x16xf32> to vector<16x16xbf16>
    %c0_1 = arith.constant 0 : index
    %c0_2 = arith.constant 0 : index
    %c0_3 = arith.constant 0 : index
    %2 = vector.load %arg2[%c0_1, %c0_2, %c0_3] : memref<2x16x16xf32, #tpu.memory_space<vmem>>, vector<1x16x16xf32>
    %3 = vector.shape_cast %2 : vector<1x16x16xf32> to vector<16x16xf32>
    %4 = arith.truncf %3 : vector<16x16xf32> to vector<16x16xbf16>
    %cst = arith.constant dense<0.000000e+00> : vector<16x16xf32>
    %5 = tpu.matmul %1, %4, %cst {dimension_numbers = #tpu.dot_dimension_numbers<[1], [0], [0], [1], [0, 0, 1, 1], [], []>} : vector<16x16xbf16>, vector<16x16xbf16>, vector<16x16xf32> -> vector<16x16xf32>
    %c0_4 = arith.constant 0 : index
    %c0_5 = arith.constant 0 : index
    %c0_6 = arith.constant 0 : index
    %6 = vector.load %arg3[%c0_4, %c0_5, %c0_6] : memref<2x1x16xf32, #tpu.memory_space<vmem>>, vector<1x1x16xf32>
    %7 = vector.shape_cast %6 : vector<1x1x16xf32> to vector<1x16xf32>
    %8 = vector.broadcast %7 : vector<1x16xf32> to vector<16x16xf32>
    %9 = arith.addf %5, %8 : vector<16x16xf32>
    %10 = arith.negf %9 : vector<16x16xf32>
    %11 = math.exp %10 : vector<16x16xf32>
    %cst_7 = arith.constant 1.000000e+00 : f32
    %12 = vector.broadcast %cst_7 : f32 to vector<16x16xf32>
    %13 = arith.addf %12, %11 : vector<16x16xf32>
    %14 = arith.divf %12, %13 : vector<16x16xf32>
    %c0_8 = arith.constant 0 : index
    %c0_9 = arith.constant 0 : index
    %c0_10 = arith.constant 0 : index
    %15 = vector.load %arg4[%c0_8, %c0_9, %c0_10] : memref<2x16x16xf32, #tpu.memory_space<vmem>>, vector<1x16x16xf32>
    %16 = vector.shape_cast %15 : vector<1x16x16xf32> to vector<16x16xf32>
    %17 = arith.truncf %16 : vector<16x16xf32> to vector<16x16xbf16>
    %cst_11 = arith.constant dense<0.000000e+00> : vector<16x16xf32>
    %18 = tpu.matmul %1, %17, %cst_11 {dimension_numbers = #tpu.dot_dimension_numbers<[1], [0], [0], [1], [0, 0, 1, 1], [], []>} : vector<16x16xbf16>, vector<16x16xbf16>, vector<16x16xf32> -> vector<16x16xf32>
    %c0_12 = arith.constant 0 : index
    %c0_13 = arith.constant 0 : index
    %c0_14 = arith.constant 0 : index
    %19 = vector.load %arg5[%c0_12, %c0_13, %c0_14] : memref<2x1x16xf32, #tpu.memory_space<vmem>>, vector<1x1x16xf32>
    %20 = vector.shape_cast %19 : vector<1x1x16xf32> to vector<1x16xf32>
    %21 = vector.broadcast %20 : vector<1x16xf32> to vector<16x16xf32>
    %22 = arith.addf %18, %21 : vector<16x16xf32>
    %cst_15 = arith.constant 0.000000e+00 : f32
    %23 = vector.broadcast %cst_15 : f32 to vector<16x16xf32>
    %24 = arith.maximumf %22, %23 : vector<16x16xf32>
    %25 = arith.mulf %14, %24 : vector<16x16xf32>
    %cst_16 = arith.constant 1.000000e+00 : f32
    %26 = vector.broadcast %cst_16 : f32 to vector<16x16xf32>
    %27 = arith.subf %26, %14 : vector<16x16xf32>
    %28 = arith.mulf %27, %0 : vector<16x16xf32>
    %29 = arith.addf %25, %28 : vector<16x16xf32>
    %30 = arith.truncf %29 : vector<16x16xf32> to vector<16x16xbf16>
    %c1 = arith.constant 1 : index
    %c0_17 = arith.constant 0 : index
    %c0_18 = arith.constant 0 : index
    %31 = vector.load %arg2[%c1, %c0_17, %c0_18] : memref<2x16x16xf32, #tpu.memory_space<vmem>>, vector<1x16x16xf32>
    %32 = vector.shape_cast %31 : vector<1x16x16xf32> to vector<16x16xf32>
    %33 = arith.truncf %32 : vector<16x16xf32> to vector<16x16xbf16>
    %cst_19 = arith.constant dense<0.000000e+00> : vector<16x16xf32>
    %34 = tpu.matmul %30, %33, %cst_19 {dimension_numbers = #tpu.dot_dimension_numbers<[1], [0], [0], [1], [0, 0, 1, 1], [], []>} : vector<16x16xbf16>, vector<16x16xbf16>, vector<16x16xf32> -> vector<16x16xf32>
    %c1_20 = arith.constant 1 : index
    %c0_21 = arith.constant 0 : index
    %c0_22 = arith.constant 0 : index
    %35 = vector.load %arg3[%c1_20, %c0_21, %c0_22] : memref<2x1x16xf32, #tpu.memory_space<vmem>>, vector<1x1x16xf32>
    %36 = vector.shape_cast %35 : vector<1x1x16xf32> to vector<1x16xf32>
    %37 = vector.broadcast %36 : vector<1x16xf32> to vector<16x16xf32>
    %38 = arith.addf %34, %37 : vector<16x16xf32>
    %39 = arith.negf %38 : vector<16x16xf32>
    %40 = math.exp %39 : vector<16x16xf32>
    %cst_23 = arith.constant 1.000000e+00 : f32
    %41 = vector.broadcast %cst_23 : f32 to vector<16x16xf32>
    %42 = arith.addf %41, %40 : vector<16x16xf32>
    %43 = arith.divf %41, %42 : vector<16x16xf32>
    %c1_24 = arith.constant 1 : index
    %c0_25 = arith.constant 0 : index
    %c0_26 = arith.constant 0 : index
    %44 = vector.load %arg4[%c1_24, %c0_25, %c0_26] : memref<2x16x16xf32, #tpu.memory_space<vmem>>, vector<1x16x16xf32>
    %45 = vector.shape_cast %44 : vector<1x16x16xf32> to vector<16x16xf32>
    %46 = arith.truncf %45 : vector<16x16xf32> to vector<16x16xbf16>
    %cst_27 = arith.constant dense<0.000000e+00> : vector<16x16xf32>
    %47 = tpu.matmul %30, %46, %cst_27 {dimension_numbers = #tpu.dot_dimension_numbers<[1], [0], [0], [1], [0, 0, 1, 1], [], []>} : vector<16x16xbf16>, vector<16x16xbf16>, vector<16x16xf32> -> vector<16x16xf32>
    %c1_28 = arith.constant 1 : index
    %c0_29 = arith.constant 0 : index
    %c0_30 = arith.constant 0 : index
    %48 = vector.load %arg5[%c1_28, %c0_29, %c0_30] : memref<2x1x16xf32, #tpu.memory_space<vmem>>, vector<1x1x16xf32>
    %49 = vector.shape_cast %48 : vector<1x1x16xf32> to vector<1x16xf32>
    %50 = vector.broadcast %49 : vector<1x16xf32> to vector<16x16xf32>
    %51 = arith.addf %47, %50 : vector<16x16xf32>
    %cst_31 = arith.constant 0.000000e+00 : f32
    %52 = vector.broadcast %cst_31 : f32 to vector<16x16xf32>
    %53 = arith.maximumf %51, %52 : vector<16x16xf32>
    %54 = arith.mulf %43, %53 : vector<16x16xf32>
    %cst_32 = arith.constant 1.000000e+00 : f32
    %55 = vector.broadcast %cst_32 : f32 to vector<16x16xf32>
    %56 = arith.subf %55, %43 : vector<16x16xf32>
    %57 = arith.mulf %56, %29 : vector<16x16xf32>
    %58 = arith.addf %54, %57 : vector<16x16xf32>
    %c0_33 = arith.constant 0 : index
    %c0_34 = arith.constant 0 : index
    %59 = vector.load %arg6[%c0_33, %c0_34] : memref<16x16xf32, #tpu.memory_space<vmem>>, vector<16x16xf32>
    tpu.vector_store %arg6[%c0_33, %c0_34], %58 {strides = array<i32>} : memref<16x16xf32, #tpu.memory_space<vmem>>, vector<16x16xf32>,
    return
  }
  func.func @transform_0(%arg0: i32) -> (i32, i32) {
    %c0_i32 = arith.constant 0 : i32
    %c0_i32_0 = arith.constant 0 : i32
    return %arg0, %c0_i32 : i32, i32
  }
  func.func @transform_1(%arg0: i32) -> (i32, i32, i32) {
    %c0_i32 = arith.constant 0 : i32
    %c0_i32_0 = arith.constant 0 : i32
    %c0_i32_1 = arith.constant 0 : i32
    %c0_i32_2 = arith.constant 0 : i32
    return %c0_i32, %c0_i32_0, %c0_i32_1 : i32, i32, i32
  }
  func.func @transform_2(%arg0: i32) -> (i32, i32, i32) {
    %c0_i32 = arith.constant 0 : i32
    %c0_i32_0 = arith.constant 0 : i32
    %c0_i32_1 = arith.constant 0 : i32
    %c0_i32_2 = arith.constant 0 : i32
    return %c0_i32, %c0_i32_0, %c0_i32_1 : i32, i32, i32
  }
  func.func @transform_3(%arg0: i32) -> (i32, i32, i32) {
    %c0_i32 = arith.constant 0 : i32
    %c0_i32_0 = arith.constant 0 : i32
    %c0_i32_1 = arith.constant 0 : i32
    %c0_i32_2 = arith.constant 0 : i32
    return %c0_i32, %c0_i32_0, %c0_i32_1 : i32, i32, i32
  }
  func.func @transform_4(%arg0: i32) -> (i32, i32, i32) {
    %c0_i32 = arith.constant 0 : i32
    %c0_i32_0 = arith.constant 0 : i32
    %c0_i32_1 = arith.constant 0 : i32
    %c0_i32_2 = arith.constant 0 : i32
    return %c0_i32, %c0_i32_0, %c0_i32_1 : i32, i32, i32
  }
  func.func @transform_5(%arg0: i32) -> (i32, i32) {
    %c0_i32 = arith.constant 0 : i32
    %c0_i32_0 = arith.constant 0 : i32
    return %arg0, %c0_i32 : i32, i32
  }
}

module attributes {stable_mosaic.version = 11 : i64} {
  func.func @_linear_kernel(%arg0: i32, %arg1: memref<16x18xf32, #tpu.memory_space<vmem>>, %arg2: memref<18x128xf32, #tpu.memory_space<vmem>>, %arg3: memref<1x128xf32, #tpu.memory_space<vmem>>, %arg4: memref<16x128xbf16, #tpu.memory_space<vmem>>) attributes {dimension_semantics = [#tpu.dimension_semantics<parallel>], iteration_bounds = array<i64: 1>, scalar_prefetch = 0 : i64, scratch_operands = 0 : i64, tpu.core_type = #tpu.core_type<tc>, window_params = [{transform_indices = @transform_0, window_bounds = array<i64: 16, 18>}, {pipeline_mode = #tpu.pipeline_mode<synchronous>, transform_indices = @transform_1, window_bounds = array<i64: 18, 128>}, {pipeline_mode = #tpu.pipeline_mode<synchronous>, transform_indices = @transform_2, window_bounds = array<i64: 1, 128>}, {transform_indices = @transform_3, window_bounds = array<i64: 16, 128>}]} {
    %c0 = arith.constant 0 : index
    %c0_0 = arith.constant 0 : index
    %0 = vector.load %arg1[%c0, %c0_0] : memref<16x18xf32, #tpu.memory_space<vmem>>, vector<16x18xf32>
    %1 = arith.truncf %0 : vector<16x18xf32> to vector<16x18xbf16>
    %c0_1 = arith.constant 0 : index
    %c0_2 = arith.constant 0 : index
    %2 = vector.load %arg2[%c0_1, %c0_2] : memref<18x128xf32, #tpu.memory_space<vmem>>, vector<18x128xf32>
    %3 = arith.truncf %2 : vector<18x128xf32> to vector<18x128xbf16>
    %cst = arith.constant dense<0.000000e+00> : vector<16x128xf32>
    %4 = tpu.matmul %1, %3, %cst {dimension_numbers = #tpu.dot_dimension_numbers<[1], [0], [0], [1], [0, 0, 1, 1], [], []>} : vector<16x18xbf16>, vector<18x128xbf16>, vector<16x128xf32> -> vector<16x128xf32>
    %c0_3 = arith.constant 0 : index
    %c0_4 = arith.constant 0 : index
    %5 = vector.load %arg3[%c0_3, %c0_4] : memref<1x128xf32, #tpu.memory_space<vmem>>, vector<1x128xf32>
    %6 = vector.broadcast %5 : vector<1x128xf32> to vector<16x128xf32>
    %7 = arith.addf %4, %6 : vector<16x128xf32>
    %8 = arith.truncf %7 : vector<16x128xf32> to vector<16x128xbf16>
    %c0_5 = arith.constant 0 : index
    %c0_6 = arith.constant 0 : index
    %9 = vector.load %arg4[%c0_5, %c0_6] : memref<16x128xbf16, #tpu.memory_space<vmem>>, vector<16x128xbf16>
    tpu.vector_store %arg4[%c0_5, %c0_6], %8 {strides = array<i32>} : memref<16x128xbf16, #tpu.memory_space<vmem>>, vector<16x128xbf16>,
    return
  }
  func.func @transform_0(%arg0: i32) -> (i32, i32) {
    %c0_i32 = arith.constant 0 : i32
    %c0_i32_0 = arith.constant 0 : i32
    return %arg0, %c0_i32 : i32, i32
  }
  func.func @transform_1(%arg0: i32) -> (i32, i32) {
    %c0_i32 = arith.constant 0 : i32
    %c0_i32_0 = arith.constant 0 : i32
    %c0_i32_1 = arith.constant 0 : i32
    return %c0_i32, %c0_i32_0 : i32, i32
  }
  func.func @transform_2(%arg0: i32) -> (i32, i32) {
    %c0_i32 = arith.constant 0 : i32
    %c0_i32_0 = arith.constant 0 : i32
    %c0_i32_1 = arith.constant 0 : i32
    return %c0_i32, %c0_i32_0 : i32, i32
  }
  func.func @transform_3(%arg0: i32) -> (i32, i32) {
    %c0_i32 = arith.constant 0 : i32
    %c0_i32_0 = arith.constant 0 : i32
    return %arg0, %c0_i32 : i32, i32
  }
}

module attributes {stable_mosaic.version = 11 : i64} {
  func.func @_bilstm_kernel(%arg0: i32, %arg1: memref<2x8x2x64xbf16, #tpu.memory_space<vmem>>, %arg2: memref<2x16x64xf32, #tpu.memory_space<vmem>>, %arg3: memref<8x2x1xf32, #tpu.memory_space<vmem>>, %arg4: memref<2x8x2x16xf32, #tpu.memory_space<vmem>>) attributes {dimension_semantics = [#tpu.dimension_semantics<parallel>], iteration_bounds = array<i64: 1>, scalar_prefetch = 0 : i64, scratch_operands = 0 : i64, tpu.core_type = #tpu.core_type<tc>, window_params = [{transform_indices = @transform_0, window_bounds = array<i64: 2, 8, 2, 64>}, {pipeline_mode = #tpu.pipeline_mode<synchronous>, transform_indices = @transform_1, window_bounds = array<i64: 2, 16, 64>}, {transform_indices = @transform_2, window_bounds = array<i64: 8, 2, 1>}, {transform_indices = @transform_3, window_bounds = array<i64: 2, 8, 2, 16>}]} {
    %cst = arith.constant 0.000000e+00 : f32
    %0 = vector.broadcast %cst : f32 to vector<2x16xf32>
    %c0_i32 = arith.constant 0 : i32
    %c8_i32 = arith.constant 8 : i32
    %1 = arith.addi %c0_i32, %c8_i32 : i32
    %c1_i32 = arith.constant 1 : i32
    %2:4 = scf.for %arg5 = %c0_i32 to %1 step %c1_i32 iter_args(%arg6 = %0, %arg7 = %0, %arg8 = %0, %arg9 = %0) -> (vector<2x16xf32>, vector<2x16xf32>, vector<2x16xf32>, vector<2x16xf32>)  : i32 {
      %c7_i32 = arith.constant 7 : i32
      %3 = arith.subi %c7_i32, %arg5 : i32
      %4 = arith.index_cast %arg5 : i32 to index
      %c0 = arith.constant 0 : index
      %c0_1 = arith.constant 0 : index
      %5 = vector.load %arg3[%4, %c0, %c0_1] : memref<8x2x1xf32, #tpu.memory_space<vmem>>, vector<1x2x1xf32>
      %6 = vector.shape_cast %5 : vector<1x2x1xf32> to vector<2x1xf32>
      %7 = arith.index_cast %3 : i32 to index
      %c0_2 = arith.constant 0 : index
      %c0_3 = arith.constant 0 : index
      %8 = vector.load %arg3[%7, %c0_2, %c0_3] : memref<8x2x1xf32, #tpu.memory_space<vmem>>, vector<1x2x1xf32>
      %9 = vector.shape_cast %8 : vector<1x2x1xf32> to vector<2x1xf32>
      %c0_4 = arith.constant 0 : index
      %10 = arith.index_cast %arg5 : i32 to index
      %c0_5 = arith.constant 0 : index
      %c0_6 = arith.constant 0 : index
      %11 = vector.load %arg1[%c0_4, %10, %c0_5, %c0_6] : memref<2x8x2x64xbf16, #tpu.memory_space<vmem>>, vector<1x1x2x64xbf16>
      %12 = vector.shape_cast %11 : vector<1x1x2x64xbf16> to vector<2x64xbf16>
      %13 = arith.extf %12 : vector<2x64xbf16> to vector<2x64xf32>
      %14 = arith.truncf %arg6 : vector<2x16xf32> to vector<2x16xbf16>
      %c0_7 = arith.constant 0 : index
      %c0_8 = arith.constant 0 : index
      %c0_9 = arith.constant 0 : index
      %15 = vector.load %arg2[%c0_7, %c0_8, %c0_9] : memref<2x16x64xf32, #tpu.memory_space<vmem>>, vector<1x16x64xf32>
      %16 = vector.shape_cast %15 : vector<1x16x64xf32> to vector<16x64xf32>
      %17 = arith.truncf %16 : vector<16x64xf32> to vector<16x64xbf16>
      %cst_10 = arith.constant dense<0.000000e+00> : vector<2x64xf32>
      %18 = tpu.matmul %14, %17, %cst_10 {dimension_numbers = #tpu.dot_dimension_numbers<[1], [0], [0], [1], [0, 0, 1, 1], [], []>} : vector<2x16xbf16>, vector<16x64xbf16>, vector<2x64xf32> -> vector<2x64xf32>
      %19 = arith.addf %13, %18 : vector<2x64xf32>
      %c1 = arith.constant 1 : index
      %20 = arith.index_cast %3 : i32 to index
      %c0_11 = arith.constant 0 : index
      %c0_12 = arith.constant 0 : index
      %21 = vector.load %arg1[%c1, %20, %c0_11, %c0_12] : memref<2x8x2x64xbf16, #tpu.memory_space<vmem>>, vector<1x1x2x64xbf16>
      %22 = vector.shape_cast %21 : vector<1x1x2x64xbf16> to vector<2x64xbf16>
      %23 = arith.extf %22 : vector<2x64xbf16> to vector<2x64xf32>
      %24 = arith.truncf %arg8 : vector<2x16xf32> to vector<2x16xbf16>
      %c1_13 = arith.constant 1 : index
      %c0_14 = arith.constant 0 : index
      %c0_15 = arith.constant 0 : index
      %25 = vector.load %arg2[%c1_13, %c0_14, %c0_15] : memref<2x16x64xf32, #tpu.memory_space<vmem>>, vector<1x16x64xf32>
      %26 = vector.shape_cast %25 : vector<1x16x64xf32> to vector<16x64xf32>
      %27 = arith.truncf %26 : vector<16x64xf32> to vector<16x64xbf16>
      %cst_16 = arith.constant dense<0.000000e+00> : vector<2x64xf32>
      %28 = tpu.matmul %24, %27, %cst_16 {dimension_numbers = #tpu.dot_dimension_numbers<[1], [0], [0], [1], [0, 0, 1, 1], [], []>} : vector<2x16xbf16>, vector<16x64xbf16>, vector<2x64xf32> -> vector<2x64xf32>
      %29 = arith.addf %23, %28 : vector<2x64xf32>
      %30 = vector.extract_strided_slice %19 {offsets = [0, 0], sizes = [2, 16], strides = [1, 1]} : vector<2x64xf32> to vector<2x16xf32>
      %31 = arith.negf %30 : vector<2x16xf32>
      %32 = math.exp %31 : vector<2x16xf32>
      %cst_17 = arith.constant 1.000000e+00 : f32
      %33 = vector.broadcast %cst_17 : f32 to vector<2x16xf32>
      %34 = arith.addf %33, %32 : vector<2x16xf32>
      %35 = arith.divf %33, %34 : vector<2x16xf32>
      %36 = vector.extract_strided_slice %19 {offsets = [0, 16], sizes = [2, 16], strides = [1, 1]} : vector<2x64xf32> to vector<2x16xf32>
      %37 = arith.negf %36 : vector<2x16xf32>
      %38 = math.exp %37 : vector<2x16xf32>
      %cst_18 = arith.constant 1.000000e+00 : f32
      %39 = vector.broadcast %cst_18 : f32 to vector<2x16xf32>
      %40 = arith.addf %39, %38 : vector<2x16xf32>
      %41 = arith.divf %39, %40 : vector<2x16xf32>
      %42 = vector.extract_strided_slice %19 {offsets = [0, 32], sizes = [2, 16], strides = [1, 1]} : vector<2x64xf32> to vector<2x16xf32>
      %43 = math.tanh %42 : vector<2x16xf32>
      %44 = vector.extract_strided_slice %19 {offsets = [0, 48], sizes = [2, 16], strides = [1, 1]} : vector<2x64xf32> to vector<2x16xf32>
      %45 = arith.negf %44 : vector<2x16xf32>
      %46 = math.exp %45 : vector<2x16xf32>
      %cst_19 = arith.constant 1.000000e+00 : f32
      %47 = vector.broadcast %cst_19 : f32 to vector<2x16xf32>
      %48 = arith.addf %47, %46 : vector<2x16xf32>
      %49 = arith.divf %47, %48 : vector<2x16xf32>
      %50 = arith.mulf %41, %arg7 : vector<2x16xf32>
      %51 = arith.mulf %35, %43 : vector<2x16xf32>
      %52 = arith.addf %50, %51 : vector<2x16xf32>
      %53 = math.tanh %52 : vector<2x16xf32>
      %54 = arith.mulf %49, %53 : vector<2x16xf32>
      %55 = vector.extract_strided_slice %29 {offsets = [0, 0], sizes = [2, 16], strides = [1, 1]} : vector<2x64xf32> to vector<2x16xf32>
      %56 = arith.negf %55 : vector<2x16xf32>
      %57 = math.exp %56 : vector<2x16xf32>
      %cst_20 = arith.constant 1.000000e+00 : f32
      %58 = vector.broadcast %cst_20 : f32 to vector<2x16xf32>
      %59 = arith.addf %58, %57 : vector<2x16xf32>
      %60 = arith.divf %58, %59 : vector<2x16xf32>
      %61 = vector.extract_strided_slice %29 {offsets = [0, 16], sizes = [2, 16], strides = [1, 1]} : vector<2x64xf32> to vector<2x16xf32>
      %62 = arith.negf %61 : vector<2x16xf32>
      %63 = math.exp %62 : vector<2x16xf32>
      %cst_21 = arith.constant 1.000000e+00 : f32
      %64 = vector.broadcast %cst_21 : f32 to vector<2x16xf32>
      %65 = arith.addf %64, %63 : vector<2x16xf32>
      %66 = arith.divf %64, %65 : vector<2x16xf32>
      %67 = vector.extract_strided_slice %29 {offsets = [0, 32], sizes = [2, 16], strides = [1, 1]} : vector<2x64xf32> to vector<2x16xf32>
      %68 = math.tanh %67 : vector<2x16xf32>
      %69 = vector.extract_strided_slice %29 {offsets = [0, 48], sizes = [2, 16], strides = [1, 1]} : vector<2x64xf32> to vector<2x16xf32>
      %70 = arith.negf %69 : vector<2x16xf32>
      %71 = math.exp %70 : vector<2x16xf32>
      %cst_22 = arith.constant 1.000000e+00 : f32
      %72 = vector.broadcast %cst_22 : f32 to vector<2x16xf32>
      %73 = arith.addf %72, %71 : vector<2x16xf32>
      %74 = arith.divf %72, %73 : vector<2x16xf32>
      %75 = arith.mulf %66, %arg9 : vector<2x16xf32>
      %76 = arith.mulf %60, %68 : vector<2x16xf32>
      %77 = arith.addf %75, %76 : vector<2x16xf32>
      %78 = math.tanh %77 : vector<2x16xf32>
      %79 = arith.mulf %74, %78 : vector<2x16xf32>
      %cst_23 = arith.constant 0.000000e+00 : f32
      %80 = vector.broadcast %cst_23 : f32 to vector<2x1xf32>
      %81 = arith.cmpf ogt, %6, %80 : vector<2x1xf32>
      %82 = vector.shape_cast %81 : vector<2x1xi1> to vector<2x1xi1>
      %83 = vector.broadcast %82 : vector<2x1xi1> to vector<2x16xi1>
      %84 = arith.select %83, %54, %arg6 : vector<2x16xi1>, vector<2x16xf32>
      %cst_24 = arith.constant 0.000000e+00 : f32
      %85 = vector.broadcast %cst_24 : f32 to vector<2x1xf32>
      %86 = arith.cmpf ogt, %6, %85 : vector<2x1xf32>
      %87 = vector.shape_cast %86 : vector<2x1xi1> to vector<2x1xi1>
      %88 = vector.broadcast %87 : vector<2x1xi1> to vector<2x16xi1>
      %89 = arith.select %88, %52, %arg7 : vector<2x16xi1>, vector<2x16xf32>
      %cst_25 = arith.constant 0.000000e+00 : f32
      %90 = vector.broadcast %cst_25 : f32 to vector<2x1xf32>
      %91 = arith.cmpf ogt, %9, %90 : vector<2x1xf32>
      %92 = vector.shape_cast %91 : vector<2x1xi1> to vector<2x1xi1>
      %93 = vector.broadcast %92 : vector<2x1xi1> to vector<2x16xi1>
      %94 = arith.select %93, %79, %arg8 : vector<2x16xi1>, vector<2x16xf32>
      %cst_26 = arith.constant 0.000000e+00 : f32
      %95 = vector.broadcast %cst_26 : f32 to vector<2x1xf32>
      %96 = arith.cmpf ogt, %9, %95 : vector<2x1xf32>
      %97 = vector.shape_cast %96 : vector<2x1xi1> to vector<2x1xi1>
      %98 = vector.broadcast %97 : vector<2x1xi1> to vector<2x16xi1>
      %99 = arith.select %98, %77, %arg9 : vector<2x16xi1>, vector<2x16xf32>
      %100 = vector.broadcast %6 : vector<2x1xf32> to vector<2x16xf32>
      %101 = arith.mulf %84, %100 : vector<2x16xf32>
      %c0_27 = arith.constant 0 : index
      %102 = arith.index_cast %arg5 : i32 to index
      %c0_28 = arith.constant 0 : index
      %c0_29 = arith.constant 0 : index
      %103 = vector.load %arg4[%c0_27, %102, %c0_28, %c0_29] : memref<2x8x2x16xf32, #tpu.memory_space<vmem>>, vector<1x1x2x16xf32>
      %104 = vector.shape_cast %103 : vector<1x1x2x16xf32> to vector<2x16xf32>
      %105 = vector.shape_cast %101 : vector<2x16xf32> to vector<1x1x2x16xf32>
      tpu.vector_store %arg4[%c0_27, %102, %c0_28, %c0_29], %105 {strides = array<i32>} : memref<2x8x2x16xf32, #tpu.memory_space<vmem>>, vector<1x1x2x16xf32>,
      %106 = vector.broadcast %9 : vector<2x1xf32> to vector<2x16xf32>
      %107 = arith.mulf %94, %106 : vector<2x16xf32>
      %c1_30 = arith.constant 1 : index
      %108 = arith.index_cast %3 : i32 to index
      %c0_31 = arith.constant 0 : index
      %c0_32 = arith.constant 0 : index
      %109 = vector.load %arg4[%c1_30, %108, %c0_31, %c0_32] : memref<2x8x2x16xf32, #tpu.memory_space<vmem>>, vector<1x1x2x16xf32>
      %110 = vector.shape_cast %109 : vector<1x1x2x16xf32> to vector<2x16xf32>
      %111 = vector.shape_cast %107 : vector<2x16xf32> to vector<1x1x2x16xf32>
      tpu.vector_store %arg4[%c1_30, %108, %c0_31, %c0_32], %111 {strides = array<i32>} : memref<2x8x2x16xf32, #tpu.memory_space<vmem>>, vector<1x1x2x16xf32>,
      scf.yield %84, %89, %94, %99 : vector<2x16xf32>, vector<2x16xf32>, vector<2x16xf32>, vector<2x16xf32>
    }
    %c8_i32_0 = arith.constant 8 : i32
    return
  }
  func.func @transform_0(%arg0: i32) -> (i32, i32, i32, i32) {
    %c0_i32 = arith.constant 0 : i32
    %c0_i32_0 = arith.constant 0 : i32
    %c0_i32_1 = arith.constant 0 : i32
    %c0_i32_2 = arith.constant 0 : i32
    return %c0_i32, %c0_i32_0, %arg0, %c0_i32_1 : i32, i32, i32, i32
  }
  func.func @transform_1(%arg0: i32) -> (i32, i32, i32) {
    %c0_i32 = arith.constant 0 : i32
    %c0_i32_0 = arith.constant 0 : i32
    %c0_i32_1 = arith.constant 0 : i32
    %c0_i32_2 = arith.constant 0 : i32
    return %c0_i32, %c0_i32_0, %c0_i32_1 : i32, i32, i32
  }
  func.func @transform_2(%arg0: i32) -> (i32, i32, i32) {
    %c0_i32 = arith.constant 0 : i32
    %c0_i32_0 = arith.constant 0 : i32
    %c0_i32_1 = arith.constant 0 : i32
    return %c0_i32, %arg0, %c0_i32_0 : i32, i32, i32
  }
  func.func @transform_3(%arg0: i32) -> (i32, i32, i32, i32) {
    %c0_i32 = arith.constant 0 : i32
    %c0_i32_0 = arith.constant 0 : i32
    %c0_i32_1 = arith.constant 0 : i32
    %c0_i32_2 = arith.constant 0 : i32
    return %c0_i32, %c0_i32_0, %arg0, %c0_i32_1 : i32, i32, i32, i32
  }
}

module attributes {stable_mosaic.version = 11 : i64} {
  func.func @_bidaf_att_kernel(%arg0: i32, %arg1: memref<1x16x32xf32, #tpu.memory_space<vmem>>, %arg2: memref<1x8x32xf32, #tpu.memory_space<vmem>>, %arg3: memref<1x16x1xf32, #tpu.memory_space<vmem>>, %arg4: memref<1x1x8xf32, #tpu.memory_space<vmem>>, %arg5: memref<1x32xf32, #tpu.memory_space<vmem>>, %arg6: memref<1x32xf32, #tpu.memory_space<vmem>>, %arg7: memref<1x32xf32, #tpu.memory_space<vmem>>, %arg8: memref<1x1xf32, #tpu.memory_space<vmem>>, %arg9: memref<1x16x128xf32, #tpu.memory_space<vmem>>) attributes {dimension_semantics = [#tpu.dimension_semantics<parallel>], iteration_bounds = array<i64: 2>, scalar_prefetch = 0 : i64, scratch_operands = 0 : i64, tpu.core_type = #tpu.core_type<tc>, window_params = [{transform_indices = @transform_0, window_bounds = array<i64: 1, 16, 32>}, {transform_indices = @transform_1, window_bounds = array<i64: 1, 8, 32>}, {transform_indices = @transform_2, window_bounds = array<i64: 1, 16, 1>}, {transform_indices = @transform_3, window_bounds = array<i64: 1, 1, 8>}, {pipeline_mode = #tpu.pipeline_mode<synchronous>, transform_indices = @transform_4, window_bounds = array<i64: 1, 32>}, {pipeline_mode = #tpu.pipeline_mode<synchronous>, transform_indices = @transform_5, window_bounds = array<i64: 1, 32>}, {pipeline_mode = #tpu.pipeline_mode<synchronous>, transform_indices = @transform_6, window_bounds = array<i64: 1, 32>}, {pipeline_mode = #tpu.pipeline_mode<synchronous>, transform_indices = @transform_7, window_bounds = array<i64: 1, 1>}, {transform_indices = @transform_8, window_bounds = array<i64: 1, 16, 128>}]} {
    %c0 = arith.constant 0 : index
    %c0_0 = arith.constant 0 : index
    %c0_1 = arith.constant 0 : index
    %0 = vector.load %arg1[%c0, %c0_0, %c0_1] : memref<1x16x32xf32, #tpu.memory_space<vmem>>, vector<1x16x32xf32>
    %1 = vector.shape_cast %0 : vector<1x16x32xf32> to vector<16x32xf32>
    %c0_2 = arith.constant 0 : index
    %c0_3 = arith.constant 0 : index
    %c0_4 = arith.constant 0 : index
    %2 = vector.load %arg2[%c0_2, %c0_3, %c0_4] : memref<1x8x32xf32, #tpu.memory_space<vmem>>, vector<1x8x32xf32>
    %3 = vector.shape_cast %2 : vector<1x8x32xf32> to vector<8x32xf32>
    %c0_5 = arith.constant 0 : index
    %c0_6 = arith.constant 0 : index
    %c0_7 = arith.constant 0 : index
    %4 = vector.load %arg3[%c0_5, %c0_6, %c0_7] : memref<1x16x1xf32, #tpu.memory_space<vmem>>, vector<1x16x1xf32>
    %5 = vector.shape_cast %4 : vector<1x16x1xf32> to vector<16x1xf32>
    %c0_8 = arith.constant 0 : index
    %c0_9 = arith.constant 0 : index
    %c0_10 = arith.constant 0 : index
    %6 = vector.load %arg4[%c0_8, %c0_9, %c0_10] : memref<1x1x8xf32, #tpu.memory_space<vmem>>, vector<1x1x8xf32>
    %7 = vector.shape_cast %6 : vector<1x1x8xf32> to vector<1x8xf32>
    %8 = arith.truncf %1 : vector<16x32xf32> to vector<16x32xbf16>
    %9 = arith.truncf %3 : vector<8x32xf32> to vector<8x32xbf16>
    %c0_11 = arith.constant 0 : index
    %c0_12 = arith.constant 0 : index
    %10 = vector.load %arg5[%c0_11, %c0_12] : memref<1x32xf32, #tpu.memory_space<vmem>>, vector<1x32xf32>
    %11 = vector.broadcast %10 : vector<1x32xf32> to vector<16x32xf32>
    %12 = arith.mulf %1, %11 : vector<16x32xf32>
    %cst = arith.constant dense<0.000000e+00> : vector<16xf32>
    %13 = vector.multi_reduction <add>, %12, %cst [1] : vector<16x32xf32> to vector<16xf32>
    %14 = vector.shape_cast %13 : vector<16xf32> to vector<16x1xf32>
    %c0_13 = arith.constant 0 : index
    %c0_14 = arith.constant 0 : index
    %15 = vector.load %arg6[%c0_13, %c0_14] : memref<1x32xf32, #tpu.memory_space<vmem>>, vector<1x32xf32>
    %16 = vector.broadcast %15 : vector<1x32xf32> to vector<8x32xf32>
    %17 = arith.mulf %3, %16 : vector<8x32xf32>
    %cst_15 = arith.constant dense<0.000000e+00> : vector<8xf32>
    %18 = vector.multi_reduction <add>, %17, %cst_15 [1] : vector<8x32xf32> to vector<8xf32>
    %19 = vector.shape_cast %18 : vector<8xf32> to vector<8x1xf32>
    %c0_16 = arith.constant 0 : index
    %c0_17 = arith.constant 0 : index
    %20 = vector.load %arg7[%c0_16, %c0_17] : memref<1x32xf32, #tpu.memory_space<vmem>>, vector<1x32xf32>
    %21 = vector.broadcast %20 : vector<1x32xf32> to vector<16x32xf32>
    %22 = arith.mulf %1, %21 : vector<16x32xf32>
    %23 = arith.truncf %22 : vector<16x32xf32> to vector<16x32xbf16>
    %24 = tpu.transpose %3, [1, 0] : vector<8x32xf32> -> vector<32x8xf32>
    %25 = arith.truncf %24 : vector<32x8xf32> to vector<32x8xbf16>
    %cst_18 = arith.constant dense<0.000000e+00> : vector<16x8xf32>
    %26 = tpu.matmul %23, %25, %cst_18 {dimension_numbers = #tpu.dot_dimension_numbers<[1], [0], [0], [1], [0, 0, 1, 1], [], []>} : vector<16x32xbf16>, vector<32x8xbf16>, vector<16x8xf32> -> vector<16x8xf32>
    %27 = tpu.transpose %19, [1, 0] : vector<8x1xf32> -> vector<1x8xf32>
    %28 = vector.broadcast %14 : vector<16x1xf32> to vector<16x8xf32>
    %29 = vector.broadcast %27 : vector<1x8xf32> to vector<16x8xf32>
    %30 = arith.addf %28, %29 : vector<16x8xf32>
    %31 = arith.addf %30, %26 : vector<16x8xf32>
    %c0_19 = arith.constant 0 : index
    %c0_20 = arith.constant 0 : index
    %32 = vector.load %arg8[%c0_19, %c0_20] : memref<1x1xf32, #tpu.memory_space<vmem>>, vector<1x1xf32>
    %33 = vector.broadcast %32 : vector<1x1xf32> to vector<16x8xf32>
    %34 = arith.addf %31, %33 : vector<16x8xf32>
    %cst_21 = arith.constant 0.000000e+00 : f32
    %35 = vector.broadcast %cst_21 : f32 to vector<1x8xf32>
    %36 = arith.cmpf ogt, %7, %35 : vector<1x8xf32>
    %cst_22 = arith.constant -1.000000e+30 : f32
    %37 = vector.shape_cast %36 : vector<1x8xi1> to vector<1x8xi1>
    %38 = vector.broadcast %37 : vector<1x8xi1> to vector<16x8xi1>
    %39 = vector.broadcast %cst_22 : f32 to vector<16x8xf32>
    %40 = arith.select %38, %34, %39 : vector<16x8xi1>, vector<16x8xf32>
    %cst_23 = arith.constant dense<0xFF800000> : vector<16xf32>
    %41 = vector.multi_reduction <maximumf>, %40, %cst_23 [1] : vector<16x8xf32> to vector<16xf32>
    %42 = vector.shape_cast %41 : vector<16xf32> to vector<16x1xf32>
    %43 = vector.broadcast %42 : vector<16x1xf32> to vector<16x8xf32>
    %44 = arith.subf %40, %43 : vector<16x8xf32>
    %45 = math.exp %44 : vector<16x8xf32>
    %cst_24 = arith.constant dense<0.000000e+00> : vector<16xf32>
    %46 = vector.multi_reduction <add>, %45, %cst_24 [1] : vector<16x8xf32> to vector<16xf32>
    %47 = vector.shape_cast %46 : vector<16xf32> to vector<16x1xf32>
    %48 = tpu.reciprocal %47 {approx = true} : vector<16x1xf32> -> vector<16x1xf32>
    %49 = vector.broadcast %48 : vector<16x1xf32> to vector<16x8xf32>
    %50 = arith.mulf %45, %49 : vector<16x8xf32>
    %cst_25 = arith.constant 0.000000e+00 : f32
    %51 = vector.broadcast %cst_25 : f32 to vector<16x1xf32>
    %52 = arith.cmpf ogt, %5, %51 : vector<16x1xf32>
    %cst_26 = arith.constant -1.000000e+30 : f32
    %53 = vector.shape_cast %52 : vector<16x1xi1> to vector<16x1xi1>
    %54 = vector.broadcast %53 : vector<16x1xi1> to vector<16x8xi1>
    %55 = vector.broadcast %cst_26 : f32 to vector<16x8xf32>
    %56 = arith.select %54, %34, %55 : vector<16x8xi1>, vector<16x8xf32>
    %cst_27 = arith.constant dense<0xFF800000> : vector<8xf32>
    %57 = vector.multi_reduction <maximumf>, %56, %cst_27 [0] : vector<16x8xf32> to vector<8xf32>
    %58 = vector.shape_cast %57 : vector<8xf32> to vector<1x8xf32>
    %59 = vector.broadcast %58 : vector<1x8xf32> to vector<16x8xf32>
    %60 = arith.subf %56, %59 : vector<16x8xf32>
    %61 = math.exp %60 : vector<16x8xf32>
    %cst_28 = arith.constant dense<0.000000e+00> : vector<8xf32>
    %62 = vector.multi_reduction <add>, %61, %cst_28 [0] : vector<16x8xf32> to vector<8xf32>
    %63 = vector.shape_cast %62 : vector<8xf32> to vector<1x8xf32>
    %64 = tpu.reciprocal %63 {approx = true} : vector<1x8xf32> -> vector<1x8xf32>
    %65 = vector.broadcast %64 : vector<1x8xf32> to vector<16x8xf32>
    %66 = arith.mulf %61, %65 : vector<16x8xf32>
    %67 = arith.truncf %50 : vector<16x8xf32> to vector<16x8xbf16>
    %cst_29 = arith.constant dense<0.000000e+00> : vector<16x32xf32>
    %68 = tpu.matmul %67, %9, %cst_29 {dimension_numbers = #tpu.dot_dimension_numbers<[1], [0], [0], [1], [0, 0, 1, 1], [], []>} : vector<16x8xbf16>, vector<8x32xbf16>, vector<16x32xf32> -> vector<16x32xf32>
    %69 = arith.truncf %50 : vector<16x8xf32> to vector<16x8xbf16>
    %70 = tpu.transpose %66, [1, 0] : vector<16x8xf32> -> vector<8x16xf32>
    %71 = arith.truncf %70 : vector<8x16xf32> to vector<8x16xbf16>
    %cst_30 = arith.constant dense<0.000000e+00> : vector<16x16xf32>
    %72 = tpu.matmul %69, %71, %cst_30 {dimension_numbers = #tpu.dot_dimension_numbers<[1], [0], [0], [1], [0, 0, 1, 1], [], []>} : vector<16x8xbf16>, vector<8x16xbf16>, vector<16x16xf32> -> vector<16x16xf32>
    %73 = arith.truncf %72 : vector<16x16xf32> to vector<16x16xbf16>
    %cst_31 = arith.constant dense<0.000000e+00> : vector<16x32xf32>
    %74 = tpu.matmul %73, %8, %cst_31 {dimension_numbers = #tpu.dot_dimension_numbers<[1], [0], [0], [1], [0, 0, 1, 1], [], []>} : vector<16x16xbf16>, vector<16x32xbf16>, vector<16x32xf32> -> vector<16x32xf32>
    %75 = arith.mulf %1, %68 : vector<16x32xf32>
    %76 = arith.mulf %1, %74 : vector<16x32xf32>
    %77 = tpu.concatenate %1, %68, %75, %76 in 1 : vector<16x32xf32>, vector<16x32xf32>, vector<16x32xf32>, vector<16x32xf32> -> vector<16x128xf32>
    %c0_32 = arith.constant 0 : index
    %c0_33 = arith.constant 0 : index
    %c0_34 = arith.constant 0 : index
    %78 = vector.load %arg9[%c0_32, %c0_33, %c0_34] : memref<1x16x128xf32, #tpu.memory_space<vmem>>, vector<1x16x128xf32>
    %79 = vector.shape_cast %78 : vector<1x16x128xf32> to vector<16x128xf32>
    %80 = vector.shape_cast %77 : vector<16x128xf32> to vector<1x16x128xf32>
    tpu.vector_store %arg9[%c0_32, %c0_33, %c0_34], %80 {strides = array<i32>} : memref<1x16x128xf32, #tpu.memory_space<vmem>>, vector<1x16x128xf32>,
    return
  }
  func.func @transform_0(%arg0: i32) -> (i32, i32, i32) {
    %c0_i32 = arith.constant 0 : i32
    %c0_i32_0 = arith.constant 0 : i32
    %c0_i32_1 = arith.constant 0 : i32
    return %arg0, %c0_i32, %c0_i32_0 : i32, i32, i32
  }
  func.func @transform_1(%arg0: i32) -> (i32, i32, i32) {
    %c0_i32 = arith.constant 0 : i32
    %c0_i32_0 = arith.constant 0 : i32
    %c0_i32_1 = arith.constant 0 : i32
    return %arg0, %c0_i32, %c0_i32_0 : i32, i32, i32
  }
  func.func @transform_2(%arg0: i32) -> (i32, i32, i32) {
    %c0_i32 = arith.constant 0 : i32
    %c0_i32_0 = arith.constant 0 : i32
    %c0_i32_1 = arith.constant 0 : i32
    return %arg0, %c0_i32, %c0_i32_0 : i32, i32, i32
  }
  func.func @transform_3(%arg0: i32) -> (i32, i32, i32) {
    %c0_i32 = arith.constant 0 : i32
    %c0_i32_0 = arith.constant 0 : i32
    %c0_i32_1 = arith.constant 0 : i32
    return %arg0, %c0_i32, %c0_i32_0 : i32, i32, i32
  }
  func.func @transform_4(%arg0: i32) -> (i32, i32) {
    %c0_i32 = arith.constant 0 : i32
    %c0_i32_0 = arith.constant 0 : i32
    %c0_i32_1 = arith.constant 0 : i32
    return %c0_i32, %c0_i32_0 : i32, i32
  }
  func.func @transform_5(%arg0: i32) -> (i32, i32) {
    %c0_i32 = arith.constant 0 : i32
    %c0_i32_0 = arith.constant 0 : i32
    %c0_i32_1 = arith.constant 0 : i32
    return %c0_i32, %c0_i32_0 : i32, i32
  }
  func.func @transform_6(%arg0: i32) -> (i32, i32) {
    %c0_i32 = arith.constant 0 : i32
    %c0_i32_0 = arith.constant 0 : i32
    %c0_i32_1 = arith.constant 0 : i32
    return %c0_i32, %c0_i32_0 : i32, i32
  }
  func.func @transform_7(%arg0: i32) -> (i32, i32) {
    %c0_i32 = arith.constant 0 : i32
    %c0_i32_0 = arith.constant 0 : i32
    %c0_i32_1 = arith.constant 0 : i32
    return %c0_i32, %c0_i32_0 : i32, i32
  }
  func.func @transform_8(%arg0: i32) -> (i32, i32, i32) {
    %c0_i32 = arith.constant 0 : i32
    %c0_i32_0 = arith.constant 0 : i32
    %c0_i32_1 = arith.constant 0 : i32
    return %arg0, %c0_i32, %c0_i32_0 : i32, i32, i32
  }
}

module attributes {stable_mosaic.version = 11 : i64} {
  func.func @_self_att_kernel(%arg0: i32, %arg1: memref<1x16x128xf32, #tpu.memory_space<vmem>>, %arg2: memref<1x1x16xf32, #tpu.memory_space<vmem>>, %arg3: memref<128x128xf32, #tpu.memory_space<vmem>>, %arg4: memref<1x16x128xf32, #tpu.memory_space<vmem>>) attributes {dimension_semantics = [#tpu.dimension_semantics<parallel>], iteration_bounds = array<i64: 2>, scalar_prefetch = 0 : i64, scratch_operands = 0 : i64, tpu.core_type = #tpu.core_type<tc>, window_params = [{transform_indices = @transform_0, window_bounds = array<i64: 1, 16, 128>}, {transform_indices = @transform_1, window_bounds = array<i64: 1, 1, 16>}, {pipeline_mode = #tpu.pipeline_mode<synchronous>, transform_indices = @transform_2, window_bounds = array<i64: 128, 128>}, {transform_indices = @transform_3, window_bounds = array<i64: 1, 16, 128>}]} {
    %c0 = arith.constant 0 : index
    %c0_0 = arith.constant 0 : index
    %c0_1 = arith.constant 0 : index
    %0 = vector.load %arg1[%c0, %c0_0, %c0_1] : memref<1x16x128xf32, #tpu.memory_space<vmem>>, vector<1x16x128xf32>
    %1 = vector.shape_cast %0 : vector<1x16x128xf32> to vector<16x128xf32>
    %c0_2 = arith.constant 0 : index
    %c0_3 = arith.constant 0 : index
    %c0_4 = arith.constant 0 : index
    %2 = vector.load %arg2[%c0_2, %c0_3, %c0_4] : memref<1x1x16xf32, #tpu.memory_space<vmem>>, vector<1x1x16xf32>
    %3 = vector.shape_cast %2 : vector<1x1x16xf32> to vector<1x16xf32>
    %4 = arith.truncf %1 : vector<16x128xf32> to vector<16x128xbf16>
    %c0_5 = arith.constant 0 : index
    %c0_6 = arith.constant 0 : index
    %5 = vector.load %arg3[%c0_5, %c0_6] : memref<128x128xf32, #tpu.memory_space<vmem>>, vector<128x128xf32>
    %6 = arith.truncf %5 : vector<128x128xf32> to vector<128x128xbf16>
    %cst = arith.constant dense<0.000000e+00> : vector<16x128xf32>
    %7 = tpu.matmul %4, %6, %cst {dimension_numbers = #tpu.dot_dimension_numbers<[1], [0], [0], [1], [0, 0, 1, 1], [], []>} : vector<16x128xbf16>, vector<128x128xbf16>, vector<16x128xf32> -> vector<16x128xf32>
    %8 = arith.truncf %7 : vector<16x128xf32> to vector<16x128xbf16>
    %9 = tpu.transpose %1, [1, 0] : vector<16x128xf32> -> vector<128x16xf32>
    %10 = arith.truncf %9 : vector<128x16xf32> to vector<128x16xbf16>
    %cst_7 = arith.constant dense<0.000000e+00> : vector<16x16xf32>
    %11 = tpu.matmul %8, %10, %cst_7 {dimension_numbers = #tpu.dot_dimension_numbers<[1], [0], [0], [1], [0, 0, 1, 1], [], []>} : vector<16x128xbf16>, vector<128x16xbf16>, vector<16x16xf32> -> vector<16x16xf32>
    %cst_8 = arith.constant 0.0883883461 : f32
    %12 = vector.broadcast %cst_8 : f32 to vector<16x16xf32>
    %13 = arith.mulf %11, %12 : vector<16x16xf32>
    %cst_9 = arith.constant 0.000000e+00 : f32
    %14 = vector.broadcast %cst_9 : f32 to vector<1x16xf32>
    %15 = arith.cmpf ogt, %3, %14 : vector<1x16xf32>
    %cst_10 = arith.constant -1.000000e+30 : f32
    %16 = vector.shape_cast %15 : vector<1x16xi1> to vector<1x16xi1>
    %17 = vector.broadcast %16 : vector<1x16xi1> to vector<16x16xi1>
    %18 = vector.broadcast %cst_10 : f32 to vector<16x16xf32>
    %19 = arith.select %17, %13, %18 : vector<16x16xi1>, vector<16x16xf32>
    %cst_11 = arith.constant dense<0xFF800000> : vector<16xf32>
    %20 = vector.multi_reduction <maximumf>, %19, %cst_11 [1] : vector<16x16xf32> to vector<16xf32>
    %21 = vector.shape_cast %20 : vector<16xf32> to vector<16x1xf32>
    %22 = vector.broadcast %21 : vector<16x1xf32> to vector<16x16xf32>
    %23 = arith.subf %19, %22 : vector<16x16xf32>
    %24 = math.exp %23 : vector<16x16xf32>
    %cst_12 = arith.constant dense<0.000000e+00> : vector<16xf32>
    %25 = vector.multi_reduction <add>, %24, %cst_12 [1] : vector<16x16xf32> to vector<16xf32>
    %26 = vector.shape_cast %25 : vector<16xf32> to vector<16x1xf32>
    %27 = tpu.reciprocal %26 {approx = true} : vector<16x1xf32> -> vector<16x1xf32>
    %28 = vector.broadcast %27 : vector<16x1xf32> to vector<16x16xf32>
    %29 = arith.mulf %24, %28 : vector<16x16xf32>
    %30 = arith.truncf %29 : vector<16x16xf32> to vector<16x16xbf16>
    %cst_13 = arith.constant dense<0.000000e+00> : vector<16x128xf32>
    %31 = tpu.matmul %30, %4, %cst_13 {dimension_numbers = #tpu.dot_dimension_numbers<[1], [0], [0], [1], [0, 0, 1, 1], [], []>} : vector<16x16xbf16>, vector<16x128xbf16>, vector<16x128xf32> -> vector<16x128xf32>
    %32 = arith.addf %1, %31 : vector<16x128xf32>
    %c0_14 = arith.constant 0 : index
    %c0_15 = arith.constant 0 : index
    %c0_16 = arith.constant 0 : index
    %33 = vector.load %arg4[%c0_14, %c0_15, %c0_16] : memref<1x16x128xf32, #tpu.memory_space<vmem>>, vector<1x16x128xf32>
    %34 = vector.shape_cast %33 : vector<1x16x128xf32> to vector<16x128xf32>
    %35 = vector.shape_cast %32 : vector<16x128xf32> to vector<1x16x128xf32>
    tpu.vector_store %arg4[%c0_14, %c0_15, %c0_16], %35 {strides = array<i32>} : memref<1x16x128xf32, #tpu.memory_space<vmem>>, vector<1x16x128xf32>,
    return
  }
  func.func @transform_0(%arg0: i32) -> (i32, i32, i32) {
    %c0_i32 = arith.constant 0 : i32
    %c0_i32_0 = arith.constant 0 : i32
    %c0_i32_1 = arith.constant 0 : i32
    return %arg0, %c0_i32, %c0_i32_0 : i32, i32, i32
  }
  func.func @transform_1(%arg0: i32) -> (i32, i32, i32) {
    %c0_i32 = arith.constant 0 : i32
    %c0_i32_0 = arith.constant 0 : i32
    %c0_i32_1 = arith.constant 0 : i32
    return %arg0, %c0_i32, %c0_i32_0 : i32, i32, i32
  }
  func.func @transform_2(%arg0: i32) -> (i32, i32) {
    %c0_i32 = arith.constant 0 : i32
    %c0_i32_0 = arith.constant 0 : i32
    %c0_i32_1 = arith.constant 0 : i32
    return %c0_i32, %c0_i32_0 : i32, i32
  }
  func.func @transform_3(%arg0: i32) -> (i32, i32, i32) {
    %c0_i32 = arith.constant 0 : i32
    %c0_i32_0 = arith.constant 0 : i32
    %c0_i32_1 = arith.constant 0 : i32
    return %arg0, %c0_i32, %c0_i32_0 : i32, i32, i32
  }
}

module attributes {stable_mosaic.version = 11 : i64} {
  func.func @_linear_kernel(%arg0: i32, %arg1: memref<32x128xf32, #tpu.memory_space<vmem>>, %arg2: memref<128x128xf32, #tpu.memory_space<vmem>>, %arg3: memref<1x128xf32, #tpu.memory_space<vmem>>, %arg4: memref<32x128xbf16, #tpu.memory_space<vmem>>) attributes {dimension_semantics = [#tpu.dimension_semantics<parallel>], iteration_bounds = array<i64: 1>, scalar_prefetch = 0 : i64, scratch_operands = 0 : i64, tpu.core_type = #tpu.core_type<tc>, window_params = [{transform_indices = @transform_0, window_bounds = array<i64: 32, 128>}, {pipeline_mode = #tpu.pipeline_mode<synchronous>, transform_indices = @transform_1, window_bounds = array<i64: 128, 128>}, {pipeline_mode = #tpu.pipeline_mode<synchronous>, transform_indices = @transform_2, window_bounds = array<i64: 1, 128>}, {transform_indices = @transform_3, window_bounds = array<i64: 32, 128>}]} {
    %c0 = arith.constant 0 : index
    %c0_0 = arith.constant 0 : index
    %0 = vector.load %arg1[%c0, %c0_0] : memref<32x128xf32, #tpu.memory_space<vmem>>, vector<32x128xf32>
    %1 = arith.truncf %0 : vector<32x128xf32> to vector<32x128xbf16>
    %c0_1 = arith.constant 0 : index
    %c0_2 = arith.constant 0 : index
    %2 = vector.load %arg2[%c0_1, %c0_2] : memref<128x128xf32, #tpu.memory_space<vmem>>, vector<128x128xf32>
    %3 = arith.truncf %2 : vector<128x128xf32> to vector<128x128xbf16>
    %cst = arith.constant dense<0.000000e+00> : vector<32x128xf32>
    %4 = tpu.matmul %1, %3, %cst {dimension_numbers = #tpu.dot_dimension_numbers<[1], [0], [0], [1], [0, 0, 1, 1], [], []>} : vector<32x128xbf16>, vector<128x128xbf16>, vector<32x128xf32> -> vector<32x128xf32>
    %c0_3 = arith.constant 0 : index
    %c0_4 = arith.constant 0 : index
    %5 = vector.load %arg3[%c0_3, %c0_4] : memref<1x128xf32, #tpu.memory_space<vmem>>, vector<1x128xf32>
    %6 = vector.broadcast %5 : vector<1x128xf32> to vector<32x128xf32>
    %7 = arith.addf %4, %6 : vector<32x128xf32>
    %8 = arith.truncf %7 : vector<32x128xf32> to vector<32x128xbf16>
    %c0_5 = arith.constant 0 : index
    %c0_6 = arith.constant 0 : index
    %9 = vector.load %arg4[%c0_5, %c0_6] : memref<32x128xbf16, #tpu.memory_space<vmem>>, vector<32x128xbf16>
    tpu.vector_store %arg4[%c0_5, %c0_6], %8 {strides = array<i32>} : memref<32x128xbf16, #tpu.memory_space<vmem>>, vector<32x128xbf16>,
    return
  }
  func.func @transform_0(%arg0: i32) -> (i32, i32) {
    %c0_i32 = arith.constant 0 : i32
    %c0_i32_0 = arith.constant 0 : i32
    return %arg0, %c0_i32 : i32, i32
  }
  func.func @transform_1(%arg0: i32) -> (i32, i32) {
    %c0_i32 = arith.constant 0 : i32
    %c0_i32_0 = arith.constant 0 : i32
    %c0_i32_1 = arith.constant 0 : i32
    return %c0_i32, %c0_i32_0 : i32, i32
  }
  func.func @transform_2(%arg0: i32) -> (i32, i32) {
    %c0_i32 = arith.constant 0 : i32
    %c0_i32_0 = arith.constant 0 : i32
    %c0_i32_1 = arith.constant 0 : i32
    return %c0_i32, %c0_i32_0 : i32, i32
  }
  func.func @transform_3(%arg0: i32) -> (i32, i32) {
    %c0_i32 = arith.constant 0 : i32
    %c0_i32_0 = arith.constant 0 : i32
    return %arg0, %c0_i32 : i32, i32
  }
}

module attributes {stable_mosaic.version = 11 : i64} {
  func.func @_linear_kernel(%arg0: i32, %arg1: memref<32x32xf32, #tpu.memory_space<vmem>>, %arg2: memref<32x128xf32, #tpu.memory_space<vmem>>, %arg3: memref<1x128xf32, #tpu.memory_space<vmem>>, %arg4: memref<32x128xbf16, #tpu.memory_space<vmem>>) attributes {dimension_semantics = [#tpu.dimension_semantics<parallel>], iteration_bounds = array<i64: 1>, scalar_prefetch = 0 : i64, scratch_operands = 0 : i64, tpu.core_type = #tpu.core_type<tc>, window_params = [{transform_indices = @transform_0, window_bounds = array<i64: 32, 32>}, {pipeline_mode = #tpu.pipeline_mode<synchronous>, transform_indices = @transform_1, window_bounds = array<i64: 32, 128>}, {pipeline_mode = #tpu.pipeline_mode<synchronous>, transform_indices = @transform_2, window_bounds = array<i64: 1, 128>}, {transform_indices = @transform_3, window_bounds = array<i64: 32, 128>}]} {
    %c0 = arith.constant 0 : index
    %c0_0 = arith.constant 0 : index
    %0 = vector.load %arg1[%c0, %c0_0] : memref<32x32xf32, #tpu.memory_space<vmem>>, vector<32x32xf32>
    %1 = arith.truncf %0 : vector<32x32xf32> to vector<32x32xbf16>
    %c0_1 = arith.constant 0 : index
    %c0_2 = arith.constant 0 : index
    %2 = vector.load %arg2[%c0_1, %c0_2] : memref<32x128xf32, #tpu.memory_space<vmem>>, vector<32x128xf32>
    %3 = arith.truncf %2 : vector<32x128xf32> to vector<32x128xbf16>
    %cst = arith.constant dense<0.000000e+00> : vector<32x128xf32>
    %4 = tpu.matmul %1, %3, %cst {dimension_numbers = #tpu.dot_dimension_numbers<[1], [0], [0], [1], [0, 0, 1, 1], [], []>} : vector<32x32xbf16>, vector<32x128xbf16>, vector<32x128xf32> -> vector<32x128xf32>
    %c0_3 = arith.constant 0 : index
    %c0_4 = arith.constant 0 : index
    %5 = vector.load %arg3[%c0_3, %c0_4] : memref<1x128xf32, #tpu.memory_space<vmem>>, vector<1x128xf32>
    %6 = vector.broadcast %5 : vector<1x128xf32> to vector<32x128xf32>
    %7 = arith.addf %4, %6 : vector<32x128xf32>
    %8 = arith.truncf %7 : vector<32x128xf32> to vector<32x128xbf16>
    %c0_5 = arith.constant 0 : index
    %c0_6 = arith.constant 0 : index
    %9 = vector.load %arg4[%c0_5, %c0_6] : memref<32x128xbf16, #tpu.memory_space<vmem>>, vector<32x128xbf16>
    tpu.vector_store %arg4[%c0_5, %c0_6], %8 {strides = array<i32>} : memref<32x128xbf16, #tpu.memory_space<vmem>>, vector<32x128xbf16>,
    return
  }
  func.func @transform_0(%arg0: i32) -> (i32, i32) {
    %c0_i32 = arith.constant 0 : i32
    %c0_i32_0 = arith.constant 0 : i32
    return %arg0, %c0_i32 : i32, i32
  }
  func.func @transform_1(%arg0: i32) -> (i32, i32) {
    %c0_i32 = arith.constant 0 : i32
    %c0_i32_0 = arith.constant 0 : i32
    %c0_i32_1 = arith.constant 0 : i32
    return %c0_i32, %c0_i32_0 : i32, i32
  }
  func.func @transform_2(%arg0: i32) -> (i32, i32) {
    %c0_i32 = arith.constant 0 : i32
    %c0_i32_0 = arith.constant 0 : i32
    %c0_i32_1 = arith.constant 0 : i32
    return %c0_i32, %c0_i32_0 : i32, i32
  }
  func.func @transform_3(%arg0: i32) -> (i32, i32) {
    %c0_i32 = arith.constant 0 : i32
    %c0_i32_0 = arith.constant 0 : i32
    return %arg0, %c0_i32 : i32, i32
  }
}

module attributes {stable_mosaic.version = 11 : i64} {
  func.func @_output_head_kernel(%arg0: i32, %arg1: memref<1x16x128xf32, #tpu.memory_space<vmem>>, %arg2: memref<1x16x32xf32, #tpu.memory_space<vmem>>, %arg3: memref<1x1x16xf32, #tpu.memory_space<vmem>>, %arg4: memref<1x128xf32, #tpu.memory_space<vmem>>, %arg5: memref<1x32xf32, #tpu.memory_space<vmem>>, %arg6: memref<1x1xf32, #tpu.memory_space<vmem>>, %arg7: memref<1x1x16xf32, #tpu.memory_space<vmem>>) attributes {dimension_semantics = [#tpu.dimension_semantics<parallel>], iteration_bounds = array<i64: 2>, scalar_prefetch = 0 : i64, scratch_operands = 0 : i64, tpu.core_type = #tpu.core_type<tc>, window_params = [{transform_indices = @transform_0, window_bounds = array<i64: 1, 16, 128>}, {transform_indices = @transform_1, window_bounds = array<i64: 1, 16, 32>}, {transform_indices = @transform_2, window_bounds = array<i64: 1, 1, 16>}, {pipeline_mode = #tpu.pipeline_mode<synchronous>, transform_indices = @transform_3, window_bounds = array<i64: 1, 128>}, {pipeline_mode = #tpu.pipeline_mode<synchronous>, transform_indices = @transform_4, window_bounds = array<i64: 1, 32>}, {pipeline_mode = #tpu.pipeline_mode<synchronous>, transform_indices = @transform_5, window_bounds = array<i64: 1, 1>}, {transform_indices = @transform_6, window_bounds = array<i64: 1, 1, 16>}]} {
    %c0 = arith.constant 0 : index
    %c0_0 = arith.constant 0 : index
    %c0_1 = arith.constant 0 : index
    %0 = vector.load %arg1[%c0, %c0_0, %c0_1] : memref<1x16x128xf32, #tpu.memory_space<vmem>>, vector<1x16x128xf32>
    %1 = vector.shape_cast %0 : vector<1x16x128xf32> to vector<16x128xf32>
    %c0_2 = arith.constant 0 : index
    %c0_3 = arith.constant 0 : index
    %c0_4 = arith.constant 0 : index
    %2 = vector.load %arg2[%c0_2, %c0_3, %c0_4] : memref<1x16x32xf32, #tpu.memory_space<vmem>>, vector<1x16x32xf32>
    %3 = vector.shape_cast %2 : vector<1x16x32xf32> to vector<16x32xf32>
    %c0_5 = arith.constant 0 : index
    %c0_6 = arith.constant 0 : index
    %c0_7 = arith.constant 0 : index
    %4 = vector.load %arg3[%c0_5, %c0_6, %c0_7] : memref<1x1x16xf32, #tpu.memory_space<vmem>>, vector<1x1x16xf32>
    %5 = vector.shape_cast %4 : vector<1x1x16xf32> to vector<1x16xf32>
    %c0_8 = arith.constant 0 : index
    %c0_9 = arith.constant 0 : index
    %6 = vector.load %arg4[%c0_8, %c0_9] : memref<1x128xf32, #tpu.memory_space<vmem>>, vector<1x128xf32>
    %7 = vector.broadcast %6 : vector<1x128xf32> to vector<16x128xf32>
    %8 = arith.mulf %1, %7 : vector<16x128xf32>
    %cst = arith.constant dense<0.000000e+00> : vector<16xf32>
    %9 = vector.multi_reduction <add>, %8, %cst [1] : vector<16x128xf32> to vector<16xf32>
    %10 = vector.shape_cast %9 : vector<16xf32> to vector<16x1xf32>
    %c0_10 = arith.constant 0 : index
    %c0_11 = arith.constant 0 : index
    %11 = vector.load %arg5[%c0_10, %c0_11] : memref<1x32xf32, #tpu.memory_space<vmem>>, vector<1x32xf32>
    %12 = vector.broadcast %11 : vector<1x32xf32> to vector<16x32xf32>
    %13 = arith.mulf %3, %12 : vector<16x32xf32>
    %cst_12 = arith.constant dense<0.000000e+00> : vector<16xf32>
    %14 = vector.multi_reduction <add>, %13, %cst_12 [1] : vector<16x32xf32> to vector<16xf32>
    %15 = vector.shape_cast %14 : vector<16xf32> to vector<16x1xf32>
    %16 = arith.addf %10, %15 : vector<16x1xf32>
    %17 = tpu.transpose %16, [1, 0] : vector<16x1xf32> -> vector<1x16xf32>
    %c0_13 = arith.constant 0 : index
    %c0_14 = arith.constant 0 : index
    %18 = vector.load %arg6[%c0_13, %c0_14] : memref<1x1xf32, #tpu.memory_space<vmem>>, vector<1x1xf32>
    %19 = vector.broadcast %18 : vector<1x1xf32> to vector<1x16xf32>
    %20 = arith.addf %17, %19 : vector<1x16xf32>
    %cst_15 = arith.constant 0.000000e+00 : f32
    %21 = vector.broadcast %cst_15 : f32 to vector<1x16xf32>
    %22 = arith.cmpf ogt, %5, %21 : vector<1x16xf32>
    %cst_16 = arith.constant -1.000000e+30 : f32
    %23 = vector.broadcast %cst_16 : f32 to vector<1x16xf32>
    %24 = arith.select %22, %20, %23 : vector<1x16xi1>, vector<1x16xf32>
    %cst_17 = arith.constant dense<0xFF800000> : vector<1xf32>
    %25 = vector.multi_reduction <maximumf>, %24, %cst_17 [1] : vector<1x16xf32> to vector<1xf32>
    %26 = vector.shape_cast %25 : vector<1xf32> to vector<1x1xf32>
    %27 = vector.broadcast %26 : vector<1x1xf32> to vector<1x16xf32>
    %28 = arith.subf %24, %27 : vector<1x16xf32>
    %29 = math.exp %28 : vector<1x16xf32>
    %cst_18 = arith.constant dense<0.000000e+00> : vector<1xf32>
    %30 = vector.multi_reduction <add>, %29, %cst_18 [1] : vector<1x16xf32> to vector<1xf32>
    %31 = vector.shape_cast %30 : vector<1xf32> to vector<1x1xf32>
    %32 = math.log %31 : vector<1x1xf32>
    %33 = vector.broadcast %32 : vector<1x1xf32> to vector<1x16xf32>
    %34 = arith.subf %28, %33 : vector<1x16xf32>
    %c0_19 = arith.constant 0 : index
    %c0_20 = arith.constant 0 : index
    %c0_21 = arith.constant 0 : index
    %35 = vector.load %arg7[%c0_19, %c0_20, %c0_21] : memref<1x1x16xf32, #tpu.memory_space<vmem>>, vector<1x1x16xf32>
    %36 = vector.shape_cast %35 : vector<1x1x16xf32> to vector<1x16xf32>
    %37 = vector.shape_cast %34 : vector<1x16xf32> to vector<1x1x16xf32>
    tpu.vector_store %arg7[%c0_19, %c0_20, %c0_21], %37 {strides = array<i32>} : memref<1x1x16xf32, #tpu.memory_space<vmem>>, vector<1x1x16xf32>,
    return
  }
  func.func @transform_0(%arg0: i32) -> (i32, i32, i32) {
    %c0_i32 = arith.constant 0 : i32
    %c0_i32_0 = arith.constant 0 : i32
    %c0_i32_1 = arith.constant 0 : i32
    return %arg0, %c0_i32, %c0_i32_0 : i32, i32, i32
  }
  func.func @transform_1(%arg0: i32) -> (i32, i32, i32) {
    %c0_i32 = arith.constant 0 : i32
    %c0_i32_0 = arith.constant 0 : i32
    %c0_i32_1 = arith.constant 0 : i32
    return %arg0, %c0_i32, %c0_i32_0 : i32, i32, i32
  }
  func.func @transform_2(%arg0: i32) -> (i32, i32, i32) {
    %c0_i32 = arith.constant 0 : i32
    %c0_i32_0 = arith.constant 0 : i32
    %c0_i32_1 = arith.constant 0 : i32
    return %arg0, %c0_i32, %c0_i32_0 : i32, i32, i32
  }
  func.func @transform_3(%arg0: i32) -> (i32, i32) {
    %c0_i32 = arith.constant 0 : i32
    %c0_i32_0 = arith.constant 0 : i32
    %c0_i32_1 = arith.constant 0 : i32
    return %c0_i32, %c0_i32_0 : i32, i32
  }
  func.func @transform_4(%arg0: i32) -> (i32, i32) {
    %c0_i32 = arith.constant 0 : i32
    %c0_i32_0 = arith.constant 0 : i32
    %c0_i32_1 = arith.constant 0 : i32
    return %c0_i32, %c0_i32_0 : i32, i32
  }
  func.func @transform_5(%arg0: i32) -> (i32, i32) {
    %c0_i32 = arith.constant 0 : i32
    %c0_i32_0 = arith.constant 0 : i32
    %c0_i32_1 = arith.constant 0 : i32
    return %c0_i32, %c0_i32_0 : i32, i32
  }
  func.func @transform_6(%arg0: i32) -> (i32, i32, i32) {
    %c0_i32 = arith.constant 0 : i32
    %c0_i32_0 = arith.constant 0 : i32
    %c0_i32_1 = arith.constant 0 : i32
    return %arg0, %c0_i32, %c0_i32_0 : i32, i32, i32
  }
}

</mosaic_0001>

<llo_original>
// kernel: bidaf_forward.20
$region0: #{bidaf_forward.20}
  #allocation0 [shape = 'u32[]', space=smem, size = 0x4, offset = 0x4, fixed_abs, tag = 'smem constant byte address 0x4 - core index']
  #allocation1 [shape = 'u32[144,128]{1,0:T(1,128)}', space=vmem, size = 0x12000, scoped, tag = 'internal scratch']
  %s0 = inlined_call_operand.vmem [shape: f32[32,24], index: 0, kind: input, shape index: {}]
  %s1 = inlined_call_operand.vmem [shape: f32[24,8], index: 1, kind: input, shape index: {}]
  %s2 = inlined_call_operand.vmem [shape: f32[1,8], index: 2, kind: input, shape index: {}]
  %s3 = inlined_call_operand.vmem [shape: f32[32,8], index: 3, kind: output, shape index: {}]
  %s4 = sld [smem:[#allocation0]]
  $region22: #{bidaf_forward.20} parent=0
    _
  %s6 = ssub.s32 1, %s4
  %s7 = scalar_select 0, %s6, %s4
  // Predicated region
  $region2: #{bidaf_forward.20} parent=0 // pred_check
    _
  $region3: #{bidaf_forward.20} parent=0 // pred_check_branch
    %9 = sbr.rel (0) target = $region5
  $region4: #{bidaf_forward.20} parent=0 // pred_region
    _
  $region5: #{bidaf_forward.20} parent=0 // pred_fallthru
    _
  // Predicated region
  $region6: #{bidaf_forward.20} parent=0 // pred_check
    _
  $region7: #{bidaf_forward.20} parent=0 // pred_check_branch
    %11 = sbr.rel (0) target = $region9
  $region8: #{bidaf_forward.20} parent=0 // pred_region
    _
  $region9: #{bidaf_forward.20} parent=0 // pred_fallthru
    _
  // Predicated region
  $region10: #{bidaf_forward.20} parent=0 // pred_check
    _
  $region11: #{bidaf_forward.20} parent=0 // pred_check_branch
    %13 = sbr.rel (0) target = $region13
  $region12: #{bidaf_forward.20} parent=0 // pred_region
    _
  $region13: #{bidaf_forward.20} parent=0 // pred_fallthru
    _
  %v15 = vld [vmem:[%s0] sm:$0xff]
  %v16 = vld [vmem:[%s0 + $0x8] sm:$0xff]
  %v17 = vld [vmem:[%s0 + $0x10] sm:$0xff]
  %v18 = vld [vmem:[%s0 + $0x18] sm:$0xff]
  %v19 = vpack.c.bf16 %v16, %v15
  %v20 = vpack.c.bf16 %v18, %v17
  %v21 = vld [vmem:[%s1] sm:$0xff]
  %v22 = vld [vmem:[%s1 + $0x8] sm:$0xff]
  %v23 = vld [vmem:[%s1 + $0x10] sm:$0xff]
  %v24 = vpack.c.bf16 %v22, %v21
  %v25 = vpack.c.bf16 %v23, %v23
  %v26 = vld [vmem:[%s2] sm:$0x1]
  %v28 = vlaneseq
  %v29 = vshrl.u32 %v28, 7
  %v30 = vsub.s32 0, %v29
  %v31 = vrot.slane %v26, %v30
  %vm33 = vcmask 195584
  %v35 = vsel %vm33, %v19, 0
  %v38 = vsel %vm33, %v20, 0
  %vm40 = vcmask 1043456
  %v42 = vsel %vm40, %v25, 0
  %44 = vmatprep.subr.bf16.mxu0 0
  %45 = vmatpush1.bf16.msra.mxu0 %v24
  %46 = vmatprep.subr.bf16.mxu0 0
  %47 = vmatpush1.bf16.msra.mxu0 %v42
  %48 = vmatprep.subr.bf16.mxu0 0
  %49 = vmatpush1.bf16.msra.mxu0 0
  %50 = vmatprep.subr.bf16.mxu0 0
  %51 = vmatpush1.bf16.msra.mxu0 0
  %52 = vmatprep.subr.bf16.mxu0 0
  %53 = vmatpush1.bf16.msra.mxu0 0
  %54 = vmatprep.subr.bf16.mxu0 0
  %55 = vmatpush1.bf16.msra.mxu0 0
  %56 = vmatprep.subr.bf16.mxu0 0
  %57 = vmatpush1.bf16.msra.mxu0 0
  %58 = vmatprep.subr.bf16.mxu0 0
  %59 = vmatpush1.bf16.msra.mxu0 0
  %60 = vmatprep.subr.bf16.mxu0 0
  %61 = vmatpush1.bf16.msra.mxu0 0
  %62 = vmatprep.subr.bf16.mxu0 0
  %63 = vmatpush1.bf16.msra.mxu0 0
  %64 = vmatprep.subr.bf16.mxu0 0
  %65 = vmatpush1.bf16.msra.mxu0 0
  %66 = vmatprep.subr.bf16.mxu0 0
  %67 = vmatpush1.bf16.msra.mxu0 0
  %68 = vmatprep.subr.bf16.mxu0 0
  %69 = vmatpush1.bf16.msra.mxu0 0
  %70 = vmatprep.subr.bf16.mxu0 0
  %71 = vmatpush1.bf16.msra.mxu0 0
  %72 = vmatprep.subr.bf16.mxu0 0
  %73 = vmatpush1.bf16.msra.mxu0 0
  %74 = vmatprep.subr.bf16.mxu0 0
  %75 = vmatpush1.bf16.msra.mxu0 0
  %76 = vmatprep.mubr.bf16.mxu0 0
  %77 = vmatmul.mubr.bf16.gmra.mrb[0].mxu0 %v35
  %v78 = vpop.f32.mrb[0].mxu0
  %v79 = vadd.f32 %v31, %v78
  %v80 = vpop.f32.mrb[0].mxu0
  %v81 = vpop.f32.mrb[0].mxu0
  %v82 = vadd.f32 %v31, %v81
  %v83 = vpop.f32.mrb[0].mxu0
  %84 = vmatprep.mubr.bf16.mxu0 0
  %85 = vmatmul.mubr.bf16.gmra.mrb[0].mxu0 %v38
  %v86 = vpop.f32.mrb[0].mxu0
  %v87 = vadd.f32 %v31, %v86
  %v88 = vpop.f32.mrb[0].mxu0
  %v89 = vpop.f32.mrb[0].mxu0
  %v90 = vadd.f32 %v31, %v89
  %v91 = vpop.f32.mrb[0].mxu0
  %92 = vdwg.mxu0
  %vm93 = vcmask 64512
  %94 = vst.msk [vmem:[%s3] sm:$0xff] %vm93, %v79
  %95 = vst.msk [vmem:[%s3 + $0x8] sm:$0xff] %vm93, %v82
  %96 = vst.msk [vmem:[%s3 + $0x10] sm:$0xff] %vm93, %v87
  %97 = vst.msk [vmem:[%s3 + $0x18] sm:$0xff] %vm93, %v90
  // Predicated region
  $region14: #{bidaf_forward.20} parent=0 // pred_check
    _
  $region15: #{bidaf_forward.20} parent=0 // pred_check_branch
    %99 = sbr.rel (0) target = $region17
  $region16: #{bidaf_forward.20} parent=0 // pred_region
    _
  $region17: #{bidaf_forward.20} parent=0 // pred_fallthru
    _
  // Predicated region
  $region18: #{bidaf_forward.20} parent=0 // pred_check
    _
  $region19: #{bidaf_forward.20} parent=0 // pred_check_branch
    %101 = sbr.rel (0) target = $region21
  $region20: #{bidaf_forward.20} parent=0 // pred_region
    _
  $region21: #{bidaf_forward.20} parent=0 // pred_fallthru
    _

// kernel: bidaf_forward.22
$region0: #{bidaf_forward.22}
  #allocation0 [shape = 'u32[]', space=smem, size = 0x4, offset = 0x4, fixed_abs, tag = 'smem constant byte address 0x4 - core index']
  #allocation1 [shape = 'u32[144,128]{1,0:T(1,128)}', space=vmem, size = 0x12000, scoped, tag = 'internal scratch']
  %s0 = inlined_call_operand.vmem [shape: f32[32,16], index: 0, kind: input, shape index: {}]
  %s1 = inlined_call_operand.vmem [shape: f32[2,16,16], index: 1, kind: input, shape index: {}]
  %s2 = inlined_call_operand.vmem [shape: f32[2,1,16], index: 2, kind: input, shape index: {}]
  %s3 = inlined_call_operand.vmem [shape: f32[2,16,16], index: 3, kind: input, shape index: {}]
  %s4 = inlined_call_operand.vmem [shape: f32[2,1,16], index: 4, kind: input, shape index: {}]
  %s5 = inlined_call_operand.vmem [shape: f32[32,16], index: 5, kind: output, shape index: {}]
  %s6 = sld [smem:[#allocation0]]
  $region30: #{bidaf_forward.22} parent=0
    _
  %s8 = ssub.s32 1, %s6
  %s9 = scalar_select 0, %s8, %s6
  // Predicated region
  $region2: #{bidaf_forward.22} parent=0 // pred_check
    _
  $region3: #{bidaf_forward.22} parent=0 // pred_check_branch
    %11 = sbr.rel (0) target = $region5
  $region4: #{bidaf_forward.22} parent=0 // pred_region
    _
  $region5: #{bidaf_forward.22} parent=0 // pred_fallthru
    _
  // Predicated region
  $region6: #{bidaf_forward.22} parent=0 // pred_check
    _
  $region7: #{bidaf_forward.22} parent=0 // pred_check_branch
    %13 = sbr.rel (0) target = $region9
  $region8: #{bidaf_forward.22} parent=0 // pred_region
    _
  $region9: #{bidaf_forward.22} parent=0 // pred_fallthru
    _
  // Predicated region
  $region10: #{bidaf_forward.22} parent=0 // pred_check
    _
  $region11: #{bidaf_forward.22} parent=0 // pred_check_branch
    %15 = sbr.rel (0) target = $region13
  $region12: #{bidaf_forward.22} parent=0 // pred_region
    _
  $region13: #{bidaf_forward.22} parent=0 // pred_fallthru
    _
  // Predicated region
  $region14: #{bidaf_forward.22} parent=0 // pred_check
    _
  $region15: #{bidaf_forward.22} parent=0 // pred_check_branch
    %17 = sbr.rel (0) target = $region17
  $region16: #{bidaf_forward.22} parent=0 // pred_region
    _
  $region17: #{bidaf_forward.22} parent=0 // pred_fallthru
    _
  // Predicated region
  $region18: #{bidaf_forward.22} parent=0 // pred_check
    _
  $region19: #{bidaf_forward.22} parent=0 // pred_check_branch
    %19 = sbr.rel (0) target = $region21
  $region20: #{bidaf_forward.22} parent=0 // pred_region
    _
  $region21: #{bidaf_forward.22} parent=0 // pred_fallthru
    _
  %v21 = vld [vmem:[%s0] sm:$0xff]
  %v22 = vld [vmem:[%s0 + $0x8] sm:$0xff]
  %v23 = vld [vmem:[%s0 + $0x10] sm:$0xff]
  %v24 = vld [vmem:[%s0 + $0x18] sm:$0xff]
  %v25 = vpack.c.bf16 %v22, %v21
  %v26 = vpack.c.bf16 %v24, %v23
  %v27 = vld [vmem:[%s1] sm:$0xff]
  %v28 = vld [vmem:[%s1 + $0x8] sm:$0xff]
  %v29 = vpack.c.bf16 %v28, %v27
  %v30 = vld [vmem:[%s2] sm:$0x1]
  %v32 = vlaneseq
  %v33 = vshrl.u32 %v32, 7
  %v34 = vsub.s32 0, %v33
  %v35 = vrot.slane %v30, %v34
  %vm37 = vcmask 130048
  %v39 = vsel %vm37, %v25, 0
  %v42 = vsel %vm37, %v26, 0
  %44 = vmatprep.subr.bf16.mxu0 0
  %45 = vmatpush1.bf16.msra.mxu0 %v29
  %46 = vmatprep.subr.bf16.mxu0 0
  %47 = vmatpush1.bf16.msra.mxu0 0
  %48 = vmatprep.subr.bf16.mxu0 0
  %49 = vmatpush1.bf16.msra.mxu0 0
  %50 = vmatprep.subr.bf16.mxu0 0
  %51 = vmatpush1.bf16.msra.mxu0 0
  %52 = vmatprep.subr.bf16.mxu0 0
  %53 = vmatpush1.bf16.msra.mxu0 0
  %54 = vmatprep.subr.bf16.mxu0 0
  %55 = vmatpush1.bf16.msra.mxu0 0
  %56 = vmatprep.subr.bf16.mxu0 0
  %57 = vmatpush1.bf16.msra.mxu0 0
  %58 = vmatprep.subr.bf16.mxu0 0
  %59 = vmatpush1.bf16.msra.mxu0 0
  %60 = vmatprep.subr.bf16.mxu0 0
  %61 = vmatpush1.bf16.msra.mxu0 0
  %62 = vmatprep.subr.bf16.mxu0 0
  %63 = vmatpush1.bf16.msra.mxu0 0
  %64 = vmatprep.subr.bf16.mxu0 0
  %65 = vmatpush1.bf16.msra.mxu0 0
  %66 = vmatprep.subr.bf16.mxu0 0
  %67 = vmatpush1.bf16.msra.mxu0 0
  %68 = vmatprep.subr.bf16.mxu0 0
  %69 = vmatpush1.bf16.msra.mxu0 0
  %70 = vmatprep.subr.bf16.mxu0 0
  %71 = vmatpush1.bf16.msra.mxu0 0
  %72 = vmatprep.subr.bf16.mxu0 0
  %73 = vmatpush1.bf16.msra.mxu0 0
  %74 = vmatprep.subr.bf16.mxu0 0
  %75 = vmatpush1.bf16.msra.mxu0 0
  %76 = vmatprep.mubr.bf16.mxu0 0
  %77 = vmatmul.mubr.bf16.gmra.mrb[0].mxu0 %v39
  %v78 = vpop.f32.mrb[0].mxu0
  %v79 = vadd.f32 %v35, %v78
  %v80 = vpop.f32.mrb[0].mxu0
  %v81 = vpop.f32.mrb[0].mxu0
  %v82 = vadd.f32 %v35, %v81
  %v83 = vpop.f32.mrb[0].mxu0
  %84 = vmatprep.mubr.bf16.mxu0 0
  %85 = vmatmul.mubr.bf16.gmra.mrb[0].mxu0 %v42
  %v86 = vpop.f32.mrb[0].mxu0
  %v87 = vadd.f32 %v35, %v86
  %v88 = vpop.f32.mrb[0].mxu0
  %v89 = vpop.f32.mrb[0].mxu0
  %v90 = vadd.f32 %v35, %v89
  %v91 = vpop.f32.mrb[0].mxu0
  %92 = vdwg.mxu0
  %v93 = vxor.u32 %v79, 2147483648
  %v94 = vxor.u32 %v82, 2147483648
  %v95 = vxor.u32 %v87, 2147483648
  %v96 = vxor.u32 %v90, 2147483648
  %v97 = vmul.f32 %v93, 1.442695
  %v98 = vpow.pop %v97
  %v99 = vmul.f32 %v94, 1.442695
  %v100 = vpow.pop %v99
  %v101 = vmul.f32 %v95, 1.442695
  %v102 = vpow.pop %v101
  %v103 = vmul.f32 %v96, 1.442695
  %v104 = vpow.pop %v103
  %v105 = vadd.f32 %v98, 1.0
  %v106 = vadd.f32 %v100, 1.0
  %v107 = vadd.f32 %v102, 1.0
  %v108 = vadd.f32 %v104, 1.0
  %v109 = vrcp.pop %v105
  %v110 = vmul.f32 1.0, %v109
  %v111 = vrcp.pop %v106
  %v112 = vmul.f32 1.0, %v111
  %v113 = vrcp.pop %v107
  %v114 = vmul.f32 1.0, %v113
  %v115 = vrcp.pop %v108
  %v116 = vmul.f32 1.0, %v115
  %v117 = vld [vmem:[%s3] sm:$0xff]
  %v118 = vld [vmem:[%s3 + $0x8] sm:$0xff]
  %v119 = vpack.c.bf16 %v118, %v117
  %v120 = vld [vmem:[%s4] sm:$0x1]
  %v122 = vlaneseq
  %v123 = vshrl.u32 %v122, 7
  %v124 = vsub.s32 0, %v123
  %v125 = vrot.slane %v120, %v124
  %127 = vmatprep.subr.bf16.mxu0 0
  %128 = vmatpush1.bf16.msra.mxu0 %v119
  %129 = vmatprep.subr.bf16.mxu0 0
  %130 = vmatpush1.bf16.msra.mxu0 0
  %131 = vmatprep.subr.bf16.mxu0 0
  %132 = vmatpush1.bf16.msra.mxu0 0
  %133 = vmatprep.subr.bf16.mxu0 0
  %134 = vmatpush1.bf16.msra.mxu0 0
  %135 = vmatprep.subr.bf16.mxu0 0
  %136 = vmatpush1.bf16.msra.mxu0 0
  %137 = vmatprep.subr.bf16.mxu0 0
  %138 = vmatpush1.bf16.msra.mxu0 0
  %139 = vmatprep.subr.bf16.mxu0 0
  %140 = vmatpush1.bf16.msra.mxu0 0
  %141 = vmatprep.subr.bf16.mxu0 0
  %142 = vmatpush1.bf16.msra.mxu0 0
  %143 = vmatprep.subr.bf16.mxu0 0
  %144 = vmatpush1.bf16.msra.mxu0 0
  %145 = vmatprep.subr.bf16.mxu0 0
  %146 = vmatpush1.bf16.msra.mxu0 0
  %147 = vmatprep.subr.bf16.mxu0 0
  %148 = vmatpush1.bf16.msra.mxu0 0
  %149 = vmatprep.subr.bf16.mxu0 0
  %150 = vmatpush1.bf16.msra.mxu0 0
  %151 = vmatprep.subr.bf16.mxu0 0
  %152 = vmatpush1.bf16.msra.mxu0 0
  %153 = vmatprep.subr.bf16.mxu0 0
  %154 = vmatpush1.bf16.msra.mxu0 0
  %155 = vmatprep.subr.bf16.mxu0 0
  %156 = vmatpush1.bf16.msra.mxu0 0
  %157 = vmatprep.subr.bf16.mxu0 0
  %158 = vmatpush1.bf16.msra.mxu0 0
  %159 = vmatprep.mubr.bf16.mxu0 0
  %160 = vmatmul.mubr.bf16.gmra.mrb[0].mxu0 %v39
  %v161 = vpop.f32.mrb[0].mxu0
  %v162 = vadd.f32 %v125, %v161
  %v163 = vpop.f32.mrb[0].mxu0
  %v164 = vpop.f32.mrb[0].mxu0
  %v165 = vadd.f32 %v125, %v164
  %v166 = vpop.f32.mrb[0].mxu0
  %167 = vmatprep.mubr.bf16.mxu0 0
  %168 = vmatmul.mubr.bf16.gmra.mrb[0].mxu0 %v42
  %v169 = vpop.f32.mrb[0].mxu0
  %v170 = vadd.f32 %v125, %v169
  %v171 = vpop.f32.mrb[0].mxu0
  %v172 = vpop.f32.mrb[0].mxu0
  %v173 = vadd.f32 %v125, %v172
  %v174 = vpop.f32.mrb[0].mxu0
  %175 = vdwg.mxu0
  %v176 = vmax.f32 %v162, 0.0
  %v177 = vmax.f32 %v165, 0.0
  %v178 = vmax.f32 %v170, 0.0
  %v179 = vmax.f32 %v173, 0.0
  %v180 = vmul.f32 %v110, %v176
  %v181 = vmul.f32 %v112, %v177
  %v182 = vmul.f32 %v114, %v178
  %v183 = vmul.f32 %v116, %v179
  %v184 = vsub.f32 1.0, %v110
  %v185 = vsub.f32 1.0, %v112
  %v186 = vsub.f32 1.0, %v114
  %v187 = vsub.f32 1.0, %v116
  %v188 = vmul.f32 %v184, %v21
  %v189 = vmul.f32 %v185, %v22
  %v190 = vmul.f32 %v186, %v23
  %v191 = vmul.f32 %v187, %v24
  %v192 = vadd.f32 %v180, %v188
  %v193 = vadd.f32 %v181, %v189
  %v194 = vadd.f32 %v182, %v190
  %v195 = vadd.f32 %v183, %v191
  %v196 = vpack.c.bf16 %v193, %v192
  %v197 = vpack.c.bf16 %v195, %v194
  %s198 = scalar_lea.vmem %s1, 16
  %v199 = vld [vmem:[%s198] sm:$0xff]
  %v200 = vld [vmem:[%s198 + $0x8] sm:$0xff]
  %v201 = vpack.c.bf16 %v200, %v199
  %s202 = scalar_lea.vmem %s2, 1
  %v203 = vld [vmem:[%s202] sm:$0x1]
  %v205 = vlaneseq
  %v206 = vshrl.u32 %v205, 7
  %v207 = vsub.s32 0, %v206
  %v208 = vrot.slane %v203, %v207
  %v211 = vsel %vm37, %v196, 0
  %v214 = vsel %vm37, %v197, 0
  %216 = vmatprep.subr.bf16.mxu0 0
  %217 = vmatpush1.bf16.msra.mxu0 %v201
  %218 = vmatprep.subr.bf16.mxu0 0
  %219 = vmatpush1.bf16.msra.mxu0 0
  %220 = vmatprep.subr.bf16.mxu0 0
  %221 = vmatpush1.bf16.msra.mxu0 0
  %222 = vmatprep.subr.bf16.mxu0 0
  %223 = vmatpush1.bf16.msra.mxu0 0
  %224 = vmatprep.subr.bf16.mxu0 0
  %225 = vmatpush1.bf16.msra.mxu0 0
  %226 = vmatprep.subr.bf16.mxu0 0
  %227 = vmatpush1.bf16.msra.mxu0 0
  %228 = vmatprep.subr.bf16.mxu0 0
  %229 = vmatpush1.bf16.msra.mxu0 0
  %230 = vmatprep.subr.bf16.mxu0 0
  %231 = vmatpush1.bf16.msra.mxu0 0
  %232 = vmatprep.subr.bf16.mxu0 0
  %233 = vmatpush1.bf16.msra.mxu0 0
  %234 = vmatprep.subr.bf16.mxu0 0
  %235 = vmatpush1.bf16.msra.mxu0 0
  %236 = vmatprep.subr.bf16.mxu0 0
  %237 = vmatpush1.bf16.msra.mxu0 0
  %238 = vmatprep.subr.bf16.mxu0 0
  %239 = vmatpush1.bf16.msra.mxu0 0
  %240 = vmatprep.subr.bf16.mxu0 0
  %241 = vmatpush1.bf16.msra.mxu0 0
  %242 = vmatprep.subr.bf16.mxu0 0
  %243 = vmatpush1.bf16.msra.mxu0 0
  %244 = vmatprep.subr.bf16.mxu0 0
  %245 = vmatpush1.bf16.msra.mxu0 0
  %246 = vmatprep.subr.bf16.mxu0 0
  %247 = vmatpush1.bf16.msra.mxu0 0
  %248 = vmatprep.mubr.bf16.mxu0 0
  %249 = vmatmul.mubr.bf16.gmra.mrb[0].mxu0 %v211
  %v250 = vpop.f32.mrb[0].mxu0
  %v251 = vadd.f32 %v208, %v250
  %v252 = vpop.f32.mrb[0].mxu0
  %v253 = vpop.f32.mrb[0].mxu0
  %v254 = vadd.f32 %v208, %v253
  %v255 = vpop.f32.mrb[0].mxu0
  %256 = vmatprep.mubr.bf16.mxu0 0
  %257 = vmatmul.mubr.bf16.gmra.mrb[0].mxu0 %v214
  %v258 = vpop.f32.mrb[0].mxu0
  %v259 = vadd.f32 %v208, %v258
  %v260 = vpop.f32.mrb[0].mxu0
  %v261 = vpop.f32.mrb[0].mxu0
  %v262 = vadd.f32 %v208, %v261
  %v263 = vpop.f32.mrb[0].mxu0
  %264 = vdwg.mxu0
  %v265 = vxor.u32 %v251, 2147483648
  %v266 = vxor.u32 %v254, 2147483648
  %v267 = vxor.u32 %v259, 2147483648
  %v268 = vxor.u32 %v262, 2147483648
  %v269 = vmul.f32 %v265, 1.442695
  %v270 = vpow.pop %v269
  %v271 = vmul.f32 %v266, 1.442695
  %v272 = vpow.pop %v271
  %v273 = vmul.f32 %v267, 1.442695
  %v274 = vpow.pop %v273
  %v275 = vmul.f32 %v268, 1.442695
  %v276 = vpow.pop %v275
  %v277 = vadd.f32 %v270, 1.0
  %v278 = vadd.f32 %v272, 1.0
  %v279 = vadd.f32 %v274, 1.0
  %v280 = vadd.f32 %v276, 1.0
  %v281 = vrcp.pop %v277
  %v282 = vmul.f32 1.0, %v281
  %v283 = vrcp.pop %v278
  %v284 = vmul.f32 1.0, %v283
  %v285 = vrcp.pop %v279
  %v286 = vmul.f32 1.0, %v285
  %v287 = vrcp.pop %v280
  %v288 = vmul.f32 1.0, %v287
  %s289 = scalar_lea.vmem %s3, 16
  %v290 = vld [vmem:[%s289] sm:$0xff]
  %v291 = vld [vmem:[%s289 + $0x8] sm:$0xff]
  %v292 = vpack.c.bf16 %v291, %v290
  %s293 = scalar_lea.vmem %s4, 1
  %v294 = vld [vmem:[%s293] sm:$0x1]
  %v296 = vlaneseq
  %v297 = vshrl.u32 %v296, 7
  %v298 = vsub.s32 0, %v297
  %v299 = vrot.slane %v294, %v298
  %301 = vmatprep.subr.bf16.mxu0 0
  %302 = vmatpush1.bf16.msra.mxu0 %v292
  %303 = vmatprep.subr.bf16.mxu0 0
  %304 = vmatpush1.bf16.msra.mxu0 0
  %305 = vmatprep.subr.bf16.mxu0 0
  %306 = vmatpush1.bf16.msra.mxu0 0
  %307 = vmatprep.subr.bf16.mxu0 0
  %308 = vmatpush1.bf16.msra.mxu0 0
  %309 = vmatprep.subr.bf16.mxu0 0
  %310 = vmatpush1.bf16.msra.mxu0 0
  %311 = vmatprep.subr.bf16.mxu0 0
  %312 = vmatpush1.bf16.msra.mxu0 0
  %313 = vmatprep.subr.bf16.mxu0 0
  %314 = vmatpush1.bf16.msra.mxu0 0
  %315 = vmatprep.subr.bf16.mxu0 0
  %316 = vmatpush1.bf16.msra.mxu0 0
  %317 = vmatprep.subr.bf16.mxu0 0
  %318 = vmatpush1.bf16.msra.mxu0 0
  %319 = vmatprep.subr.bf16.mxu0 0
  %320 = vmatpush1.bf16.msra.mxu0 0
  %321 = vmatprep.subr.bf16.mxu0 0
  %322 = vmatpush1.bf16.msra.mxu0 0
  %323 = vmatprep.subr.bf16.mxu0 0
  %324 = vmatpush1.bf16.msra.mxu0 0
  %325 = vmatprep.subr.bf16.mxu0 0
  %326 = vmatpush1.bf16.msra.mxu0 0
  %327 = vmatprep.subr.bf16.mxu0 0
  %328 = vmatpush1.bf16.msra.mxu0 0
  %329 = vmatprep.subr.bf16.mxu0 0
  %330 = vmatpush1.bf16.msra.mxu0 0
  %331 = vmatprep.subr.bf16.mxu0 0
  %332 = vmatpush1.bf16.msra.mxu0 0
  %333 = vmatprep.mubr.bf16.mxu0 0
  %334 = vmatmul.mubr.bf16.gmra.mrb[0].mxu0 %v211
  %v335 = vpop.f32.mrb[0].mxu0
  %v336 = vadd.f32 %v299, %v335
  %v337 = vpop.f32.mrb[0].mxu0
  %v338 = vpop.f32.mrb[0].mxu0
  %v339 = vadd.f32 %v299, %v338
  %v340 = vpop.f32.mrb[0].mxu0
  %341 = vmatprep.mubr.bf16.mxu0 0
  %342 = vmatmul.mubr.bf16.gmra.mrb[0].mxu0 %v214
  %v343 = vpop.f32.mrb[0].mxu0
  %v344 = vadd.f32 %v299, %v343
  %v345 = vpop.f32.mrb[0].mxu0
  %v346 = vpop.f32.mrb[0].mxu0
  %v347 = vadd.f32 %v299, %v346
  %v348 = vpop.f32.mrb[0].mxu0
  %349 = vdwg.mxu0
  %v350 = vmax.f32 %v336, 0.0
  %v351 = vmax.f32 %v339, 0.0
  %v352 = vmax.f32 %v344, 0.0
  %v353 = vmax.f32 %v347, 0.0
  %v354 = vmul.f32 %v282, %v350
  %v355 = vmul.f32 %v284, %v351
  %v356 = vmul.f32 %v286, %v352
  %v357 = vmul.f32 %v288, %v353
  %v358 = vsub.f32 1.0, %v282
  %v359 = vsub.f32 1.0, %v284
  %v360 = vsub.f32 1.0, %v286
  %v361 = vsub.f32 1.0, %v288
  %v362 = vmul.f32 %v358, %v192
  %v363 = vmul.f32 %v359, %v193
  %v364 = vmul.f32 %v360, %v194
  %v365 = vmul.f32 %v361, %v195
  %v366 = vadd.f32 %v354, %v362
  %v367 = vadd.f32 %v355, %v363
  %v368 = vadd.f32 %v356, %v364
  %v369 = vadd.f32 %v357, %v365
  %370 = vst.msk [vmem:[%s5] sm:$0xff] %vm37, %v366
  %371 = vst.msk [vmem:[%s5 + $0x8] sm:$0xff] %vm37, %v367
  %372 = vst.msk [vmem:[%s5 + $0x10] sm:$0xff] %vm37, %v368
  %373 = vst.msk [vmem:[%s5 + $0x18] sm:$0xff] %vm37, %v369
  // Predicated region
  $region22: #{bidaf_forward.22} parent=0 // pred_check
    _
  $region23: #{bidaf_forward.22} parent=0 // pred_check_branch
    %375 = sbr.rel (0) target = $region25
  $region24: #{bidaf_forward.22} parent=0 // pred_region
    _
  $region25: #{bidaf_forward.22} parent=0 // pred_fallthru
    _
  // Predicated region
  $region26: #{bidaf_forward.22} parent=0 // pred_check
    _
  $region27: #{bidaf_forward.22} parent=0 // pred_check_branch
    %377 = sbr.rel (0) target = $region29
  $region28: #{bidaf_forward.22} parent=0 // pred_region
    _
  $region29: #{bidaf_forward.22} parent=0 // pred_fallthru
    _

// kernel: bidaf_forward.21
$region0: #{bidaf_forward.21}
  #allocation0 [shape = 'u32[]', space=smem, size = 0x4, offset = 0x4, fixed_abs, tag = 'smem constant byte address 0x4 - core index']
  #allocation1 [shape = 'u32[144,128]{1,0:T(1,128)}', space=vmem, size = 0x12000, scoped, tag = 'internal scratch']
  %s0 = inlined_call_operand.vmem [shape: f32[8,32,8], index: 0, kind: input, shape index: {}]
  %s1 = inlined_call_operand.vmem [shape: f32[3,8,8], index: 1, kind: input, shape index: {}]
  %s2 = inlined_call_operand.vmem [shape: f32[1,8], index: 2, kind: input, shape index: {}]
  %s3 = inlined_call_operand.vmem [shape: f32[32,8], index: 3, kind: output, shape index: {}]
  %s4 = sld [smem:[#allocation0]]
  $region22: #{bidaf_forward.21} parent=0
    _
  %s6 = ssub.s32 1, %s4
  %s7 = scalar_select 0, %s6, %s4
  // Predicated region
  $region2: #{bidaf_forward.21} parent=0 // pred_check
    _
  $region3: #{bidaf_forward.21} parent=0 // pred_check_branch
    %9 = sbr.rel (0) target = $region5
  $region4: #{bidaf_forward.21} parent=0 // pred_region
    _
  $region5: #{bidaf_forward.21} parent=0 // pred_fallthru
    _
  // Predicated region
  $region6: #{bidaf_forward.21} parent=0 // pred_check
    _
  $region7: #{bidaf_forward.21} parent=0 // pred_check_branch
    %11 = sbr.rel (0) target = $region9
  $region8: #{bidaf_forward.21} parent=0 // pred_region
    _
  $region9: #{bidaf_forward.21} parent=0 // pred_fallthru
    _
  // Predicated region
  $region10: #{bidaf_forward.21} parent=0 // pred_check
    _
  $region11: #{bidaf_forward.21} parent=0 // pred_check_branch
    %13 = sbr.rel (0) target = $region13
  $region12: #{bidaf_forward.21} parent=0 // pred_region
    _
  $region13: #{bidaf_forward.21} parent=0 // pred_fallthru
    _
  %v15 = vld [vmem:[%s2] sm:$0x1]
  %v16 = vld [vmem:[%s0] sm:$0xff]
  %v17 = vld [vmem:[%s0 + $0x8] sm:$0xff]
  %v18 = vld [vmem:[%s0 + $0x10] sm:$0xff]
  %v19 = vld [vmem:[%s0 + $0x18] sm:$0xff]
  %v20 = vpack.c.bf16 %v17, %v16
  %v21 = vpack.c.bf16 %v19, %v18
  %v22 = vld [vmem:[%s1] sm:$0xff]
  %v23 = vpack.c.bf16 %v22, %v22
  %vm24 = vcmask 64512
  %v26 = vsel %vm24, %v20, 0
  %v29 = vsel %vm24, %v21, 0
  %vm31 = vcmask 1043456
  %v33 = vsel %vm31, %v23, 0
  %35 = vmatprep.subr.bf16.mxu0 0
  %36 = vmatpush1.bf16.msra.mxu0 %v33
  %37 = vmatprep.subr.bf16.mxu0 0
  %38 = vmatpush1.bf16.msra.mxu0 0
  %39 = vmatprep.subr.bf16.mxu0 0
  %40 = vmatpush1.bf16.msra.mxu0 0
  %41 = vmatprep.subr.bf16.mxu0 0
  %42 = vmatpush1.bf16.msra.mxu0 0
  %43 = vmatprep.subr.bf16.mxu0 0
  %44 = vmatpush1.bf16.msra.mxu0 0
  %45 = vmatprep.subr.bf16.mxu0 0
  %46 = vmatpush1.bf16.msra.mxu0 0
  %47 = vmatprep.subr.bf16.mxu0 0
  %48 = vmatpush1.bf16.msra.mxu0 0
  %49 = vmatprep.subr.bf16.mxu0 0
  %50 = vmatpush1.bf16.msra.mxu0 0
  %51 = vmatprep.subr.bf16.mxu0 0
  %52 = vmatpush1.bf16.msra.mxu0 0
  %53 = vmatprep.subr.bf16.mxu0 0
  %54 = vmatpush1.bf16.msra.mxu0 0
  %55 = vmatprep.subr.bf16.mxu0 0
  %56 = vmatpush1.bf16.msra.mxu0 0
  %57 = vmatprep.subr.bf16.mxu0 0
  %58 = vmatpush1.bf16.msra.mxu0 0
  %59 = vmatprep.subr.bf16.mxu0 0
  %60 = vmatpush1.bf16.msra.mxu0 0
  %61 = vmatprep.subr.bf16.mxu0 0
  %62 = vmatpush1.bf16.msra.mxu0 0
  %63 = vmatprep.subr.bf16.mxu0 0
  %64 = vmatpush1.bf16.msra.mxu0 0
  %65 = vmatprep.subr.bf16.mxu0 0
  %66 = vmatpush1.bf16.msra.mxu0 0
  %67 = vmatprep.mubr.bf16.mxu0 0
  %68 = vmatmul.mubr.bf16.gmra.mrb[0].mxu0 %v26
  %v69 = vpop.f32.mrb[0].mxu0
  %v70 = vadd.f32 0.0, %v69
  %v71 = vpop.f32.mrb[0].mxu0
  %v72 = vpop.f32.mrb[0].mxu0
  %v73 = vadd.f32 0.0, %v72
  %v74 = vpop.f32.mrb[0].mxu0
  %75 = vmatprep.mubr.bf16.mxu0 0
  %76 = vmatmul.mubr.bf16.gmra.mrb[0].mxu0 %v29
  %v77 = vpop.f32.mrb[0].mxu0
  %v78 = vadd.f32 0.0, %v77
  %v79 = vpop.f32.mrb[0].mxu0
  %v80 = vpop.f32.mrb[0].mxu0
  %v81 = vadd.f32 0.0, %v80
  %v82 = vpop.f32.mrb[0].mxu0
  %83 = vdwg.mxu0
  %v85 = vlaneseq
  %v86 = vshrl.u32 %v85, 7
  %v87 = vsub.s32 0, %v86
  %v88 = vrot.slane %v15, %v87
  %v90 = vadd.f32 %v88, %v70
  %v91 = vadd.f32 %v88, %v73
  %v92 = vadd.f32 %v88, %v78
  %v93 = vadd.f32 %v88, %v81
  %s94 = scalar_lea.vmem %s0, 32
  %v95 = vld [vmem:[%s94] sm:$0xff]
  %v96 = vld [vmem:[%s94 + $0x8] sm:$0xff]
  %v97 = vld [vmem:[%s94 + $0x10] sm:$0xff]
  %v98 = vld [vmem:[%s94 + $0x18] sm:$0xff]
  %v99 = vpack.c.bf16 %v96, %v95
  %v100 = vpack.c.bf16 %v98, %v97
  %s101 = scalar_lea.vmem %s1, 8
  %v102 = vld [vmem:[%s101] sm:$0xff]
  %v103 = vpack.c.bf16 %v102, %v102
  %v105 = vsel %vm24, %v99, 0
  %v108 = vsel %vm24, %v100, 0
  %v111 = vsel %vm31, %v103, 0
  %113 = vmatprep.subr.bf16.mxu0 0
  %114 = vmatpush1.bf16.msra.mxu0 %v111
  %115 = vmatprep.subr.bf16.mxu0 0
  %116 = vmatpush1.bf16.msra.mxu0 0
  %117 = vmatprep.subr.bf16.mxu0 0
  %118 = vmatpush1.bf16.msra.mxu0 0
  %119 = vmatprep.subr.bf16.mxu0 0
  %120 = vmatpush1.bf16.msra.mxu0 0
  %121 = vmatprep.subr.bf16.mxu0 0
  %122 = vmatpush1.bf16.msra.mxu0 0
  %123 = vmatprep.subr.bf16.mxu0 0
  %124 = vmatpush1.bf16.msra.mxu0 0
  %125 = vmatprep.subr.bf16.mxu0 0
  %126 = vmatpush1.bf16.msra.mxu0 0
  %127 = vmatprep.subr.bf16.mxu0 0
  %128 = vmatpush1.bf16.msra.mxu0 0
  %129 = vmatprep.subr.bf16.mxu0 0
  %130 = vmatpush1.bf16.msra.mxu0 0
  %131 = vmatprep.subr.bf16.mxu0 0
  %132 = vmatpush1.bf16.msra.mxu0 0
  %133 = vmatprep.subr.bf16.mxu0 0
  %134 = vmatpush1.bf16.msra.mxu0 0
  %135 = vmatprep.subr.bf16.mxu0 0
  %136 = vmatpush1.bf16.msra.mxu0 0
  %137 = vmatprep.subr.bf16.mxu0 0
  %138 = vmatpush1.bf16.msra.mxu0 0
  %139 = vmatprep.subr.bf16.mxu0 0
  %140 = vmatpush1.bf16.msra.mxu0 0
  %141 = vmatprep.subr.bf16.mxu0 0
  %142 = vmatpush1.bf16.msra.mxu0 0
  %143 = vmatprep.subr.bf16.mxu0 0
  %144 = vmatpush1.bf16.msra.mxu0 0
  %145 = vmatprep.mubr.bf16.mxu0 0
  %146 = vmatmul.mubr.bf16.gmra.mrb[0].mxu0 %v105
  %v147 = vpop.f32.mrb[0].mxu0
  %v148 = vadd.f32 0.0, %v147
  %v149 = vpop.f32.mrb[0].mxu0
  %v150 = vpop.f32.mrb[0].mxu0
  %v151 = vadd.f32 0.0, %v150
  %v152 = vpop.f32.mrb[0].mxu0
  %153 = vmatprep.mubr.bf16.mxu0 0
  %154 = vmatmul.mubr.bf16.gmra.mrb[0].mxu0 %v108
  %v155 = vpop.f32.mrb[0].mxu0
  %v156 = vadd.f32 0.0, %v155
  %v157 = vpop.f32.mrb[0].mxu0
  %v158 = vpop.f32.mrb[0].mxu0
  %v159 = vadd.f32 0.0, %v158
  %v160 = vpop.f32.mrb[0].mxu0
  %161 = vdwg.mxu0
  %v162 = vadd.f32 %v90, %v148
  %v163 = vadd.f32 %v91, %v151
  %v164 = vadd.f32 %v92, %v156
  %v165 = vadd.f32 %v93, %v159
  %s166 = scalar_lea.vmem %s0, 64
  %v167 = vld [vmem:[%s166] sm:$0xff]
  %v168 = vld [vmem:[%s166 + $0x8] sm:$0xff]
  %v169 = vld [vmem:[%s166 + $0x10] sm:$0xff]
  %v170 = vld [vmem:[%s166 + $0x18] sm:$0xff]
  %v171 = vpack.c.bf16 %v168, %v167
  %v172 = vpack.c.bf16 %v170, %v169
  %s173 = scalar_lea.vmem %s1, 16
  %v174 = vld [vmem:[%s173] sm:$0xff]
  %v175 = vpack.c.bf16 %v174, %v174
  %v177 = vsel %vm24, %v171, 0
  %v180 = vsel %vm24, %v172, 0
  %v183 = vsel %vm31, %v175, 0
  %185 = vmatprep.subr.bf16.mxu0 0
  %186 = vmatpush1.bf16.msra.mxu0 %v183
  %187 = vmatprep.subr.bf16.mxu0 0
  %188 = vmatpush1.bf16.msra.mxu0 0
  %189 = vmatprep.subr.bf16.mxu0 0
  %190 = vmatpush1.bf16.msra.mxu0 0
  %191 = vmatprep.subr.bf16.mxu0 0
  %192 = vmatpush1.bf16.msra.mxu0 0
  %193 = vmatprep.subr.bf16.mxu0 0
  %194 = vmatpush1.bf16.msra.mxu0 0
  %195 = vmatprep.subr.bf16.mxu0 0
  %196 = vmatpush1.bf16.msra.mxu0 0
  %197 = vmatprep.subr.bf16.mxu0 0
  %198 = vmatpush1.bf16.msra.mxu0 0
  %199 = vmatprep.subr.bf16.mxu0 0
  %200 = vmatpush1.bf16.msra.mxu0 0
  %201 = vmatprep.subr.bf16.mxu0 0
  %202 = vmatpush1.bf16.msra.mxu0 0
  %203 = vmatprep.subr.bf16.mxu0 0
  %204 = vmatpush1.bf16.msra.mxu0 0
  %205 = vmatprep.subr.bf16.mxu0 0
  %206 = vmatpush1.bf16.msra.mxu0 0
  %207 = vmatprep.subr.bf16.mxu0 0
  %208 = vmatpush1.bf16.msra.mxu0 0
  %209 = vmatprep.subr.bf16.mxu0 0
  %210 = vmatpush1.bf16.msra.mxu0 0
  %211 = vmatprep.subr.bf16.mxu0 0
  %212 = vmatpush1.bf16.msra.mxu0 0
  %213 = vmatprep.subr.bf16.mxu0 0
  %214 = vmatpush1.bf16.msra.mxu0 0
  %215 = vmatprep.subr.bf16.mxu0 0
  %216 = vmatpush1.bf16.msra.mxu0 0
  %217 = vmatprep.mubr.bf16.mxu0 0
  %218 = vmatmul.mubr.bf16.gmra.mrb[0].mxu0 %v177
  %v219 = vpop.f32.mrb[0].mxu0
  %v220 = vadd.f32 0.0, %v219
  %v221 = vpop.f32.mrb[0].mxu0
  %v222 = vpop.f32.mrb[0].mxu0
  %v223 = vadd.f32 0.0, %v222
  %v224 = vpop.f32.mrb[0].mxu0
  %225 = vmatprep.mubr.bf16.mxu0 0
  %226 = vmatmul.mubr.bf16.gmra.mrb[0].mxu0 %v180
  %v227 = vpop.f32.mrb[0].mxu0
  %v228 = vadd.f32 0.0, %v227
  %v229 = vpop.f32.mrb[0].mxu0
  %v230 = vpop.f32.mrb[0].mxu0
  %v231 = vadd.f32 0.0, %v230
  %v232 = vpop.f32.mrb[0].mxu0
  %233 = vdwg.mxu0
  %v234 = vadd.f32 %v162, %v220
  %v235 = vadd.f32 %v163, %v223
  %v236 = vadd.f32 %v164, %v228
  %v237 = vadd.f32 %v165, %v231
  %v238 = vmax.f32 %v234, 0.0
  %v239 = vmax.f32 %v235, 0.0
  %v240 = vmax.f32 %v236, 0.0
  %v241 = vmax.f32 %v237, 0.0
  %242 = vmatprep.subr.bf16.mxu0 0
  %243 = vmatpush1.bf16.msra.mxu0 %v33
  %244 = vmatprep.subr.bf16.mxu0 0
  %245 = vmatpush1.bf16.msra.mxu0 0
  %246 = vmatprep.subr.bf16.mxu0 0
  %247 = vmatpush1.bf16.msra.mxu0 0
  %248 = vmatprep.subr.bf16.mxu0 0
  %249 = vmatpush1.bf16.msra.mxu0 0
  %250 = vmatprep.subr.bf16.mxu0 0
  %251 = vmatpush1.bf16.msra.mxu0 0
  %252 = vmatprep.subr.bf16.mxu0 0
  %253 = vmatpush1.bf16.msra.mxu0 0
  %254 = vmatprep.subr.bf16.mxu0 0
  %255 = vmatpush1.bf16.msra.mxu0 0
  %256 = vmatprep.subr.bf16.mxu0 0
  %257 = vmatpush1.bf16.msra.mxu0 0
  %258 = vmatprep.subr.bf16.mxu0 0
  %259 = vmatpush1.bf16.msra.mxu0 0
  %260 = vmatprep.subr.bf16.mxu0 0
  %261 = vmatpush1.bf16.msra.mxu0 0
  %262 = vmatprep.subr.bf16.mxu0 0
  %263 = vmatpush1.bf16.msra.mxu0 0
  %264 = vmatprep.subr.bf16.mxu0 0
  %265 = vmatpush1.bf16.msra.mxu0 0
  %266 = vmatprep.subr.bf16.mxu0 0
  %267 = vmatpush1.bf16.msra.mxu0 0
  %268 = vmatprep.subr.bf16.mxu0 0
  %269 = vmatpush1.bf16.msra.mxu0 0
  %270 = vmatprep.subr.bf16.mxu0 0
  %271 = vmatpush1.bf16.msra.mxu0 0
  %272 = vmatprep.subr.bf16.mxu0 0
  %273 = vmatpush1.bf16.msra.mxu0 0
  %274 = vmatprep.mubr.bf16.mxu0 0
  %275 = vmatmul.mubr.bf16.gmra.mrb[0].mxu0 %v105
  %v276 = vpop.f32.mrb[0].mxu0
  %v277 = vadd.f32 0.0, %v276
  %v278 = vpop.f32.mrb[0].mxu0
  %v279 = vpop.f32.mrb[0].mxu0
  %v280 = vadd.f32 0.0, %v279
  %v281 = vpop.f32.mrb[0].mxu0
  %282 = vmatprep.mubr.bf16.mxu0 0
  %283 = vmatmul.mubr.bf16.gmra.mrb[0].mxu0 %v108
  %v284 = vpop.f32.mrb[0].mxu0
  %v285 = vadd.f32 0.0, %v284
  %v286 = vpop.f32.mrb[0].mxu0
  %v287 = vpop.f32.mrb[0].mxu0
  %v288 = vadd.f32 0.0, %v287
  %v289 = vpop.f32.mrb[0].mxu0
  %290 = vdwg.mxu0
  %v291 = vadd.f32 %v88, %v277
  %v292 = vadd.f32 %v88, %v280
  %v293 = vadd.f32 %v88, %v285
  %v294 = vadd.f32 %v88, %v288
  %295 = vmatprep.subr.bf16.mxu0 0
  %296 = vmatpush1.bf16.msra.mxu0 %v111
  %297 = vmatprep.subr.bf16.mxu0 0
  %298 = vmatpush1.bf16.msra.mxu0 0
  %299 = vmatprep.subr.bf16.mxu0 0
  %300 = vmatpush1.bf16.msra.mxu0 0
  %301 = vmatprep.subr.bf16.mxu0 0
  %302 = vmatpush1.bf16.msra.mxu0 0
  %303 = vmatprep.subr.bf16.mxu0 0
  %304 = vmatpush1.bf16.msra.mxu0 0
  %305 = vmatprep.subr.bf16.mxu0 0
  %306 = vmatpush1.bf16.msra.mxu0 0
  %307 = vmatprep.subr.bf16.mxu0 0
  %308 = vmatpush1.bf16.msra.mxu0 0
  %309 = vmatprep.subr.bf16.mxu0 0
  %310 = vmatpush1.bf16.msra.mxu0 0
  %311 = vmatprep.subr.bf16.mxu0 0
  %312 = vmatpush1.bf16.msra.mxu0 0
  %313 = vmatprep.subr.bf16.mxu0 0
  %314 = vmatpush1.bf16.msra.mxu0 0
  %315 = vmatprep.subr.bf16.mxu0 0
  %316 = vmatpush1.bf16.msra.mxu0 0
  %317 = vmatprep.subr.bf16.mxu0 0
  %318 = vmatpush1.bf16.msra.mxu0 0
  %319 = vmatprep.subr.bf16.mxu0 0
  %320 = vmatpush1.bf16.msra.mxu0 0
  %321 = vmatprep.subr.bf16.mxu0 0
  %322 = vmatpush1.bf16.msra.mxu0 0
  %323 = vmatprep.subr.bf16.mxu0 0
  %324 = vmatpush1.bf16.msra.mxu0 0
  %325 = vmatprep.subr.bf16.mxu0 0
  %326 = vmatpush1.bf16.msra.mxu0 0
  %327 = vmatprep.mubr.bf16.mxu0 0
  %328 = vmatmul.mubr.bf16.gmra.mrb[0].mxu0 %v177
  %v329 = vpop.f32.mrb[0].mxu0
  %v330 = vadd.f32 0.0, %v329
  %v331 = vpop.f32.mrb[0].mxu0
  %v332 = vpop.f32.mrb[0].mxu0
  %v333 = vadd.f32 0.0, %v332
  %v334 = vpop.f32.mrb[0].mxu0
  %335 = vmatprep.mubr.bf16.mxu0 0
  %336 = vmatmul.mubr.bf16.gmra.mrb[0].mxu0 %v180
  %v337 = vpop.f32.mrb[0].mxu0
  %v338 = vadd.f32 0.0, %v337
  %v339 = vpop.f32.mrb[0].mxu0
  %v340 = vpop.f32.mrb[0].mxu0
  %v341 = vadd.f32 0.0, %v340
  %v342 = vpop.f32.mrb[0].mxu0
  %343 = vdwg.mxu0
  %v344 = vadd.f32 %v291, %v330
  %v345 = vadd.f32 %v292, %v333
  %v346 = vadd.f32 %v293, %v338
  %v347 = vadd.f32 %v294, %v341
  %s348 = scalar_lea.vmem %s0, 96
  %v349 = vld [vmem:[%s348] sm:$0xff]
  %v350 = vld [vmem:[%s348 + $0x8] sm:$0xff]
  %v351 = vld [vmem:[%s348 + $0x10] sm:$0xff]
  %v352 = vld [vmem:[%s348 + $0x18] sm:$0xff]
  %v353 = vpack.c.bf16 %v350, %v349
  %v354 = vpack.c.bf16 %v352, %v351
  %v356 = vsel %vm24, %v353, 0
  %v359 = vsel %vm24, %v354, 0
  %361 = vmatprep.subr.bf16.mxu0 0
  %362 = vmatpush1.bf16.msra.mxu0 %v183
  %363 = vmatprep.subr.bf16.mxu0 0
  %364 = vmatpush1.bf16.msra.mxu0 0
  %365 = vmatprep.subr.bf16.mxu0 0
  %366 = vmatpush1.bf16.msra.mxu0 0
  %367 = vmatprep.subr.bf16.mxu0 0
  %368 = vmatpush1.bf16.msra.mxu0 0
  %369 = vmatprep.subr.bf16.mxu0 0
  %370 = vmatpush1.bf16.msra.mxu0 0
  %371 = vmatprep.subr.bf16.mxu0 0
  %372 = vmatpush1.bf16.msra.mxu0 0
  %373 = vmatprep.subr.bf16.mxu0 0
  %374 = vmatpush1.bf16.msra.mxu0 0
  %375 = vmatprep.subr.bf16.mxu0 0
  %376 = vmatpush1.bf16.msra.mxu0 0
  %377 = vmatprep.subr.bf16.mxu0 0
  %378 = vmatpush1.bf16.msra.mxu0 0
  %379 = vmatprep.subr.bf16.mxu0 0
  %380 = vmatpush1.bf16.msra.mxu0 0
  %381 = vmatprep.subr.bf16.mxu0 0
  %382 = vmatpush1.bf16.msra.mxu0 0
  %383 = vmatprep.subr.bf16.mxu0 0
  %384 = vmatpush1.bf16.msra.mxu0 0
  %385 = vmatprep.subr.bf16.mxu0 0
  %386 = vmatpush1.bf16.msra.mxu0 0
  %387 = vmatprep.subr.bf16.mxu0 0
  %388 = vmatpush1.bf16.msra.mxu0 0
  %389 = vmatprep.subr.bf16.mxu0 0
  %390 = vmatpush1.bf16.msra.mxu0 0
  %391 = vmatprep.subr.bf16.mxu0 0
  %392 = vmatpush1.bf16.msra.mxu0 0
  %393 = vmatprep.mubr.bf16.mxu0 0
  %394 = vmatmul.mubr.bf16.gmra.mrb[0].mxu0 %v356
  %v395 = vpop.f32.mrb[0].mxu0
  %v396 = vadd.f32 0.0, %v395
  %v397 = vpop.f32.mrb[0].mxu0
  %v398 = vpop.f32.mrb[0].mxu0
  %v399 = vadd.f32 0.0, %v398
  %v400 = vpop.f32.mrb[0].mxu0
  %401 = vmatprep.mubr.bf16.mxu0 0
  %402 = vmatmul.mubr.bf16.gmra.mrb[0].mxu0 %v359
  %v403 = vpop.f32.mrb[0].mxu0
  %v404 = vadd.f32 0.0, %v403
  %v405 = vpop.f32.mrb[0].mxu0
  %v406 = vpop.f32.mrb[0].mxu0
  %v407 = vadd.f32 0.0, %v406
  %v408 = vpop.f32.mrb[0].mxu0
  %409 = vdwg.mxu0
  %v410 = vadd.f32 %v344, %v396
  %v411 = vadd.f32 %v345, %v399
  %v412 = vadd.f32 %v346, %v404
  %v413 = vadd.f32 %v347, %v407
  %v414 = vmax.f32 %v410, 0.0
  %v415 = vmax.f32 %v411, 0.0
  %v416 = vmax.f32 %v412, 0.0
  %v417 = vmax.f32 %v413, 0.0
  %v418 = vmax.f32 %v238, %v414
  %v419 = vmax.f32 %v239, %v415
  %v420 = vmax.f32 %v240, %v416
  %v421 = vmax.f32 %v241, %v417
  %422 = vmatprep.subr.bf16.mxu0 0
  %423 = vmatpush1.bf16.msra.mxu0 %v33
  %424 = vmatprep.subr.bf16.mxu0 0
  %425 = vmatpush1.bf16.msra.mxu0 0
  %426 = vmatprep.subr.bf16.mxu0 0
  %427 = vmatpush1.bf16.msra.mxu0 0
  %428 = vmatprep.subr.bf16.mxu0 0
  %429 = vmatpush1.bf16.msra.mxu0 0
  %430 = vmatprep.subr.bf16.mxu0 0
  %431 = vmatpush1.bf16.msra.mxu0 0
  %432 = vmatprep.subr.bf16.mxu0 0
  %433 = vmatpush1.bf16.msra.mxu0 0
  %434 = vmatprep.subr.bf16.mxu0 0
  %435 = vmatpush1.bf16.msra.mxu0 0
  %436 = vmatprep.subr.bf16.mxu0 0
  %437 = vmatpush1.bf16.msra.mxu0 0
  %438 = vmatprep.subr.bf16.mxu0 0
  %439 = vmatpush1.bf16.msra.mxu0 0
  %440 = vmatprep.subr.bf16.mxu0 0
  %441 = vmatpush1.bf16.msra.mxu0 0
  %442 = vmatprep.subr.bf16.mxu0 0
  %443 = vmatpush1.bf16.msra.mxu0 0
  %444 = vmatprep.subr.bf16.mxu0 0
  %445 = vmatpush1.bf16.msra.mxu0 0
  %446 = vmatprep.subr.bf16.mxu0 0
  %447 = vmatpush1.bf16.msra.mxu0 0
  %448 = vmatprep.subr.bf16.mxu0 0
  %449 = vmatpush1.bf16.msra.mxu0 0
  %450 = vmatprep.subr.bf16.mxu0 0
  %451 = vmatpush1.bf16.msra.mxu0 0
  %452 = vmatprep.subr.bf16.mxu0 0
  %453 = vmatpush1.bf16.msra.mxu0 0
  %454 = vmatprep.mubr.bf16.mxu0 0
  %455 = vmatmul.mubr.bf16.gmra.mrb[0].mxu0 %v177
  %v456 = vpop.f32.mrb[0].mxu0
  %v457 = vadd.f32 0.0, %v456
  %v458 = vpop.f32.mrb[0].mxu0
  %v459 = vpop.f32.mrb[0].mxu0
  %v460 = vadd.f32 0.0, %v459
  %v461 = vpop.f32.mrb[0].mxu0
  %462 = vmatprep.mubr.bf16.mxu0 0
  %463 = vmatmul.mubr.bf16.gmra.mrb[0].mxu0 %v180
  %v464 = vpop.f32.mrb[0].mxu0
  %v465 = vadd.f32 0.0, %v464
  %v466 = vpop.f32.mrb[0].mxu0
  %v467 = vpop.f32.mrb[0].mxu0
  %v468 = vadd.f32 0.0, %v467
  %v469 = vpop.f32.mrb[0].mxu0
  %470 = vdwg.mxu0
  %v471 = vadd.f32 %v88, %v457
  %v472 = vadd.f32 %v88, %v460
  %v473 = vadd.f32 %v88, %v465
  %v474 = vadd.f32 %v88, %v468
  %475 = vmatprep.subr.bf16.mxu0 0
  %476 = vmatpush1.bf16.msra.mxu0 %v111
  %477 = vmatprep.subr.bf16.mxu0 0
  %478 = vmatpush1.bf16.msra.mxu0 0
  %479 = vmatprep.subr.bf16.mxu0 0
  %480 = vmatpush1.bf16.msra.mxu0 0
  %481 = vmatprep.subr.bf16.mxu0 0
  %482 = vmatpush1.bf16.msra.mxu0 0
  %483 = vmatprep.subr.bf16.mxu0 0
  %484 = vmatpush1.bf16.msra.mxu0 0
  %485 = vmatprep.subr.bf16.mxu0 0
  %486 = vmatpush1.bf16.msra.mxu0 0
  %487 = vmatprep.subr.bf16.mxu0 0
  %488 = vmatpush1.bf16.msra.mxu0 0
  %489 = vmatprep.subr.bf16.mxu0 0
  %490 = vmatpush1.bf16.msra.mxu0 0
  %491 = vmatprep.subr.bf16.mxu0 0
  %492 = vmatpush1.bf16.msra.mxu0 0
  %493 = vmatprep.subr.bf16.mxu0 0
  %494 = vmatpush1.bf16.msra.mxu0 0
  %495 = vmatprep.subr.bf16.mxu0 0
  %496 = vmatpush1.bf16.msra.mxu0 0
  %497 = vmatprep.subr.bf16.mxu0 0
  %498 = vmatpush1.bf16.msra.mxu0 0
  %499 = vmatprep.subr.bf16.mxu0 0
  %500 = vmatpush1.bf16.msra.mxu0 0
  %501 = vmatprep.subr.bf16.mxu0 0
  %502 = vmatpush1.bf16.msra.mxu0 0
  %503 = vmatprep.subr.bf16.mxu0 0
  %504 = vmatpush1.bf16.msra.mxu0 0
  %505 = vmatprep.subr.bf16.mxu0 0
  %506 = vmatpush1.bf16.msra.mxu0 0
  %507 = vmatprep.mubr.bf16.mxu0 0
  %508 = vmatmul.mubr.bf16.gmra.mrb[0].mxu0 %v356
  %v509 = vpop.f32.mrb[0].mxu0
  %v510 = vadd.f32 0.0, %v509
  %v511 = vpop.f32.mrb[0].mxu0
  %v512 = vpop.f32.mrb[0].mxu0
  %v513 = vadd.f32 0.0, %v512
  %v514 = vpop.f32.mrb[0].mxu0
  %515 = vmatprep.mubr.bf16.mxu0 0
  %516 = vmatmul.mubr.bf16.gmra.mrb[0].mxu0 %v359
  %v517 = vpop.f32.mrb[0].mxu0
  %v518 = vadd.f32 0.0, %v517
  %v519 = vpop.f32.mrb[0].mxu0
  %v520 = vpop.f32.mrb[0].mxu0
  %v521 = vadd.f32 0.0, %v520
  %v522 = vpop.f32.mrb[0].mxu0
  %523 = vdwg.mxu0
  %v524 = vadd.f32 %v471, %v510
  %v525 = vadd.f32 %v472, %v513
  %v526 = vadd.f32 %v473, %v518
  %v527 = vadd.f32 %v474, %v521
  %s528 = scalar_lea.vmem %s0, 128
  %v529 = vld [vmem:[%s528] sm:$0xff]
  %v530 = vld [vmem:[%s528 + $0x8] sm:$0xff]
  %v531 = vld [vmem:[%s528 + $0x10] sm:$0xff]
  %v532 = vld [vmem:[%s528 + $0x18] sm:$0xff]
  %v533 = vpack.c.bf16 %v530, %v529
  %v534 = vpack.c.bf16 %v532, %v531
  %v536 = vsel %vm24, %v533, 0
  %v539 = vsel %vm24, %v534, 0
  %541 = vmatprep.subr.bf16.mxu0 0
  %542 = vmatpush1.bf16.msra.mxu0 %v183
  %543 = vmatprep.subr.bf16.mxu0 0
  %544 = vmatpush1.bf16.msra.mxu0 0
  %545 = vmatprep.subr.bf16.mxu0 0
  %546 = vmatpush1.bf16.msra.mxu0 0
  %547 = vmatprep.subr.bf16.mxu0 0
  %548 = vmatpush1.bf16.msra.mxu0 0
  %549 = vmatprep.subr.bf16.mxu0 0
  %550 = vmatpush1.bf16.msra.mxu0 0
  %551 = vmatprep.subr.bf16.mxu0 0
  %552 = vmatpush1.bf16.msra.mxu0 0
  %553 = vmatprep.subr.bf16.mxu0 0
  %554 = vmatpush1.bf16.msra.mxu0 0
  %555 = vmatprep.subr.bf16.mxu0 0
  %556 = vmatpush1.bf16.msra.mxu0 0
  %557 = vmatprep.subr.bf16.mxu0 0
  %558 = vmatpush1.bf16.msra.mxu0 0
  %559 = vmatprep.subr.bf16.mxu0 0
  %560 = vmatpush1.bf16.msra.mxu0 0
  %561 = vmatprep.subr.bf16.mxu0 0
  %562 = vmatpush1.bf16.msra.mxu0 0
  %563 = vmatprep.subr.bf16.mxu0 0
  %564 = vmatpush1.bf16.msra.mxu0 0
  %565 = vmatprep.subr.bf16.mxu0 0
  %566 = vmatpush1.bf16.msra.mxu0 0
  %567 = vmatprep.subr.bf16.mxu0 0
  %568 = vmatpush1.bf16.msra.mxu0 0
  %569 = vmatprep.subr.bf16.mxu0 0
  %570 = vmatpush1.bf16.msra.mxu0 0
  %571 = vmatprep.subr.bf16.mxu0 0
  %572 = vmatpush1.bf16.msra.mxu0 0
  %573 = vmatprep.mubr.bf16.mxu0 0
  %574 = vmatmul.mubr.bf16.gmra.mrb[0].mxu0 %v536
  %v575 = vpop.f32.mrb[0].mxu0
  %v576 = vadd.f32 0.0, %v575
  %v577 = vpop.f32.mrb[0].mxu0
  %v578 = vpop.f32.mrb[0].mxu0
  %v579 = vadd.f32 0.0, %v578
  %v580 = vpop.f32.mrb[0].mxu0
  %581 = vmatprep.mubr.bf16.mxu0 0
  %582 = vmatmul.mubr.bf16.gmra.mrb[0].mxu0 %v539
  %v583 = vpop.f32.mrb[0].mxu0
  %v584 = vadd.f32 0.0, %v583
  %v585 = vpop.f32.mrb[0].mxu0
  %v586 = vpop.f32.mrb[0].mxu0
  %v587 = vadd.f32 0.0, %v586
  %v588 = vpop.f32.mrb[0].mxu0
  %589 = vdwg.mxu0
  %v590 = vadd.f32 %v524, %v576
  %v591 = vadd.f32 %v525, %v579
  %v592 = vadd.f32 %v526, %v584
  %v593 = vadd.f32 %v527, %v587
  %v594 = vmax.f32 %v590, 0.0
  %v595 = vmax.f32 %v591, 0.0
  %v596 = vmax.f32 %v592, 0.0
  %v597 = vmax.f32 %v593, 0.0
  %v598 = vmax.f32 %v418, %v594
  %v599 = vmax.f32 %v419, %v595
  %v600 = vmax.f32 %v420, %v596
  %v601 = vmax.f32 %v421, %v597
  %602 = vmatprep.subr.bf16.mxu0 0
  %603 = vmatpush1.bf16.msra.mxu0 %v33
  %604 = vmatprep.subr.bf16.mxu0 0
  %605 = vmatpush1.bf16.msra.mxu0 0
  %606 = vmatprep.subr.bf16.mxu0 0
  %607 = vmatpush1.bf16.msra.mxu0 0
  %608 = vmatprep.subr.bf16.mxu0 0
  %609 = vmatpush1.bf16.msra.mxu0 0
  %610 = vmatprep.subr.bf16.mxu0 0
  %611 = vmatpush1.bf16.msra.mxu0 0
  %612 = vmatprep.subr.bf16.mxu0 0
  %613 = vmatpush1.bf16.msra.mxu0 0
  %614 = vmatprep.subr.bf16.mxu0 0
  %615 = vmatpush1.bf16.msra.mxu0 0
  %616 = vmatprep.subr.bf16.mxu0 0
  %617 = vmatpush1.bf16.msra.mxu0 0
  %618 = vmatprep.subr.bf16.mxu0 0
  %619 = vmatpush1.bf16.msra.mxu0 0
  %620 = vmatprep.subr.bf16.mxu0 0
  %621 = vmatpush1.bf16.msra.mxu0 0
  %622 = vmatprep.subr.bf16.mxu0 0
  %623 = vmatpush1.bf16.msra.mxu0 0
  %624 = vmatprep.subr.bf16.mxu0 0
  %625 = vmatpush1.bf16.msra.mxu0 0
  %626 = vmatprep.subr.bf16.mxu0 0
  %627 = vmatpush1.bf16.msra.mxu0 0
  %628 = vmatprep.subr.bf16.mxu0 0
  %629 = vmatpush1.bf16.msra.mxu0 0
  %630 = vmatprep.subr.bf16.mxu0 0
  %631 = vmatpush1.bf16.msra.mxu0 0
  %632 = vmatprep.subr.bf16.mxu0 0
  %633 = vmatpush1.bf16.msra.mxu0 0
  %634 = vmatprep.mubr.bf16.mxu0 0
  %635 = vmatmul.mubr.bf16.gmra.mrb[0].mxu0 %v356
  %v636 = vpop.f32.mrb[0].mxu0
  %v637 = vadd.f32 0.0, %v636
  %v638 = vpop.f32.mrb[0].mxu0
  %v639 = vpop.f32.mrb[0].mxu0
  %v640 = vadd.f32 0.0, %v639
  %v641 = vpop.f32.mrb[0].mxu0
  %642 = vmatprep.mubr.bf16.mxu0 0
  %643 = vmatmul.mubr.bf16.gmra.mrb[0].mxu0 %v359
  %v644 = vpop.f32.mrb[0].mxu0
  %v645 = vadd.f32 0.0, %v644
  %v646 = vpop.f32.mrb[0].mxu0
  %v647 = vpop.f32.mrb[0].mxu0
  %v648 = vadd.f32 0.0, %v647
  %v649 = vpop.f32.mrb[0].mxu0
  %650 = vdwg.mxu0
  %v651 = vadd.f32 %v88, %v637
  %v652 = vadd.f32 %v88, %v640
  %v653 = vadd.f32 %v88, %v645
  %v654 = vadd.f32 %v88, %v648
  %655 = vmatprep.subr.bf16.mxu0 0
  %656 = vmatpush1.bf16.msra.mxu0 %v111
  %657 = vmatprep.subr.bf16.mxu0 0
  %658 = vmatpush1.bf16.msra.mxu0 0
  %659 = vmatprep.subr.bf16.mxu0 0
  %660 = vmatpush1.bf16.msra.mxu0 0
  %661 = vmatprep.subr.bf16.mxu0 0
  %662 = vmatpush1.bf16.msra.mxu0 0
  %663 = vmatprep.subr.bf16.mxu0 0
  %664 = vmatpush1.bf16.msra.mxu0 0
  %665 = vmatprep.subr.bf16.mxu0 0
  %666 = vmatpush1.bf16.msra.mxu0 0
  %667 = vmatprep.subr.bf16.mxu0 0
  %668 = vmatpush1.bf16.msra.mxu0 0
  %669 = vmatprep.subr.bf16.mxu0 0
  %670 = vmatpush1.bf16.msra.mxu0 0
  %671 = vmatprep.subr.bf16.mxu0 0
  %672 = vmatpush1.bf16.msra.mxu0 0
  %673 = vmatprep.subr.bf16.mxu0 0
  %674 = vmatpush1.bf16.msra.mxu0 0
  %675 = vmatprep.subr.bf16.mxu0 0
  %676 = vmatpush1.bf16.msra.mxu0 0
  %677 = vmatprep.subr.bf16.mxu0 0
  %678 = vmatpush1.bf16.msra.mxu0 0
  %679 = vmatprep.subr.bf16.mxu0 0
  %680 = vmatpush1.bf16.msra.mxu0 0
  %681 = vmatprep.subr.bf16.mxu0 0
  %682 = vmatpush1.bf16.msra.mxu0 0
  %683 = vmatprep.subr.bf16.mxu0 0
  %684 = vmatpush1.bf16.msra.mxu0 0
  %685 = vmatprep.subr.bf16.mxu0 0
  %686 = vmatpush1.bf16.msra.mxu0 0
  %687 = vmatprep.mubr.bf16.mxu0 0
  %688 = vmatmul.mubr.bf16.gmra.mrb[0].mxu0 %v536
  %v689 = vpop.f32.mrb[0].mxu0
  %v690 = vadd.f32 0.0, %v689
  %v691 = vpop.f32.mrb[0].mxu0
  %v692 = vpop.f32.mrb[0].mxu0
  %v693 = vadd.f32 0.0, %v692
  %v694 = vpop.f32.mrb[0].mxu0
  %695 = vmatprep.mubr.bf16.mxu0 0
  %696 = vmatmul.mubr.bf16.gmra.mrb[0].mxu0 %v539
  %v697 = vpop.f32.mrb[0].mxu0
  %v698 = vadd.f32 0.0, %v697
  %v699 = vpop.f32.mrb[0].mxu0
  %v700 = vpop.f32.mrb[0].mxu0
  %v701 = vadd.f32 0.0, %v700
  %v702 = vpop.f32.mrb[0].mxu0
  %703 = vdwg.mxu0
  %v704 = vadd.f32 %v651, %v690
  %v705 = vadd.f32 %v652, %v693
  %v706 = vadd.f32 %v653, %v698
  %v707 = vadd.f32 %v654, %v701
  %s708 = scalar_lea.vmem %s0, 160
  %v709 = vld [vmem:[%s708] sm:$0xff]
  %v710 = vld [vmem:[%s708 + $0x8] sm:$0xff]
  %v711 = vld [vmem:[%s708 + $0x10] sm:$0xff]
  %v712 = vld [vmem:[%s708 + $0x18] sm:$0xff]
  %v713 = vpack.c.bf16 %v710, %v709
  %v714 = vpack.c.bf16 %v712, %v711
  %v716 = vsel %vm24, %v713, 0
  %v719 = vsel %vm24, %v714, 0
  %721 = vmatprep.subr.bf16.mxu0 0
  %722 = vmatpush1.bf16.msra.mxu0 %v183
  %723 = vmatprep.subr.bf16.mxu0 0
  %724 = vmatpush1.bf16.msra.mxu0 0
  %725 = vmatprep.subr.bf16.mxu0 0
  %726 = vmatpush1.bf16.msra.mxu0 0
  %727 = vmatprep.subr.bf16.mxu0 0
  %728 = vmatpush1.bf16.msra.mxu0 0
  %729 = vmatprep.subr.bf16.mxu0 0
  %730 = vmatpush1.bf16.msra.mxu0 0
  %731 = vmatprep.subr.bf16.mxu0 0
  %732 = vmatpush1.bf16.msra.mxu0 0
  %733 = vmatprep.subr.bf16.mxu0 0
  %734 = vmatpush1.bf16.msra.mxu0 0
  %735 = vmatprep.subr.bf16.mxu0 0
  %736 = vmatpush1.bf16.msra.mxu0 0
  %737 = vmatprep.subr.bf16.mxu0 0
  %738 = vmatpush1.bf16.msra.mxu0 0
  %739 = vmatprep.subr.bf16.mxu0 0
  %740 = vmatpush1.bf16.msra.mxu0 0
  %741 = vmatprep.subr.bf16.mxu0 0
  %742 = vmatpush1.bf16.msra.mxu0 0
  %743 = vmatprep.subr.bf16.mxu0 0
  %744 = vmatpush1.bf16.msra.mxu0 0
  %745 = vmatprep.subr.bf16.mxu0 0
  %746 = vmatpush1.bf16.msra.mxu0 0
  %747 = vmatprep.subr.bf16.mxu0 0
  %748 = vmatpush1.bf16.msra.mxu0 0
  %749 = vmatprep.subr.bf16.mxu0 0
  %750 = vmatpush1.bf16.msra.mxu0 0
  %751 = vmatprep.subr.bf16.mxu0 0
  %752 = vmatpush1.bf16.msra.mxu0 0
  %753 = vmatprep.mubr.bf16.mxu0 0
  %754 = vmatmul.mubr.bf16.gmra.mrb[0].mxu0 %v716
  %v755 = vpop.f32.mrb[0].mxu0
  %v756 = vadd.f32 0.0, %v755
  %v757 = vpop.f32.mrb[0].mxu0
  %v758 = vpop.f32.mrb[0].mxu0
  %v759 = vadd.f32 0.0, %v758
  %v760 = vpop.f32.mrb[0].mxu0
  %761 = vmatprep.mubr.bf16.mxu0 0
  %762 = vmatmul.mubr.bf16.gmra.mrb[0].mxu0 %v719
  %v763 = vpop.f32.mrb[0].mxu0
  %v764 = vadd.f32 0.0, %v763
  %v765 = vpop.f32.mrb[0].mxu0
  %v766 = vpop.f32.mrb[0].mxu0
  %v767 = vadd.f32 0.0, %v766
  %v768 = vpop.f32.mrb[0].mxu0
  %769 = vdwg.mxu0
  %v770 = vadd.f32 %v704, %v756
  %v771 = vadd.f32 %v705, %v759
  %v772 = vadd.f32 %v706, %v764
  %v773 = vadd.f32 %v707, %v767
  %v774 = vmax.f32 %v770, 0.0
  %v775 = vmax.f32 %v771, 0.0
  %v776 = vmax.f32 %v772, 0.0
  %v777 = vmax.f32 %v773, 0.0
  %v778 = vmax.f32 %v598, %v774
  %v779 = vmax.f32 %v599, %v775
  %v780 = vmax.f32 %v600, %v776
  %v781 = vmax.f32 %v601, %v777
  %782 = vmatprep.subr.bf16.mxu0 0
  %783 = vmatpush1.bf16.msra.mxu0 %v33
  %784 = vmatprep.subr.bf16.mxu0 0
  %785 = vmatpush1.bf16.msra.mxu0 0
  %786 = vmatprep.subr.bf16.mxu0 0
  %787 = vmatpush1.bf16.msra.mxu0 0
  %788 = vmatprep.subr.bf16.mxu0 0
  %789 = vmatpush1.bf16.msra.mxu0 0
  %790 = vmatprep.subr.bf16.mxu0 0
  %791 = vmatpush1.bf16.msra.mxu0 0
  %792 = vmatprep.subr.bf16.mxu0 0
  %793 = vmatpush1.bf16.msra.mxu0 0
  %794 = vmatprep.subr.bf16.mxu0 0
  %795 = vmatpush1.bf16.msra.mxu0 0
  %796 = vmatprep.subr.bf16.mxu0 0
  %797 = vmatpush1.bf16.msra.mxu0 0
  %798 = vmatprep.subr.bf16.mxu0 0
  %799 = vmatpush1.bf16.msra.mxu0 0
  %800 = vmatprep.subr.bf16.mxu0 0
  %801 = vmatpush1.bf16.msra.mxu0 0
  %802 = vmatprep.subr.bf16.mxu0 0
  %803 = vmatpush1.bf16.msra.mxu0 0
  %804 = vmatprep.subr.bf16.mxu0 0
  %805 = vmatpush1.bf16.msra.mxu0 0
  %806 = vmatprep.subr.bf16.mxu0 0
  %807 = vmatpush1.bf16.msra.mxu0 0
  %808 = vmatprep.subr.bf16.mxu0 0
  %809 = vmatpush1.bf16.msra.mxu0 0
  %810 = vmatprep.subr.bf16.mxu0 0
  %811 = vmatpush1.bf16.msra.mxu0 0
  %812 = vmatprep.subr.bf16.mxu0 0
  %813 = vmatpush1.bf16.msra.mxu0 0
  %814 = vmatprep.mubr.bf16.mxu0 0
  %815 = vmatmul.mubr.bf16.gmra.mrb[0].mxu0 %v536
  %v816 = vpop.f32.mrb[0].mxu0
  %v817 = vadd.f32 0.0, %v816
  %v818 = vpop.f32.mrb[0].mxu0
  %v819 = vpop.f32.mrb[0].mxu0
  %v820 = vadd.f32 0.0, %v819
  %v821 = vpop.f32.mrb[0].mxu0
  %822 = vmatprep.mubr.bf16.mxu0 0
  %823 = vmatmul.mubr.bf16.gmra.mrb[0].mxu0 %v539
  %v824 = vpop.f32.mrb[0].mxu0
  %v825 = vadd.f32 0.0, %v824
  %v826 = vpop.f32.mrb[0].mxu0
  %v827 = vpop.f32.mrb[0].mxu0
  %v828 = vadd.f32 0.0, %v827
  %v829 = vpop.f32.mrb[0].mxu0
  %830 = vdwg.mxu0
  %v831 = vadd.f32 %v88, %v817
  %v832 = vadd.f32 %v88, %v820
  %v833 = vadd.f32 %v88, %v825
  %v834 = vadd.f32 %v88, %v828
  %835 = vmatprep.subr.bf16.mxu0 0
  %836 = vmatpush1.bf16.msra.mxu0 %v111
  %837 = vmatprep.subr.bf16.mxu0 0
  %838 = vmatpush1.bf16.msra.mxu0 0
  %839 = vmatprep.subr.bf16.mxu0 0
  %840 = vmatpush1.bf16.msra.mxu0 0
  %841 = vmatprep.subr.bf16.mxu0 0
  %842 = vmatpush1.bf16.msra.mxu0 0
  %843 = vmatprep.subr.bf16.mxu0 0
  %844 = vmatpush1.bf16.msra.mxu0 0
  %845 = vmatprep.subr.bf16.mxu0 0
  %846 = vmatpush1.bf16.msra.mxu0 0
  %847 = vmatprep.subr.bf16.mxu0 0
  %848 = vmatpush1.bf16.msra.mxu0 0
  %849 = vmatprep.subr.bf16.mxu0 0
  %850 = vmatpush1.bf16.msra.mxu0 0
  %851 = vmatprep.subr.bf16.mxu0 0
  %852 = vmatpush1.bf16.msra.mxu0 0
  %853 = vmatprep.subr.bf16.mxu0 0
  %854 = vmatpush1.bf16.msra.mxu0 0
  %855 = vmatprep.subr.bf16.mxu0 0
  %856 = vmatpush1.bf16.msra.mxu0 0
  %857 = vmatprep.subr.bf16.mxu0 0
  %858 = vmatpush1.bf16.msra.mxu0 0
  %859 = vmatprep.subr.bf16.mxu0 0
  %860 = vmatpush1.bf16.msra.mxu0 0
  %861 = vmatprep.subr.bf16.mxu0 0
  %862 = vmatpush1.bf16.msra.mxu0 0
  %863 = vmatprep.subr.bf16.mxu0 0
  %864 = vmatpush1.bf16.msra.mxu0 0
  %865 = vmatprep.subr.bf16.mxu0 0
  %866 = vmatpush1.bf16.msra.mxu0 0
  %867 = vmatprep.mubr.bf16.mxu0 0
  %868 = vmatmul.mubr.bf16.gmra.mrb[0].mxu0 %v716
  %v869 = vpop.f32.mrb[0].mxu0
  %v870 = vadd.f32 0.0, %v869
  %v871 = vpop.f32.mrb[0].mxu0
  %v872 = vpop.f32.mrb[0].mxu0
  %v873 = vadd.f32 0.0, %v872
  %v874 = vpop.f32.mrb[0].mxu0
  %875 = vmatprep.mubr.bf16.mxu0 0
  %876 = vmatmul.mubr.bf16.gmra.mrb[0].mxu0 %v719
  %v877 = vpop.f32.mrb[0].mxu0
  %v878 = vadd.f32 0.0, %v877
  %v879 = vpop.f32.mrb[0].mxu0
  %v880 = vpop.f32.mrb[0].mxu0
  %v881 = vadd.f32 0.0, %v880
  %v882 = vpop.f32.mrb[0].mxu0
  %883 = vdwg.mxu0
  %v884 = vadd.f32 %v831, %v870
  %v885 = vadd.f32 %v832, %v873
  %v886 = vadd.f32 %v833, %v878
  %v887 = vadd.f32 %v834, %v881
  %s888 = scalar_lea.vmem %s0, 192
  %v889 = vld [vmem:[%s888] sm:$0xff]
  %v890 = vld [vmem:[%s888 + $0x8] sm:$0xff]
  %v891 = vld [vmem:[%s888 + $0x10] sm:$0xff]
  %v892 = vld [vmem:[%s888 + $0x18] sm:$0xff]
  %v893 = vpack.c.bf16 %v890, %v889
  %v894 = vpack.c.bf16 %v892, %v891
  %v896 = vsel %vm24, %v893, 0
  %v899 = vsel %vm24, %v894, 0
  %901 = vmatprep.subr.bf16.mxu0 0
  %902 = vmatpush1.bf16.msra.mxu0 %v183
  %903 = vmatprep.subr.bf16.mxu0 0
  %904 = vmatpush1.bf16.msra.mxu0 0
  %905 = vmatprep.subr.bf16.mxu0 0
  %906 = vmatpush1.bf16.msra.mxu0 0
  %907 = vmatprep.subr.bf16.mxu0 0
  %908 = vmatpush1.bf16.msra.mxu0 0
  %909 = vmatprep.subr.bf16.mxu0 0
  %910 = vmatpush1.bf16.msra.mxu0 0
  %911 = vmatprep.subr.bf16.mxu0 0
  %912 = vmatpush1.bf16.msra.mxu0 0
  %913 = vmatprep.subr.bf16.mxu0 0
  %914 = vmatpush1.bf16.msra.mxu0 0
  %915 = vmatprep.subr.bf16.mxu0 0
  %916 = vmatpush1.bf16.msra.mxu0 0
  %917 = vmatprep.subr.bf16.mxu0 0
  %918 = vmatpush1.bf16.msra.mxu0 0
  %919 = vmatprep.subr.bf16.mxu0 0
  %920 = vmatpush1.bf16.msra.mxu0 0
  %921 = vmatprep.subr.bf16.mxu0 0
  %922 = vmatpush1.bf16.msra.mxu0 0
  %923 = vmatprep.subr.bf16.mxu0 0
  %924 = vmatpush1.bf16.msra.mxu0 0
  %925 = vmatprep.subr.bf16.mxu0 0
  %926 = vmatpush1.bf16.msra.mxu0 0
  %927 = vmatprep.subr.bf16.mxu0 0
  %928 = vmatpush1.bf16.msra.mxu0 0
  %929 = vmatprep.subr.bf16.mxu0 0
  %930 = vmatpush1.bf16.msra.mxu0 0
  %931 = vmatprep.subr.bf16.mxu0 0
  %932 = vmatpush1.bf16.msra.mxu0 0
  %933 = vmatprep.mubr.bf16.mxu0 0
  %934 = vmatmul.mubr.bf16.gmra.mrb[0].mxu0 %v896
  %v935 = vpop.f32.mrb[0].mxu0
  %v936 = vadd.f32 0.0, %v935
  %v937 = vpop.f32.mrb[0].mxu0
  %v938 = vpop.f32.mrb[0].mxu0
  %v939 = vadd.f32 0.0, %v938
  %v940 = vpop.f32.mrb[0].mxu0
  %941 = vmatprep.mubr.bf16.mxu0 0
  %942 = vmatmul.mubr.bf16.gmra.mrb[0].mxu0 %v899
  %v943 = vpop.f32.mrb[0].mxu0
  %v944 = vadd.f32 0.0, %v943
  %v945 = vpop.f32.mrb[0].mxu0
  %v946 = vpop.f32.mrb[0].mxu0
  %v947 = vadd.f32 0.0, %v946
  %v948 = vpop.f32.mrb[0].mxu0
  %949 = vdwg.mxu0
  %v950 = vadd.f32 %v884, %v936
  %v951 = vadd.f32 %v885, %v939
  %v952 = vadd.f32 %v886, %v944
  %v953 = vadd.f32 %v887, %v947
  %v954 = vmax.f32 %v950, 0.0
  %v955 = vmax.f32 %v951, 0.0
  %v956 = vmax.f32 %v952, 0.0
  %v957 = vmax.f32 %v953, 0.0
  %v958 = vmax.f32 %v778, %v954
  %v959 = vmax.f32 %v779, %v955
  %v960 = vmax.f32 %v780, %v956
  %v961 = vmax.f32 %v781, %v957
  %962 = vmatprep.subr.bf16.mxu0 0
  %963 = vmatpush1.bf16.msra.mxu0 %v33
  %964 = vmatprep.subr.bf16.mxu0 0
  %965 = vmatpush1.bf16.msra.mxu0 0
  %966 = vmatprep.subr.bf16.mxu0 0
  %967 = vmatpush1.bf16.msra.mxu0 0
  %968 = vmatprep.subr.bf16.mxu0 0
  %969 = vmatpush1.bf16.msra.mxu0 0
  %970 = vmatprep.subr.bf16.mxu0 0
  %971 = vmatpush1.bf16.msra.mxu0 0
  %972 = vmatprep.subr.bf16.mxu0 0
  %973 = vmatpush1.bf16.msra.mxu0 0
  %974 = vmatprep.subr.bf16.mxu0 0
  %975 = vmatpush1.bf16.msra.mxu0 0
  %976 = vmatprep.subr.bf16.mxu0 0
  %977 = vmatpush1.bf16.msra.mxu0 0
  %978 = vmatprep.subr.bf16.mxu0 0
  %979 = vmatpush1.bf16.msra.mxu0 0
  %980 = vmatprep.subr.bf16.mxu0 0
  %981 = vmatpush1.bf16.msra.mxu0 0
  %982 = vmatprep.subr.bf16.mxu0 0
  %983 = vmatpush1.bf16.msra.mxu0 0
  %984 = vmatprep.subr.bf16.mxu0 0
  %985 = vmatpush1.bf16.msra.mxu0 0
  %986 = vmatprep.subr.bf16.mxu0 0
  %987 = vmatpush1.bf16.msra.mxu0 0
  %988 = vmatprep.subr.bf16.mxu0 0
  %989 = vmatpush1.bf16.msra.mxu0 0
  %990 = vmatprep.subr.bf16.mxu0 0
  %991 = vmatpush1.bf16.msra.mxu0 0
  %992 = vmatprep.subr.bf16.mxu0 0
  %993 = vmatpush1.bf16.msra.mxu0 0
  %994 = vmatprep.mubr.bf16.mxu0 0
  %995 = vmatmul.mubr.bf16.gmra.mrb[0].mxu0 %v716
  %v996 = vpop.f32.mrb[0].mxu0
  %v997 = vadd.f32 0.0, %v996
  %v998 = vpop.f32.mrb[0].mxu0
  %v999 = vpop.f32.mrb[0].mxu0
  %v1000 = vadd.f32 0.0, %v999
  %v1001 = vpop.f32.mrb[0].mxu0
  %1002 = vmatprep.mubr.bf16.mxu0 0
  %1003 = vmatmul.mubr.bf16.gmra.mrb[0].mxu0 %v719
  %v1004 = vpop.f32.mrb[0].mxu0
  %v1005 = vadd.f32 0.0, %v1004
  %v1006 = vpop.f32.mrb[0].mxu0
  %v1007 = vpop.f32.mrb[0].mxu0
  %v1008 = vadd.f32 0.0, %v1007
  %v1009 = vpop.f32.mrb[0].mxu0
  %1010 = vdwg.mxu0
  %v1011 = vadd.f32 %v88, %v997
  %v1012 = vadd.f32 %v88, %v1000
  %v1013 = vadd.f32 %v88, %v1005
  %v1014 = vadd.f32 %v88, %v1008
  %1015 = vmatprep.subr.bf16.mxu0 0
  %1016 = vmatpush1.bf16.msra.mxu0 %v111
  %1017 = vmatprep.subr.bf16.mxu0 0
  %1018 = vmatpush1.bf16.msra.mxu0 0
  %1019 = vmatprep.subr.bf16.mxu0 0
  %1020 = vmatpush1.bf16.msra.mxu0 0
  %1021 = vmatprep.subr.bf16.mxu0 0
  %1022 = vmatpush1.bf16.msra.mxu0 0
  %1023 = vmatprep.subr.bf16.mxu0 0
  %1024 = vmatpush1.bf16.msra.mxu0 0
  %1025 = vmatprep.subr.bf16.mxu0 0
  %1026 = vmatpush1.bf16.msra.mxu0 0
  %1027 = vmatprep.subr.bf16.mxu0 0
  %1028 = vmatpush1.bf16.msra.mxu0 0
  %1029 = vmatprep.subr.bf16.mxu0 0
  %1030 = vmatpush1.bf16.msra.mxu0 0
  %1031 = vmatprep.subr.bf16.mxu0 0
  %1032 = vmatpush1.bf16.msra.mxu0 0
  %1033 = vmatprep.subr.bf16.mxu0 0
  %1034 = vmatpush1.bf16.msra.mxu0 0
  %1035 = vmatprep.subr.bf16.mxu0 0
  %1036 = vmatpush1.bf16.msra.mxu0 0
  %1037 = vmatprep.subr.bf16.mxu0 0
  %1038 = vmatpush1.bf16.msra.mxu0 0
  %1039 = vmatprep.subr.bf16.mxu0 0
  %1040 = vmatpush1.bf16.msra.mxu0 0
  %1041 = vmatprep.subr.bf16.mxu0 0
  %1042 = vmatpush1.bf16.msra.mxu0 0
  %1043 = vmatprep.subr.bf16.mxu0 0
  %1044 = vmatpush1.bf16.msra.mxu0 0
  %1045 = vmatprep.subr.bf16.mxu0 0
  %1046 = vmatpush1.bf16.msra.mxu0 0
  %1047 = vmatprep.mubr.bf16.mxu0 0
  %1048 = vmatmul.mubr.bf16.gmra.mrb[0].mxu0 %v896
  %v1049 = vpop.f32.mrb[0].mxu0
  %v1050 = vadd.f32 0.0, %v1049
  %v1051 = vpop.f32.mrb[0].mxu0
  %v1052 = vpop.f32.mrb[0].mxu0
  %v1053 = vadd.f32 0.0, %v1052
  %v1054 = vpop.f32.mrb[0].mxu0
  %1055 = vmatprep.mubr.bf16.mxu0 0
  %1056 = vmatmul.mubr.bf16.gmra.mrb[0].mxu0 %v899
  %v1057 = vpop.f32.mrb[0].mxu0
  %v1058 = vadd.f32 0.0, %v1057
  %v1059 = vpop.f32.mrb[0].mxu0
  %v1060 = vpop.f32.mrb[0].mxu0
  %v1061 = vadd.f32 0.0, %v1060
  %v1062 = vpop.f32.mrb[0].mxu0
  %1063 = vdwg.mxu0
  %v1064 = vadd.f32 %v1011, %v1050
  %v1065 = vadd.f32 %v1012, %v1053
  %v1066 = vadd.f32 %v1013, %v1058
  %v1067 = vadd.f32 %v1014, %v1061
  %s1068 = scalar_lea.vmem %s0, 224
  %v1069 = vld [vmem:[%s1068] sm:$0xff]
  %v1070 = vld [vmem:[%s1068 + $0x8] sm:$0xff]
  %v1071 = vld [vmem:[%s1068 + $0x10] sm:$0xff]
  %v1072 = vld [vmem:[%s1068 + $0x18] sm:$0xff]
  %v1073 = vpack.c.bf16 %v1070, %v1069
  %v1074 = vpack.c.bf16 %v1072, %v1071
  %v1076 = vsel %vm24, %v1073, 0
  %v1079 = vsel %vm24, %v1074, 0
  %1081 = vmatprep.subr.bf16.mxu0 0
  %1082 = vmatpush1.bf16.msra.mxu0 %v183
  %1083 = vmatprep.subr.bf16.mxu0 0
  %1084 = vmatpush1.bf16.msra.mxu0 0
  %1085 = vmatprep.subr.bf16.mxu0 0
  %1086 = vmatpush1.bf16.msra.mxu0 0
  %1087 = vmatprep.subr.bf16.mxu0 0
  %1088 = vmatpush1.bf16.msra.mxu0 0
  %1089 = vmatprep.subr.bf16.mxu0 0
  %1090 = vmatpush1.bf16.msra.mxu0 0
  %1091 = vmatprep.subr.bf16.mxu0 0
  %1092 = vmatpush1.bf16.msra.mxu0 0
  %1093 = vmatprep.subr.bf16.mxu0 0
  %1094 = vmatpush1.bf16.msra.mxu0 0
  %1095 = vmatprep.subr.bf16.mxu0 0
  %1096 = vmatpush1.bf16.msra.mxu0 0
  %1097 = vmatprep.subr.bf16.mxu0 0
  %1098 = vmatpush1.bf16.msra.mxu0 0
  %1099 = vmatprep.subr.bf16.mxu0 0
  %1100 = vmatpush1.bf16.msra.mxu0 0
  %1101 = vmatprep.subr.bf16.mxu0 0
  %1102 = vmatpush1.bf16.msra.mxu0 0
  %1103 = vmatprep.subr.bf16.mxu0 0
  %1104 = vmatpush1.bf16.msra.mxu0 0
  %1105 = vmatprep.subr.bf16.mxu0 0
  %1106 = vmatpush1.bf16.msra.mxu0 0
  %1107 = vmatprep.subr.bf16.mxu0 0
  %1108 = vmatpush1.bf16.msra.mxu0 0
  %1109 = vmatprep.subr.bf16.mxu0 0
  %1110 = vmatpush1.bf16.msra.mxu0 0
  %1111 = vmatprep.subr.bf16.mxu0 0
  %1112 = vmatpush1.bf16.msra.mxu0 0
  %1113 = vmatprep.mubr.bf16.mxu0 0
  %1114 = vmatmul.mubr.bf16.gmra.mrb[0].mxu0 %v1076
  %v1115 = vpop.f32.mrb[0].mxu0
  %v1116 = vadd.f32 0.0, %v1115
  %v1117 = vpop.f32.mrb[0].mxu0
  %v1118 = vpop.f32.mrb[0].mxu0
  %v1119 = vadd.f32 0.0, %v1118
  %v1120 = vpop.f32.mrb[0].mxu0
  %1121 = vmatprep.mubr.bf16.mxu0 0
  %1122 = vmatmul.mubr.bf16.gmra.mrb[0].mxu0 %v1079
  %v1123 = vpop.f32.mrb[0].mxu0
  %v1124 = vadd.f32 0.0, %v1123
  %v1125 = vpop.f32.mrb[0].mxu0
  %v1126 = vpop.f32.mrb[0].mxu0
  %v1127 = vadd.f32 0.0, %v1126
  %v1128 = vpop.f32.mrb[0].mxu0
  %1129 = vdwg.mxu0
  %v1130 = vadd.f32 %v1064, %v1116
  %v1131 = vadd.f32 %v1065, %v1119
  %v1132 = vadd.f32 %v1066, %v1124
  %v1133 = vadd.f32 %v1067, %v1127
  %v1134 = vmax.f32 %v1130, 0.0
  %v1135 = vmax.f32 %v1131, 0.0
  %v1136 = vmax.f32 %v1132, 0.0
  %v1137 = vmax.f32 %v1133, 0.0
  %v1138 = vmax.f32 %v958, %v1134
  %v1139 = vmax.f32 %v959, %v1135
  %v1140 = vmax.f32 %v960, %v1136
  %v1141 = vmax.f32 %v961, %v1137
  %1142 = vst.msk [vmem:[%s3] sm:$0xff] %vm24, %v1138
  %1143 = vst.msk [vmem:[%s3 + $0x8] sm:$0xff] %vm24, %v1139
  %1144 = vst.msk [vmem:[%s3 + $0x10] sm:$0xff] %vm24, %v1140
  %1145 = vst.msk [vmem:[%s3 + $0x18] sm:$0xff] %vm24, %v1141
  // Predicated region
  $region14: #{bidaf_forward.21} parent=0 // pred_check
    _
  $region15: #{bidaf_forward.21} parent=0 // pred_check_branch
    %1147 = sbr.rel (0) target = $region17
  $region16: #{bidaf_forward.21} parent=0 // pred_region
    _
  $region17: #{bidaf_forward.21} parent=0 // pred_fallthru
    _
  // Predicated region
  $region18: #{bidaf_forward.21} parent=0 // pred_check
    _
  $region19: #{bidaf_forward.21} parent=0 // pred_check_branch
    %1149 = sbr.rel (0) target = $region21
  $region20: #{bidaf_forward.21} parent=0 // pred_region
    _
  $region21: #{bidaf_forward.21} parent=0 // pred_fallthru
    _

// kernel: bidaf_forward.26
$region0: #{bidaf_forward.26}
  #allocation0 [shape = 'u32[]', space=smem, size = 0x4, offset = 0x4, fixed_abs, tag = 'smem constant byte address 0x4 - core index']
  #allocation1 [shape = 'u32[144,128]{1,0:T(1,128)}', space=vmem, size = 0x12000, scoped, tag = 'internal scratch']
  %s0 = inlined_call_operand.vmem [shape: f32[32,18], index: 0, kind: input, shape index: {}]
  %s1 = inlined_call_operand.vmem [shape: f32[18,128], index: 1, kind: input, shape index: {}]
  %s2 = inlined_call_operand.vmem [shape: f32[1,128], index: 2, kind: input, shape index: {}]
  %s3 = inlined_call_operand.vmem [shape: bf16[32,128], index: 3, kind: output, shape index: {}]
  %s4 = sld [smem:[#allocation0]]
  $region22: #{bidaf_forward.26} parent=0
    _
  %s6 = ssub.s32 1, %s4
  %s7 = scalar_select 0, %s6, %s4
  // Predicated region
  $region2: #{bidaf_forward.26} parent=0 // pred_check
    _
  $region3: #{bidaf_forward.26} parent=0 // pred_check_branch
    %9 = sbr.rel (0) target = $region5
  $region4: #{bidaf_forward.26} parent=0 // pred_region
    _
  $region5: #{bidaf_forward.26} parent=0 // pred_fallthru
    _
  // Predicated region
  $region6: #{bidaf_forward.26} parent=0 // pred_check
    _
  $region7: #{bidaf_forward.26} parent=0 // pred_check_branch
    %11 = sbr.rel (0) target = $region9
  $region8: #{bidaf_forward.26} parent=0 // pred_region
    _
  $region9: #{bidaf_forward.26} parent=0 // pred_fallthru
    _
  // Predicated region
  $region10: #{bidaf_forward.26} parent=0 // pred_check
    _
  $region11: #{bidaf_forward.26} parent=0 // pred_check_branch
    %13 = sbr.rel (0) target = $region13
  $region12: #{bidaf_forward.26} parent=0 // pred_region
    _
  $region13: #{bidaf_forward.26} parent=0 // pred_fallthru
    _
  %v15 = vld [vmem:[%s0] sm:$0xff]
  %v16 = vld [vmem:[%s0 + $0x8] sm:$0xff]
  %v17 = vld [vmem:[%s0 + $0x10] sm:$0xff]
  %v18 = vld [vmem:[%s0 + $0x18] sm:$0xff]
  %v19 = vpack.c.bf16 %v16, %v15
  %v20 = vpack.c.bf16 %v18, %v17
  %v21 = vld [vmem:[%s1] sm:$0xff]
  %v22 = vld [vmem:[%s1 + $0x8] sm:$0xff]
  %v23 = vld [vmem:[%s1 + $0x10] sm:$0x3]
  %v24 = vpack.c.bf16 %v22, %v21
  %v25 = vpack.c.bf16 %v23, %v23
  %v26 = vld [vmem:[%s2] sm:$0x1]
  %v28 = vlaneseq
  %v29 = vshrl.u32 %v28, 7
  %v30 = vsub.s32 0, %v29
  %v31 = vrot.slane %v26, %v30
  %vm33 = vcmask 146432
  %v35 = vsel %vm33, %v19, 0
  %v38 = vsel %vm33, %v20, 0
  %vm40 = vcmask 1040384
  %v42 = vsel %vm40, %v25, 0
  %44 = vmatprep.subr.bf16.mxu0 0
  %45 = vmatpush1.bf16.msra.mxu0 %v24
  %46 = vmatprep.subr.bf16.mxu0 0
  %47 = vmatpush1.bf16.msra.mxu0 %v42
  %48 = vmatprep.subr.bf16.mxu0 0
  %49 = vmatpush1.bf16.msra.mxu0 0
  %50 = vmatprep.subr.bf16.mxu0 0
  %51 = vmatpush1.bf16.msra.mxu0 0
  %52 = vmatprep.subr.bf16.mxu0 0
  %53 = vmatpush1.bf16.msra.mxu0 0
  %54 = vmatprep.subr.bf16.mxu0 0
  %55 = vmatpush1.bf16.msra.mxu0 0
  %56 = vmatprep.subr.bf16.mxu0 0
  %57 = vmatpush1.bf16.msra.mxu0 0
  %58 = vmatprep.subr.bf16.mxu0 0
  %59 = vmatpush1.bf16.msra.mxu0 0
  %60 = vmatprep.subr.bf16.mxu0 0
  %61 = vmatpush1.bf16.msra.mxu0 0
  %62 = vmatprep.subr.bf16.mxu0 0
  %63 = vmatpush1.bf16.msra.mxu0 0
  %64 = vmatprep.subr.bf16.mxu0 0
  %65 = vmatpush1.bf16.msra.mxu0 0
  %66 = vmatprep.subr.bf16.mxu0 0
  %67 = vmatpush1.bf16.msra.mxu0 0
  %68 = vmatprep.subr.bf16.mxu0 0
  %69 = vmatpush1.bf16.msra.mxu0 0
  %70 = vmatprep.subr.bf16.mxu0 0
  %71 = vmatpush1.bf16.msra.mxu0 0
  %72 = vmatprep.subr.bf16.mxu0 0
  %73 = vmatpush1.bf16.msra.mxu0 0
  %74 = vmatprep.subr.bf16.mxu0 0
  %75 = vmatpush1.bf16.msra.mxu0 0
  %76 = vmatprep.mubr.bf16.mxu0 0
  %77 = vmatmul.mubr.bf16.gmra.mrb[0].mxu0 %v35
  %v78 = vpop.f32.mrb[0].mxu0
  %v79 = vadd.f32 %v31, %v78
  %v80 = vpop.f32.mrb[0].mxu0
  %v81 = vpop.f32.mrb[0].mxu0
  %v82 = vadd.f32 %v31, %v81
  %v83 = vpop.f32.mrb[0].mxu0
  %84 = vmatprep.mubr.bf16.mxu0 0
  %85 = vmatmul.mubr.bf16.gmra.mrb[0].mxu0 %v38
  %v86 = vpop.f32.mrb[0].mxu0
  %v87 = vadd.f32 %v31, %v86
  %v88 = vpop.f32.mrb[0].mxu0
  %v89 = vpop.f32.mrb[0].mxu0
  %v90 = vadd.f32 %v31, %v89
  %v91 = vpop.f32.mrb[0].mxu0
  %92 = vdwg.mxu0
  %v93 = vpack.c.bf16 %v82, %v79
  %v94 = vpack.c.bf16 %v90, %v87
  %v97 = vunpack.c.l.b16 %v93
  %v98 = vunpack.c.h.b16 %v93
  %v99 = vunpack.c.l.b16 %v94
  %v100 = vunpack.c.h.b16 %v94
  %v101 = vpack.c.b16 %v97, %v97
  %v102 = vpack.c.b16 %v98, %v98
  %v103 = vpack.c.b16 %v99, %v99
  %v104 = vpack.c.b16 %v100, %v100
  %109 = vst [vmem:[%s3] sm:$0xf] %v101
  %110 = vst [vmem:[%s3 + $0x4] sm:$0xf] %v102
  %111 = vst [vmem:[%s3 + $0x8] sm:$0xf] %v103
  %112 = vst [vmem:[%s3 + $0xc] sm:$0xf] %v104
  // Predicated region
  $region14: #{bidaf_forward.26} parent=0 // pred_check
    _
  $region15: #{bidaf_forward.26} parent=0 // pred_check_branch
    %114 = sbr.rel (0) target = $region17
  $region16: #{bidaf_forward.26} parent=0 // pred_region
    _
  $region17: #{bidaf_forward.26} parent=0 // pred_fallthru
    _
  // Predicated region
  $region18: #{bidaf_forward.26} parent=0 // pred_check
    _
  $region19: #{bidaf_forward.26} parent=0 // pred_check_branch
    %116 = sbr.rel (0) target = $region21
  $region20: #{bidaf_forward.26} parent=0 // pred_region
    _
  $region21: #{bidaf_forward.26} parent=0 // pred_fallthru
    _

// kernel: bidaf_forward.27
$region0: #{bidaf_forward.27}
  #allocation0 [shape = 'u32[]', space=smem, size = 0x4, offset = 0x4, fixed_abs, tag = 'smem constant byte address 0x4 - core index']
  #allocation1 [shape = 'u32[144,128]{1,0:T(1,128)}', space=vmem, size = 0x12000, scoped, tag = 'internal scratch']
  %s0 = inlined_call_operand.vmem [shape: bf16[2,16,2,64], index: 0, kind: input, shape index: {}]
  %s1 = inlined_call_operand.vmem [shape: f32[2,16,64], index: 1, kind: input, shape index: {}]
  %s2 = inlined_call_operand.vmem [shape: f32[16,2,1], index: 2, kind: input, shape index: {}]
  %s3 = inlined_call_operand.vmem [shape: f32[2,16,2,16], index: 3, kind: output, shape index: {}]
  %s4 = sld [smem:[#allocation0]]
  $region29: #{bidaf_forward.27} parent=0
    _
  %s6 = ssub.s32 1, %s4
  %s7 = scalar_select 0, %s6, %s4
  // Predicated region
  $region2: #{bidaf_forward.27} parent=0 // pred_check
    _
  $region3: #{bidaf_forward.27} parent=0 // pred_check_branch
    %9 = sbr.rel (0) target = $region5
  $region4: #{bidaf_forward.27} parent=0 // pred_region
    _
  $region5: #{bidaf_forward.27} parent=0 // pred_fallthru
    _
  // Predicated region
  $region6: #{bidaf_forward.27} parent=0 // pred_check
    _
  $region7: #{bidaf_forward.27} parent=0 // pred_check_branch
    %11 = sbr.rel (0) target = $region9
  $region8: #{bidaf_forward.27} parent=0 // pred_region
    _
  $region9: #{bidaf_forward.27} parent=0 // pred_fallthru
    _
  // Predicated region
  $region10: #{bidaf_forward.27} parent=0 // pred_check
    _
  $region11: #{bidaf_forward.27} parent=0 // pred_check_branch
    %13 = sbr.rel (0) target = $region13
  $region12: #{bidaf_forward.27} parent=0 // pred_region
    _
  $region13: #{bidaf_forward.27} parent=0 // pred_fallthru
    _
  loop: start=0, step=1, limit=16
  $region14: #{bidaf_forward.27} parent=0 // loop_pre_header
    _
  $region15: #{bidaf_forward.27} parent=0 // loop_header
    %s16 = sphi 0, %s20
    %p17 = scmp.ge.s32.totalorder %s16, 16
    %v21 = vphi 0.0, %v224
    %v22 = vphi 0.0, %v236
    %v23 = vphi 0.0, %v254
    %v24 = vphi 0.0, %v266
  $region16: #{bidaf_forward.27} parent=0 // loop_header_branch
    %19 = sbr.rel (%p17) target = $region20
  $region17: #{bidaf_forward.27} parent=0 // loop_body
    %s25 = ssub.s32 15, %s16
    %s26 = smul.u32 %s16, 2
    %s27 = scalar_lea.vmem %s2, %s26
    %v28 = vld [vmem:[%s27] sm:$0x3]
    %s29 = smul.u32 %s25, 2
    %s30 = scalar_lea.vmem %s2, %s29
    %v31 = vld [vmem:[%s30] sm:$0x3]
    %s32 = scalar_lea.vmem %s0, %s16
    %v33 = vld [vmem:[%s32] sm:$0x1]
    %v34 = vunpack.c.l.bf16 %v33
    %v35 = vpack.c.bf16 %v21, %v21
    %v36 = vld [vmem:[%s1] sm:$0xff]
    %v37 = vld [vmem:[%s1 + $0x8] sm:$0xff]
    %v38 = vpack.c.bf16 %v37, %v36
    %vm39 = vcmask 130048
    %v41 = vsel %vm39, %v35, 0
    %43 = vmatprep.subr.bf16.mxu0 0
    %44 = vmatpush1.bf16.msra.mxu0 %v38
    %45 = vmatprep.subr.bf16.mxu0 0
    %46 = vmatpush1.bf16.msra.mxu0 0
    %47 = vmatprep.subr.bf16.mxu0 0
    %48 = vmatpush1.bf16.msra.mxu0 0
    %49 = vmatprep.subr.bf16.mxu0 0
    %50 = vmatpush1.bf16.msra.mxu0 0
    %51 = vmatprep.subr.bf16.mxu0 0
    %52 = vmatpush1.bf16.msra.mxu0 0
    %53 = vmatprep.subr.bf16.mxu0 0
    %54 = vmatpush1.bf16.msra.mxu0 0
    %55 = vmatprep.subr.bf16.mxu0 0
    %56 = vmatpush1.bf16.msra.mxu0 0
    %57 = vmatprep.subr.bf16.mxu0 0
    %58 = vmatpush1.bf16.msra.mxu0 0
    %59 = vmatprep.subr.bf16.mxu0 0
    %60 = vmatpush1.bf16.msra.mxu0 0
    %61 = vmatprep.subr.bf16.mxu0 0
    %62 = vmatpush1.bf16.msra.mxu0 0
    %63 = vmatprep.subr.bf16.mxu0 0
    %64 = vmatpush1.bf16.msra.mxu0 0
    %65 = vmatprep.subr.bf16.mxu0 0
    %66 = vmatpush1.bf16.msra.mxu0 0
    %67 = vmatprep.subr.bf16.mxu0 0
    %68 = vmatpush1.bf16.msra.mxu0 0
    %69 = vmatprep.subr.bf16.mxu0 0
    %70 = vmatpush1.bf16.msra.mxu0 0
    %71 = vmatprep.subr.bf16.mxu0 0
    %72 = vmatpush1.bf16.msra.mxu0 0
    %73 = vmatprep.subr.bf16.mxu0 0
    %74 = vmatpush1.bf16.msra.mxu0 0
    %75 = vmatprep.mubr.bf16.mxu0 0
    %76 = vmatmul.mubr.bf16.gmra.mrb[0].mxu0 %v41
    %v77 = vpop.f32.mrb[0].mxu0
    %v78 = vadd.f32 0.0, %v77
    %v79 = vpop.f32.mrb[0].mxu0
    %v80 = vpop.f32.mrb[0].mxu0
    %v81 = vpop.f32.mrb[0].mxu0
    %82 = vdwg.mxu0
    %v83 = vadd.f32 %v34, %v78
    %s84 = sadd.s32 %s25, 16
    %s85 = scalar_lea.vmem %s0, %s84
    %v86 = vld [vmem:[%s85] sm:$0x1]
    %v87 = vunpack.c.l.bf16 %v86
    %v88 = vpack.c.bf16 %v23, %v23
    %s89 = scalar_lea.vmem %s1, 16
    %v90 = vld [vmem:[%s89] sm:$0xff]
    %v91 = vld [vmem:[%s89 + $0x8] sm:$0xff]
    %v92 = vpack.c.bf16 %v91, %v90
    %v94 = vsel %vm39, %v88, 0
    %96 = vmatprep.subr.bf16.mxu0 0
    %97 = vmatpush1.bf16.msra.mxu0 %v92
    %98 = vmatprep.subr.bf16.mxu0 0
    %99 = vmatpush1.bf16.msra.mxu0 0
    %100 = vmatprep.subr.bf16.mxu0 0
    %101 = vmatpush1.bf16.msra.mxu0 0
    %102 = vmatprep.subr.bf16.mxu0 0
    %103 = vmatpush1.bf16.msra.mxu0 0
    %104 = vmatprep.subr.bf16.mxu0 0
    %105 = vmatpush1.bf16.msra.mxu0 0
    %106 = vmatprep.subr.bf16.mxu0 0
    %107 = vmatpush1.bf16.msra.mxu0 0
    %108 = vmatprep.subr.bf16.mxu0 0
    %109 = vmatpush1.bf16.msra.mxu0 0
    %110 = vmatprep.subr.bf16.mxu0 0
    %111 = vmatpush1.bf16.msra.mxu0 0
    %112 = vmatprep.subr.bf16.mxu0 0
    %113 = vmatpush1.bf16.msra.mxu0 0
    %114 = vmatprep.subr.bf16.mxu0 0
    %115 = vmatpush1.bf16.msra.mxu0 0
    %116 = vmatprep.subr.bf16.mxu0 0
    %117 = vmatpush1.bf16.msra.mxu0 0
    %118 = vmatprep.subr.bf16.mxu0 0
    %119 = vmatpush1.bf16.msra.mxu0 0
    %120 = vmatprep.subr.bf16.mxu0 0
    %121 = vmatpush1.bf16.msra.mxu0 0
    %122 = vmatprep.subr.bf16.mxu0 0
    %123 = vmatpush1.bf16.msra.mxu0 0
    %124 = vmatprep.subr.bf16.mxu0 0
    %125 = vmatpush1.bf16.msra.mxu0 0
    %126 = vmatprep.subr.bf16.mxu0 0
    %127 = vmatpush1.bf16.msra.mxu0 0
    %128 = vmatprep.mubr.bf16.mxu0 0
    %129 = vmatmul.mubr.bf16.gmra.mrb[0].mxu0 %v94
    %v130 = vpop.f32.mrb[0].mxu0
    %v131 = vadd.f32 0.0, %v130
    %v132 = vpop.f32.mrb[0].mxu0
    %v133 = vpop.f32.mrb[0].mxu0
    %v134 = vpop.f32.mrb[0].mxu0
    %135 = vdwg.mxu0
    %v136 = vadd.f32 %v87, %v131
    %v137 = vxor.u32 %v83, 2147483648
    %v138 = vmul.f32 %v137, 1.442695
    %v139 = vpow.pop %v138
    %v140 = vadd.f32 %v139, 1.0
    %v141 = vrcp.pop %v140
    %v142 = vmul.f32 1.0, %v141
    %v143 = vtanh.pop %v83
    %v146 = vunpack.c.l.s4 1983009808
    %v147 = vunpack.c.0.s8 %v146
    %v148 = vlaneseq
    %v149 = vshrl.u32 %v148, 7
    %v150 = vsub.s32 %v147, %v149
    %v151 = vrot.slane %v22, %v150
    %152 = vrot.lane.b32.xlu0 %v151, 16
    %v153 = vpop.permute.xlu0 %152
    %v155 = vmul.f32 %v142, %v153
    %157 = vrot.lane.b32.xlu0 %v143, 96
    %v158 = vpop.permute.xlu0 %157
    %v160 = vmul.f32 %v142, %v158
    %162 = vrot.lane.b32.xlu0 %v160, 16
    %v163 = vpop.permute.xlu0 %162
    %v165 = vadd.f32 %v155, %v163
    %v166 = vtanh.pop %v165
    %168 = vrot.lane.b32.xlu0 %v166, 32
    %v169 = vpop.permute.xlu0 %168
    %v171 = vmul.f32 %v142, %v169
    %v172 = vxor.u32 %v136, 2147483648
    %v173 = vmul.f32 %v172, 1.442695
    %v174 = vpow.pop %v173
    %v175 = vadd.f32 %v174, 1.0
    %v176 = vrcp.pop %v175
    %v177 = vmul.f32 1.0, %v176
    %v178 = vtanh.pop %v136
    %v181 = vunpack.c.l.s4 1983009808
    %v182 = vunpack.c.0.s8 %v181
    %v183 = vlaneseq
    %v184 = vshrl.u32 %v183, 7
    %v185 = vsub.s32 %v182, %v184
    %v186 = vrot.slane %v24, %v185
    %187 = vrot.lane.b32.xlu0 %v186, 16
    %v188 = vpop.permute.xlu0 %187
    %v190 = vmul.f32 %v177, %v188
    %192 = vrot.lane.b32.xlu0 %v178, 96
    %v193 = vpop.permute.xlu0 %192
    %v195 = vmul.f32 %v177, %v193
    %197 = vrot.lane.b32.xlu0 %v195, 16
    %v198 = vpop.permute.xlu0 %197
    %v200 = vadd.f32 %v190, %v198
    %v201 = vtanh.pop %v200
    %203 = vrot.lane.b32.xlu0 %v201, 32
    %v204 = vpop.permute.xlu0 %203
    %v206 = vmul.f32 %v177, %v204
    %vm207 = vcmp.gt.f32.partialorder %v28, 0.0
    %v208 = vsel %vm207, 1, 0
    %209 = vset.pattern.permute.xlu0 0
    %210 = vperm.xlu0 %209, %v208
    %v211 = vpop.permute.xlu0 %210
    %vm212 = vcmp.eq.s32.totalorder %v211, 1
    %v215 = vunpack.c.l.s4 1983009808
    %v216 = vunpack.c.0.s8 %v215
    %v217 = vlaneseq
    %v218 = vshrl.u32 %v217, 7
    %v219 = vsub.s32 %v216, %v218
    %v220 = vrot.slane %v171, %v219
    %221 = vrot.lane.b32.xlu0 %v220, 80
    %v222 = vpop.permute.xlu0 %221
    %v224 = vsel %vm212, %v222, %v21
    %v227 = vunpack.c.l.s4 1983009808
    %v228 = vunpack.c.0.s8 %v227
    %v229 = vlaneseq
    %v230 = vshrl.u32 %v229, 7
    %v231 = vsub.s32 %v228, %v230
    %v232 = vrot.slane %v165, %v231
    %233 = vrot.lane.b32.xlu0 %v232, 112
    %v234 = vpop.permute.xlu0 %233
    %v236 = vsel %vm212, %v234, %v22
    %vm237 = vcmp.gt.f32.partialorder %v31, 0.0
    %v238 = vsel %vm237, 1, 0
    %239 = vset.pattern.permute.xlu0 0
    %240 = vperm.xlu0 %239, %v238
    %v241 = vpop.permute.xlu0 %240
    %vm242 = vcmp.eq.s32.totalorder %v241, 1
    %v245 = vunpack.c.l.s4 1983009808
    %v246 = vunpack.c.0.s8 %v245
    %v247 = vlaneseq
    %v248 = vshrl.u32 %v247, 7
    %v249 = vsub.s32 %v246, %v248
    %v250 = vrot.slane %v206, %v249
    %251 = vrot.lane.b32.xlu0 %v250, 80
    %v252 = vpop.permute.xlu0 %251
    %v254 = vsel %vm242, %v252, %v23
    %v257 = vunpack.c.l.s4 1983009808
    %v258 = vunpack.c.0.s8 %v257
    %v259 = vlaneseq
    %v260 = vshrl.u32 %v259, 7
    %v261 = vsub.s32 %v258, %v260
    %v262 = vrot.slane %v200, %v261
    %263 = vrot.lane.b32.xlu0 %v262, 112
    %v264 = vpop.permute.xlu0 %263
    %v266 = vsel %vm242, %v264, %v24
    %268 = vset.pattern.permute.xlu0 0
    %269 = vperm.xlu0 %268, %v28
    %v270 = vpop.permute.xlu0 %269
    %v272 = vmul.f32 %v224, %v270
    %s273 = scalar_lea.vmem %s3, %s26
    %vm274 = vcmask 123904
    %275 = vst.msk [vmem:[%s273] sm:$0x3] %vm274, %v272
    %277 = vset.pattern.permute.xlu0 0
    %278 = vperm.xlu0 %277, %v31
    %v279 = vpop.permute.xlu0 %278
    %v281 = vmul.f32 %v254, %v279
    %s282 = sadd.s32 %s29, 32
    %s283 = scalar_lea.vmem %s3, %s282
    %284 = vst.msk [vmem:[%s283] sm:$0x3] %vm274, %v281
  $region18: #{bidaf_forward.27} parent=0 // loop_footer
    %s20 = sadd.s32 1, %s16
  $region19: #{bidaf_forward.27} parent=0 // loop_footer_branch
    %15 = sbr.rel target = $region15
  $region20: #{bidaf_forward.27} parent=0 // loop_exit
    _
  // Predicated region
  $region21: #{bidaf_forward.27} parent=0 // pred_check
    _
  $region22: #{bidaf_forward.27} parent=0 // pred_check_branch
    %286 = sbr.rel (0) target = $region24
  $region23: #{bidaf_forward.27} parent=0 // pred_region
    _
  $region24: #{bidaf_forward.27} parent=0 // pred_fallthru
    _
  // Predicated region
  $region25: #{bidaf_forward.27} parent=0 // pred_check
    _
  $region26: #{bidaf_forward.27} parent=0 // pred_check_branch
    %288 = sbr.rel (0) target = $region28
  $region27: #{bidaf_forward.27} parent=0 // pred_region
    _
  $region28: #{bidaf_forward.27} parent=0 // pred_fallthru
    _

// kernel: bidaf_forward.23
$region0: #{bidaf_forward.23}
  #allocation0 [shape = 'u32[]', space=smem, size = 0x4, offset = 0x4, fixed_abs, tag = 'smem constant byte address 0x4 - core index']
  #allocation1 [shape = 'u32[144,128]{1,0:T(1,128)}', space=vmem, size = 0x12000, scoped, tag = 'internal scratch']
  %s0 = inlined_call_operand.vmem [shape: f32[16,24], index: 0, kind: input, shape index: {}]
  %s1 = inlined_call_operand.vmem [shape: f32[24,8], index: 1, kind: input, shape index: {}]
  %s2 = inlined_call_operand.vmem [shape: f32[1,8], index: 2, kind: input, shape index: {}]
  %s3 = inlined_call_operand.vmem [shape: f32[16,8], index: 3, kind: output, shape index: {}]
  %s4 = sld [smem:[#allocation0]]
  $region22: #{bidaf_forward.23} parent=0
    _
  %s6 = ssub.s32 1, %s4
  %s7 = scalar_select 0, %s6, %s4
  // Predicated region
  $region2: #{bidaf_forward.23} parent=0 // pred_check
    _
  $region3: #{bidaf_forward.23} parent=0 // pred_check_branch
    %9 = sbr.rel (0) target = $region5
  $region4: #{bidaf_forward.23} parent=0 // pred_region
    _
  $region5: #{bidaf_forward.23} parent=0 // pred_fallthru
    _
  // Predicated region
  $region6: #{bidaf_forward.23} parent=0 // pred_check
    _
  $region7: #{bidaf_forward.23} parent=0 // pred_check_branch
    %11 = sbr.rel (0) target = $region9
  $region8: #{bidaf_forward.23} parent=0 // pred_region
    _
  $region9: #{bidaf_forward.23} parent=0 // pred_fallthru
    _
  // Predicated region
  $region10: #{bidaf_forward.23} parent=0 // pred_check
    _
  $region11: #{bidaf_forward.23} parent=0 // pred_check_branch
    %13 = sbr.rel (0) target = $region13
  $region12: #{bidaf_forward.23} parent=0 // pred_region
    _
  $region13: #{bidaf_forward.23} parent=0 // pred_fallthru
    _
  %v15 = vld [vmem:[%s0] sm:$0xff]
  %v16 = vld [vmem:[%s0 + $0x8] sm:$0xff]
  %v17 = vpack.c.bf16 %v16, %v15
  %v18 = vld [vmem:[%s1] sm:$0xff]
  %v19 = vld [vmem:[%s1 + $0x8] sm:$0xff]
  %v20 = vld [vmem:[%s1 + $0x10] sm:$0xff]
  %v21 = vpack.c.bf16 %v19, %v18
  %v22 = vpack.c.bf16 %v20, %v20
  %v23 = vld [vmem:[%s2] sm:$0x1]
  %v25 = vlaneseq
  %v26 = vshrl.u32 %v25, 7
  %v27 = vsub.s32 0, %v26
  %v28 = vrot.slane %v23, %v27
  %vm30 = vcmask 195584
  %v32 = vsel %vm30, %v17, 0
  %vm34 = vcmask 1043456
  %v36 = vsel %vm34, %v22, 0
  %38 = vmatprep.subr.bf16.mxu0 0
  %39 = vmatpush1.bf16.msra.mxu0 %v21
  %40 = vmatprep.subr.bf16.mxu0 0
  %41 = vmatpush1.bf16.msra.mxu0 %v36
  %42 = vmatprep.subr.bf16.mxu0 0
  %43 = vmatpush1.bf16.msra.mxu0 0
  %44 = vmatprep.subr.bf16.mxu0 0
  %45 = vmatpush1.bf16.msra.mxu0 0
  %46 = vmatprep.subr.bf16.mxu0 0
  %47 = vmatpush1.bf16.msra.mxu0 0
  %48 = vmatprep.subr.bf16.mxu0 0
  %49 = vmatpush1.bf16.msra.mxu0 0
  %50 = vmatprep.subr.bf16.mxu0 0
  %51 = vmatpush1.bf16.msra.mxu0 0
  %52 = vmatprep.subr.bf16.mxu0 0
  %53 = vmatpush1.bf16.msra.mxu0 0
  %54 = vmatprep.subr.bf16.mxu0 0
  %55 = vmatpush1.bf16.msra.mxu0 0
  %56 = vmatprep.subr.bf16.mxu0 0
  %57 = vmatpush1.bf16.msra.mxu0 0
  %58 = vmatprep.subr.bf16.mxu0 0
  %59 = vmatpush1.bf16.msra.mxu0 0
  %60 = vmatprep.subr.bf16.mxu0 0
  %61 = vmatpush1.bf16.msra.mxu0 0
  %62 = vmatprep.subr.bf16.mxu0 0
  %63 = vmatpush1.bf16.msra.mxu0 0
  %64 = vmatprep.subr.bf16.mxu0 0
  %65 = vmatpush1.bf16.msra.mxu0 0
  %66 = vmatprep.subr.bf16.mxu0 0
  %67 = vmatpush1.bf16.msra.mxu0 0
  %68 = vmatprep.subr.bf16.mxu0 0
  %69 = vmatpush1.bf16.msra.mxu0 0
  %70 = vmatprep.mubr.bf16.mxu0 0
  %71 = vmatmul.mubr.bf16.gmra.mrb[0].mxu0 %v32
  %v72 = vpop.f32.mrb[0].mxu0
  %v73 = vadd.f32 %v28, %v72
  %v74 = vpop.f32.mrb[0].mxu0
  %v75 = vpop.f32.mrb[0].mxu0
  %v76 = vadd.f32 %v28, %v75
  %v77 = vpop.f32.mrb[0].mxu0
  %78 = vdwg.mxu0
  %vm79 = vcmask 64512
  %80 = vst.msk [vmem:[%s3] sm:$0xff] %vm79, %v73
  %81 = vst.msk [vmem:[%s3 + $0x8] sm:$0xff] %vm79, %v76
  // Predicated region
  $region14: #{bidaf_forward.23} parent=0 // pred_check
    _
  $region15: #{bidaf_forward.23} parent=0 // pred_check_branch
    %83 = sbr.rel (0) target = $region17
  $region16: #{bidaf_forward.23} parent=0 // pred_region
    _
  $region17: #{bidaf_forward.23} parent=0 // pred_fallthru
    _
  // Predicated region
  $region18: #{bidaf_forward.23} parent=0 // pred_check
    _
  $region19: #{bidaf_forward.23} parent=0 // pred_check_branch
    %85 = sbr.rel (0) target = $region21
  $region20: #{bidaf_forward.23} parent=0 // pred_region
    _
  $region21: #{bidaf_forward.23} parent=0 // pred_fallthru
    _

// kernel: bidaf_forward.24
$region0: #{bidaf_forward.24}
  #allocation0 [shape = 'u32[]', space=smem, size = 0x4, offset = 0x4, fixed_abs, tag = 'smem constant byte address 0x4 - core index']
  #allocation1 [shape = 'u32[144,128]{1,0:T(1,128)}', space=vmem, size = 0x12000, scoped, tag = 'internal scratch']
  %s0 = inlined_call_operand.vmem [shape: f32[8,16,8], index: 0, kind: input, shape index: {}]
  %s1 = inlined_call_operand.vmem [shape: f32[3,8,8], index: 1, kind: input, shape index: {}]
  %s2 = inlined_call_operand.vmem [shape: f32[1,8], index: 2, kind: input, shape index: {}]
  %s3 = inlined_call_operand.vmem [shape: f32[16,8], index: 3, kind: output, shape index: {}]
  %s4 = sld [smem:[#allocation0]]
  $region22: #{bidaf_forward.24} parent=0
    _
  %s6 = ssub.s32 1, %s4
  %s7 = scalar_select 0, %s6, %s4
  // Predicated region
  $region2: #{bidaf_forward.24} parent=0 // pred_check
    _
  $region3: #{bidaf_forward.24} parent=0 // pred_check_branch
    %9 = sbr.rel (0) target = $region5
  $region4: #{bidaf_forward.24} parent=0 // pred_region
    _
  $region5: #{bidaf_forward.24} parent=0 // pred_fallthru
    _
  // Predicated region
  $region6: #{bidaf_forward.24} parent=0 // pred_check
    _
  $region7: #{bidaf_forward.24} parent=0 // pred_check_branch
    %11 = sbr.rel (0) target = $region9
  $region8: #{bidaf_forward.24} parent=0 // pred_region
    _
  $region9: #{bidaf_forward.24} parent=0 // pred_fallthru
    _
  // Predicated region
  $region10: #{bidaf_forward.24} parent=0 // pred_check
    _
  $region11: #{bidaf_forward.24} parent=0 // pred_check_branch
    %13 = sbr.rel (0) target = $region13
  $region12: #{bidaf_forward.24} parent=0 // pred_region
    _
  $region13: #{bidaf_forward.24} parent=0 // pred_fallthru
    _
  %v15 = vld [vmem:[%s2] sm:$0x1]
  %v16 = vld [vmem:[%s0] sm:$0xff]
  %v17 = vld [vmem:[%s0 + $0x8] sm:$0xff]
  %v18 = vpack.c.bf16 %v17, %v16
  %v19 = vld [vmem:[%s1] sm:$0xff]
  %v20 = vpack.c.bf16 %v19, %v19
  %vm21 = vcmask 64512
  %v23 = vsel %vm21, %v18, 0
  %vm25 = vcmask 1043456
  %v27 = vsel %vm25, %v20, 0
  %29 = vmatprep.subr.bf16.mxu0 0
  %30 = vmatpush1.bf16.msra.mxu0 %v27
  %31 = vmatprep.subr.bf16.mxu0 0
  %32 = vmatpush1.bf16.msra.mxu0 0
  %33 = vmatprep.subr.bf16.mxu0 0
  %34 = vmatpush1.bf16.msra.mxu0 0
  %35 = vmatprep.subr.bf16.mxu0 0
  %36 = vmatpush1.bf16.msra.mxu0 0
  %37 = vmatprep.subr.bf16.mxu0 0
  %38 = vmatpush1.bf16.msra.mxu0 0
  %39 = vmatprep.subr.bf16.mxu0 0
  %40 = vmatpush1.bf16.msra.mxu0 0
  %41 = vmatprep.subr.bf16.mxu0 0
  %42 = vmatpush1.bf16.msra.mxu0 0
  %43 = vmatprep.subr.bf16.mxu0 0
  %44 = vmatpush1.bf16.msra.mxu0 0
  %45 = vmatprep.subr.bf16.mxu0 0
  %46 = vmatpush1.bf16.msra.mxu0 0
  %47 = vmatprep.subr.bf16.mxu0 0
  %48 = vmatpush1.bf16.msra.mxu0 0
  %49 = vmatprep.subr.bf16.mxu0 0
  %50 = vmatpush1.bf16.msra.mxu0 0
  %51 = vmatprep.subr.bf16.mxu0 0
  %52 = vmatpush1.bf16.msra.mxu0 0
  %53 = vmatprep.subr.bf16.mxu0 0
  %54 = vmatpush1.bf16.msra.mxu0 0
  %55 = vmatprep.subr.bf16.mxu0 0
  %56 = vmatpush1.bf16.msra.mxu0 0
  %57 = vmatprep.subr.bf16.mxu0 0
  %58 = vmatpush1.bf16.msra.mxu0 0
  %59 = vmatprep.subr.bf16.mxu0 0
  %60 = vmatpush1.bf16.msra.mxu0 0
  %61 = vmatprep.mubr.bf16.mxu0 0
  %62 = vmatmul.mubr.bf16.gmra.mrb[0].mxu0 %v23
  %v63 = vpop.f32.mrb[0].mxu0
  %v64 = vadd.f32 0.0, %v63
  %v65 = vpop.f32.mrb[0].mxu0
  %v66 = vpop.f32.mrb[0].mxu0
  %v67 = vadd.f32 0.0, %v66
  %v68 = vpop.f32.mrb[0].mxu0
  %69 = vdwg.mxu0
  %v71 = vlaneseq
  %v72 = vshrl.u32 %v71, 7
  %v73 = vsub.s32 0, %v72
  %v74 = vrot.slane %v15, %v73
  %v76 = vadd.f32 %v74, %v64
  %v77 = vadd.f32 %v74, %v67
  %s78 = scalar_lea.vmem %s0, 16
  %v79 = vld [vmem:[%s78] sm:$0xff]
  %v80 = vld [vmem:[%s78 + $0x8] sm:$0xff]
  %v81 = vpack.c.bf16 %v80, %v79
  %s82 = scalar_lea.vmem %s1, 8
  %v83 = vld [vmem:[%s82] sm:$0xff]
  %v84 = vpack.c.bf16 %v83, %v83
  %v86 = vsel %vm21, %v81, 0
  %v89 = vsel %vm25, %v84, 0
  %91 = vmatprep.subr.bf16.mxu0 0
  %92 = vmatpush1.bf16.msra.mxu0 %v89
  %93 = vmatprep.subr.bf16.mxu0 0
  %94 = vmatpush1.bf16.msra.mxu0 0
  %95 = vmatprep.subr.bf16.mxu0 0
  %96 = vmatpush1.bf16.msra.mxu0 0
  %97 = vmatprep.subr.bf16.mxu0 0
  %98 = vmatpush1.bf16.msra.mxu0 0
  %99 = vmatprep.subr.bf16.mxu0 0
  %100 = vmatpush1.bf16.msra.mxu0 0
  %101 = vmatprep.subr.bf16.mxu0 0
  %102 = vmatpush1.bf16.msra.mxu0 0
  %103 = vmatprep.subr.bf16.mxu0 0
  %104 = vmatpush1.bf16.msra.mxu0 0
  %105 = vmatprep.subr.bf16.mxu0 0
  %106 = vmatpush1.bf16.msra.mxu0 0
  %107 = vmatprep.subr.bf16.mxu0 0
  %108 = vmatpush1.bf16.msra.mxu0 0
  %109 = vmatprep.subr.bf16.mxu0 0
  %110 = vmatpush1.bf16.msra.mxu0 0
  %111 = vmatprep.subr.bf16.mxu0 0
  %112 = vmatpush1.bf16.msra.mxu0 0
  %113 = vmatprep.subr.bf16.mxu0 0
  %114 = vmatpush1.bf16.msra.mxu0 0
  %115 = vmatprep.subr.bf16.mxu0 0
  %116 = vmatpush1.bf16.msra.mxu0 0
  %117 = vmatprep.subr.bf16.mxu0 0
  %118 = vmatpush1.bf16.msra.mxu0 0
  %119 = vmatprep.subr.bf16.mxu0 0
  %120 = vmatpush1.bf16.msra.mxu0 0
  %121 = vmatprep.subr.bf16.mxu0 0
  %122 = vmatpush1.bf16.msra.mxu0 0
  %123 = vmatprep.mubr.bf16.mxu0 0
  %124 = vmatmul.mubr.bf16.gmra.mrb[0].mxu0 %v86
  %v125 = vpop.f32.mrb[0].mxu0
  %v126 = vadd.f32 0.0, %v125
  %v127 = vpop.f32.mrb[0].mxu0
  %v128 = vpop.f32.mrb[0].mxu0
  %v129 = vadd.f32 0.0, %v128
  %v130 = vpop.f32.mrb[0].mxu0
  %131 = vdwg.mxu0
  %v132 = vadd.f32 %v76, %v126
  %v133 = vadd.f32 %v77, %v129
  %s134 = scalar_lea.vmem %s0, 32
  %v135 = vld [vmem:[%s134] sm:$0xff]
  %v136 = vld [vmem:[%s134 + $0x8] sm:$0xff]
  %v137 = vpack.c.bf16 %v136, %v135
  %s138 = scalar_lea.vmem %s1, 16
  %v139 = vld [vmem:[%s138] sm:$0xff]
  %v140 = vpack.c.bf16 %v139, %v139
  %v142 = vsel %vm21, %v137, 0
  %v145 = vsel %vm25, %v140, 0
  %147 = vmatprep.subr.bf16.mxu0 0
  %148 = vmatpush1.bf16.msra.mxu0 %v145
  %149 = vmatprep.subr.bf16.mxu0 0
  %150 = vmatpush1.bf16.msra.mxu0 0
  %151 = vmatprep.subr.bf16.mxu0 0
  %152 = vmatpush1.bf16.msra.mxu0 0
  %153 = vmatprep.subr.bf16.mxu0 0
  %154 = vmatpush1.bf16.msra.mxu0 0
  %155 = vmatprep.subr.bf16.mxu0 0
  %156 = vmatpush1.bf16.msra.mxu0 0
  %157 = vmatprep.subr.bf16.mxu0 0
  %158 = vmatpush1.bf16.msra.mxu0 0
  %159 = vmatprep.subr.bf16.mxu0 0
  %160 = vmatpush1.bf16.msra.mxu0 0
  %161 = vmatprep.subr.bf16.mxu0 0
  %162 = vmatpush1.bf16.msra.mxu0 0
  %163 = vmatprep.subr.bf16.mxu0 0
  %164 = vmatpush1.bf16.msra.mxu0 0
  %165 = vmatprep.subr.bf16.mxu0 0
  %166 = vmatpush1.bf16.msra.mxu0 0
  %167 = vmatprep.subr.bf16.mxu0 0
  %168 = vmatpush1.bf16.msra.mxu0 0
  %169 = vmatprep.subr.bf16.mxu0 0
  %170 = vmatpush1.bf16.msra.mxu0 0
  %171 = vmatprep.subr.bf16.mxu0 0
  %172 = vmatpush1.bf16.msra.mxu0 0
  %173 = vmatprep.subr.bf16.mxu0 0
  %174 = vmatpush1.bf16.msra.mxu0 0
  %175 = vmatprep.subr.bf16.mxu0 0
  %176 = vmatpush1.bf16.msra.mxu0 0
  %177 = vmatprep.subr.bf16.mxu0 0
  %178 = vmatpush1.bf16.msra.mxu0 0
  %179 = vmatprep.mubr.bf16.mxu0 0
  %180 = vmatmul.mubr.bf16.gmra.mrb[0].mxu0 %v142
  %v181 = vpop.f32.mrb[0].mxu0
  %v182 = vadd.f32 0.0, %v181
  %v183 = vpop.f32.mrb[0].mxu0
  %v184 = vpop.f32.mrb[0].mxu0
  %v185 = vadd.f32 0.0, %v184
  %v186 = vpop.f32.mrb[0].mxu0
  %187 = vdwg.mxu0
  %v188 = vadd.f32 %v132, %v182
  %v189 = vadd.f32 %v133, %v185
  %v190 = vmax.f32 %v188, 0.0
  %v191 = vmax.f32 %v189, 0.0
  %192 = vmatprep.subr.bf16.mxu0 0
  %193 = vmatpush1.bf16.msra.mxu0 %v27
  %194 = vmatprep.subr.bf16.mxu0 0
  %195 = vmatpush1.bf16.msra.mxu0 0
  %196 = vmatprep.subr.bf16.mxu0 0
  %197 = vmatpush1.bf16.msra.mxu0 0
  %198 = vmatprep.subr.bf16.mxu0 0
  %199 = vmatpush1.bf16.msra.mxu0 0
  %200 = vmatprep.subr.bf16.mxu0 0
  %201 = vmatpush1.bf16.msra.mxu0 0
  %202 = vmatprep.subr.bf16.mxu0 0
  %203 = vmatpush1.bf16.msra.mxu0 0
  %204 = vmatprep.subr.bf16.mxu0 0
  %205 = vmatpush1.bf16.msra.mxu0 0
  %206 = vmatprep.subr.bf16.mxu0 0
  %207 = vmatpush1.bf16.msra.mxu0 0
  %208 = vmatprep.subr.bf16.mxu0 0
  %209 = vmatpush1.bf16.msra.mxu0 0
  %210 = vmatprep.subr.bf16.mxu0 0
  %211 = vmatpush1.bf16.msra.mxu0 0
  %212 = vmatprep.subr.bf16.mxu0 0
  %213 = vmatpush1.bf16.msra.mxu0 0
  %214 = vmatprep.subr.bf16.mxu0 0
  %215 = vmatpush1.bf16.msra.mxu0 0
  %216 = vmatprep.subr.bf16.mxu0 0
  %217 = vmatpush1.bf16.msra.mxu0 0
  %218 = vmatprep.subr.bf16.mxu0 0
  %219 = vmatpush1.bf16.msra.mxu0 0
  %220 = vmatprep.subr.bf16.mxu0 0
  %221 = vmatpush1.bf16.msra.mxu0 0
  %222 = vmatprep.subr.bf16.mxu0 0
  %223 = vmatpush1.bf16.msra.mxu0 0
  %224 = vmatprep.mubr.bf16.mxu0 0
  %225 = vmatmul.mubr.bf16.gmra.mrb[0].mxu0 %v86
  %v226 = vpop.f32.mrb[0].mxu0
  %v227 = vadd.f32 0.0, %v226
  %v228 = vpop.f32.mrb[0].mxu0
  %v229 = vpop.f32.mrb[0].mxu0
  %v230 = vadd.f32 0.0, %v229
  %v231 = vpop.f32.mrb[0].mxu0
  %232 = vdwg.mxu0
  %v233 = vadd.f32 %v74, %v227
  %v234 = vadd.f32 %v74, %v230
  %235 = vmatprep.subr.bf16.mxu0 0
  %236 = vmatpush1.bf16.msra.mxu0 %v89
  %237 = vmatprep.subr.bf16.mxu0 0
  %238 = vmatpush1.bf16.msra.mxu0 0
  %239 = vmatprep.subr.bf16.mxu0 0
  %240 = vmatpush1.bf16.msra.mxu0 0
  %241 = vmatprep.subr.bf16.mxu0 0
  %242 = vmatpush1.bf16.msra.mxu0 0
  %243 = vmatprep.subr.bf16.mxu0 0
  %244 = vmatpush1.bf16.msra.mxu0 0
  %245 = vmatprep.subr.bf16.mxu0 0
  %246 = vmatpush1.bf16.msra.mxu0 0
  %247 = vmatprep.subr.bf16.mxu0 0
  %248 = vmatpush1.bf16.msra.mxu0 0
  %249 = vmatprep.subr.bf16.mxu0 0
  %250 = vmatpush1.bf16.msra.mxu0 0
  %251 = vmatprep.subr.bf16.mxu0 0
  %252 = vmatpush1.bf16.msra.mxu0 0
  %253 = vmatprep.subr.bf16.mxu0 0
  %254 = vmatpush1.bf16.msra.mxu0 0
  %255 = vmatprep.subr.bf16.mxu0 0
  %256 = vmatpush1.bf16.msra.mxu0 0
  %257 = vmatprep.subr.bf16.mxu0 0
  %258 = vmatpush1.bf16.msra.mxu0 0
  %259 = vmatprep.subr.bf16.mxu0 0
  %260 = vmatpush1.bf16.msra.mxu0 0
  %261 = vmatprep.subr.bf16.mxu0 0
  %262 = vmatpush1.bf16.msra.mxu0 0
  %263 = vmatprep.subr.bf16.mxu0 0
  %264 = vmatpush1.bf16.msra.mxu0 0
  %265 = vmatprep.subr.bf16.mxu0 0
  %266 = vmatpush1.bf16.msra.mxu0 0
  %267 = vmatprep.mubr.bf16.mxu0 0
  %268 = vmatmul.mubr.bf16.gmra.mrb[0].mxu0 %v142
  %v269 = vpop.f32.mrb[0].mxu0
  %v270 = vadd.f32 0.0, %v269
  %v271 = vpop.f32.mrb[0].mxu0
  %v272 = vpop.f32.mrb[0].mxu0
  %v273 = vadd.f32 0.0, %v272
  %v274 = vpop.f32.mrb[0].mxu0
  %275 = vdwg.mxu0
  %v276 = vadd.f32 %v233, %v270
  %v277 = vadd.f32 %v234, %v273
  %s278 = scalar_lea.vmem %s0, 48
  %v279 = vld [vmem:[%s278] sm:$0xff]
  %v280 = vld [vmem:[%s278 + $0x8] sm:$0xff]
  %v281 = vpack.c.bf16 %v280, %v279
  %v283 = vsel %vm21, %v281, 0
  %285 = vmatprep.subr.bf16.mxu0 0
  %286 = vmatpush1.bf16.msra.mxu0 %v145
  %287 = vmatprep.subr.bf16.mxu0 0
  %288 = vmatpush1.bf16.msra.mxu0 0
  %289 = vmatprep.subr.bf16.mxu0 0
  %290 = vmatpush1.bf16.msra.mxu0 0
  %291 = vmatprep.subr.bf16.mxu0 0
  %292 = vmatpush1.bf16.msra.mxu0 0
  %293 = vmatprep.subr.bf16.mxu0 0
  %294 = vmatpush1.bf16.msra.mxu0 0
  %295 = vmatprep.subr.bf16.mxu0 0
  %296 = vmatpush1.bf16.msra.mxu0 0
  %297 = vmatprep.subr.bf16.mxu0 0
  %298 = vmatpush1.bf16.msra.mxu0 0
  %299 = vmatprep.subr.bf16.mxu0 0
  %300 = vmatpush1.bf16.msra.mxu0 0
  %301 = vmatprep.subr.bf16.mxu0 0
  %302 = vmatpush1.bf16.msra.mxu0 0
  %303 = vmatprep.subr.bf16.mxu0 0
  %304 = vmatpush1.bf16.msra.mxu0 0
  %305 = vmatprep.subr.bf16.mxu0 0
  %306 = vmatpush1.bf16.msra.mxu0 0
  %307 = vmatprep.subr.bf16.mxu0 0
  %308 = vmatpush1.bf16.msra.mxu0 0
  %309 = vmatprep.subr.bf16.mxu0 0
  %310 = vmatpush1.bf16.msra.mxu0 0
  %311 = vmatprep.subr.bf16.mxu0 0
  %312 = vmatpush1.bf16.msra.mxu0 0
  %313 = vmatprep.subr.bf16.mxu0 0
  %314 = vmatpush1.bf16.msra.mxu0 0
  %315 = vmatprep.subr.bf16.mxu0 0
  %316 = vmatpush1.bf16.msra.mxu0 0
  %317 = vmatprep.mubr.bf16.mxu0 0
  %318 = vmatmul.mubr.bf16.gmra.mrb[0].mxu0 %v283
  %v319 = vpop.f32.mrb[0].mxu0
  %v320 = vadd.f32 0.0, %v319
  %v321 = vpop.f32.mrb[0].mxu0
  %v322 = vpop.f32.mrb[0].mxu0
  %v323 = vadd.f32 0.0, %v322
  %v324 = vpop.f32.mrb[0].mxu0
  %325 = vdwg.mxu0
  %v326 = vadd.f32 %v276, %v320
  %v327 = vadd.f32 %v277, %v323
  %v328 = vmax.f32 %v326, 0.0
  %v329 = vmax.f32 %v327, 0.0
  %v330 = vmax.f32 %v190, %v328
  %v331 = vmax.f32 %v191, %v329
  %332 = vmatprep.subr.bf16.mxu0 0
  %333 = vmatpush1.bf16.msra.mxu0 %v27
  %334 = vmatprep.subr.bf16.mxu0 0
  %335 = vmatpush1.bf16.msra.mxu0 0
  %336 = vmatprep.subr.bf16.mxu0 0
  %337 = vmatpush1.bf16.msra.mxu0 0
  %338 = vmatprep.subr.bf16.mxu0 0
  %339 = vmatpush1.bf16.msra.mxu0 0
  %340 = vmatprep.subr.bf16.mxu0 0
  %341 = vmatpush1.bf16.msra.mxu0 0
  %342 = vmatprep.subr.bf16.mxu0 0
  %343 = vmatpush1.bf16.msra.mxu0 0
  %344 = vmatprep.subr.bf16.mxu0 0
  %345 = vmatpush1.bf16.msra.mxu0 0
  %346 = vmatprep.subr.bf16.mxu0 0
  %347 = vmatpush1.bf16.msra.mxu0 0
  %348 = vmatprep.subr.bf16.mxu0 0
  %349 = vmatpush1.bf16.msra.mxu0 0
  %350 = vmatprep.subr.bf16.mxu0 0
  %351 = vmatpush1.bf16.msra.mxu0 0
  %352 = vmatprep.subr.bf16.mxu0 0
  %353 = vmatpush1.bf16.msra.mxu0 0
  %354 = vmatprep.subr.bf16.mxu0 0
  %355 = vmatpush1.bf16.msra.mxu0 0
  %356 = vmatprep.subr.bf16.mxu0 0
  %357 = vmatpush1.bf16.msra.mxu0 0
  %358 = vmatprep.subr.bf16.mxu0 0
  %359 = vmatpush1.bf16.msra.mxu0 0
  %360 = vmatprep.subr.bf16.mxu0 0
  %361 = vmatpush1.bf16.msra.mxu0 0
  %362 = vmatprep.subr.bf16.mxu0 0
  %363 = vmatpush1.bf16.msra.mxu0 0
  %364 = vmatprep.mubr.bf16.mxu0 0
  %365 = vmatmul.mubr.bf16.gmra.mrb[0].mxu0 %v142
  %v366 = vpop.f32.mrb[0].mxu0
  %v367 = vadd.f32 0.0, %v366
  %v368 = vpop.f32.mrb[0].mxu0
  %v369 = vpop.f32.mrb[0].mxu0
  %v370 = vadd.f32 0.0, %v369
  %v371 = vpop.f32.mrb[0].mxu0
  %372 = vdwg.mxu0
  %v373 = vadd.f32 %v74, %v367
  %v374 = vadd.f32 %v74, %v370
  %375 = vmatprep.subr.bf16.mxu0 0
  %376 = vmatpush1.bf16.msra.mxu0 %v89
  %377 = vmatprep.subr.bf16.mxu0 0
  %378 = vmatpush1.bf16.msra.mxu0 0
  %379 = vmatprep.subr.bf16.mxu0 0
  %380 = vmatpush1.bf16.msra.mxu0 0
  %381 = vmatprep.subr.bf16.mxu0 0
  %382 = vmatpush1.bf16.msra.mxu0 0
  %383 = vmatprep.subr.bf16.mxu0 0
  %384 = vmatpush1.bf16.msra.mxu0 0
  %385 = vmatprep.subr.bf16.mxu0 0
  %386 = vmatpush1.bf16.msra.mxu0 0
  %387 = vmatprep.subr.bf16.mxu0 0
  %388 = vmatpush1.bf16.msra.mxu0 0
  %389 = vmatprep.subr.bf16.mxu0 0
  %390 = vmatpush1.bf16.msra.mxu0 0
  %391 = vmatprep.subr.bf16.mxu0 0
  %392 = vmatpush1.bf16.msra.mxu0 0
  %393 = vmatprep.subr.bf16.mxu0 0
  %394 = vmatpush1.bf16.msra.mxu0 0
  %395 = vmatprep.subr.bf16.mxu0 0
  %396 = vmatpush1.bf16.msra.mxu0 0
  %397 = vmatprep.subr.bf16.mxu0 0
  %398 = vmatpush1.bf16.msra.mxu0 0
  %399 = vmatprep.subr.bf16.mxu0 0
  %400 = vmatpush1.bf16.msra.mxu0 0
  %401 = vmatprep.subr.bf16.mxu0 0
  %402 = vmatpush1.bf16.msra.mxu0 0
  %403 = vmatprep.subr.bf16.mxu0 0
  %404 = vmatpush1.bf16.msra.mxu0 0
  %405 = vmatprep.subr.bf16.mxu0 0
  %406 = vmatpush1.bf16.msra.mxu0 0
  %407 = vmatprep.mubr.bf16.mxu0 0
  %408 = vmatmul.mubr.bf16.gmra.mrb[0].mxu0 %v283
  %v409 = vpop.f32.mrb[0].mxu0
  %v410 = vadd.f32 0.0, %v409
  %v411 = vpop.f32.mrb[0].mxu0
  %v412 = vpop.f32.mrb[0].mxu0
  %v413 = vadd.f32 0.0, %v412
  %v414 = vpop.f32.mrb[0].mxu0
  %415 = vdwg.mxu0
  %v416 = vadd.f32 %v373, %v410
  %v417 = vadd.f32 %v374, %v413
  %s418 = scalar_lea.vmem %s0, 64
  %v419 = vld [vmem:[%s418] sm:$0xff]
  %v420 = vld [vmem:[%s418 + $0x8] sm:$0xff]
  %v421 = vpack.c.bf16 %v420, %v419
  %v423 = vsel %vm21, %v421, 0
  %425 = vmatprep.subr.bf16.mxu0 0
  %426 = vmatpush1.bf16.msra.mxu0 %v145
  %427 = vmatprep.subr.bf16.mxu0 0
  %428 = vmatpush1.bf16.msra.mxu0 0
  %429 = vmatprep.subr.bf16.mxu0 0
  %430 = vmatpush1.bf16.msra.mxu0 0
  %431 = vmatprep.subr.bf16.mxu0 0
  %432 = vmatpush1.bf16.msra.mxu0 0
  %433 = vmatprep.subr.bf16.mxu0 0
  %434 = vmatpush1.bf16.msra.mxu0 0
  %435 = vmatprep.subr.bf16.mxu0 0
  %436 = vmatpush1.bf16.msra.mxu0 0
  %437 = vmatprep.subr.bf16.mxu0 0
  %438 = vmatpush1.bf16.msra.mxu0 0
  %439 = vmatprep.subr.bf16.mxu0 0
  %440 = vmatpush1.bf16.msra.mxu0 0
  %441 = vmatprep.subr.bf16.mxu0 0
  %442 = vmatpush1.bf16.msra.mxu0 0
  %443 = vmatprep.subr.bf16.mxu0 0
  %444 = vmatpush1.bf16.msra.mxu0 0
  %445 = vmatprep.subr.bf16.mxu0 0
  %446 = vmatpush1.bf16.msra.mxu0 0
  %447 = vmatprep.subr.bf16.mxu0 0
  %448 = vmatpush1.bf16.msra.mxu0 0
  %449 = vmatprep.subr.bf16.mxu0 0
  %450 = vmatpush1.bf16.msra.mxu0 0
  %451 = vmatprep.subr.bf16.mxu0 0
  %452 = vmatpush1.bf16.msra.mxu0 0
  %453 = vmatprep.subr.bf16.mxu0 0
  %454 = vmatpush1.bf16.msra.mxu0 0
  %455 = vmatprep.subr.bf16.mxu0 0
  %456 = vmatpush1.bf16.msra.mxu0 0
  %457 = vmatprep.mubr.bf16.mxu0 0
  %458 = vmatmul.mubr.bf16.gmra.mrb[0].mxu0 %v423
  %v459 = vpop.f32.mrb[0].mxu0
  %v460 = vadd.f32 0.0, %v459
  %v461 = vpop.f32.mrb[0].mxu0
  %v462 = vpop.f32.mrb[0].mxu0
  %v463 = vadd.f32 0.0, %v462
  %v464 = vpop.f32.mrb[0].mxu0
  %465 = vdwg.mxu0
  %v466 = vadd.f32 %v416, %v460
  %v467 = vadd.f32 %v417, %v463
  %v468 = vmax.f32 %v466, 0.0
  %v469 = vmax.f32 %v467, 0.0
  %v470 = vmax.f32 %v330, %v468
  %v471 = vmax.f32 %v331, %v469
  %472 = vmatprep.subr.bf16.mxu0 0
  %473 = vmatpush1.bf16.msra.mxu0 %v27
  %474 = vmatprep.subr.bf16.mxu0 0
  %475 = vmatpush1.bf16.msra.mxu0 0
  %476 = vmatprep.subr.bf16.mxu0 0
  %477 = vmatpush1.bf16.msra.mxu0 0
  %478 = vmatprep.subr.bf16.mxu0 0
  %479 = vmatpush1.bf16.msra.mxu0 0
  %480 = vmatprep.subr.bf16.mxu0 0
  %481 = vmatpush1.bf16.msra.mxu0 0
  %482 = vmatprep.subr.bf16.mxu0 0
  %483 = vmatpush1.bf16.msra.mxu0 0
  %484 = vmatprep.subr.bf16.mxu0 0
  %485 = vmatpush1.bf16.msra.mxu0 0
  %486 = vmatprep.subr.bf16.mxu0 0
  %487 = vmatpush1.bf16.msra.mxu0 0
  %488 = vmatprep.subr.bf16.mxu0 0
  %489 = vmatpush1.bf16.msra.mxu0 0
  %490 = vmatprep.subr.bf16.mxu0 0
  %491 = vmatpush1.bf16.msra.mxu0 0
  %492 = vmatprep.subr.bf16.mxu0 0
  %493 = vmatpush1.bf16.msra.mxu0 0
  %494 = vmatprep.subr.bf16.mxu0 0
  %495 = vmatpush1.bf16.msra.mxu0 0
  %496 = vmatprep.subr.bf16.mxu0 0
  %497 = vmatpush1.bf16.msra.mxu0 0
  %498 = vmatprep.subr.bf16.mxu0 0
  %499 = vmatpush1.bf16.msra.mxu0 0
  %500 = vmatprep.subr.bf16.mxu0 0
  %501 = vmatpush1.bf16.msra.mxu0 0
  %502 = vmatprep.subr.bf16.mxu0 0
  %503 = vmatpush1.bf16.msra.mxu0 0
  %504 = vmatprep.mubr.bf16.mxu0 0
  %505 = vmatmul.mubr.bf16.gmra.mrb[0].mxu0 %v283
  %v506 = vpop.f32.mrb[0].mxu0
  %v507 = vadd.f32 0.0, %v506
  %v508 = vpop.f32.mrb[0].mxu0
  %v509 = vpop.f32.mrb[0].mxu0
  %v510 = vadd.f32 0.0, %v509
  %v511 = vpop.f32.mrb[0].mxu0
  %512 = vdwg.mxu0
  %v513 = vadd.f32 %v74, %v507
  %v514 = vadd.f32 %v74, %v510
  %515 = vmatprep.subr.bf16.mxu0 0
  %516 = vmatpush1.bf16.msra.mxu0 %v89
  %517 = vmatprep.subr.bf16.mxu0 0
  %518 = vmatpush1.bf16.msra.mxu0 0
  %519 = vmatprep.subr.bf16.mxu0 0
  %520 = vmatpush1.bf16.msra.mxu0 0
  %521 = vmatprep.subr.bf16.mxu0 0
  %522 = vmatpush1.bf16.msra.mxu0 0
  %523 = vmatprep.subr.bf16.mxu0 0
  %524 = vmatpush1.bf16.msra.mxu0 0
  %525 = vmatprep.subr.bf16.mxu0 0
  %526 = vmatpush1.bf16.msra.mxu0 0
  %527 = vmatprep.subr.bf16.mxu0 0
  %528 = vmatpush1.bf16.msra.mxu0 0
  %529 = vmatprep.subr.bf16.mxu0 0
  %530 = vmatpush1.bf16.msra.mxu0 0
  %531 = vmatprep.subr.bf16.mxu0 0
  %532 = vmatpush1.bf16.msra.mxu0 0
  %533 = vmatprep.subr.bf16.mxu0 0
  %534 = vmatpush1.bf16.msra.mxu0 0
  %535 = vmatprep.subr.bf16.mxu0 0
  %536 = vmatpush1.bf16.msra.mxu0 0
  %537 = vmatprep.subr.bf16.mxu0 0
  %538 = vmatpush1.bf16.msra.mxu0 0
  %539 = vmatprep.subr.bf16.mxu0 0
  %540 = vmatpush1.bf16.msra.mxu0 0
  %541 = vmatprep.subr.bf16.mxu0 0
  %542 = vmatpush1.bf16.msra.mxu0 0
  %543 = vmatprep.subr.bf16.mxu0 0
  %544 = vmatpush1.bf16.msra.mxu0 0
  %545 = vmatprep.subr.bf16.mxu0 0
  %546 = vmatpush1.bf16.msra.mxu0 0
  %547 = vmatprep.mubr.bf16.mxu0 0
  %548 = vmatmul.mubr.bf16.gmra.mrb[0].mxu0 %v423
  %v549 = vpop.f32.mrb[0].mxu0
  %v550 = vadd.f32 0.0, %v549
  %v551 = vpop.f32.mrb[0].mxu0
  %v552 = vpop.f32.mrb[0].mxu0
  %v553 = vadd.f32 0.0, %v552
  %v554 = vpop.f32.mrb[0].mxu0
  %555 = vdwg.mxu0
  %v556 = vadd.f32 %v513, %v550
  %v557 = vadd.f32 %v514, %v553
  %s558 = scalar_lea.vmem %s0, 80
  %v559 = vld [vmem:[%s558] sm:$0xff]
  %v560 = vld [vmem:[%s558 + $0x8] sm:$0xff]
  %v561 = vpack.c.bf16 %v560, %v559
  %v563 = vsel %vm21, %v561, 0
  %565 = vmatprep.subr.bf16.mxu0 0
  %566 = vmatpush1.bf16.msra.mxu0 %v145
  %567 = vmatprep.subr.bf16.mxu0 0
  %568 = vmatpush1.bf16.msra.mxu0 0
  %569 = vmatprep.subr.bf16.mxu0 0
  %570 = vmatpush1.bf16.msra.mxu0 0
  %571 = vmatprep.subr.bf16.mxu0 0
  %572 = vmatpush1.bf16.msra.mxu0 0
  %573 = vmatprep.subr.bf16.mxu0 0
  %574 = vmatpush1.bf16.msra.mxu0 0
  %575 = vmatprep.subr.bf16.mxu0 0
  %576 = vmatpush1.bf16.msra.mxu0 0
  %577 = vmatprep.subr.bf16.mxu0 0
  %578 = vmatpush1.bf16.msra.mxu0 0
  %579 = vmatprep.subr.bf16.mxu0 0
  %580 = vmatpush1.bf16.msra.mxu0 0
  %581 = vmatprep.subr.bf16.mxu0 0
  %582 = vmatpush1.bf16.msra.mxu0 0
  %583 = vmatprep.subr.bf16.mxu0 0
  %584 = vmatpush1.bf16.msra.mxu0 0
  %585 = vmatprep.subr.bf16.mxu0 0
  %586 = vmatpush1.bf16.msra.mxu0 0
  %587 = vmatprep.subr.bf16.mxu0 0
  %588 = vmatpush1.bf16.msra.mxu0 0
  %589 = vmatprep.subr.bf16.mxu0 0
  %590 = vmatpush1.bf16.msra.mxu0 0
  %591 = vmatprep.subr.bf16.mxu0 0
  %592 = vmatpush1.bf16.msra.mxu0 0
  %593 = vmatprep.subr.bf16.mxu0 0
  %594 = vmatpush1.bf16.msra.mxu0 0
  %595 = vmatprep.subr.bf16.mxu0 0
  %596 = vmatpush1.bf16.msra.mxu0 0
  %597 = vmatprep.mubr.bf16.mxu0 0
  %598 = vmatmul.mubr.bf16.gmra.mrb[0].mxu0 %v563
  %v599 = vpop.f32.mrb[0].mxu0
  %v600 = vadd.f32 0.0, %v599
  %v601 = vpop.f32.mrb[0].mxu0
  %v602 = vpop.f32.mrb[0].mxu0
  %v603 = vadd.f32 0.0, %v602
  %v604 = vpop.f32.mrb[0].mxu0
  %605 = vdwg.mxu0
  %v606 = vadd.f32 %v556, %v600
  %v607 = vadd.f32 %v557, %v603
  %v608 = vmax.f32 %v606, 0.0
  %v609 = vmax.f32 %v607, 0.0
  %v610 = vmax.f32 %v470, %v608
  %v611 = vmax.f32 %v471, %v609
  %612 = vmatprep.subr.bf16.mxu0 0
  %613 = vmatpush1.bf16.msra.mxu0 %v27
  %614 = vmatprep.subr.bf16.mxu0 0
  %615 = vmatpush1.bf16.msra.mxu0 0
  %616 = vmatprep.subr.bf16.mxu0 0
  %617 = vmatpush1.bf16.msra.mxu0 0
  %618 = vmatprep.subr.bf16.mxu0 0
  %619 = vmatpush1.bf16.msra.mxu0 0
  %620 = vmatprep.subr.bf16.mxu0 0
  %621 = vmatpush1.bf16.msra.mxu0 0
  %622 = vmatprep.subr.bf16.mxu0 0
  %623 = vmatpush1.bf16.msra.mxu0 0
  %624 = vmatprep.subr.bf16.mxu0 0
  %625 = vmatpush1.bf16.msra.mxu0 0
  %626 = vmatprep.subr.bf16.mxu0 0
  %627 = vmatpush1.bf16.msra.mxu0 0
  %628 = vmatprep.subr.bf16.mxu0 0
  %629 = vmatpush1.bf16.msra.mxu0 0
  %630 = vmatprep.subr.bf16.mxu0 0
  %631 = vmatpush1.bf16.msra.mxu0 0
  %632 = vmatprep.subr.bf16.mxu0 0
  %633 = vmatpush1.bf16.msra.mxu0 0
  %634 = vmatprep.subr.bf16.mxu0 0
  %635 = vmatpush1.bf16.msra.mxu0 0
  %636 = vmatprep.subr.bf16.mxu0 0
  %637 = vmatpush1.bf16.msra.mxu0 0
  %638 = vmatprep.subr.bf16.mxu0 0
  %639 = vmatpush1.bf16.msra.mxu0 0
  %640 = vmatprep.subr.bf16.mxu0 0
  %641 = vmatpush1.bf16.msra.mxu0 0
  %642 = vmatprep.subr.bf16.mxu0 0
  %643 = vmatpush1.bf16.msra.mxu0 0
  %644 = vmatprep.mubr.bf16.mxu0 0
  %645 = vmatmul.mubr.bf16.gmra.mrb[0].mxu0 %v423
  %v646 = vpop.f32.mrb[0].mxu0
  %v647 = vadd.f32 0.0, %v646
  %v648 = vpop.f32.mrb[0].mxu0
  %v649 = vpop.f32.mrb[0].mxu0
  %v650 = vadd.f32 0.0, %v649
  %v651 = vpop.f32.mrb[0].mxu0
  %652 = vdwg.mxu0
  %v653 = vadd.f32 %v74, %v647
  %v654 = vadd.f32 %v74, %v650
  %655 = vmatprep.subr.bf16.mxu0 0
  %656 = vmatpush1.bf16.msra.mxu0 %v89
  %657 = vmatprep.subr.bf16.mxu0 0
  %658 = vmatpush1.bf16.msra.mxu0 0
  %659 = vmatprep.subr.bf16.mxu0 0
  %660 = vmatpush1.bf16.msra.mxu0 0
  %661 = vmatprep.subr.bf16.mxu0 0
  %662 = vmatpush1.bf16.msra.mxu0 0
  %663 = vmatprep.subr.bf16.mxu0 0
  %664 = vmatpush1.bf16.msra.mxu0 0
  %665 = vmatprep.subr.bf16.mxu0 0
  %666 = vmatpush1.bf16.msra.mxu0 0
  %667 = vmatprep.subr.bf16.mxu0 0
  %668 = vmatpush1.bf16.msra.mxu0 0
  %669 = vmatprep.subr.bf16.mxu0 0
  %670 = vmatpush1.bf16.msra.mxu0 0
  %671 = vmatprep.subr.bf16.mxu0 0
  %672 = vmatpush1.bf16.msra.mxu0 0
  %673 = vmatprep.subr.bf16.mxu0 0
  %674 = vmatpush1.bf16.msra.mxu0 0
  %675 = vmatprep.subr.bf16.mxu0 0
  %676 = vmatpush1.bf16.msra.mxu0 0
  %677 = vmatprep.subr.bf16.mxu0 0
  %678 = vmatpush1.bf16.msra.mxu0 0
  %679 = vmatprep.subr.bf16.mxu0 0
  %680 = vmatpush1.bf16.msra.mxu0 0
  %681 = vmatprep.subr.bf16.mxu0 0
  %682 = vmatpush1.bf16.msra.mxu0 0
  %683 = vmatprep.subr.bf16.mxu0 0
  %684 = vmatpush1.bf16.msra.mxu0 0
  %685 = vmatprep.subr.bf16.mxu0 0
  %686 = vmatpush1.bf16.msra.mxu0 0
  %687 = vmatprep.mubr.bf16.mxu0 0
  %688 = vmatmul.mubr.bf16.gmra.mrb[0].mxu0 %v563
  %v689 = vpop.f32.mrb[0].mxu0
  %v690 = vadd.f32 0.0, %v689
  %v691 = vpop.f32.mrb[0].mxu0
  %v692 = vpop.f32.mrb[0].mxu0
  %v693 = vadd.f32 0.0, %v692
  %v694 = vpop.f32.mrb[0].mxu0
  %695 = vdwg.mxu0
  %v696 = vadd.f32 %v653, %v690
  %v697 = vadd.f32 %v654, %v693
  %s698 = scalar_lea.vmem %s0, 96
  %v699 = vld [vmem:[%s698] sm:$0xff]
  %v700 = vld [vmem:[%s698 + $0x8] sm:$0xff]
  %v701 = vpack.c.bf16 %v700, %v699
  %v703 = vsel %vm21, %v701, 0
  %705 = vmatprep.subr.bf16.mxu0 0
  %706 = vmatpush1.bf16.msra.mxu0 %v145
  %707 = vmatprep.subr.bf16.mxu0 0
  %708 = vmatpush1.bf16.msra.mxu0 0
  %709 = vmatprep.subr.bf16.mxu0 0
  %710 = vmatpush1.bf16.msra.mxu0 0
  %711 = vmatprep.subr.bf16.mxu0 0
  %712 = vmatpush1.bf16.msra.mxu0 0
  %713 = vmatprep.subr.bf16.mxu0 0
  %714 = vmatpush1.bf16.msra.mxu0 0
  %715 = vmatprep.subr.bf16.mxu0 0
  %716 = vmatpush1.bf16.msra.mxu0 0
  %717 = vmatprep.subr.bf16.mxu0 0
  %718 = vmatpush1.bf16.msra.mxu0 0
  %719 = vmatprep.subr.bf16.mxu0 0
  %720 = vmatpush1.bf16.msra.mxu0 0
  %721 = vmatprep.subr.bf16.mxu0 0
  %722 = vmatpush1.bf16.msra.mxu0 0
  %723 = vmatprep.subr.bf16.mxu0 0
  %724 = vmatpush1.bf16.msra.mxu0 0
  %725 = vmatprep.subr.bf16.mxu0 0
  %726 = vmatpush1.bf16.msra.mxu0 0
  %727 = vmatprep.subr.bf16.mxu0 0
  %728 = vmatpush1.bf16.msra.mxu0 0
  %729 = vmatprep.subr.bf16.mxu0 0
  %730 = vmatpush1.bf16.msra.mxu0 0
  %731 = vmatprep.subr.bf16.mxu0 0
  %732 = vmatpush1.bf16.msra.mxu0 0
  %733 = vmatprep.subr.bf16.mxu0 0
  %734 = vmatpush1.bf16.msra.mxu0 0
  %735 = vmatprep.subr.bf16.mxu0 0
  %736 = vmatpush1.bf16.msra.mxu0 0
  %737 = vmatprep.mubr.bf16.mxu0 0
  %738 = vmatmul.mubr.bf16.gmra.mrb[0].mxu0 %v703
  %v739 = vpop.f32.mrb[0].mxu0
  %v740 = vadd.f32 0.0, %v739
  %v741 = vpop.f32.mrb[0].mxu0
  %v742 = vpop.f32.mrb[0].mxu0
  %v743 = vadd.f32 0.0, %v742
  %v744 = vpop.f32.mrb[0].mxu0
  %745 = vdwg.mxu0
  %v746 = vadd.f32 %v696, %v740
  %v747 = vadd.f32 %v697, %v743
  %v748 = vmax.f32 %v746, 0.0
  %v749 = vmax.f32 %v747, 0.0
  %v750 = vmax.f32 %v610, %v748
  %v751 = vmax.f32 %v611, %v749
  %752 = vmatprep.subr.bf16.mxu0 0
  %753 = vmatpush1.bf16.msra.mxu0 %v27
  %754 = vmatprep.subr.bf16.mxu0 0
  %755 = vmatpush1.bf16.msra.mxu0 0
  %756 = vmatprep.subr.bf16.mxu0 0
  %757 = vmatpush1.bf16.msra.mxu0 0
  %758 = vmatprep.subr.bf16.mxu0 0
  %759 = vmatpush1.bf16.msra.mxu0 0
  %760 = vmatprep.subr.bf16.mxu0 0
  %761 = vmatpush1.bf16.msra.mxu0 0
  %762 = vmatprep.subr.bf16.mxu0 0
  %763 = vmatpush1.bf16.msra.mxu0 0
  %764 = vmatprep.subr.bf16.mxu0 0
  %765 = vmatpush1.bf16.msra.mxu0 0
  %766 = vmatprep.subr.bf16.mxu0 0
  %767 = vmatpush1.bf16.msra.mxu0 0
  %768 = vmatprep.subr.bf16.mxu0 0
  %769 = vmatpush1.bf16.msra.mxu0 0
  %770 = vmatprep.subr.bf16.mxu0 0
  %771 = vmatpush1.bf16.msra.mxu0 0
  %772 = vmatprep.subr.bf16.mxu0 0
  %773 = vmatpush1.bf16.msra.mxu0 0
  %774 = vmatprep.subr.bf16.mxu0 0
  %775 = vmatpush1.bf16.msra.mxu0 0
  %776 = vmatprep.subr.bf16.mxu0 0
  %777 = vmatpush1.bf16.msra.mxu0 0
  %778 = vmatprep.subr.bf16.mxu0 0
  %779 = vmatpush1.bf16.msra.mxu0 0
  %780 = vmatprep.subr.bf16.mxu0 0
  %781 = vmatpush1.bf16.msra.mxu0 0
  %782 = vmatprep.subr.bf16.mxu0 0
  %783 = vmatpush1.bf16.msra.mxu0 0
  %784 = vmatprep.mubr.bf16.mxu0 0
  %785 = vmatmul.mubr.bf16.gmra.mrb[0].mxu0 %v563
  %v786 = vpop.f32.mrb[0].mxu0
  %v787 = vadd.f32 0.0, %v786
  %v788 = vpop.f32.mrb[0].mxu0
  %v789 = vpop.f32.mrb[0].mxu0
  %v790 = vadd.f32 0.0, %v789
  %v791 = vpop.f32.mrb[0].mxu0
  %792 = vdwg.mxu0
  %v793 = vadd.f32 %v74, %v787
  %v794 = vadd.f32 %v74, %v790
  %795 = vmatprep.subr.bf16.mxu0 0
  %796 = vmatpush1.bf16.msra.mxu0 %v89
  %797 = vmatprep.subr.bf16.mxu0 0
  %798 = vmatpush1.bf16.msra.mxu0 0
  %799 = vmatprep.subr.bf16.mxu0 0
  %800 = vmatpush1.bf16.msra.mxu0 0
  %801 = vmatprep.subr.bf16.mxu0 0
  %802 = vmatpush1.bf16.msra.mxu0 0
  %803 = vmatprep.subr.bf16.mxu0 0
  %804 = vmatpush1.bf16.msra.mxu0 0
  %805 = vmatprep.subr.bf16.mxu0 0
  %806 = vmatpush1.bf16.msra.mxu0 0
  %807 = vmatprep.subr.bf16.mxu0 0
  %808 = vmatpush1.bf16.msra.mxu0 0
  %809 = vmatprep.subr.bf16.mxu0 0
  %810 = vmatpush1.bf16.msra.mxu0 0
  %811 = vmatprep.subr.bf16.mxu0 0
  %812 = vmatpush1.bf16.msra.mxu0 0
  %813 = vmatprep.subr.bf16.mxu0 0
  %814 = vmatpush1.bf16.msra.mxu0 0
  %815 = vmatprep.subr.bf16.mxu0 0
  %816 = vmatpush1.bf16.msra.mxu0 0
  %817 = vmatprep.subr.bf16.mxu0 0
  %818 = vmatpush1.bf16.msra.mxu0 0
  %819 = vmatprep.subr.bf16.mxu0 0
  %820 = vmatpush1.bf16.msra.mxu0 0
  %821 = vmatprep.subr.bf16.mxu0 0
  %822 = vmatpush1.bf16.msra.mxu0 0
  %823 = vmatprep.subr.bf16.mxu0 0
  %824 = vmatpush1.bf16.msra.mxu0 0
  %825 = vmatprep.subr.bf16.mxu0 0
  %826 = vmatpush1.bf16.msra.mxu0 0
  %827 = vmatprep.mubr.bf16.mxu0 0
  %828 = vmatmul.mubr.bf16.gmra.mrb[0].mxu0 %v703
  %v829 = vpop.f32.mrb[0].mxu0
  %v830 = vadd.f32 0.0, %v829
  %v831 = vpop.f32.mrb[0].mxu0
  %v832 = vpop.f32.mrb[0].mxu0
  %v833 = vadd.f32 0.0, %v832
  %v834 = vpop.f32.mrb[0].mxu0
  %835 = vdwg.mxu0
  %v836 = vadd.f32 %v793, %v830
  %v837 = vadd.f32 %v794, %v833
  %s838 = scalar_lea.vmem %s0, 112
  %v839 = vld [vmem:[%s838] sm:$0xff]
  %v840 = vld [vmem:[%s838 + $0x8] sm:$0xff]
  %v841 = vpack.c.bf16 %v840, %v839
  %v843 = vsel %vm21, %v841, 0
  %845 = vmatprep.subr.bf16.mxu0 0
  %846 = vmatpush1.bf16.msra.mxu0 %v145
  %847 = vmatprep.subr.bf16.mxu0 0
  %848 = vmatpush1.bf16.msra.mxu0 0
  %849 = vmatprep.subr.bf16.mxu0 0
  %850 = vmatpush1.bf16.msra.mxu0 0
  %851 = vmatprep.subr.bf16.mxu0 0
  %852 = vmatpush1.bf16.msra.mxu0 0
  %853 = vmatprep.subr.bf16.mxu0 0
  %854 = vmatpush1.bf16.msra.mxu0 0
  %855 = vmatprep.subr.bf16.mxu0 0
  %856 = vmatpush1.bf16.msra.mxu0 0
  %857 = vmatprep.subr.bf16.mxu0 0
  %858 = vmatpush1.bf16.msra.mxu0 0
  %859 = vmatprep.subr.bf16.mxu0 0
  %860 = vmatpush1.bf16.msra.mxu0 0
  %861 = vmatprep.subr.bf16.mxu0 0
  %862 = vmatpush1.bf16.msra.mxu0 0
  %863 = vmatprep.subr.bf16.mxu0 0
  %864 = vmatpush1.bf16.msra.mxu0 0
  %865 = vmatprep.subr.bf16.mxu0 0
  %866 = vmatpush1.bf16.msra.mxu0 0
  %867 = vmatprep.subr.bf16.mxu0 0
  %868 = vmatpush1.bf16.msra.mxu0 0
  %869 = vmatprep.subr.bf16.mxu0 0
  %870 = vmatpush1.bf16.msra.mxu0 0
  %871 = vmatprep.subr.bf16.mxu0 0
  %872 = vmatpush1.bf16.msra.mxu0 0
  %873 = vmatprep.subr.bf16.mxu0 0
  %874 = vmatpush1.bf16.msra.mxu0 0
  %875 = vmatprep.subr.bf16.mxu0 0
  %876 = vmatpush1.bf16.msra.mxu0 0
  %877 = vmatprep.mubr.bf16.mxu0 0
  %878 = vmatmul.mubr.bf16.gmra.mrb[0].mxu0 %v843
  %v879 = vpop.f32.mrb[0].mxu0
  %v880 = vadd.f32 0.0, %v879
  %v881 = vpop.f32.mrb[0].mxu0
  %v882 = vpop.f32.mrb[0].mxu0
  %v883 = vadd.f32 0.0, %v882
  %v884 = vpop.f32.mrb[0].mxu0
  %885 = vdwg.mxu0
  %v886 = vadd.f32 %v836, %v880
  %v887 = vadd.f32 %v837, %v883
  %v888 = vmax.f32 %v886, 0.0
  %v889 = vmax.f32 %v887, 0.0
  %v890 = vmax.f32 %v750, %v888
  %v891 = vmax.f32 %v751, %v889
  %892 = vst.msk [vmem:[%s3] sm:$0xff] %vm21, %v890
  %893 = vst.msk [vmem:[%s3 + $0x8] sm:$0xff] %vm21, %v891
  // Predicated region
  $region14: #{bidaf_forward.24} parent=0 // pred_check
    _
  $region15: #{bidaf_forward.24} parent=0 // pred_check_branch
    %895 = sbr.rel (0) target = $region17
  $region16: #{bidaf_forward.24} parent=0 // pred_region
    _
  $region17: #{bidaf_forward.24} parent=0 // pred_fallthru
    _
  // Predicated region
  $region18: #{bidaf_forward.24} parent=0 // pred_check
    _
  $region19: #{bidaf_forward.24} parent=0 // pred_check_branch
    %897 = sbr.rel (0) target = $region21
  $region20: #{bidaf_forward.24} parent=0 // pred_region
    _
  $region21: #{bidaf_forward.24} parent=0 // pred_fallthru
    _

// kernel: bidaf_forward.28
$region0: #{bidaf_forward.28}
  #allocation0 [shape = 'u32[]', space=smem, size = 0x4, offset = 0x4, fixed_abs, tag = 'smem constant byte address 0x4 - core index']
  #allocation1 [shape = 'u32[144,128]{1,0:T(1,128)}', space=vmem, size = 0x12000, scoped, tag = 'internal scratch']
  %s0 = inlined_call_operand.vmem [shape: f32[16,18], index: 0, kind: input, shape index: {}]
  %s1 = inlined_call_operand.vmem [shape: f32[18,128], index: 1, kind: input, shape index: {}]
  %s2 = inlined_call_operand.vmem [shape: f32[1,128], index: 2, kind: input, shape index: {}]
  %s3 = inlined_call_operand.vmem [shape: bf16[16,128], index: 3, kind: output, shape index: {}]
  %s4 = sld [smem:[#allocation0]]
  $region22: #{bidaf_forward.28} parent=0
    _
  %s6 = ssub.s32 1, %s4
  %s7 = scalar_select 0, %s6, %s4
  // Predicated region
  $region2: #{bidaf_forward.28} parent=0 // pred_check
    _
  $region3: #{bidaf_forward.28} parent=0 // pred_check_branch
    %9 = sbr.rel (0) target = $region5
  $region4: #{bidaf_forward.28} parent=0 // pred_region
    _
  $region5: #{bidaf_forward.28} parent=0 // pred_fallthru
    _
  // Predicated region
  $region6: #{bidaf_forward.28} parent=0 // pred_check
    _
  $region7: #{bidaf_forward.28} parent=0 // pred_check_branch
    %11 = sbr.rel (0) target = $region9
  $region8: #{bidaf_forward.28} parent=0 // pred_region
    _
  $region9: #{bidaf_forward.28} parent=0 // pred_fallthru
    _
  // Predicated region
  $region10: #{bidaf_forward.28} parent=0 // pred_check
    _
  $region11: #{bidaf_forward.28} parent=0 // pred_check_branch
    %13 = sbr.rel (0) target = $region13
  $region12: #{bidaf_forward.28} parent=0 // pred_region
    _
  $region13: #{bidaf_forward.28} parent=0 // pred_fallthru
    _
  %v15 = vld [vmem:[%s0] sm:$0xff]
  %v16 = vld [vmem:[%s0 + $0x8] sm:$0xff]
  %v17 = vpack.c.bf16 %v16, %v15
  %v18 = vld [vmem:[%s1] sm:$0xff]
  %v19 = vld [vmem:[%s1 + $0x8] sm:$0xff]
  %v20 = vld [vmem:[%s1 + $0x10] sm:$0x3]
  %v21 = vpack.c.bf16 %v19, %v18
  %v22 = vpack.c.bf16 %v20, %v20
  %v23 = vld [vmem:[%s2] sm:$0x1]
  %v25 = vlaneseq
  %v26 = vshrl.u32 %v25, 7
  %v27 = vsub.s32 0, %v26
  %v28 = vrot.slane %v23, %v27
  %vm30 = vcmask 146432
  %v32 = vsel %vm30, %v17, 0
  %vm34 = vcmask 1040384
  %v36 = vsel %vm34, %v22, 0
  %38 = vmatprep.subr.bf16.mxu0 0
  %39 = vmatpush1.bf16.msra.mxu0 %v21
  %40 = vmatprep.subr.bf16.mxu0 0
  %41 = vmatpush1.bf16.msra.mxu0 %v36
  %42 = vmatprep.subr.bf16.mxu0 0
  %43 = vmatpush1.bf16.msra.mxu0 0
  %44 = vmatprep.subr.bf16.mxu0 0
  %45 = vmatpush1.bf16.msra.mxu0 0
  %46 = vmatprep.subr.bf16.mxu0 0
  %47 = vmatpush1.bf16.msra.mxu0 0
  %48 = vmatprep.subr.bf16.mxu0 0
  %49 = vmatpush1.bf16.msra.mxu0 0
  %50 = vmatprep.subr.bf16.mxu0 0
  %51 = vmatpush1.bf16.msra.mxu0 0
  %52 = vmatprep.subr.bf16.mxu0 0
  %53 = vmatpush1.bf16.msra.mxu0 0
  %54 = vmatprep.subr.bf16.mxu0 0
  %55 = vmatpush1.bf16.msra.mxu0 0
  %56 = vmatprep.subr.bf16.mxu0 0
  %57 = vmatpush1.bf16.msra.mxu0 0
  %58 = vmatprep.subr.bf16.mxu0 0
  %59 = vmatpush1.bf16.msra.mxu0 0
  %60 = vmatprep.subr.bf16.mxu0 0
  %61 = vmatpush1.bf16.msra.mxu0 0
  %62 = vmatprep.subr.bf16.mxu0 0
  %63 = vmatpush1.bf16.msra.mxu0 0
  %64 = vmatprep.subr.bf16.mxu0 0
  %65 = vmatpush1.bf16.msra.mxu0 0
  %66 = vmatprep.subr.bf16.mxu0 0
  %67 = vmatpush1.bf16.msra.mxu0 0
  %68 = vmatprep.subr.bf16.mxu0 0
  %69 = vmatpush1.bf16.msra.mxu0 0
  %70 = vmatprep.mubr.bf16.mxu0 0
  %71 = vmatmul.mubr.bf16.gmra.mrb[0].mxu0 %v32
  %v72 = vpop.f32.mrb[0].mxu0
  %v73 = vadd.f32 %v28, %v72
  %v74 = vpop.f32.mrb[0].mxu0
  %v75 = vpop.f32.mrb[0].mxu0
  %v76 = vadd.f32 %v28, %v75
  %v77 = vpop.f32.mrb[0].mxu0
  %78 = vdwg.mxu0
  %v79 = vpack.c.bf16 %v76, %v73
  %v81 = vunpack.c.l.b16 %v79
  %v82 = vunpack.c.h.b16 %v79
  %v83 = vpack.c.b16 %v81, %v81
  %v84 = vpack.c.b16 %v82, %v82
  %87 = vst [vmem:[%s3] sm:$0xf] %v83
  %88 = vst [vmem:[%s3 + $0x4] sm:$0xf] %v84
  // Predicated region
  $region14: #{bidaf_forward.28} parent=0 // pred_check
    _
  $region15: #{bidaf_forward.28} parent=0 // pred_check_branch
    %90 = sbr.rel (0) target = $region17
  $region16: #{bidaf_forward.28} parent=0 // pred_region
    _
  $region17: #{bidaf_forward.28} parent=0 // pred_fallthru
    _
  // Predicated region
  $region18: #{bidaf_forward.28} parent=0 // pred_check
    _
  $region19: #{bidaf_forward.28} parent=0 // pred_check_branch
    %92 = sbr.rel (0) target = $region21
  $region20: #{bidaf_forward.28} parent=0 // pred_region
    _
  $region21: #{bidaf_forward.28} parent=0 // pred_fallthru
    _

// kernel: bidaf_forward.25
$region0: #{bidaf_forward.25}
  #allocation0 [shape = 'u32[]', space=smem, size = 0x4, offset = 0x4, fixed_abs, tag = 'smem constant byte address 0x4 - core index']
  #allocation1 [shape = 'u32[144,128]{1,0:T(1,128)}', space=vmem, size = 0x12000, scoped, tag = 'internal scratch']
  %s0 = inlined_call_operand.vmem [shape: f32[16,16], index: 0, kind: input, shape index: {}]
  %s1 = inlined_call_operand.vmem [shape: f32[2,16,16], index: 1, kind: input, shape index: {}]
  %s2 = inlined_call_operand.vmem [shape: f32[2,1,16], index: 2, kind: input, shape index: {}]
  %s3 = inlined_call_operand.vmem [shape: f32[2,16,16], index: 3, kind: input, shape index: {}]
  %s4 = inlined_call_operand.vmem [shape: f32[2,1,16], index: 4, kind: input, shape index: {}]
  %s5 = inlined_call_operand.vmem [shape: f32[16,16], index: 5, kind: output, shape index: {}]
  %s6 = sld [smem:[#allocation0]]
  $region30: #{bidaf_forward.25} parent=0
    _
  %s8 = ssub.s32 1, %s6
  %s9 = scalar_select 0, %s8, %s6
  // Predicated region
  $region2: #{bidaf_forward.25} parent=0 // pred_check
    _
  $region3: #{bidaf_forward.25} parent=0 // pred_check_branch
    %11 = sbr.rel (0) target = $region5
  $region4: #{bidaf_forward.25} parent=0 // pred_region
    _
  $region5: #{bidaf_forward.25} parent=0 // pred_fallthru
    _
  // Predicated region
  $region6: #{bidaf_forward.25} parent=0 // pred_check
    _
  $region7: #{bidaf_forward.25} parent=0 // pred_check_branch
    %13 = sbr.rel (0) target = $region9
  $region8: #{bidaf_forward.25} parent=0 // pred_region
    _
  $region9: #{bidaf_forward.25} parent=0 // pred_fallthru
    _
  // Predicated region
  $region10: #{bidaf_forward.25} parent=0 // pred_check
    _
  $region11: #{bidaf_forward.25} parent=0 // pred_check_branch
    %15 = sbr.rel (0) target = $region13
  $region12: #{bidaf_forward.25} parent=0 // pred_region
    _
  $region13: #{bidaf_forward.25} parent=0 // pred_fallthru
    _
  // Predicated region
  $region14: #{bidaf_forward.25} parent=0 // pred_check
    _
  $region15: #{bidaf_forward.25} parent=0 // pred_check_branch
    %17 = sbr.rel (0) target = $region17
  $region16: #{bidaf_forward.25} parent=0 // pred_region
    _
  $region17: #{bidaf_forward.25} parent=0 // pred_fallthru
    _
  // Predicated region
  $region18: #{bidaf_forward.25} parent=0 // pred_check
    _
  $region19: #{bidaf_forward.25} parent=0 // pred_check_branch
    %19 = sbr.rel (0) target = $region21
  $region20: #{bidaf_forward.25} parent=0 // pred_region
    _
  $region21: #{bidaf_forward.25} parent=0 // pred_fallthru
    _
  %v21 = vld [vmem:[%s0] sm:$0xff]
  %v22 = vld [vmem:[%s0 + $0x8] sm:$0xff]
  %v23 = vpack.c.bf16 %v22, %v21
  %v24 = vld [vmem:[%s1] sm:$0xff]
  %v25 = vld [vmem:[%s1 + $0x8] sm:$0xff]
  %v26 = vpack.c.bf16 %v25, %v24
  %v27 = vld [vmem:[%s2] sm:$0x1]
  %v29 = vlaneseq
  %v30 = vshrl.u32 %v29, 7
  %v31 = vsub.s32 0, %v30
  %v32 = vrot.slane %v27, %v31
  %vm34 = vcmask 130048
  %v36 = vsel %vm34, %v23, 0
  %38 = vmatprep.subr.bf16.mxu0 0
  %39 = vmatpush1.bf16.msra.mxu0 %v26
  %40 = vmatprep.subr.bf16.mxu0 0
  %41 = vmatpush1.bf16.msra.mxu0 0
  %42 = vmatprep.subr.bf16.mxu0 0
  %43 = vmatpush1.bf16.msra.mxu0 0
  %44 = vmatprep.subr.bf16.mxu0 0
  %45 = vmatpush1.bf16.msra.mxu0 0
  %46 = vmatprep.subr.bf16.mxu0 0
  %47 = vmatpush1.bf16.msra.mxu0 0
  %48 = vmatprep.subr.bf16.mxu0 0
  %49 = vmatpush1.bf16.msra.mxu0 0
  %50 = vmatprep.subr.bf16.mxu0 0
  %51 = vmatpush1.bf16.msra.mxu0 0
  %52 = vmatprep.subr.bf16.mxu0 0
  %53 = vmatpush1.bf16.msra.mxu0 0
  %54 = vmatprep.subr.bf16.mxu0 0
  %55 = vmatpush1.bf16.msra.mxu0 0
  %56 = vmatprep.subr.bf16.mxu0 0
  %57 = vmatpush1.bf16.msra.mxu0 0
  %58 = vmatprep.subr.bf16.mxu0 0
  %59 = vmatpush1.bf16.msra.mxu0 0
  %60 = vmatprep.subr.bf16.mxu0 0
  %61 = vmatpush1.bf16.msra.mxu0 0
  %62 = vmatprep.subr.bf16.mxu0 0
  %63 = vmatpush1.bf16.msra.mxu0 0
  %64 = vmatprep.subr.bf16.mxu0 0
  %65 = vmatpush1.bf16.msra.mxu0 0
  %66 = vmatprep.subr.bf16.mxu0 0
  %67 = vmatpush1.bf16.msra.mxu0 0
  %68 = vmatprep.subr.bf16.mxu0 0
  %69 = vmatpush1.bf16.msra.mxu0 0
  %70 = vmatprep.mubr.bf16.mxu0 0
  %71 = vmatmul.mubr.bf16.gmra.mrb[0].mxu0 %v36
  %v72 = vpop.f32.mrb[0].mxu0
  %v73 = vadd.f32 %v32, %v72
  %v74 = vpop.f32.mrb[0].mxu0
  %v75 = vpop.f32.mrb[0].mxu0
  %v76 = vadd.f32 %v32, %v75
  %v77 = vpop.f32.mrb[0].mxu0
  %78 = vdwg.mxu0
  %v79 = vxor.u32 %v73, 2147483648
  %v80 = vxor.u32 %v76, 2147483648
  %v81 = vmul.f32 %v79, 1.442695
  %v82 = vpow.pop %v81
  %v83 = vmul.f32 %v80, 1.442695
  %v84 = vpow.pop %v83
  %v85 = vadd.f32 %v82, 1.0
  %v86 = vadd.f32 %v84, 1.0
  %v87 = vrcp.pop %v85
  %v88 = vmul.f32 1.0, %v87
  %v89 = vrcp.pop %v86
  %v90 = vmul.f32 1.0, %v89
  %v91 = vld [vmem:[%s3] sm:$0xff]
  %v92 = vld [vmem:[%s3 + $0x8] sm:$0xff]
  %v93 = vpack.c.bf16 %v92, %v91
  %v94 = vld [vmem:[%s4] sm:$0x1]
  %v96 = vlaneseq
  %v97 = vshrl.u32 %v96, 7
  %v98 = vsub.s32 0, %v97
  %v99 = vrot.slane %v94, %v98
  %101 = vmatprep.subr.bf16.mxu0 0
  %102 = vmatpush1.bf16.msra.mxu0 %v93
  %103 = vmatprep.subr.bf16.mxu0 0
  %104 = vmatpush1.bf16.msra.mxu0 0
  %105 = vmatprep.subr.bf16.mxu0 0
  %106 = vmatpush1.bf16.msra.mxu0 0
  %107 = vmatprep.subr.bf16.mxu0 0
  %108 = vmatpush1.bf16.msra.mxu0 0
  %109 = vmatprep.subr.bf16.mxu0 0
  %110 = vmatpush1.bf16.msra.mxu0 0
  %111 = vmatprep.subr.bf16.mxu0 0
  %112 = vmatpush1.bf16.msra.mxu0 0
  %113 = vmatprep.subr.bf16.mxu0 0
  %114 = vmatpush1.bf16.msra.mxu0 0
  %115 = vmatprep.subr.bf16.mxu0 0
  %116 = vmatpush1.bf16.msra.mxu0 0
  %117 = vmatprep.subr.bf16.mxu0 0
  %118 = vmatpush1.bf16.msra.mxu0 0
  %119 = vmatprep.subr.bf16.mxu0 0
  %120 = vmatpush1.bf16.msra.mxu0 0
  %121 = vmatprep.subr.bf16.mxu0 0
  %122 = vmatpush1.bf16.msra.mxu0 0
  %123 = vmatprep.subr.bf16.mxu0 0
  %124 = vmatpush1.bf16.msra.mxu0 0
  %125 = vmatprep.subr.bf16.mxu0 0
  %126 = vmatpush1.bf16.msra.mxu0 0
  %127 = vmatprep.subr.bf16.mxu0 0
  %128 = vmatpush1.bf16.msra.mxu0 0
  %129 = vmatprep.subr.bf16.mxu0 0
  %130 = vmatpush1.bf16.msra.mxu0 0
  %131 = vmatprep.subr.bf16.mxu0 0
  %132 = vmatpush1.bf16.msra.mxu0 0
  %133 = vmatprep.mubr.bf16.mxu0 0
  %134 = vmatmul.mubr.bf16.gmra.mrb[0].mxu0 %v36
  %v135 = vpop.f32.mrb[0].mxu0
  %v136 = vadd.f32 %v99, %v135
  %v137 = vpop.f32.mrb[0].mxu0
  %v138 = vpop.f32.mrb[0].mxu0
  %v139 = vadd.f32 %v99, %v138
  %v140 = vpop.f32.mrb[0].mxu0
  %141 = vdwg.mxu0
  %v142 = vmax.f32 %v136, 0.0
  %v143 = vmax.f32 %v139, 0.0
  %v144 = vmul.f32 %v88, %v142
  %v145 = vmul.f32 %v90, %v143
  %v146 = vsub.f32 1.0, %v88
  %v147 = vsub.f32 1.0, %v90
  %v148 = vmul.f32 %v146, %v21
  %v149 = vmul.f32 %v147, %v22
  %v150 = vadd.f32 %v144, %v148
  %v151 = vadd.f32 %v145, %v149
  %v152 = vpack.c.bf16 %v151, %v150
  %s153 = scalar_lea.vmem %s1, 16
  %v154 = vld [vmem:[%s153] sm:$0xff]
  %v155 = vld [vmem:[%s153 + $0x8] sm:$0xff]
  %v156 = vpack.c.bf16 %v155, %v154
  %s157 = scalar_lea.vmem %s2, 1
  %v158 = vld [vmem:[%s157] sm:$0x1]
  %v160 = vlaneseq
  %v161 = vshrl.u32 %v160, 7
  %v162 = vsub.s32 0, %v161
  %v163 = vrot.slane %v158, %v162
  %v166 = vsel %vm34, %v152, 0
  %168 = vmatprep.subr.bf16.mxu0 0
  %169 = vmatpush1.bf16.msra.mxu0 %v156
  %170 = vmatprep.subr.bf16.mxu0 0
  %171 = vmatpush1.bf16.msra.mxu0 0
  %172 = vmatprep.subr.bf16.mxu0 0
  %173 = vmatpush1.bf16.msra.mxu0 0
  %174 = vmatprep.subr.bf16.mxu0 0
  %175 = vmatpush1.bf16.msra.mxu0 0
  %176 = vmatprep.subr.bf16.mxu0 0
  %177 = vmatpush1.bf16.msra.mxu0 0
  %178 = vmatprep.subr.bf16.mxu0 0
  %179 = vmatpush1.bf16.msra.mxu0 0
  %180 = vmatprep.subr.bf16.mxu0 0
  %181 = vmatpush1.bf16.msra.mxu0 0
  %182 = vmatprep.subr.bf16.mxu0 0
  %183 = vmatpush1.bf16.msra.mxu0 0
  %184 = vmatprep.subr.bf16.mxu0 0
  %185 = vmatpush1.bf16.msra.mxu0 0
  %186 = vmatprep.subr.bf16.mxu0 0
  %187 = vmatpush1.bf16.msra.mxu0 0
  %188 = vmatprep.subr.bf16.mxu0 0
  %189 = vmatpush1.bf16.msra.mxu0 0
  %190 = vmatprep.subr.bf16.mxu0 0
  %191 = vmatpush1.bf16.msra.mxu0 0
  %192 = vmatprep.subr.bf16.mxu0 0
  %193 = vmatpush1.bf16.msra.mxu0 0
  %194 = vmatprep.subr.bf16.mxu0 0
  %195 = vmatpush1.bf16.msra.mxu0 0
  %196 = vmatprep.subr.bf16.mxu0 0
  %197 = vmatpush1.bf16.msra.mxu0 0
  %198 = vmatprep.subr.bf16.mxu0 0
  %199 = vmatpush1.bf16.msra.mxu0 0
  %200 = vmatprep.mubr.bf16.mxu0 0
  %201 = vmatmul.mubr.bf16.gmra.mrb[0].mxu0 %v166
  %v202 = vpop.f32.mrb[0].mxu0
  %v203 = vadd.f32 %v163, %v202
  %v204 = vpop.f32.mrb[0].mxu0
  %v205 = vpop.f32.mrb[0].mxu0
  %v206 = vadd.f32 %v163, %v205
  %v207 = vpop.f32.mrb[0].mxu0
  %208 = vdwg.mxu0
  %v209 = vxor.u32 %v203, 2147483648
  %v210 = vxor.u32 %v206, 2147483648
  %v211 = vmul.f32 %v209, 1.442695
  %v212 = vpow.pop %v211
  %v213 = vmul.f32 %v210, 1.442695
  %v214 = vpow.pop %v213
  %v215 = vadd.f32 %v212, 1.0
  %v216 = vadd.f32 %v214, 1.0
  %v217 = vrcp.pop %v215
  %v218 = vmul.f32 1.0, %v217
  %v219 = vrcp.pop %v216
  %v220 = vmul.f32 1.0, %v219
  %s221 = scalar_lea.vmem %s3, 16
  %v222 = vld [vmem:[%s221] sm:$0xff]
  %v223 = vld [vmem:[%s221 + $0x8] sm:$0xff]
  %v224 = vpack.c.bf16 %v223, %v222
  %s225 = scalar_lea.vmem %s4, 1
  %v226 = vld [vmem:[%s225] sm:$0x1]
  %v228 = vlaneseq
  %v229 = vshrl.u32 %v228, 7
  %v230 = vsub.s32 0, %v229
  %v231 = vrot.slane %v226, %v230
  %233 = vmatprep.subr.bf16.mxu0 0
  %234 = vmatpush1.bf16.msra.mxu0 %v224
  %235 = vmatprep.subr.bf16.mxu0 0
  %236 = vmatpush1.bf16.msra.mxu0 0
  %237 = vmatprep.subr.bf16.mxu0 0
  %238 = vmatpush1.bf16.msra.mxu0 0
  %239 = vmatprep.subr.bf16.mxu0 0
  %240 = vmatpush1.bf16.msra.mxu0 0
  %241 = vmatprep.subr.bf16.mxu0 0
  %242 = vmatpush1.bf16.msra.mxu0 0
  %243 = vmatprep.subr.bf16.mxu0 0
  %244 = vmatpush1.bf16.msra.mxu0 0
  %245 = vmatprep.subr.bf16.mxu0 0
  %246 = vmatpush1.bf16.msra.mxu0 0
  %247 = vmatprep.subr.bf16.mxu0 0
  %248 = vmatpush1.bf16.msra.mxu0 0
  %249 = vmatprep.subr.bf16.mxu0 0
  %250 = vmatpush1.bf16.msra.mxu0 0
  %251 = vmatprep.subr.bf16.mxu0 0
  %252 = vmatpush1.bf16.msra.mxu0 0
  %253 = vmatprep.subr.bf16.mxu0 0
  %254 = vmatpush1.bf16.msra.mxu0 0
  %255 = vmatprep.subr.bf16.mxu0 0
  %256 = vmatpush1.bf16.msra.mxu0 0
  %257 = vmatprep.subr.bf16.mxu0 0
  %258 = vmatpush1.bf16.msra.mxu0 0
  %259 = vmatprep.subr.bf16.mxu0 0
  %260 = vmatpush1.bf16.msra.mxu0 0
  %261 = vmatprep.subr.bf16.mxu0 0
  %262 = vmatpush1.bf16.msra.mxu0 0
  %263 = vmatprep.subr.bf16.mxu0 0
  %264 = vmatpush1.bf16.msra.mxu0 0
  %265 = vmatprep.mubr.bf16.mxu0 0
  %266 = vmatmul.mubr.bf16.gmra.mrb[0].mxu0 %v166
  %v267 = vpop.f32.mrb[0].mxu0
  %v268 = vadd.f32 %v231, %v267
  %v269 = vpop.f32.mrb[0].mxu0
  %v270 = vpop.f32.mrb[0].mxu0
  %v271 = vadd.f32 %v231, %v270
  %v272 = vpop.f32.mrb[0].mxu0
  %273 = vdwg.mxu0
  %v274 = vmax.f32 %v268, 0.0
  %v275 = vmax.f32 %v271, 0.0
  %v276 = vmul.f32 %v218, %v274
  %v277 = vmul.f32 %v220, %v275
  %v278 = vsub.f32 1.0, %v218
  %v279 = vsub.f32 1.0, %v220
  %v280 = vmul.f32 %v278, %v150
  %v281 = vmul.f32 %v279, %v151
  %v282 = vadd.f32 %v276, %v280
  %v283 = vadd.f32 %v277, %v281
  %284 = vst.msk [vmem:[%s5] sm:$0xff] %vm34, %v282
  %285 = vst.msk [vmem:[%s5 + $0x8] sm:$0xff] %vm34, %v283
  // Predicated region
  $region22: #{bidaf_forward.25} parent=0 // pred_check
    _
  $region23: #{bidaf_forward.25} parent=0 // pred_check_branch
    %287 = sbr.rel (0) target = $region25
  $region24: #{bidaf_forward.25} parent=0 // pred_region
    _
  $region25: #{bidaf_forward.25} parent=0 // pred_fallthru
    _
  // Predicated region
  $region26: #{bidaf_forward.25} parent=0 // pred_check
    _
  $region27: #{bidaf_forward.25} parent=0 // pred_check_branch
    %289 = sbr.rel (0) target = $region29
  $region28: #{bidaf_forward.25} parent=0 // pred_region
    _
  $region29: #{bidaf_forward.25} parent=0 // pred_fallthru
    _

// kernel: bidaf_forward.29
$region0: #{bidaf_forward.29}
  #allocation0 [shape = 'u32[]', space=smem, size = 0x4, offset = 0x4, fixed_abs, tag = 'smem constant byte address 0x4 - core index']
  #allocation1 [shape = 'u32[144,128]{1,0:T(1,128)}', space=vmem, size = 0x12000, scoped, tag = 'internal scratch']
  %s0 = inlined_call_operand.vmem [shape: bf16[2,8,2,64], index: 0, kind: input, shape index: {}]
  %s1 = inlined_call_operand.vmem [shape: f32[2,16,64], index: 1, kind: input, shape index: {}]
  %s2 = inlined_call_operand.vmem [shape: f32[8,2,1], index: 2, kind: input, shape index: {}]
  %s3 = inlined_call_operand.vmem [shape: f32[2,8,2,16], index: 3, kind: output, shape index: {}]
  %s4 = sld [smem:[#allocation0]]
  $region29: #{bidaf_forward.29} parent=0
    _
  %s6 = ssub.s32 1, %s4
  %s7 = scalar_select 0, %s6, %s4
  // Predicated region
  $region2: #{bidaf_forward.29} parent=0 // pred_check
    _
  $region3: #{bidaf_forward.29} parent=0 // pred_check_branch
    %9 = sbr.rel (0) target = $region5
  $region4: #{bidaf_forward.29} parent=0 // pred_region
    _
  $region5: #{bidaf_forward.29} parent=0 // pred_fallthru
    _
  // Predicated region
  $region6: #{bidaf_forward.29} parent=0 // pred_check
    _
  $region7: #{bidaf_forward.29} parent=0 // pred_check_branch
    %11 = sbr.rel (0) target = $region9
  $region8: #{bidaf_forward.29} parent=0 // pred_region
    _
  $region9: #{bidaf_forward.29} parent=0 // pred_fallthru
    _
  // Predicated region
  $region10: #{bidaf_forward.29} parent=0 // pred_check
    _
  $region11: #{bidaf_forward.29} parent=0 // pred_check_branch
    %13 = sbr.rel (0) target = $region13
  $region12: #{bidaf_forward.29} parent=0 // pred_region
    _
  $region13: #{bidaf_forward.29} parent=0 // pred_fallthru
    _
  loop: start=0, step=1, limit=8
  $region14: #{bidaf_forward.29} parent=0 // loop_pre_header
    _
  $region15: #{bidaf_forward.29} parent=0 // loop_header
    %s16 = sphi 0, %s20
    %p17 = scmp.ge.s32.totalorder %s16, 8
    %v21 = vphi 0.0, %v224
    %v22 = vphi 0.0, %v236
    %v23 = vphi 0.0, %v254
    %v24 = vphi 0.0, %v266
  $region16: #{bidaf_forward.29} parent=0 // loop_header_branch
    %19 = sbr.rel (%p17) target = $region20
  $region17: #{bidaf_forward.29} parent=0 // loop_body
    %s25 = ssub.s32 7, %s16
    %s26 = smul.u32 %s16, 2
    %s27 = scalar_lea.vmem %s2, %s26
    %v28 = vld [vmem:[%s27] sm:$0x3]
    %s29 = smul.u32 %s25, 2
    %s30 = scalar_lea.vmem %s2, %s29
    %v31 = vld [vmem:[%s30] sm:$0x3]
    %s32 = scalar_lea.vmem %s0, %s16
    %v33 = vld [vmem:[%s32] sm:$0x1]
    %v34 = vunpack.c.l.bf16 %v33
    %v35 = vpack.c.bf16 %v21, %v21
    %v36 = vld [vmem:[%s1] sm:$0xff]
    %v37 = vld [vmem:[%s1 + $0x8] sm:$0xff]
    %v38 = vpack.c.bf16 %v37, %v36
    %vm39 = vcmask 130048
    %v41 = vsel %vm39, %v35, 0
    %43 = vmatprep.subr.bf16.mxu0 0
    %44 = vmatpush1.bf16.msra.mxu0 %v38
    %45 = vmatprep.subr.bf16.mxu0 0
    %46 = vmatpush1.bf16.msra.mxu0 0
    %47 = vmatprep.subr.bf16.mxu0 0
    %48 = vmatpush1.bf16.msra.mxu0 0
    %49 = vmatprep.subr.bf16.mxu0 0
    %50 = vmatpush1.bf16.msra.mxu0 0
    %51 = vmatprep.subr.bf16.mxu0 0
    %52 = vmatpush1.bf16.msra.mxu0 0
    %53 = vmatprep.subr.bf16.mxu0 0
    %54 = vmatpush1.bf16.msra.mxu0 0
    %55 = vmatprep.subr.bf16.mxu0 0
    %56 = vmatpush1.bf16.msra.mxu0 0
    %57 = vmatprep.subr.bf16.mxu0 0
    %58 = vmatpush1.bf16.msra.mxu0 0
    %59 = vmatprep.subr.bf16.mxu0 0
    %60 = vmatpush1.bf16.msra.mxu0 0
    %61 = vmatprep.subr.bf16.mxu0 0
    %62 = vmatpush1.bf16.msra.mxu0 0
    %63 = vmatprep.subr.bf16.mxu0 0
    %64 = vmatpush1.bf16.msra.mxu0 0
    %65 = vmatprep.subr.bf16.mxu0 0
    %66 = vmatpush1.bf16.msra.mxu0 0
    %67 = vmatprep.subr.bf16.mxu0 0
    %68 = vmatpush1.bf16.msra.mxu0 0
    %69 = vmatprep.subr.bf16.mxu0 0
    %70 = vmatpush1.bf16.msra.mxu0 0
    %71 = vmatprep.subr.bf16.mxu0 0
    %72 = vmatpush1.bf16.msra.mxu0 0
    %73 = vmatprep.subr.bf16.mxu0 0
    %74 = vmatpush1.bf16.msra.mxu0 0
    %75 = vmatprep.mubr.bf16.mxu0 0
    %76 = vmatmul.mubr.bf16.gmra.mrb[0].mxu0 %v41
    %v77 = vpop.f32.mrb[0].mxu0
    %v78 = vadd.f32 0.0, %v77
    %v79 = vpop.f32.mrb[0].mxu0
    %v80 = vpop.f32.mrb[0].mxu0
    %v81 = vpop.f32.mrb[0].mxu0
    %82 = vdwg.mxu0
    %v83 = vadd.f32 %v34, %v78
    %s84 = sadd.s32 %s25, 8
    %s85 = scalar_lea.vmem %s0, %s84
    %v86 = vld [vmem:[%s85] sm:$0x1]
    %v87 = vunpack.c.l.bf16 %v86
    %v88 = vpack.c.bf16 %v23, %v23
    %s89 = scalar_lea.vmem %s1, 16
    %v90 = vld [vmem:[%s89] sm:$0xff]
    %v91 = vld [vmem:[%s89 + $0x8] sm:$0xff]
    %v92 = vpack.c.bf16 %v91, %v90
    %v94 = vsel %vm39, %v88, 0
    %96 = vmatprep.subr.bf16.mxu0 0
    %97 = vmatpush1.bf16.msra.mxu0 %v92
    %98 = vmatprep.subr.bf16.mxu0 0
    %99 = vmatpush1.bf16.msra.mxu0 0
    %100 = vmatprep.subr.bf16.mxu0 0
    %101 = vmatpush1.bf16.msra.mxu0 0
    %102 = vmatprep.subr.bf16.mxu0 0
    %103 = vmatpush1.bf16.msra.mxu0 0
    %104 = vmatprep.subr.bf16.mxu0 0
    %105 = vmatpush1.bf16.msra.mxu0 0
    %106 = vmatprep.subr.bf16.mxu0 0
    %107 = vmatpush1.bf16.msra.mxu0 0
    %108 = vmatprep.subr.bf16.mxu0 0
    %109 = vmatpush1.bf16.msra.mxu0 0
    %110 = vmatprep.subr.bf16.mxu0 0
    %111 = vmatpush1.bf16.msra.mxu0 0
    %112 = vmatprep.subr.bf16.mxu0 0
    %113 = vmatpush1.bf16.msra.mxu0 0
    %114 = vmatprep.subr.bf16.mxu0 0
    %115 = vmatpush1.bf16.msra.mxu0 0
    %116 = vmatprep.subr.bf16.mxu0 0
    %117 = vmatpush1.bf16.msra.mxu0 0
    %118 = vmatprep.subr.bf16.mxu0 0
    %119 = vmatpush1.bf16.msra.mxu0 0
    %120 = vmatprep.subr.bf16.mxu0 0
    %121 = vmatpush1.bf16.msra.mxu0 0
    %122 = vmatprep.subr.bf16.mxu0 0
    %123 = vmatpush1.bf16.msra.mxu0 0
    %124 = vmatprep.subr.bf16.mxu0 0
    %125 = vmatpush1.bf16.msra.mxu0 0
    %126 = vmatprep.subr.bf16.mxu0 0
    %127 = vmatpush1.bf16.msra.mxu0 0
    %128 = vmatprep.mubr.bf16.mxu0 0
    %129 = vmatmul.mubr.bf16.gmra.mrb[0].mxu0 %v94
    %v130 = vpop.f32.mrb[0].mxu0
    %v131 = vadd.f32 0.0, %v130
    %v132 = vpop.f32.mrb[0].mxu0
    %v133 = vpop.f32.mrb[0].mxu0
    %v134 = vpop.f32.mrb[0].mxu0
    %135 = vdwg.mxu0
    %v136 = vadd.f32 %v87, %v131
    %v137 = vxor.u32 %v83, 2147483648
    %v138 = vmul.f32 %v137, 1.442695
    %v139 = vpow.pop %v138
    %v140 = vadd.f32 %v139, 1.0
    %v141 = vrcp.pop %v140
    %v142 = vmul.f32 1.0, %v141
    %v143 = vtanh.pop %v83
    %v146 = vunpack.c.l.s4 1983009808
    %v147 = vunpack.c.0.s8 %v146
    %v148 = vlaneseq
    %v149 = vshrl.u32 %v148, 7
    %v150 = vsub.s32 %v147, %v149
    %v151 = vrot.slane %v22, %v150
    %152 = vrot.lane.b32.xlu0 %v151, 16
    %v153 = vpop.permute.xlu0 %152
    %v155 = vmul.f32 %v142, %v153
    %157 = vrot.lane.b32.xlu0 %v143, 96
    %v158 = vpop.permute.xlu0 %157
    %v160 = vmul.f32 %v142, %v158
    %162 = vrot.lane.b32.xlu0 %v160, 16
    %v163 = vpop.permute.xlu0 %162
    %v165 = vadd.f32 %v155, %v163
    %v166 = vtanh.pop %v165
    %168 = vrot.lane.b32.xlu0 %v166, 32
    %v169 = vpop.permute.xlu0 %168
    %v171 = vmul.f32 %v142, %v169
    %v172 = vxor.u32 %v136, 2147483648
    %v173 = vmul.f32 %v172, 1.442695
    %v174 = vpow.pop %v173
    %v175 = vadd.f32 %v174, 1.0
    %v176 = vrcp.pop %v175
    %v177 = vmul.f32 1.0, %v176
    %v178 = vtanh.pop %v136
    %v181 = vunpack.c.l.s4 1983009808
    %v182 = vunpack.c.0.s8 %v181
    %v183 = vlaneseq
    %v184 = vshrl.u32 %v183, 7
    %v185 = vsub.s32 %v182, %v184
    %v186 = vrot.slane %v24, %v185
    %187 = vrot.lane.b32.xlu0 %v186, 16
    %v188 = vpop.permute.xlu0 %187
    %v190 = vmul.f32 %v177, %v188
    %192 = vrot.lane.b32.xlu0 %v178, 96
    %v193 = vpop.permute.xlu0 %192
    %v195 = vmul.f32 %v177, %v193
    %197 = vrot.lane.b32.xlu0 %v195, 16
    %v198 = vpop.permute.xlu0 %197
    %v200 = vadd.f32 %v190, %v198
    %v201 = vtanh.pop %v200
    %203 = vrot.lane.b32.xlu0 %v201, 32
    %v204 = vpop.permute.xlu0 %203
    %v206 = vmul.f32 %v177, %v204
    %vm207 = vcmp.gt.f32.partialorder %v28, 0.0
    %v208 = vsel %vm207, 1, 0
    %209 = vset.pattern.permute.xlu0 0
    %210 = vperm.xlu0 %209, %v208
    %v211 = vpop.permute.xlu0 %210
    %vm212 = vcmp.eq.s32.totalorder %v211, 1
    %v215 = vunpack.c.l.s4 1983009808
    %v216 = vunpack.c.0.s8 %v215
    %v217 = vlaneseq
    %v218 = vshrl.u32 %v217, 7
    %v219 = vsub.s32 %v216, %v218
    %v220 = vrot.slane %v171, %v219
    %221 = vrot.lane.b32.xlu0 %v220, 80
    %v222 = vpop.permute.xlu0 %221
    %v224 = vsel %vm212, %v222, %v21
    %v227 = vunpack.c.l.s4 1983009808
    %v228 = vunpack.c.0.s8 %v227
    %v229 = vlaneseq
    %v230 = vshrl.u32 %v229, 7
    %v231 = vsub.s32 %v228, %v230
    %v232 = vrot.slane %v165, %v231
    %233 = vrot.lane.b32.xlu0 %v232, 112
    %v234 = vpop.permute.xlu0 %233
    %v236 = vsel %vm212, %v234, %v22
    %vm237 = vcmp.gt.f32.partialorder %v31, 0.0
    %v238 = vsel %vm237, 1, 0
    %239 = vset.pattern.permute.xlu0 0
    %240 = vperm.xlu0 %239, %v238
    %v241 = vpop.permute.xlu0 %240
    %vm242 = vcmp.eq.s32.totalorder %v241, 1
    %v245 = vunpack.c.l.s4 1983009808
    %v246 = vunpack.c.0.s8 %v245
    %v247 = vlaneseq
    %v248 = vshrl.u32 %v247, 7
    %v249 = vsub.s32 %v246, %v248
    %v250 = vrot.slane %v206, %v249
    %251 = vrot.lane.b32.xlu0 %v250, 80
    %v252 = vpop.permute.xlu0 %251
    %v254 = vsel %vm242, %v252, %v23
    %v257 = vunpack.c.l.s4 1983009808
    %v258 = vunpack.c.0.s8 %v257
    %v259 = vlaneseq
    %v260 = vshrl.u32 %v259, 7
    %v261 = vsub.s32 %v258, %v260
    %v262 = vrot.slane %v200, %v261
    %263 = vrot.lane.b32.xlu0 %v262, 112
    %v264 = vpop.permute.xlu0 %263
    %v266 = vsel %vm242, %v264, %v24
    %268 = vset.pattern.permute.xlu0 0
    %269 = vperm.xlu0 %268, %v28
    %v270 = vpop.permute.xlu0 %269
    %v272 = vmul.f32 %v224, %v270
    %s273 = scalar_lea.vmem %s3, %s26
    %vm274 = vcmask 123904
    %275 = vst.msk [vmem:[%s273] sm:$0x3] %vm274, %v272
    %277 = vset.pattern.permute.xlu0 0
    %278 = vperm.xlu0 %277, %v31
    %v279 = vpop.permute.xlu0 %278
    %v281 = vmul.f32 %v254, %v279
    %s282 = sadd.s32 %s29, 16
    %s283 = scalar_lea.vmem %s3, %s282
    %284 = vst.msk [vmem:[%s283] sm:$0x3] %vm274, %v281
  $region18: #{bidaf_forward.29} parent=0 // loop_footer
    %s20 = sadd.s32 1, %s16
  $region19: #{bidaf_forward.29} parent=0 // loop_footer_branch
    %15 = sbr.rel target = $region15
  $region20: #{bidaf_forward.29} parent=0 // loop_exit
    _
  // Predicated region
  $region21: #{bidaf_forward.29} parent=0 // pred_check
    _
  $region22: #{bidaf_forward.29} parent=0 // pred_check_branch
    %286 = sbr.rel (0) target = $region24
  $region23: #{bidaf_forward.29} parent=0 // pred_region
    _
  $region24: #{bidaf_forward.29} parent=0 // pred_fallthru
    _
  // Predicated region
  $region25: #{bidaf_forward.29} parent=0 // pred_check
    _
  $region26: #{bidaf_forward.29} parent=0 // pred_check_branch
    %288 = sbr.rel (0) target = $region28
  $region27: #{bidaf_forward.29} parent=0 // pred_region
    _
  $region28: #{bidaf_forward.29} parent=0 // pred_fallthru
    _

// kernel: bidaf_forward.30
$region0: #{bidaf_forward.30}
  #allocation0 [shape = 'u32[]', space=smem, size = 0x4, offset = 0x4, fixed_abs, tag = 'smem constant byte address 0x4 - core index']
  #allocation1 [shape = 'u32[144,128]{1,0:T(1,128)}', space=vmem, size = 0x12000, scoped, tag = 'internal scratch']
  #allocation2 [shape = 'f32[1,1]{1,0:T(1,128)S(1)}', space=vmem, size = 0x200, scoped, tag = 'scoped memory for bidaf_forward.30']
  %s0 = inlined_call_operand.vmem [shape: f32[2,16,32], index: 0, kind: input, shape index: {}]
  %s1 = inlined_call_operand.vmem [shape: f32[2,8,32], index: 1, kind: input, shape index: {}]
  %s2 = inlined_call_operand.vmem [shape: f32[2,16,1], index: 2, kind: input, shape index: {}]
  %s3 = inlined_call_operand.vmem [shape: f32[2,1,8], index: 3, kind: input, shape index: {}]
  %s4 = inlined_call_operand.vmem [shape: f32[1,32], index: 4, kind: input, shape index: {}]
  %s5 = inlined_call_operand.vmem [shape: f32[1,32], index: 5, kind: input, shape index: {}]
  %s6 = inlined_call_operand.vmem [shape: f32[1,32], index: 6, kind: input, shape index: {}]
  %s7 = inlined_call_operand.<no memory space> [shape: f32[1,1], index: 7, kind: input, shape index: {}]
  %s8 = inlined_call_operand.vmem [shape: f32[2,16,128], index: 8, kind: output, shape index: {}]
  %s9 = sld [smem:[#allocation0]]
  $region65: #{bidaf_forward.30} parent=0
    _
  %s11 = ssub.s32 1, %s9
  %s12 = scalar_select 0, %s11, %s9
  %v13 = vstv %s7
  %14 = vst [vmem:[#allocation2] sm:$0x1] %v13
  loop: start=0, step=1, limit=4
  $region2: #{bidaf_forward.30} parent=0 // loop_pre_header
    _
  $region3: #{bidaf_forward.30} parent=0 // loop_header
    %s16 = sphi 0, %s20
    %p17 = scmp.ge.s32.totalorder %s16, 4
    %s26 = sphi 0, %s28
    %s29 = sphi 0, %s26
    %s30 = sphi 0, %s29
    %s46 = sphi 0, %s30
    %s52 = sphi 0, %s54
    %s55 = sphi 0, %s52
    %s56 = sphi 0, %s55
    %s72 = sphi 0, %s56
    %s78 = sphi 0, %s80
    %s81 = sphi 0, %s78
    %s82 = sphi 0, %s81
    %s98 = sphi 0, %s82
    %s104 = sphi 0, %s106
    %s107 = sphi 0, %s104
    %s108 = sphi 0, %s107
    %s124 = sphi 0, %s108
    %s128 = sphi 0, %s128
    %s130 = sphi 0, %s128
    %s131 = sphi 0, %s130
    %s145 = sphi 0, %s131
    %s149 = sphi 0, %s149
    %s151 = sphi 0, %s149
    %s152 = sphi 0, %s151
    %s166 = sphi 0, %s152
    %s170 = sphi 0, %s170
    %s172 = sphi 0, %s170
    %s173 = sphi 0, %s172
    %s187 = sphi 0, %s173
    %s191 = sphi 0, %s191
    %s193 = sphi 0, %s191
    %s194 = sphi 0, %s193
    %s208 = sphi 0, %s194
    %s214 = sphi 0, %s216
    %s217 = sphi 0, %s214
    %s218 = sphi 0, %s217
    %s234 = sphi 0, %s218
  $region4: #{bidaf_forward.30} parent=0 // loop_header_branch
    %19 = sbr.rel (%p17) target = $region8
  $region5: #{bidaf_forward.30} parent=0 // loop_body
    %s21 = ssub.s32 %s16, 1
    %s22 = ssub.s32 %s16, 2
    %s23 = sadd.s32 %s16, 1
    %s24 = ssub.s32 %s16, %s23
    %p25 = scmp.eq.s32.totalorder %s24, 0
    %s27 = sadd.s32 %s26, 1
    %s28 = scalar_select %p25, %s26, %s27
    %p31 = pneg %p25
    %p32 = scmp.eq.s32.totalorder %s16, 1
    %p33 = por %p31, %p32
    %p34 = scmp.ne.s32.totalorder %s26, %s29
    %p35 = scmp.eq.s32.totalorder %s16, 0
    %p36 = por %p34, %p35
    %p37 = scmp.ne.s32.totalorder %s26, %s29
    %p38 = scmp.eq.s32.totalorder %s21, 1
    %p39 = por %p37, %p38
    %p40 = scmp.ne.s32.totalorder %s29, %s30
    %p41 = scmp.eq.s32.totalorder %s21, 0
    %p42 = por %p40, %p41
    %p43 = scmp.ne.s32.totalorder %s29, %s30
    %p44 = scmp.eq.s32.totalorder %s22, 1
    %p45 = por %p43, %p44
    %p47 = scmp.ne.s32.totalorder %s30, %s46
    %p48 = scmp.eq.s32.totalorder %s22, 0
    %p49 = por %p47, %p48
    %s50 = ssub.s32 %s16, %s23
    %p51 = scmp.eq.s32.totalorder %s50, 0
    %s53 = sadd.s32 %s52, 1
    %s54 = scalar_select %p51, %s52, %s53
    %p57 = pneg %p51
    %p58 = scmp.eq.s32.totalorder %s16, 1
    %p59 = por %p57, %p58
    %p60 = scmp.ne.s32.totalorder %s52, %s55
    %p61 = scmp.eq.s32.totalorder %s16, 0
    %p62 = por %p60, %p61
    %p63 = scmp.ne.s32.totalorder %s52, %s55
    %p64 = scmp.eq.s32.totalorder %s21, 1
    %p65 = por %p63, %p64
    %p66 = scmp.ne.s32.totalorder %s55, %s56
    %p67 = scmp.eq.s32.totalorder %s21, 0
    %p68 = por %p66, %p67
    %p69 = scmp.ne.s32.totalorder %s55, %s56
    %p70 = scmp.eq.s32.totalorder %s22, 1
    %p71 = por %p69, %p70
    %p73 = scmp.ne.s32.totalorder %s56, %s72
    %p74 = scmp.eq.s32.totalorder %s22, 0
    %p75 = por %p73, %p74
    %s76 = ssub.s32 %s16, %s23
    %p77 = scmp.eq.s32.totalorder %s76, 0
    %s79 = sadd.s32 %s78, 1
    %s80 = scalar_select %p77, %s78, %s79
    %p83 = pneg %p77
    %p84 = scmp.eq.s32.totalorder %s16, 1
    %p85 = por %p83, %p84
    %p86 = scmp.ne.s32.totalorder %s78, %s81
    %p87 = scmp.eq.s32.totalorder %s16, 0
    %p88 = por %p86, %p87
    %p89 = scmp.ne.s32.totalorder %s78, %s81
    %p90 = scmp.eq.s32.totalorder %s21, 1
    %p91 = por %p89, %p90
    %p92 = scmp.ne.s32.totalorder %s81, %s82
    %p93 = scmp.eq.s32.totalorder %s21, 0
    %p94 = por %p92, %p93
    %p95 = scmp.ne.s32.totalorder %s81, %s82
    %p96 = scmp.eq.s32.totalorder %s22, 1
    %p97 = por %p95, %p96
    %p99 = scmp.ne.s32.totalorder %s82, %s98
    %p100 = scmp.eq.s32.totalorder %s22, 0
    %p101 = por %p99, %p100
    %s102 = ssub.s32 %s16, %s23
    %p103 = scmp.eq.s32.totalorder %s102, 0
    %s105 = sadd.s32 %s104, 1
    %s106 = scalar_select %p103, %s104, %s105
    %p109 = pneg %p103
    %p110 = scmp.eq.s32.totalorder %s16, 1
    %p111 = por %p109, %p110
    %p112 = scmp.ne.s32.totalorder %s104, %s107
    %p113 = scmp.eq.s32.totalorder %s16, 0
    %p114 = por %p112, %p113
    %p115 = scmp.ne.s32.totalorder %s104, %s107
    %p116 = scmp.eq.s32.totalorder %s21, 1
    %p117 = por %p115, %p116
    %p118 = scmp.ne.s32.totalorder %s107, %s108
    %p119 = scmp.eq.s32.totalorder %s21, 0
    %p120 = por %p118, %p119
    %p121 = scmp.ne.s32.totalorder %s107, %s108
    %p122 = scmp.eq.s32.totalorder %s22, 1
    %p123 = por %p121, %p122
    %p125 = scmp.ne.s32.totalorder %s108, %s124
    %p126 = scmp.eq.s32.totalorder %s22, 0
    %p127 = por %p125, %p126
    %s129 = sadd.s32 %s128, 1
    %p132 = scmp.eq.s32.totalorder %s16, 1
    %p133 = scmp.ne.s32.totalorder %s128, %s130
    %p134 = scmp.eq.s32.totalorder %s16, 0
    %p135 = por %p133, %p134
    %p136 = scmp.ne.s32.totalorder %s128, %s130
    %p137 = scmp.eq.s32.totalorder %s21, 1
    %p138 = por %p136, %p137
    %p139 = scmp.ne.s32.totalorder %s130, %s131
    %p140 = scmp.eq.s32.totalorder %s21, 0
    %p141 = por %p139, %p140
    %p142 = scmp.ne.s32.totalorder %s130, %s131
    %p143 = scmp.eq.s32.totalorder %s22, 1
    %p144 = por %p142, %p143
    %p146 = scmp.ne.s32.totalorder %s131, %s145
    %p147 = scmp.eq.s32.totalorder %s22, 0
    %p148 = por %p146, %p147
    %s150 = sadd.s32 %s149, 1
    %p153 = scmp.eq.s32.totalorder %s16, 1
    %p154 = scmp.ne.s32.totalorder %s149, %s151
    %p155 = scmp.eq.s32.totalorder %s16, 0
    %p156 = por %p154, %p155
    %p157 = scmp.ne.s32.totalorder %s149, %s151
    %p158 = scmp.eq.s32.totalorder %s21, 1
    %p159 = por %p157, %p158
    %p160 = scmp.ne.s32.totalorder %s151, %s152
    %p161 = scmp.eq.s32.totalorder %s21, 0
    %p162 = por %p160, %p161
    %p163 = scmp.ne.s32.totalorder %s151, %s152
    %p164 = scmp.eq.s32.totalorder %s22, 1
    %p165 = por %p163, %p164
    %p167 = scmp.ne.s32.totalorder %s152, %s166
    %p168 = scmp.eq.s32.totalorder %s22, 0
    %p169 = por %p167, %p168
    %s171 = sadd.s32 %s170, 1
    %p174 = scmp.eq.s32.totalorder %s16, 1
    %p175 = scmp.ne.s32.totalorder %s170, %s172
    %p176 = scmp.eq.s32.totalorder %s16, 0
    %p177 = por %p175, %p176
    %p178 = scmp.ne.s32.totalorder %s170, %s172
    %p179 = scmp.eq.s32.totalorder %s21, 1
    %p180 = por %p178, %p179
    %p181 = scmp.ne.s32.totalorder %s172, %s173
    %p182 = scmp.eq.s32.totalorder %s21, 0
    %p183 = por %p181, %p182
    %p184 = scmp.ne.s32.totalorder %s172, %s173
    %p185 = scmp.eq.s32.totalorder %s22, 1
    %p186 = por %p184, %p185
    %p188 = scmp.ne.s32.totalorder %s173, %s187
    %p189 = scmp.eq.s32.totalorder %s22, 0
    %p190 = por %p188, %p189
    %s192 = sadd.s32 %s191, 1
    %p195 = scmp.eq.s32.totalorder %s16, 1
    %p196 = scmp.ne.s32.totalorder %s191, %s193
    %p197 = scmp.eq.s32.totalorder %s16, 0
    %p198 = por %p196, %p197
    %p199 = scmp.ne.s32.totalorder %s191, %s193
    %p200 = scmp.eq.s32.totalorder %s21, 1
    %p201 = por %p199, %p200
    %p202 = scmp.ne.s32.totalorder %s193, %s194
    %p203 = scmp.eq.s32.totalorder %s21, 0
    %p204 = por %p202, %p203
    %p205 = scmp.ne.s32.totalorder %s193, %s194
    %p206 = scmp.eq.s32.totalorder %s22, 1
    %p207 = por %p205, %p206
    %p209 = scmp.ne.s32.totalorder %s194, %s208
    %p210 = scmp.eq.s32.totalorder %s22, 0
    %p211 = por %p209, %p210
    %s212 = ssub.s32 %s16, %s23
    %p213 = scmp.eq.s32.totalorder %s212, 0
    %s215 = sadd.s32 %s214, 1
    %s216 = scalar_select %p213, %s214, %s215
    %p219 = pneg %p213
    %p220 = scmp.eq.s32.totalorder %s16, 1
    %p221 = por %p219, %p220
    %p222 = scmp.ne.s32.totalorder %s214, %s217
    %p223 = scmp.eq.s32.totalorder %s16, 0
    %p224 = por %p222, %p223
    %p225 = scmp.ne.s32.totalorder %s214, %s217
    %p226 = scmp.eq.s32.totalorder %s21, 1
    %p227 = por %p225, %p226
    %p228 = scmp.ne.s32.totalorder %s217, %s218
    %p229 = scmp.eq.s32.totalorder %s21, 0
    %p230 = por %p228, %p229
    %p231 = scmp.ne.s32.totalorder %s217, %s218
    %p232 = scmp.eq.s32.totalorder %s22, 1
    %p233 = por %p231, %p232
    %p235 = scmp.ne.s32.totalorder %s218, %s234
    %p236 = scmp.eq.s32.totalorder %s22, 0
    %p237 = por %p235, %p236
    %p238 = scmp.le.s32.totalorder 1, %s16
    %p239 = scmp.lt.s32.totalorder %s16, 3
    %p240 = pnand %p238, %p239
    %p241 = pneg %p240
    // Predicated region
    $region9: #{bidaf_forward.30} parent=5 // pred_check
      _
    $region10: #{bidaf_forward.30} parent=5 // pred_check_branch
      %243 = sbr.rel (%p240) target = $region12
    $region11: #{bidaf_forward.30} parent=5 // pred_region
      %s244 = ssub.s32 %s16, 1
      // Predicated region
      $region13: #{bidaf_forward.30} parent=11 // pred_check
        %p245 = pneg %p141
      $region14: #{bidaf_forward.30} parent=11 // pred_check_branch
        %247 = sbr.rel (%p245) target = $region16
      $region15: #{bidaf_forward.30} parent=11 // pred_region
        _
      $region16: #{bidaf_forward.30} parent=11 // pred_fallthru
        _
      // Predicated region
      $region17: #{bidaf_forward.30} parent=11 // pred_check
        %p248 = pneg %p162
      $region18: #{bidaf_forward.30} parent=11 // pred_check_branch
        %250 = sbr.rel (%p248) target = $region20
      $region19: #{bidaf_forward.30} parent=11 // pred_region
        _
      $region20: #{bidaf_forward.30} parent=11 // pred_fallthru
        _
      // Predicated region
      $region21: #{bidaf_forward.30} parent=11 // pred_check
        %p251 = pneg %p183
      $region22: #{bidaf_forward.30} parent=11 // pred_check_branch
        %253 = sbr.rel (%p251) target = $region24
      $region23: #{bidaf_forward.30} parent=11 // pred_region
        _
      $region24: #{bidaf_forward.30} parent=11 // pred_fallthru
        _
      // Predicated region
      $region25: #{bidaf_forward.30} parent=11 // pred_check
        %p254 = pneg %p204
      $region26: #{bidaf_forward.30} parent=11 // pred_check_branch
        %256 = sbr.rel (%p254) target = $region28
      $region27: #{bidaf_forward.30} parent=11 // pred_region
        _
      $region28: #{bidaf_forward.30} parent=11 // pred_fallthru
        _
    $region12: #{bidaf_forward.30} parent=5 // pred_fallthru
      _
    %p257 = scmp.lt.s32.totalorder %s16, 2
    // Predicated region
    $region29: #{bidaf_forward.30} parent=5 // pred_check
      %p258 = pneg %p257
    $region30: #{bidaf_forward.30} parent=5 // pred_check_branch
      %260 = sbr.rel (%p258) target = $region32
    $region31: #{bidaf_forward.30} parent=5 // pred_region
      // Predicated region
      $region33: #{bidaf_forward.30} parent=31 // pred_check
        %p261 = pneg %p36
      $region34: #{bidaf_forward.30} parent=31 // pred_check_branch
        %263 = sbr.rel (%p261) target = $region36
      $region35: #{bidaf_forward.30} parent=31 // pred_region
        %p264 = scmp.lt.s32.totalorder %s16, 1
        %s265 = scalar_select %p264, %s16, 1
        %s266 = smul.addr %s265, 2
        %s267 = smul.addr %s266, 8
        %s268 = scalar_lea.vmem %s0, %s267
      $region36: #{bidaf_forward.30} parent=31 // pred_fallthru
        _
      // Predicated region
      $region37: #{bidaf_forward.30} parent=31 // pred_check
        %p269 = pneg %p62
      $region38: #{bidaf_forward.30} parent=31 // pred_check_branch
        %271 = sbr.rel (%p269) target = $region40
      $region39: #{bidaf_forward.30} parent=31 // pred_region
        %p272 = scmp.lt.s32.totalorder %s16, 1
        %s273 = scalar_select %p272, %s16, 1
        %s274 = smul.addr %s273, 8
        %s275 = scalar_lea.vmem %s1, %s274
      $region40: #{bidaf_forward.30} parent=31 // pred_fallthru
        _
      // Predicated region
      $region41: #{bidaf_forward.30} parent=31 // pred_check
        %p276 = pneg %p88
      $region42: #{bidaf_forward.30} parent=31 // pred_check_branch
        %278 = sbr.rel (%p276) target = $region44
      $region43: #{bidaf_forward.30} parent=31 // pred_region
        %p279 = scmp.lt.s32.totalorder %s16, 1
        %s280 = scalar_select %p279, %s16, 1
        %s281 = smul.addr %s280, 2
        %s282 = smul.addr %s281, 8
        %s283 = scalar_lea.vmem %s2, %s282
      $region44: #{bidaf_forward.30} parent=31 // pred_fallthru
        _
      // Predicated region
      $region45: #{bidaf_forward.30} parent=31 // pred_check
        %p284 = pneg %p114
      $region46: #{bidaf_forward.30} parent=31 // pred_check_branch
        %286 = sbr.rel (%p284) target = $region48
      $region47: #{bidaf_forward.30} parent=31 // pred_region
        %p287 = scmp.lt.s32.totalorder %s16, 1
        %s288 = scalar_select %p287, %s16, 1
        %s289 = scalar_lea.vmem %s3, %s288
      $region48: #{bidaf_forward.30} parent=31 // pred_fallthru
        _
    $region32: #{bidaf_forward.30} parent=5 // pred_fallthru
      _
    %p290 = scmp.le.s32.totalorder 1, %s16
    %p291 = scmp.lt.s32.totalorder %s16, 3
    %p292 = pnand %p290, %p291
    %p293 = pneg %p292
    // Predicated region
    $region49: #{bidaf_forward.30} parent=5 // pred_check
      _
    $region50: #{bidaf_forward.30} parent=5 // pred_check_branch
      %295 = sbr.rel (%p292) target = $region52
    $region51: #{bidaf_forward.30} parent=5 // pred_region
      %s296 = ssub.s32 %s16, 1
      %p297 = scmp.lt.s32.totalorder %s21, 1
      %s298 = scalar_select %p297, %s21, 1
      %s299 = smul.addr %s298, 2
      %s300 = smul.addr %s299, 8
      %s301 = scalar_lea.vmem %s0, %s300
      %p302 = pneg %p42
      %p303 = pneg %p39
      %p304 = scmp.lt.s32.totalorder %s21, 1
      %s305 = scalar_select %p304, %s21, 1
      %s306 = smul.addr %s305, 8
      %s307 = scalar_lea.vmem %s1, %s306
      %p308 = pneg %p68
      %p309 = pneg %p65
      %p310 = scmp.lt.s32.totalorder %s21, 1
      %s311 = scalar_select %p310, %s21, 1
      %s312 = smul.addr %s311, 2
      %s313 = smul.addr %s312, 8
      %s314 = scalar_lea.vmem %s2, %s313
      %p315 = pneg %p94
      %p316 = pneg %p91
      %p317 = scmp.lt.s32.totalorder %s21, 1
      %s318 = scalar_select %p317, %s21, 1
      %s319 = scalar_lea.vmem %s3, %s318
      %p320 = pneg %p120
      %p321 = pneg %p117
      %p322 = pneg %p141
      %p323 = pneg %p138
      %p324 = pneg %p162
      %p325 = pneg %p159
      %p326 = pneg %p183
      %p327 = pneg %p180
      %p328 = pneg %p204
      %p329 = pneg %p201
      %p330 = pneg %p230
      %p331 = pneg %p227
      %p332 = scmp.lt.s32.totalorder %s21, 1
      %s333 = scalar_select %p332, %s21, 1
      %s334 = smul.addr %s333, 2
      %s335 = smul.addr %s334, 8
      %s336 = scalar_lea.vmem %s8, %s335
      %p337 = scmp.lt.s32.totalorder %s21, 1
      %s338 = scalar_select %p337, %s21, 1
      %s339 = smul.addr %s338, 2
      %s340 = smul.addr %s339, 8
      %s341 = scalar_lea.vmem %s0, %s340
      %p342 = scmp.lt.s32.totalorder %s21, 1
      %s343 = scalar_select %p342, %s21, 1
      %s344 = smul.addr %s343, 8
      %s345 = scalar_lea.vmem %s1, %s344
      %p346 = scmp.lt.s32.totalorder %s21, 1
      %s347 = scalar_select %p346, %s21, 1
      %s348 = smul.addr %s347, 2
      %s349 = smul.addr %s348, 8
      %s350 = scalar_lea.vmem %s2, %s349
      %p351 = scmp.lt.s32.totalorder %s21, 1
      %s352 = scalar_select %p351, %s21, 1
      %s353 = scalar_lea.vmem %s3, %s352
      %p354 = scmp.lt.s32.totalorder %s21, 1
      %s355 = scalar_select %p354, %s21, 1
      %s356 = smul.addr %s355, 2
      %s357 = smul.addr %s356, 8
      %s358 = scalar_lea.vmem %s8, %s357
      %v360 = vld [vmem:[%s341] sm:$0xff]
      %v361 = vld [vmem:[%s341 + $0x8] sm:$0xff]
      %v362 = vld [vmem:[%s345] sm:$0xff]
      %v363 = vld [vmem:[%s350] sm:$0xff]
      %v364 = vld [vmem:[%s350 + $0x8] sm:$0xff]
      %v365 = vld [vmem:[%s353] sm:$0x1]
      %v366 = vpack.c.bf16 %v361, %v360
      %v367 = vpack.c.bf16 %v362, %v362
      %v368 = vld [vmem:[%s4] sm:$0x1]
      %v370 = vlaneseq
      %v371 = vshrl.u32 %v370, 7
      %v372 = vsub.s32 0, %v371
      %v373 = vrot.slane %v368, %v372
      %v375 = vmul.f32 %v360, %v373
      %v376 = vmul.f32 %v361, %v373
      %vm377 = vcmask 261120
      %v378 = vsel %vm377, %v375, 0.0
      %379 = vadd.xlane.f32.xlu0 %v378
      %v380 = vpop.xlane.xlu0 %379
      %v381 = vsel %vm377, %v376, 0.0
      %382 = vadd.xlane.f32.xlu0 %v381
      %v383 = vpop.xlane.xlu0 %382
      %v384 = vld [vmem:[%s5] sm:$0x1]
      %v386 = vlaneseq
      %v387 = vshrl.u32 %v386, 7
      %v388 = vsub.s32 0, %v387
      %v389 = vrot.slane %v384, %v388
      %v391 = vmul.f32 %v362, %v389
      %v392 = vsel %vm377, %v391, 0.0
      %393 = vadd.xlane.f32.xlu0 %v392
      %v394 = vpop.xlane.xlu0 %393
      %v395 = vld [vmem:[%s6] sm:$0x1]
      %v397 = vlaneseq
      %v398 = vshrl.u32 %v397, 7
      %v399 = vsub.s32 0, %v398
      %v400 = vrot.slane %v395, %v399
      %v402 = vmul.f32 %v360, %v400
      %v403 = vmul.f32 %v361, %v400
      %v404 = vpack.c.bf16 %v403, %v402
      %405 = vxpose.xlu0.b32.start [1/16] %v362, 128
      %406 = vxpose.xlu0.b32.cont [2/16] 0.0, 128
      %407 = vxpose.xlu0.b32.cont [3/16] 0.0, 128
      %408 = vxpose.xlu0.b32.cont [4/16] 0.0, 128
      %409 = vxpose.xlu0.b32.cont [5/16] 0.0, 128
      %410 = vxpose.xlu0.b32.cont [6/16] 0.0, 128
      %411 = vxpose.xlu0.b32.cont [7/16] 0.0, 128
      %412 = vxpose.xlu0.b32.cont [8/16] 0.0, 128
      %413 = vxpose.xlu0.b32.cont [9/16] 0.0, 128
      %414 = vxpose.xlu0.b32.cont [10/16] 0.0, 128
      %415 = vxpose.xlu0.b32.cont [11/16] 0.0, 128
      %416 = vxpose.xlu0.b32.cont [12/16] 0.0, 128
      %417 = vxpose.xlu0.b32.cont [13/16] 0.0, 128
      %418 = vxpose.xlu0.b32.cont [14/16] 0.0, 128
      %419 = vxpose.xlu0.b32.cont [15/16] 0.0, 128
      %420 = vxpose.xlu0.b32.end [16/16] 0.0, 128
      %v421 = vpop.trf.xlu0
      %v422 = vpop.trf.xlu0
      %v423 = vpop.trf.xlu0
      %v424 = vpop.trf.xlu0
      %v425 = vpop.trf.xlu0
      %v426 = vpop.trf.xlu0
      %v427 = vpop.trf.xlu0
      %v428 = vpop.trf.xlu0
      %v429 = vpop.trf.xlu0
      %v430 = vpop.trf.xlu0
      %v431 = vpop.trf.xlu0
      %v432 = vpop.trf.xlu0
      %v433 = vpop.trf.xlu0
      %v434 = vpop.trf.xlu0
      %v435 = vpop.trf.xlu0
      %v436 = vpop.trf.xlu0
      %v437 = vpack.c.bf16 %v422, %v421
      %v438 = vpack.c.bf16 %v424, %v423
      %v440 = vsel %vm377, %v404, 0
      %442 = vmatprep.subr.bf16.mxu0 0
      %443 = vmatpush1.bf16.msra.mxu0 %v437
      %444 = vmatprep.subr.bf16.mxu0 0
      %445 = vmatpush1.bf16.msra.mxu0 %v438
      %446 = vmatprep.subr.bf16.mxu0 0
      %447 = vmatpush1.bf16.msra.mxu0 0
      %448 = vmatprep.subr.bf16.mxu0 0
      %449 = vmatpush1.bf16.msra.mxu0 0
      %450 = vmatprep.subr.bf16.mxu0 0
      %451 = vmatpush1.bf16.msra.mxu0 0
      %452 = vmatprep.subr.bf16.mxu0 0
      %453 = vmatpush1.bf16.msra.mxu0 0
      %454 = vmatprep.subr.bf16.mxu0 0
      %455 = vmatpush1.bf16.msra.mxu0 0
      %456 = vmatprep.subr.bf16.mxu0 0
      %457 = vmatpush1.bf16.msra.mxu0 0
      %458 = vmatprep.subr.bf16.mxu0 0
      %459 = vmatpush1.bf16.msra.mxu0 0
      %460 = vmatprep.subr.bf16.mxu0 0
      %461 = vmatpush1.bf16.msra.mxu0 0
      %462 = vmatprep.subr.bf16.mxu0 0
      %463 = vmatpush1.bf16.msra.mxu0 0
      %464 = vmatprep.subr.bf16.mxu0 0
      %465 = vmatpush1.bf16.msra.mxu0 0
      %466 = vmatprep.subr.bf16.mxu0 0
      %467 = vmatpush1.bf16.msra.mxu0 0
      %468 = vmatprep.subr.bf16.mxu0 0
      %469 = vmatpush1.bf16.msra.mxu0 0
      %470 = vmatprep.subr.bf16.mxu0 0
      %471 = vmatpush1.bf16.msra.mxu0 0
      %472 = vmatprep.subr.bf16.mxu0 0
      %473 = vmatpush1.bf16.msra.mxu0 0
      %474 = vmatprep.mubr.bf16.mxu0 0
      %475 = vmatmul.mubr.bf16.gmra.mrb[0].mxu0 %v440
      %v476 = vpop.f32.mrb[0].mxu0
      %v477 = vadd.f32 0.0, %v476
      %v478 = vpop.f32.mrb[0].mxu0
      %v479 = vpop.f32.mrb[0].mxu0
      %v480 = vadd.f32 0.0, %v479
      %v481 = vpop.f32.mrb[0].mxu0
      %482 = vdwg.mxu0
      %483 = vxpose.xlu0.b32.start [1/16] %v394, 128
      %484 = vxpose.xlu0.b32.cont [2/16] 0.0, 128
      %485 = vxpose.xlu0.b32.cont [3/16] 0.0, 128
      %486 = vxpose.xlu0.b32.cont [4/16] 0.0, 128
      %487 = vxpose.xlu0.b32.cont [5/16] 0.0, 128
      %488 = vxpose.xlu0.b32.cont [6/16] 0.0, 128
      %489 = vxpose.xlu0.b32.cont [7/16] 0.0, 128
      %490 = vxpose.xlu0.b32.cont [8/16] 0.0, 128
      %491 = vxpose.xlu0.b32.cont [9/16] 0.0, 128
      %492 = vxpose.xlu0.b32.cont [10/16] 0.0, 128
      %493 = vxpose.xlu0.b32.cont [11/16] 0.0, 128
      %494 = vxpose.xlu0.b32.cont [12/16] 0.0, 128
      %495 = vxpose.xlu0.b32.cont [13/16] 0.0, 128
      %496 = vxpose.xlu0.b32.cont [14/16] 0.0, 128
      %497 = vxpose.xlu0.b32.cont [15/16] 0.0, 128
      %498 = vxpose.xlu0.b32.end [16/16] 0.0, 128
      %v499 = vpop.trf.xlu0
      %v500 = vpop.trf.xlu0
      %v501 = vpop.trf.xlu0
      %v502 = vpop.trf.xlu0
      %v503 = vpop.trf.xlu0
      %v504 = vpop.trf.xlu0
      %v505 = vpop.trf.xlu0
      %v506 = vpop.trf.xlu0
      %v507 = vpop.trf.xlu0
      %v508 = vpop.trf.xlu0
      %v509 = vpop.trf.xlu0
      %v510 = vpop.trf.xlu0
      %v511 = vpop.trf.xlu0
      %v512 = vpop.trf.xlu0
      %v513 = vpop.trf.xlu0
      %v514 = vpop.trf.xlu0
      %v515 = vlaneseq
      %v516 = vshrl.u32 %v515, 7
      %v517 = vsub.s32 0, %v516
      %v518 = vrot.slane %v499, %v517
      %v519 = vadd.f32 %v380, %v518
      %v520 = vadd.f32 %v383, %v518
      %v521 = vadd.f32 %v519, %v477
      %v522 = vadd.f32 %v520, %v480
      %v523 = vld [vmem:[#allocation2] sm:$0x1]
      %v525 = vlaneseq
      %v526 = vshrl.u32 %v525, 7
      %v527 = vsub.s32 0, %v526
      %v528 = vrot.slane %v523, %v527
      %529 = vset.pattern.permute.xlu0 0
      %530 = vperm.xlu0 %529, %v528
      %v531 = vpop.permute.xlu0 %530
      %v533 = vadd.f32 %v521, %v531
      %v534 = vadd.f32 %v522, %v531
      %vm535 = vcmp.gt.f32.partialorder %v365, 0.0
      %v536 = vsel %vm535, 1, 0
      %v537 = vlaneseq
      %v538 = vshrl.u32 %v537, 7
      %v539 = vsub.s32 0, %v538
      %v540 = vrot.slane %v536, %v539
      %vm541 = vcmp.eq.s32.totalorder %v540, 1
      %v542 = vsel %vm541, %v533, -1e+30
      %v543 = vsel %vm541, %v534, -1e+30
      %vm544 = vcmask 64512
      %v545 = vsel %vm544, %v542, -inf
      %546 = vmax.xlane.f32.xlu0 %v545
      %v547 = vpop.xlane.xlu0 %546
      %v548 = vsel %vm544, %v543, -inf
      %549 = vmax.xlane.f32.xlu0 %v548
      %v550 = vpop.xlane.xlu0 %549
      %v551 = vsub.f32 %v542, %v547
      %v552 = vsub.f32 %v543, %v550
      %v553 = vmul.f32 %v551, 1.442695
      %v554 = vpow.pop %v553
      %v555 = vmul.f32 %v552, 1.442695
      %v556 = vpow.pop %v555
      %v557 = vsel %vm544, %v554, 0.0
      %558 = vadd.xlane.f32.xlu0 %v557
      %v559 = vpop.xlane.xlu0 %558
      %v560 = vsel %vm544, %v556, 0.0
      %561 = vadd.xlane.f32.xlu0 %v560
      %v562 = vpop.xlane.xlu0 %561
      %v563 = vrcp.pop %v559
      %v564 = vrcp.pop %v562
      %v565 = vmul.f32 %v554, %v563
      %v566 = vmul.f32 %v556, %v564
      %vm567 = vcmp.gt.f32.partialorder %v363, 0.0
      %vm568 = vcmp.gt.f32.partialorder %v364, 0.0
      %v569 = vsel %vm567, 1, 0
      %v570 = vsel %vm568, 1, 0
      %571 = vset.pattern.permute.xlu0 0
      %572 = vperm.xlu0 %571, %v569
      %v573 = vpop.permute.xlu0 %572
      %574 = vset.pattern.permute.xlu0 0
      %575 = vperm.xlu0 %574, %v570
      %v576 = vpop.permute.xlu0 %575
      %vm577 = vcmp.eq.s32.totalorder %v573, 1
      %vm578 = vcmp.eq.s32.totalorder %v576, 1
      %v579 = vsel %vm577, %v533, -1e+30
      %v580 = vsel %vm578, %v534, -1e+30
      %v581 = vsel %vm544, %v579, -inf
      %v582 = vsel %vm544, %v580, -inf
      %v583 = vmax.f32 %v581, %v582
      %v584 = vrot.slane %v583, 4
      %v585 = vmax.f32 %v583, %v584
      %v586 = vrot.slane %v585, 2
      %v587 = vmax.f32 %v585, %v586
      %v588 = vrot.slane %v587, 1
      %v589 = vmax.f32 %v587, %v588
      %v590 = vsub.f32 %v579, %v589
      %v591 = vsub.f32 %v580, %v589
      %v592 = vmul.f32 %v590, 1.442695
      %v593 = vpow.pop %v592
      %v594 = vmul.f32 %v591, 1.442695
      %v595 = vpow.pop %v594
      %v596 = vsel %vm544, %v593, 0.0
      %v597 = vsel %vm544, %v595, 0.0
      %v598 = vadd.f32 %v596, %v597
      %v599 = vrot.slane %v598, 4
      %v600 = vadd.f32 %v598, %v599
      %v601 = vrot.slane %v600, 2
      %v602 = vadd.f32 %v600, %v601
      %v603 = vrot.slane %v602, 1
      %v604 = vadd.f32 %v602, %v603
      %v605 = vrcp.pop %v604
      %v606 = vmul.f32 %v593, %v605
      %v607 = vmul.f32 %v595, %v605
      %v608 = vpack.c.bf16 %v566, %v565
      %v610 = vsel %vm544, %v608, 0
      %vm612 = vcmask 1043456
      %v614 = vsel %vm612, %v367, 0
      %616 = vmatprep.subr.bf16.mxu0 0
      %617 = vmatpush1.bf16.msra.mxu0 %v614
      %618 = vmatprep.subr.bf16.mxu0 0
      %619 = vmatpush1.bf16.msra.mxu0 0
      %620 = vmatprep.subr.bf16.mxu0 0
      %621 = vmatpush1.bf16.msra.mxu0 0
      %622 = vmatprep.subr.bf16.mxu0 0
      %623 = vmatpush1.bf16.msra.mxu0 0
      %624 = vmatprep.subr.bf16.mxu0 0
      %625 = vmatpush1.bf16.msra.mxu0 0
      %626 = vmatprep.subr.bf16.mxu0 0
      %627 = vmatpush1.bf16.msra.mxu0 0
      %628 = vmatprep.subr.bf16.mxu0 0
      %629 = vmatpush1.bf16.msra.mxu0 0
      %630 = vmatprep.subr.bf16.mxu0 0
      %631 = vmatpush1.bf16.msra.mxu0 0
      %632 = vmatprep.subr.bf16.mxu0 0
      %633 = vmatpush1.bf16.msra.mxu0 0
      %634 = vmatprep.subr.bf16.mxu0 0
      %635 = vmatpush1.bf16.msra.mxu0 0
      %636 = vmatprep.subr.bf16.mxu0 0
      %637 = vmatpush1.bf16.msra.mxu0 0
      %638 = vmatprep.subr.bf16.mxu0 0
      %639 = vmatpush1.bf16.msra.mxu0 0
      %640 = vmatprep.subr.bf16.mxu0 0
      %641 = vmatpush1.bf16.msra.mxu0 0
      %642 = vmatprep.subr.bf16.mxu0 0
      %643 = vmatpush1.bf16.msra.mxu0 0
      %644 = vmatprep.subr.bf16.mxu0 0
      %645 = vmatpush1.bf16.msra.mxu0 0
      %646 = vmatprep.subr.bf16.mxu0 0
      %647 = vmatpush1.bf16.msra.mxu0 0
      %648 = vmatprep.mubr.bf16.mxu0 0
      %649 = vmatmul.mubr.bf16.gmra.mrb[0].mxu0 %v610
      %v650 = vpop.f32.mrb[0].mxu0
      %v651 = vadd.f32 0.0, %v650
      %v652 = vpop.f32.mrb[0].mxu0
      %v653 = vpop.f32.mrb[0].mxu0
      %v654 = vadd.f32 0.0, %v653
      %v655 = vpop.f32.mrb[0].mxu0
      %656 = vdwg.mxu0
      %657 = vxpose.xlu0.b32.start [1/16] %v606, 128
      %658 = vxpose.xlu0.b32.cont [2/16] %v607, 128
      %659 = vxpose.xlu0.b32.cont [3/16] 0.0, 128
      %660 = vxpose.xlu0.b32.cont [4/16] 0.0, 128
      %661 = vxpose.xlu0.b32.cont [5/16] 0.0, 128
      %662 = vxpose.xlu0.b32.cont [6/16] 0.0, 128
      %663 = vxpose.xlu0.b32.cont [7/16] 0.0, 128
      %664 = vxpose.xlu0.b32.cont [8/16] 0.0, 128
      %665 = vxpose.xlu0.b32.cont [9/16] 0.0, 128
      %666 = vxpose.xlu0.b32.cont [10/16] 0.0, 128
      %667 = vxpose.xlu0.b32.cont [11/16] 0.0, 128
      %668 = vxpose.xlu0.b32.cont [12/16] 0.0, 128
      %669 = vxpose.xlu0.b32.cont [13/16] 0.0, 128
      %670 = vxpose.xlu0.b32.cont [14/16] 0.0, 128
      %671 = vxpose.xlu0.b32.cont [15/16] 0.0, 128
      %672 = vxpose.xlu0.b32.end [16/16] 0.0, 128
      %v673 = vpop.trf.xlu0
      %v674 = vpop.trf.xlu0
      %v675 = vpop.trf.xlu0
      %v676 = vpop.trf.xlu0
      %v677 = vpop.trf.xlu0
      %v678 = vpop.trf.xlu0
      %v679 = vpop.trf.xlu0
      %v680 = vpop.trf.xlu0
      %v681 = vpop.trf.xlu0
      %v682 = vpop.trf.xlu0
      %v683 = vpop.trf.xlu0
      %v684 = vpop.trf.xlu0
      %v685 = vpop.trf.xlu0
      %v686 = vpop.trf.xlu0
      %v687 = vpop.trf.xlu0
      %v688 = vpop.trf.xlu0
      %v689 = vpack.c.bf16 %v673, %v673
      %v691 = vsel %vm612, %v689, 0
      %693 = vmatprep.subr.bf16.mxu0 0
      %694 = vmatpush1.bf16.msra.mxu0 %v691
      %695 = vmatprep.subr.bf16.mxu0 0
      %696 = vmatpush1.bf16.msra.mxu0 0
      %697 = vmatprep.subr.bf16.mxu0 0
      %698 = vmatpush1.bf16.msra.mxu0 0
      %699 = vmatprep.subr.bf16.mxu0 0
      %700 = vmatpush1.bf16.msra.mxu0 0
      %701 = vmatprep.subr.bf16.mxu0 0
      %702 = vmatpush1.bf16.msra.mxu0 0
      %703 = vmatprep.subr.bf16.mxu0 0
      %704 = vmatpush1.bf16.msra.mxu0 0
      %705 = vmatprep.subr.bf16.mxu0 0
      %706 = vmatpush1.bf16.msra.mxu0 0
      %707 = vmatprep.subr.bf16.mxu0 0
      %708 = vmatpush1.bf16.msra.mxu0 0
      %709 = vmatprep.subr.bf16.mxu0 0
      %710 = vmatpush1.bf16.msra.mxu0 0
      %711 = vmatprep.subr.bf16.mxu0 0
      %712 = vmatpush1.bf16.msra.mxu0 0
      %713 = vmatprep.subr.bf16.mxu0 0
      %714 = vmatpush1.bf16.msra.mxu0 0
      %715 = vmatprep.subr.bf16.mxu0 0
      %716 = vmatpush1.bf16.msra.mxu0 0
      %717 = vmatprep.subr.bf16.mxu0 0
      %718 = vmatpush1.bf16.msra.mxu0 0
      %719 = vmatprep.subr.bf16.mxu0 0
      %720 = vmatpush1.bf16.msra.mxu0 0
      %721 = vmatprep.subr.bf16.mxu0 0
      %722 = vmatpush1.bf16.msra.mxu0 0
      %723 = vmatprep.subr.bf16.mxu0 0
      %724 = vmatpush1.bf16.msra.mxu0 0
      %725 = vmatprep.mubr.bf16.mxu0 0
      %726 = vmatmul.mubr.bf16.gmra.mrb[0].mxu0 %v610
      %v727 = vpop.f32.mrb[0].mxu0
      %v728 = vadd.f32 0.0, %v727
      %v729 = vpop.f32.mrb[0].mxu0
      %v730 = vpop.f32.mrb[0].mxu0
      %v731 = vadd.f32 0.0, %v730
      %v732 = vpop.f32.mrb[0].mxu0
      %733 = vdwg.mxu0
      %v734 = vpack.c.bf16 %v731, %v728
      %vm735 = vcmask 130048
      %v737 = vsel %vm735, %v734, 0
      %739 = vmatprep.subr.bf16.mxu0 0
      %740 = vmatpush1.bf16.msra.mxu0 %v366
      %741 = vmatprep.subr.bf16.mxu0 0
      %742 = vmatpush1.bf16.msra.mxu0 0
      %743 = vmatprep.subr.bf16.mxu0 0
      %744 = vmatpush1.bf16.msra.mxu0 0
      %745 = vmatprep.subr.bf16.mxu0 0
      %746 = vmatpush1.bf16.msra.mxu0 0
      %747 = vmatprep.subr.bf16.mxu0 0
      %748 = vmatpush1.bf16.msra.mxu0 0
      %749 = vmatprep.subr.bf16.mxu0 0
      %750 = vmatpush1.bf16.msra.mxu0 0
      %751 = vmatprep.subr.bf16.mxu0 0
      %752 = vmatpush1.bf16.msra.mxu0 0
      %753 = vmatprep.subr.bf16.mxu0 0
      %754 = vmatpush1.bf16.msra.mxu0 0
      %755 = vmatprep.subr.bf16.mxu0 0
      %756 = vmatpush1.bf16.msra.mxu0 0
      %757 = vmatprep.subr.bf16.mxu0 0
      %758 = vmatpush1.bf16.msra.mxu0 0
      %759 = vmatprep.subr.bf16.mxu0 0
      %760 = vmatpush1.bf16.msra.mxu0 0
      %761 = vmatprep.subr.bf16.mxu0 0
      %762 = vmatpush1.bf16.msra.mxu0 0
      %763 = vmatprep.subr.bf16.mxu0 0
      %764 = vmatpush1.bf16.msra.mxu0 0
      %765 = vmatprep.subr.bf16.mxu0 0
      %766 = vmatpush1.bf16.msra.mxu0 0
      %767 = vmatprep.subr.bf16.mxu0 0
      %768 = vmatpush1.bf16.msra.mxu0 0
      %769 = vmatprep.subr.bf16.mxu0 0
      %770 = vmatpush1.bf16.msra.mxu0 0
      %771 = vmatprep.mubr.bf16.mxu0 0
      %772 = vmatmul.mubr.bf16.gmra.mrb[0].mxu0 %v737
      %v773 = vpop.f32.mrb[0].mxu0
      %v774 = vadd.f32 0.0, %v773
      %v775 = vpop.f32.mrb[0].mxu0
      %v776 = vpop.f32.mrb[0].mxu0
      %v777 = vadd.f32 0.0, %v776
      %v778 = vpop.f32.mrb[0].mxu0
      %779 = vdwg.mxu0
      %v780 = vmul.f32 %v360, %v651
      %v781 = vmul.f32 %v361, %v654
      %v782 = vmul.f32 %v360, %v774
      %v783 = vmul.f32 %v361, %v777
      %786 = vrot.lane.b32.xlu0 %v651, 32
      %v787 = vpop.permute.xlu0 %786
      %788 = vrot.lane.b32.xlu0 %v654, 32
      %v789 = vpop.permute.xlu0 %788
      %794 = vrot.lane.b32.xlu0 %v780, 64
      %v795 = vpop.permute.xlu0 %794
      %796 = vrot.lane.b32.xlu0 %v781, 64
      %v797 = vpop.permute.xlu0 %796
      %802 = vrot.lane.b32.xlu0 %v782, 96
      %v803 = vpop.permute.xlu0 %802
      %804 = vrot.lane.b32.xlu0 %v783, 96
      %v805 = vpop.permute.xlu0 %804
      %v808 = vsel %vm377, %v360, %v787
      %v809 = vsel %vm377, %v361, %v789
      %vm810 = vcmask 523264
      %v811 = vsel %vm810, %v808, %v795
      %v812 = vsel %vm810, %v809, %v797
      %vm813 = vcmask 785408
      %v814 = vsel %vm813, %v811, %v803
      %v815 = vsel %vm813, %v812, %v805
      %816 = vst [vmem:[%s358] sm:$0xff] %v814
      %817 = vst [vmem:[%s358 + $0x8] sm:$0xff] %v815
      %p818 = scmp.lt.s32.totalorder %s21, 1
      %s819 = scalar_select %p818, %s21, 1
      %s820 = smul.addr %s819, 2
      %s821 = smul.addr %s820, 8
      %s822 = scalar_lea.vmem %s8, %s821
      // Predicated region
      $region53: #{bidaf_forward.30} parent=51 // pred_check
        %p823 = pneg %p227
      $region54: #{bidaf_forward.30} parent=51 // pred_check_branch
        %825 = sbr.rel (%p823) target = $region56
      $region55: #{bidaf_forward.30} parent=51 // pred_region
        _
      $region56: #{bidaf_forward.30} parent=51 // pred_fallthru
        _
    $region52: #{bidaf_forward.30} parent=5 // pred_fallthru
      _
    %p826 = scmp.le.s32.totalorder 2, %s16
    // Predicated region
    $region57: #{bidaf_forward.30} parent=5 // pred_check
      %p827 = pneg %p826
    $region58: #{bidaf_forward.30} parent=5 // pred_check_branch
      %829 = sbr.rel (%p827) target = $region60
    $region59: #{bidaf_forward.30} parent=5 // pred_region
      %s830 = ssub.s32 %s16, 2
      // Predicated region
      $region61: #{bidaf_forward.30} parent=59 // pred_check
        %p831 = pneg %p233
      $region62: #{bidaf_forward.30} parent=59 // pred_check_branch
        %833 = sbr.rel (%p831) target = $region64
      $region63: #{bidaf_forward.30} parent=59 // pred_region
        %p834 = scmp.lt.s32.totalorder %s22, 1
        %s835 = scalar_select %p834, %s22, 1
        %s836 = smul.addr %s835, 2
        %s837 = smul.addr %s836, 8
        %s838 = scalar_lea.vmem %s8, %s837
      $region64: #{bidaf_forward.30} parent=59 // pred_fallthru
        _
    $region60: #{bidaf_forward.30} parent=5 // pred_fallthru
      _
  $region6: #{bidaf_forward.30} parent=0 // loop_footer
    %s20 = sadd.s32 1, %s16
  $region7: #{bidaf_forward.30} parent=0 // loop_footer_branch
    %15 = sbr.rel target = $region3
  $region8: #{bidaf_forward.30} parent=0 // loop_exit
    _

// kernel: bidaf_forward.31
$region0: #{bidaf_forward.31}
  #allocation0 [shape = 'u32[]', space=smem, size = 0x4, offset = 0x4, fixed_abs, tag = 'smem constant byte address 0x4 - core index']
  #allocation1 [shape = 'u32[144,128]{1,0:T(1,128)}', space=vmem, size = 0x12000, scoped, tag = 'internal scratch']
  %s0 = inlined_call_operand.vmem [shape: f32[2,16,128], index: 0, kind: input, shape index: {}]
  %s1 = inlined_call_operand.vmem [shape: f32[2,1,16], index: 1, kind: input, shape index: {}]
  %s2 = inlined_call_operand.vmem [shape: f32[128,128], index: 2, kind: input, shape index: {}]
  %s3 = inlined_call_operand.vmem [shape: f32[2,16,128], index: 3, kind: output, shape index: {}]
  %s4 = sld [smem:[#allocation0]]
  $region45: #{bidaf_forward.31} parent=0
    _
  %s6 = ssub.s32 1, %s4
  %s7 = scalar_select 0, %s6, %s4
  loop: start=0, step=1, limit=4
  $region2: #{bidaf_forward.31} parent=0 // loop_pre_header
    _
  $region3: #{bidaf_forward.31} parent=0 // loop_header
    %s9 = sphi 0, %s13
    %p10 = scmp.ge.s32.totalorder %s9, 4
    %s19 = sphi 0, %s21
    %s22 = sphi 0, %s19
    %s23 = sphi 0, %s22
    %s39 = sphi 0, %s23
    %s45 = sphi 0, %s47
    %s48 = sphi 0, %s45
    %s49 = sphi 0, %s48
    %s65 = sphi 0, %s49
    %s69 = sphi 0, %s69
    %s71 = sphi 0, %s69
    %s72 = sphi 0, %s71
    %s86 = sphi 0, %s72
    %s92 = sphi 0, %s94
    %s95 = sphi 0, %s92
    %s96 = sphi 0, %s95
    %s112 = sphi 0, %s96
  $region4: #{bidaf_forward.31} parent=0 // loop_header_branch
    %12 = sbr.rel (%p10) target = $region8
  $region5: #{bidaf_forward.31} parent=0 // loop_body
    %s14 = ssub.s32 %s9, 1
    %s15 = ssub.s32 %s9, 2
    %s16 = sadd.s32 %s9, 1
    %s17 = ssub.s32 %s9, %s16
    %p18 = scmp.eq.s32.totalorder %s17, 0
    %s20 = sadd.s32 %s19, 1
    %s21 = scalar_select %p18, %s19, %s20
    %p24 = pneg %p18
    %p25 = scmp.eq.s32.totalorder %s9, 1
    %p26 = por %p24, %p25
    %p27 = scmp.ne.s32.totalorder %s19, %s22
    %p28 = scmp.eq.s32.totalorder %s9, 0
    %p29 = por %p27, %p28
    %p30 = scmp.ne.s32.totalorder %s19, %s22
    %p31 = scmp.eq.s32.totalorder %s14, 1
    %p32 = por %p30, %p31
    %p33 = scmp.ne.s32.totalorder %s22, %s23
    %p34 = scmp.eq.s32.totalorder %s14, 0
    %p35 = por %p33, %p34
    %p36 = scmp.ne.s32.totalorder %s22, %s23
    %p37 = scmp.eq.s32.totalorder %s15, 1
    %p38 = por %p36, %p37
    %p40 = scmp.ne.s32.totalorder %s23, %s39
    %p41 = scmp.eq.s32.totalorder %s15, 0
    %p42 = por %p40, %p41
    %s43 = ssub.s32 %s9, %s16
    %p44 = scmp.eq.s32.totalorder %s43, 0
    %s46 = sadd.s32 %s45, 1
    %s47 = scalar_select %p44, %s45, %s46
    %p50 = pneg %p44
    %p51 = scmp.eq.s32.totalorder %s9, 1
    %p52 = por %p50, %p51
    %p53 = scmp.ne.s32.totalorder %s45, %s48
    %p54 = scmp.eq.s32.totalorder %s9, 0
    %p55 = por %p53, %p54
    %p56 = scmp.ne.s32.totalorder %s45, %s48
    %p57 = scmp.eq.s32.totalorder %s14, 1
    %p58 = por %p56, %p57
    %p59 = scmp.ne.s32.totalorder %s48, %s49
    %p60 = scmp.eq.s32.totalorder %s14, 0
    %p61 = por %p59, %p60
    %p62 = scmp.ne.s32.totalorder %s48, %s49
    %p63 = scmp.eq.s32.totalorder %s15, 1
    %p64 = por %p62, %p63
    %p66 = scmp.ne.s32.totalorder %s49, %s65
    %p67 = scmp.eq.s32.totalorder %s15, 0
    %p68 = por %p66, %p67
    %s70 = sadd.s32 %s69, 1
    %p73 = scmp.eq.s32.totalorder %s9, 1
    %p74 = scmp.ne.s32.totalorder %s69, %s71
    %p75 = scmp.eq.s32.totalorder %s9, 0
    %p76 = por %p74, %p75
    %p77 = scmp.ne.s32.totalorder %s69, %s71
    %p78 = scmp.eq.s32.totalorder %s14, 1
    %p79 = por %p77, %p78
    %p80 = scmp.ne.s32.totalorder %s71, %s72
    %p81 = scmp.eq.s32.totalorder %s14, 0
    %p82 = por %p80, %p81
    %p83 = scmp.ne.s32.totalorder %s71, %s72
    %p84 = scmp.eq.s32.totalorder %s15, 1
    %p85 = por %p83, %p84
    %p87 = scmp.ne.s32.totalorder %s72, %s86
    %p88 = scmp.eq.s32.totalorder %s15, 0
    %p89 = por %p87, %p88
    %s90 = ssub.s32 %s9, %s16
    %p91 = scmp.eq.s32.totalorder %s90, 0
    %s93 = sadd.s32 %s92, 1
    %s94 = scalar_select %p91, %s92, %s93
    %p97 = pneg %p91
    %p98 = scmp.eq.s32.totalorder %s9, 1
    %p99 = por %p97, %p98
    %p100 = scmp.ne.s32.totalorder %s92, %s95
    %p101 = scmp.eq.s32.totalorder %s9, 0
    %p102 = por %p100, %p101
    %p103 = scmp.ne.s32.totalorder %s92, %s95
    %p104 = scmp.eq.s32.totalorder %s14, 1
    %p105 = por %p103, %p104
    %p106 = scmp.ne.s32.totalorder %s95, %s96
    %p107 = scmp.eq.s32.totalorder %s14, 0
    %p108 = por %p106, %p107
    %p109 = scmp.ne.s32.totalorder %s95, %s96
    %p110 = scmp.eq.s32.totalorder %s15, 1
    %p111 = por %p109, %p110
    %p113 = scmp.ne.s32.totalorder %s96, %s112
    %p114 = scmp.eq.s32.totalorder %s15, 0
    %p115 = por %p113, %p114
    %p116 = scmp.le.s32.totalorder 1, %s9
    %p117 = scmp.lt.s32.totalorder %s9, 3
    %p118 = pnand %p116, %p117
    %p119 = pneg %p118
    // Predicated region
    $region9: #{bidaf_forward.31} parent=5 // pred_check
      _
    $region10: #{bidaf_forward.31} parent=5 // pred_check_branch
      %121 = sbr.rel (%p118) target = $region12
    $region11: #{bidaf_forward.31} parent=5 // pred_region
      %s122 = ssub.s32 %s9, 1
      // Predicated region
      $region13: #{bidaf_forward.31} parent=11 // pred_check
        %p123 = pneg %p82
      $region14: #{bidaf_forward.31} parent=11 // pred_check_branch
        %125 = sbr.rel (%p123) target = $region16
      $region15: #{bidaf_forward.31} parent=11 // pred_region
        _
      $region16: #{bidaf_forward.31} parent=11 // pred_fallthru
        _
    $region12: #{bidaf_forward.31} parent=5 // pred_fallthru
      _
    %p126 = scmp.lt.s32.totalorder %s9, 2
    // Predicated region
    $region17: #{bidaf_forward.31} parent=5 // pred_check
      %p127 = pneg %p126
    $region18: #{bidaf_forward.31} parent=5 // pred_check_branch
      %129 = sbr.rel (%p127) target = $region20
    $region19: #{bidaf_forward.31} parent=5 // pred_region
      // Predicated region
      $region21: #{bidaf_forward.31} parent=19 // pred_check
        %p130 = pneg %p29
      $region22: #{bidaf_forward.31} parent=19 // pred_check_branch
        %132 = sbr.rel (%p130) target = $region24
      $region23: #{bidaf_forward.31} parent=19 // pred_region
        %p133 = scmp.lt.s32.totalorder %s9, 1
        %s134 = scalar_select %p133, %s9, 1
        %s135 = smul.addr %s134, 2
        %s136 = smul.addr %s135, 8
        %s137 = scalar_lea.vmem %s0, %s136
      $region24: #{bidaf_forward.31} parent=19 // pred_fallthru
        _
      // Predicated region
      $region25: #{bidaf_forward.31} parent=19 // pred_check
        %p138 = pneg %p55
      $region26: #{bidaf_forward.31} parent=19 // pred_check_branch
        %140 = sbr.rel (%p138) target = $region28
      $region27: #{bidaf_forward.31} parent=19 // pred_region
        %p141 = scmp.lt.s32.totalorder %s9, 1
        %s142 = scalar_select %p141, %s9, 1
        %s143 = scalar_lea.vmem %s1, %s142
      $region28: #{bidaf_forward.31} parent=19 // pred_fallthru
        _
    $region20: #{bidaf_forward.31} parent=5 // pred_fallthru
      _
    %p144 = scmp.le.s32.totalorder 1, %s9
    %p145 = scmp.lt.s32.totalorder %s9, 3
    %p146 = pnand %p144, %p145
    %p147 = pneg %p146
    // Predicated region
    $region29: #{bidaf_forward.31} parent=5 // pred_check
      _
    $region30: #{bidaf_forward.31} parent=5 // pred_check_branch
      %149 = sbr.rel (%p146) target = $region32
    $region31: #{bidaf_forward.31} parent=5 // pred_region
      %s150 = ssub.s32 %s9, 1
      %p151 = scmp.lt.s32.totalorder %s14, 1
      %s152 = scalar_select %p151, %s14, 1
      %s153 = smul.addr %s152, 2
      %s154 = smul.addr %s153, 8
      %s155 = scalar_lea.vmem %s0, %s154
      %p156 = pneg %p35
      %p157 = pneg %p32
      %p158 = scmp.lt.s32.totalorder %s14, 1
      %s159 = scalar_select %p158, %s14, 1
      %s160 = scalar_lea.vmem %s1, %s159
      %p161 = pneg %p61
      %p162 = pneg %p58
      %p163 = pneg %p82
      %p164 = pneg %p79
      %p165 = pneg %p108
      %p166 = pneg %p105
      %p167 = scmp.lt.s32.totalorder %s14, 1
      %s168 = scalar_select %p167, %s14, 1
      %s169 = smul.addr %s168, 2
      %s170 = smul.addr %s169, 8
      %s171 = scalar_lea.vmem %s3, %s170
      %p172 = scmp.lt.s32.totalorder %s14, 1
      %s173 = scalar_select %p172, %s14, 1
      %s174 = smul.addr %s173, 2
      %s175 = smul.addr %s174, 8
      %s176 = scalar_lea.vmem %s0, %s175
      %p177 = scmp.lt.s32.totalorder %s14, 1
      %s178 = scalar_select %p177, %s14, 1
      %s179 = scalar_lea.vmem %s1, %s178
      %p180 = scmp.lt.s32.totalorder %s14, 1
      %s181 = scalar_select %p180, %s14, 1
      %s182 = smul.addr %s181, 2
      %s183 = smul.addr %s182, 8
      %s184 = scalar_lea.vmem %s3, %s183
      %v186 = vld [vmem:[%s176] sm:$0xff]
      %v187 = vld [vmem:[%s176 + $0x8] sm:$0xff]
      %v188 = vld [vmem:[%s179] sm:$0x1]
      %v189 = vpack.c.bf16 %v187, %v186
      %v190 = vld [vmem:[%s2] sm:$0xff]
      %v191 = vld [vmem:[%s2 + $0x8] sm:$0xff]
      %v192 = vld [vmem:[%s2 + $0x10] sm:$0xff]
      %v193 = vld [vmem:[%s2 + $0x18] sm:$0xff]
      %v194 = vld [vmem:[%s2 + $0x20] sm:$0xff]
      %v195 = vld [vmem:[%s2 + $0x28] sm:$0xff]
      %v196 = vld [vmem:[%s2 + $0x30] sm:$0xff]
      %v197 = vld [vmem:[%s2 + $0x38] sm:$0xff]
      %v198 = vld [vmem:[%s2 + $0x40] sm:$0xff]
      %v199 = vld [vmem:[%s2 + $0x48] sm:$0xff]
      %v200 = vld [vmem:[%s2 + $0x50] sm:$0xff]
      %v201 = vld [vmem:[%s2 + $0x58] sm:$0xff]
      %v202 = vld [vmem:[%s2 + $0x60] sm:$0xff]
      %v203 = vld [vmem:[%s2 + $0x68] sm:$0xff]
      %v204 = vld [vmem:[%s2 + $0x70] sm:$0xff]
      %v205 = vld [vmem:[%s2 + $0x78] sm:$0xff]
      %v206 = vpack.c.bf16 %v191, %v190
      %v207 = vpack.c.bf16 %v193, %v192
      %v208 = vpack.c.bf16 %v195, %v194
      %v209 = vpack.c.bf16 %v197, %v196
      %v210 = vpack.c.bf16 %v199, %v198
      %v211 = vpack.c.bf16 %v201, %v200
      %v212 = vpack.c.bf16 %v203, %v202
      %v213 = vpack.c.bf16 %v205, %v204
      %214 = vmatprep.subr.bf16.mxu0 0
      %215 = vmatpush1.bf16.msra.mxu0 %v206
      %216 = vmatprep.subr.bf16.mxu0 0
      %217 = vmatpush1.bf16.msra.mxu0 %v207
      %218 = vmatprep.subr.bf16.mxu0 0
      %219 = vmatpush1.bf16.msra.mxu0 %v208
      %220 = vmatprep.subr.bf16.mxu0 0
      %221 = vmatpush1.bf16.msra.mxu0 %v209
      %222 = vmatprep.subr.bf16.mxu0 0
      %223 = vmatpush1.bf16.msra.mxu0 %v210
      %224 = vmatprep.subr.bf16.mxu0 0
      %225 = vmatpush1.bf16.msra.mxu0 %v211
      %226 = vmatprep.subr.bf16.mxu0 0
      %227 = vmatpush1.bf16.msra.mxu0 %v212
      %228 = vmatprep.subr.bf16.mxu0 0
      %229 = vmatpush1.bf16.msra.mxu0 %v213
      %230 = vmatprep.subr.bf16.mxu0 0
      %231 = vmatpush1.bf16.msra.mxu0 0
      %232 = vmatprep.subr.bf16.mxu0 0
      %233 = vmatpush1.bf16.msra.mxu0 0
      %234 = vmatprep.subr.bf16.mxu0 0
      %235 = vmatpush1.bf16.msra.mxu0 0
      %236 = vmatprep.subr.bf16.mxu0 0
      %237 = vmatpush1.bf16.msra.mxu0 0
      %238 = vmatprep.subr.bf16.mxu0 0
      %239 = vmatpush1.bf16.msra.mxu0 0
      %240 = vmatprep.subr.bf16.mxu0 0
      %241 = vmatpush1.bf16.msra.mxu0 0
      %242 = vmatprep.subr.bf16.mxu0 0
      %243 = vmatpush1.bf16.msra.mxu0 0
      %244 = vmatprep.subr.bf16.mxu0 0
      %245 = vmatpush1.bf16.msra.mxu0 0
      %246 = vmatprep.mubr.bf16.mxu0 0
      %247 = vmatmul.mubr.bf16.gmra.mrb[0].mxu0 %v189
      %v248 = vpop.f32.mrb[0].mxu0
      %v249 = vadd.f32 0.0, %v248
      %v250 = vpop.f32.mrb[0].mxu0
      %v251 = vpop.f32.mrb[0].mxu0
      %v252 = vadd.f32 0.0, %v251
      %v253 = vpop.f32.mrb[0].mxu0
      %254 = vdwg.mxu0
      %v255 = vpack.c.bf16 %v252, %v249
      %256 = vxpose.xlu0.b32.start [1/16] %v186, 128
      %257 = vxpose.xlu0.b32.cont [2/16] %v187, 128
      %258 = vxpose.xlu0.b32.cont [3/16] 0.0, 128
      %259 = vxpose.xlu0.b32.cont [4/16] 0.0, 128
      %260 = vxpose.xlu0.b32.cont [5/16] 0.0, 128
      %261 = vxpose.xlu0.b32.cont [6/16] 0.0, 128
      %262 = vxpose.xlu0.b32.cont [7/16] 0.0, 128
      %263 = vxpose.xlu0.b32.cont [8/16] 0.0, 128
      %264 = vxpose.xlu0.b32.cont [9/16] 0.0, 128
      %265 = vxpose.xlu0.b32.cont [10/16] 0.0, 128
      %266 = vxpose.xlu0.b32.cont [11/16] 0.0, 128
      %267 = vxpose.xlu0.b32.cont [12/16] 0.0, 128
      %268 = vxpose.xlu0.b32.cont [13/16] 0.0, 128
      %269 = vxpose.xlu0.b32.cont [14/16] 0.0, 128
      %270 = vxpose.xlu0.b32.cont [15/16] 0.0, 128
      %271 = vxpose.xlu0.b32.end [16/16] 0.0, 128
      %v272 = vpop.trf.xlu0
      %v273 = vpop.trf.xlu0
      %v274 = vpop.trf.xlu0
      %v275 = vpop.trf.xlu0
      %v276 = vpop.trf.xlu0
      %v277 = vpop.trf.xlu0
      %v278 = vpop.trf.xlu0
      %v279 = vpop.trf.xlu0
      %v280 = vpop.trf.xlu0
      %v281 = vpop.trf.xlu0
      %v282 = vpop.trf.xlu0
      %v283 = vpop.trf.xlu0
      %v284 = vpop.trf.xlu0
      %v285 = vpop.trf.xlu0
      %v286 = vpop.trf.xlu0
      %v287 = vpop.trf.xlu0
      %v288 = vpack.c.bf16 %v273, %v272
      %v289 = vpack.c.bf16 %v275, %v274
      %v290 = vpack.c.bf16 %v277, %v276
      %v291 = vpack.c.bf16 %v279, %v278
      %v292 = vpack.c.bf16 %v281, %v280
      %v293 = vpack.c.bf16 %v283, %v282
      %v294 = vpack.c.bf16 %v285, %v284
      %v295 = vpack.c.bf16 %v287, %v286
      %296 = vmatprep.subr.bf16.mxu0 0
      %297 = vmatpush1.bf16.msra.mxu0 %v288
      %298 = vmatprep.subr.bf16.mxu0 0
      %299 = vmatpush1.bf16.msra.mxu0 %v289
      %300 = vmatprep.subr.bf16.mxu0 0
      %301 = vmatpush1.bf16.msra.mxu0 %v290
      %302 = vmatprep.subr.bf16.mxu0 0
      %303 = vmatpush1.bf16.msra.mxu0 %v291
      %304 = vmatprep.subr.bf16.mxu0 0
      %305 = vmatpush1.bf16.msra.mxu0 %v292
      %306 = vmatprep.subr.bf16.mxu0 0
      %307 = vmatpush1.bf16.msra.mxu0 %v293
      %308 = vmatprep.subr.bf16.mxu0 0
      %309 = vmatpush1.bf16.msra.mxu0 %v294
      %310 = vmatprep.subr.bf16.mxu0 0
      %311 = vmatpush1.bf16.msra.mxu0 %v295
      %312 = vmatprep.subr.bf16.mxu0 0
      %313 = vmatpush1.bf16.msra.mxu0 0
      %314 = vmatprep.subr.bf16.mxu0 0
      %315 = vmatpush1.bf16.msra.mxu0 0
      %316 = vmatprep.subr.bf16.mxu0 0
      %317 = vmatpush1.bf16.msra.mxu0 0
      %318 = vmatprep.subr.bf16.mxu0 0
      %319 = vmatpush1.bf16.msra.mxu0 0
      %320 = vmatprep.subr.bf16.mxu0 0
      %321 = vmatpush1.bf16.msra.mxu0 0
      %322 = vmatprep.subr.bf16.mxu0 0
      %323 = vmatpush1.bf16.msra.mxu0 0
      %324 = vmatprep.subr.bf16.mxu0 0
      %325 = vmatpush1.bf16.msra.mxu0 0
      %326 = vmatprep.subr.bf16.mxu0 0
      %327 = vmatpush1.bf16.msra.mxu0 0
      %328 = vmatprep.mubr.bf16.mxu0 0
      %329 = vmatmul.mubr.bf16.gmra.mrb[0].mxu0 %v255
      %v330 = vpop.f32.mrb[0].mxu0
      %v331 = vadd.f32 0.0, %v330
      %v332 = vpop.f32.mrb[0].mxu0
      %v333 = vpop.f32.mrb[0].mxu0
      %v334 = vadd.f32 0.0, %v333
      %v335 = vpop.f32.mrb[0].mxu0
      %336 = vdwg.mxu0
      %v337 = vmul.f32 %v331, 0.088388346
      %v338 = vmul.f32 %v334, 0.088388346
      %vm339 = vcmp.gt.f32.partialorder %v188, 0.0
      %v340 = vsel %vm339, 1, 0
      %v341 = vlaneseq
      %v342 = vshrl.u32 %v341, 7
      %v343 = vsub.s32 0, %v342
      %v344 = vrot.slane %v340, %v343
      %vm345 = vcmp.eq.s32.totalorder %v344, 1
      %v346 = vsel %vm345, %v337, -1e+30
      %v347 = vsel %vm345, %v338, -1e+30
      %vm348 = vcmask 130048
      %v349 = vsel %vm348, %v346, -inf
      %350 = vmax.xlane.f32.xlu0 %v349
      %v351 = vpop.xlane.xlu0 %350
      %v352 = vsel %vm348, %v347, -inf
      %353 = vmax.xlane.f32.xlu0 %v352
      %v354 = vpop.xlane.xlu0 %353
      %v355 = vsub.f32 %v346, %v351
      %v356 = vsub.f32 %v347, %v354
      %v357 = vmul.f32 %v355, 1.442695
      %v358 = vpow.pop %v357
      %v359 = vmul.f32 %v356, 1.442695
      %v360 = vpow.pop %v359
      %v361 = vsel %vm348, %v358, 0.0
      %362 = vadd.xlane.f32.xlu0 %v361
      %v363 = vpop.xlane.xlu0 %362
      %v364 = vsel %vm348, %v360, 0.0
      %365 = vadd.xlane.f32.xlu0 %v364
      %v366 = vpop.xlane.xlu0 %365
      %v367 = vrcp.pop %v363
      %v368 = vrcp.pop %v366
      %v369 = vmul.f32 %v358, %v367
      %v370 = vmul.f32 %v360, %v368
      %v371 = vpack.c.bf16 %v370, %v369
      %v373 = vsel %vm348, %v371, 0
      %375 = vmatprep.subr.bf16.mxu0 0
      %376 = vmatpush1.bf16.msra.mxu0 %v189
      %377 = vmatprep.subr.bf16.mxu0 0
      %378 = vmatpush1.bf16.msra.mxu0 0
      %379 = vmatprep.subr.bf16.mxu0 0
      %380 = vmatpush1.bf16.msra.mxu0 0
      %381 = vmatprep.subr.bf16.mxu0 0
      %382 = vmatpush1.bf16.msra.mxu0 0
      %383 = vmatprep.subr.bf16.mxu0 0
      %384 = vmatpush1.bf16.msra.mxu0 0
      %385 = vmatprep.subr.bf16.mxu0 0
      %386 = vmatpush1.bf16.msra.mxu0 0
      %387 = vmatprep.subr.bf16.mxu0 0
      %388 = vmatpush1.bf16.msra.mxu0 0
      %389 = vmatprep.subr.bf16.mxu0 0
      %390 = vmatpush1.bf16.msra.mxu0 0
      %391 = vmatprep.subr.bf16.mxu0 0
      %392 = vmatpush1.bf16.msra.mxu0 0
      %393 = vmatprep.subr.bf16.mxu0 0
      %394 = vmatpush1.bf16.msra.mxu0 0
      %395 = vmatprep.subr.bf16.mxu0 0
      %396 = vmatpush1.bf16.msra.mxu0 0
      %397 = vmatprep.subr.bf16.mxu0 0
      %398 = vmatpush1.bf16.msra.mxu0 0
      %399 = vmatprep.subr.bf16.mxu0 0
      %400 = vmatpush1.bf16.msra.mxu0 0
      %401 = vmatprep.subr.bf16.mxu0 0
      %402 = vmatpush1.bf16.msra.mxu0 0
      %403 = vmatprep.subr.bf16.mxu0 0
      %404 = vmatpush1.bf16.msra.mxu0 0
      %405 = vmatprep.subr.bf16.mxu0 0
      %406 = vmatpush1.bf16.msra.mxu0 0
      %407 = vmatprep.mubr.bf16.mxu0 0
      %408 = vmatmul.mubr.bf16.gmra.mrb[0].mxu0 %v373
      %v409 = vpop.f32.mrb[0].mxu0
      %v410 = vadd.f32 0.0, %v409
      %v411 = vpop.f32.mrb[0].mxu0
      %v412 = vpop.f32.mrb[0].mxu0
      %v413 = vadd.f32 0.0, %v412
      %v414 = vpop.f32.mrb[0].mxu0
      %415 = vdwg.mxu0
      %v416 = vadd.f32 %v186, %v410
      %v417 = vadd.f32 %v187, %v413
      %418 = vst [vmem:[%s184] sm:$0xff] %v416
      %419 = vst [vmem:[%s184 + $0x8] sm:$0xff] %v417
      %p420 = scmp.lt.s32.totalorder %s14, 1
      %s421 = scalar_select %p420, %s14, 1
      %s422 = smul.addr %s421, 2
      %s423 = smul.addr %s422, 8
      %s424 = scalar_lea.vmem %s3, %s423
      // Predicated region
      $region33: #{bidaf_forward.31} parent=31 // pred_check
        %p425 = pneg %p105
      $region34: #{bidaf_forward.31} parent=31 // pred_check_branch
        %427 = sbr.rel (%p425) target = $region36
      $region35: #{bidaf_forward.31} parent=31 // pred_region
        _
      $region36: #{bidaf_forward.31} parent=31 // pred_fallthru
        _
    $region32: #{bidaf_forward.31} parent=5 // pred_fallthru
      _
    %p428 = scmp.le.s32.totalorder 2, %s9
    // Predicated region
    $region37: #{bidaf_forward.31} parent=5 // pred_check
      %p429 = pneg %p428
    $region38: #{bidaf_forward.31} parent=5 // pred_check_branch
      %431 = sbr.rel (%p429) target = $region40
    $region39: #{bidaf_forward.31} parent=5 // pred_region
      %s432 = ssub.s32 %s9, 2
      // Predicated region
      $region41: #{bidaf_forward.31} parent=39 // pred_check
        %p433 = pneg %p111
      $region42: #{bidaf_forward.31} parent=39 // pred_check_branch
        %435 = sbr.rel (%p433) target = $region44
      $region43: #{bidaf_forward.31} parent=39 // pred_region
        %p436 = scmp.lt.s32.totalorder %s15, 1
        %s437 = scalar_select %p436, %s15, 1
        %s438 = smul.addr %s437, 2
        %s439 = smul.addr %s438, 8
        %s440 = scalar_lea.vmem %s3, %s439
      $region44: #{bidaf_forward.31} parent=39 // pred_fallthru
        _
    $region40: #{bidaf_forward.31} parent=5 // pred_fallthru
      _
  $region6: #{bidaf_forward.31} parent=0 // loop_footer
    %s13 = sadd.s32 1, %s9
  $region7: #{bidaf_forward.31} parent=0 // loop_footer_branch
    %8 = sbr.rel target = $region3
  $region8: #{bidaf_forward.31} parent=0 // loop_exit
    _

// kernel: bidaf_forward.34
$region0: #{bidaf_forward.34}
  #allocation0 [shape = 'u32[]', space=smem, size = 0x4, offset = 0x4, fixed_abs, tag = 'smem constant byte address 0x4 - core index']
  #allocation1 [shape = 'u32[144,128]{1,0:T(1,128)}', space=vmem, size = 0x12000, scoped, tag = 'internal scratch']
  %s0 = inlined_call_operand.vmem [shape: f32[32,32], index: 0, kind: input, shape index: {}]
  %s1 = inlined_call_operand.vmem [shape: f32[32,128], index: 1, kind: input, shape index: {}]
  %s2 = inlined_call_operand.vmem [shape: f32[1,128], index: 2, kind: input, shape index: {}]
  %s3 = inlined_call_operand.vmem [shape: bf16[32,128], index: 3, kind: output, shape index: {}]
  %s4 = sld [smem:[#allocation0]]
  $region22: #{bidaf_forward.34} parent=0
    _
  %s6 = ssub.s32 1, %s4
  %s7 = scalar_select 0, %s6, %s4
  // Predicated region
  $region2: #{bidaf_forward.34} parent=0 // pred_check
    _
  $region3: #{bidaf_forward.34} parent=0 // pred_check_branch
    %9 = sbr.rel (0) target = $region5
  $region4: #{bidaf_forward.34} parent=0 // pred_region
    _
  $region5: #{bidaf_forward.34} parent=0 // pred_fallthru
    _
  // Predicated region
  $region6: #{bidaf_forward.34} parent=0 // pred_check
    _
  $region7: #{bidaf_forward.34} parent=0 // pred_check_branch
    %11 = sbr.rel (0) target = $region9
  $region8: #{bidaf_forward.34} parent=0 // pred_region
    _
  $region9: #{bidaf_forward.34} parent=0 // pred_fallthru
    _
  // Predicated region
  $region10: #{bidaf_forward.34} parent=0 // pred_check
    _
  $region11: #{bidaf_forward.34} parent=0 // pred_check_branch
    %13 = sbr.rel (0) target = $region13
  $region12: #{bidaf_forward.34} parent=0 // pred_region
    _
  $region13: #{bidaf_forward.34} parent=0 // pred_fallthru
    _
  %v15 = vld [vmem:[%s0] sm:$0xff]
  %v16 = vld [vmem:[%s0 + $0x8] sm:$0xff]
  %v17 = vld [vmem:[%s0 + $0x10] sm:$0xff]
  %v18 = vld [vmem:[%s0 + $0x18] sm:$0xff]
  %v19 = vpack.c.bf16 %v16, %v15
  %v20 = vpack.c.bf16 %v18, %v17
  %v21 = vld [vmem:[%s1] sm:$0xff]
  %v22 = vld [vmem:[%s1 + $0x8] sm:$0xff]
  %v23 = vld [vmem:[%s1 + $0x10] sm:$0xff]
  %v24 = vld [vmem:[%s1 + $0x18] sm:$0xff]
  %v25 = vpack.c.bf16 %v22, %v21
  %v26 = vpack.c.bf16 %v24, %v23
  %v27 = vld [vmem:[%s2] sm:$0x1]
  %v29 = vlaneseq
  %v30 = vshrl.u32 %v29, 7
  %v31 = vsub.s32 0, %v30
  %v32 = vrot.slane %v27, %v31
  %vm34 = vcmask 261120
  %v36 = vsel %vm34, %v19, 0
  %v39 = vsel %vm34, %v20, 0
  %41 = vmatprep.subr.bf16.mxu0 0
  %42 = vmatpush1.bf16.msra.mxu0 %v25
  %43 = vmatprep.subr.bf16.mxu0 0
  %44 = vmatpush1.bf16.msra.mxu0 %v26
  %45 = vmatprep.subr.bf16.mxu0 0
  %46 = vmatpush1.bf16.msra.mxu0 0
  %47 = vmatprep.subr.bf16.mxu0 0
  %48 = vmatpush1.bf16.msra.mxu0 0
  %49 = vmatprep.subr.bf16.mxu0 0
  %50 = vmatpush1.bf16.msra.mxu0 0
  %51 = vmatprep.subr.bf16.mxu0 0
  %52 = vmatpush1.bf16.msra.mxu0 0
  %53 = vmatprep.subr.bf16.mxu0 0
  %54 = vmatpush1.bf16.msra.mxu0 0
  %55 = vmatprep.subr.bf16.mxu0 0
  %56 = vmatpush1.bf16.msra.mxu0 0
  %57 = vmatprep.subr.bf16.mxu0 0
  %58 = vmatpush1.bf16.msra.mxu0 0
  %59 = vmatprep.subr.bf16.mxu0 0
  %60 = vmatpush1.bf16.msra.mxu0 0
  %61 = vmatprep.subr.bf16.mxu0 0
  %62 = vmatpush1.bf16.msra.mxu0 0
  %63 = vmatprep.subr.bf16.mxu0 0
  %64 = vmatpush1.bf16.msra.mxu0 0
  %65 = vmatprep.subr.bf16.mxu0 0
  %66 = vmatpush1.bf16.msra.mxu0 0
  %67 = vmatprep.subr.bf16.mxu0 0
  %68 = vmatpush1.bf16.msra.mxu0 0
  %69 = vmatprep.subr.bf16.mxu0 0
  %70 = vmatpush1.bf16.msra.mxu0 0
  %71 = vmatprep.subr.bf16.mxu0 0
  %72 = vmatpush1.bf16.msra.mxu0 0
  %73 = vmatprep.mubr.bf16.mxu0 0
  %74 = vmatmul.mubr.bf16.gmra.mrb[0].mxu0 %v36
  %v75 = vpop.f32.mrb[0].mxu0
  %v76 = vadd.f32 %v32, %v75
  %v77 = vpop.f32.mrb[0].mxu0
  %v78 = vpop.f32.mrb[0].mxu0
  %v79 = vadd.f32 %v32, %v78
  %v80 = vpop.f32.mrb[0].mxu0
  %81 = vmatprep.mubr.bf16.mxu0 0
  %82 = vmatmul.mubr.bf16.gmra.mrb[0].mxu0 %v39
  %v83 = vpop.f32.mrb[0].mxu0
  %v84 = vadd.f32 %v32, %v83
  %v85 = vpop.f32.mrb[0].mxu0
  %v86 = vpop.f32.mrb[0].mxu0
  %v87 = vadd.f32 %v32, %v86
  %v88 = vpop.f32.mrb[0].mxu0
  %89 = vdwg.mxu0
  %v90 = vpack.c.bf16 %v79, %v76
  %v91 = vpack.c.bf16 %v87, %v84
  %v94 = vunpack.c.l.b16 %v90
  %v95 = vunpack.c.h.b16 %v90
  %v96 = vunpack.c.l.b16 %v91
  %v97 = vunpack.c.h.b16 %v91
  %v98 = vpack.c.b16 %v94, %v94
  %v99 = vpack.c.b16 %v95, %v95
  %v100 = vpack.c.b16 %v96, %v96
  %v101 = vpack.c.b16 %v97, %v97
  %106 = vst [vmem:[%s3] sm:$0xf] %v98
  %107 = vst [vmem:[%s3 + $0x4] sm:$0xf] %v99
  %108 = vst [vmem:[%s3 + $0x8] sm:$0xf] %v100
  %109 = vst [vmem:[%s3 + $0xc] sm:$0xf] %v101
  // Predicated region
  $region14: #{bidaf_forward.34} parent=0 // pred_check
    _
  $region15: #{bidaf_forward.34} parent=0 // pred_check_branch
    %111 = sbr.rel (0) target = $region17
  $region16: #{bidaf_forward.34} parent=0 // pred_region
    _
  $region17: #{bidaf_forward.34} parent=0 // pred_fallthru
    _
  // Predicated region
  $region18: #{bidaf_forward.34} parent=0 // pred_check
    _
  $region19: #{bidaf_forward.34} parent=0 // pred_check_branch
    %113 = sbr.rel (0) target = $region21
  $region20: #{bidaf_forward.34} parent=0 // pred_region
    _
  $region21: #{bidaf_forward.34} parent=0 // pred_fallthru
    _

// kernel: bidaf_forward.32
$region0: #{bidaf_forward.32}
  #allocation0 [shape = 'u32[]', space=smem, size = 0x4, offset = 0x4, fixed_abs, tag = 'smem constant byte address 0x4 - core index']
  #allocation1 [shape = 'u32[144,128]{1,0:T(1,128)}', space=vmem, size = 0x12000, scoped, tag = 'internal scratch']
  %s0 = inlined_call_operand.vmem [shape: f32[32,128], index: 0, kind: input, shape index: {}]
  %s1 = inlined_call_operand.vmem [shape: f32[128,128], index: 1, kind: input, shape index: {}]
  %s2 = inlined_call_operand.vmem [shape: f32[1,128], index: 2, kind: input, shape index: {}]
  %s3 = inlined_call_operand.vmem [shape: bf16[32,128], index: 3, kind: output, shape index: {}]
  %s4 = sld [smem:[#allocation0]]
  $region22: #{bidaf_forward.32} parent=0
    _
  %s6 = ssub.s32 1, %s4
  %s7 = scalar_select 0, %s6, %s4
  // Predicated region
  $region2: #{bidaf_forward.32} parent=0 // pred_check
    _
  $region3: #{bidaf_forward.32} parent=0 // pred_check_branch
    %9 = sbr.rel (0) target = $region5
  $region4: #{bidaf_forward.32} parent=0 // pred_region
    _
  $region5: #{bidaf_forward.32} parent=0 // pred_fallthru
    _
  // Predicated region
  $region6: #{bidaf_forward.32} parent=0 // pred_check
    _
  $region7: #{bidaf_forward.32} parent=0 // pred_check_branch
    %11 = sbr.rel (0) target = $region9
  $region8: #{bidaf_forward.32} parent=0 // pred_region
    _
  $region9: #{bidaf_forward.32} parent=0 // pred_fallthru
    _
  // Predicated region
  $region10: #{bidaf_forward.32} parent=0 // pred_check
    _
  $region11: #{bidaf_forward.32} parent=0 // pred_check_branch
    %13 = sbr.rel (0) target = $region13
  $region12: #{bidaf_forward.32} parent=0 // pred_region
    _
  $region13: #{bidaf_forward.32} parent=0 // pred_fallthru
    _
  %v15 = vld [vmem:[%s0] sm:$0xff]
  %v16 = vld [vmem:[%s0 + $0x8] sm:$0xff]
  %v17 = vld [vmem:[%s0 + $0x10] sm:$0xff]
  %v18 = vld [vmem:[%s0 + $0x18] sm:$0xff]
  %v19 = vpack.c.bf16 %v16, %v15
  %v20 = vpack.c.bf16 %v18, %v17
  %v21 = vld [vmem:[%s1] sm:$0xff]
  %v22 = vld [vmem:[%s1 + $0x8] sm:$0xff]
  %v23 = vld [vmem:[%s1 + $0x10] sm:$0xff]
  %v24 = vld [vmem:[%s1 + $0x18] sm:$0xff]
  %v25 = vld [vmem:[%s1 + $0x20] sm:$0xff]
  %v26 = vld [vmem:[%s1 + $0x28] sm:$0xff]
  %v27 = vld [vmem:[%s1 + $0x30] sm:$0xff]
  %v28 = vld [vmem:[%s1 + $0x38] sm:$0xff]
  %v29 = vld [vmem:[%s1 + $0x40] sm:$0xff]
  %v30 = vld [vmem:[%s1 + $0x48] sm:$0xff]
  %v31 = vld [vmem:[%s1 + $0x50] sm:$0xff]
  %v32 = vld [vmem:[%s1 + $0x58] sm:$0xff]
  %v33 = vld [vmem:[%s1 + $0x60] sm:$0xff]
  %v34 = vld [vmem:[%s1 + $0x68] sm:$0xff]
  %v35 = vld [vmem:[%s1 + $0x70] sm:$0xff]
  %v36 = vld [vmem:[%s1 + $0x78] sm:$0xff]
  %v37 = vpack.c.bf16 %v22, %v21
  %v38 = vpack.c.bf16 %v24, %v23
  %v39 = vpack.c.bf16 %v26, %v25
  %v40 = vpack.c.bf16 %v28, %v27
  %v41 = vpack.c.bf16 %v30, %v29
  %v42 = vpack.c.bf16 %v32, %v31
  %v43 = vpack.c.bf16 %v34, %v33
  %v44 = vpack.c.bf16 %v36, %v35
  %v45 = vld [vmem:[%s2] sm:$0x1]
  %v47 = vlaneseq
  %v48 = vshrl.u32 %v47, 7
  %v49 = vsub.s32 0, %v48
  %v50 = vrot.slane %v45, %v49
  %52 = vmatprep.subr.bf16.mxu0 0
  %53 = vmatpush1.bf16.msra.mxu0 %v37
  %54 = vmatprep.subr.bf16.mxu0 0
  %55 = vmatpush1.bf16.msra.mxu0 %v38
  %56 = vmatprep.subr.bf16.mxu0 0
  %57 = vmatpush1.bf16.msra.mxu0 %v39
  %58 = vmatprep.subr.bf16.mxu0 0
  %59 = vmatpush1.bf16.msra.mxu0 %v40
  %60 = vmatprep.subr.bf16.mxu0 0
  %61 = vmatpush1.bf16.msra.mxu0 %v41
  %62 = vmatprep.subr.bf16.mxu0 0
  %63 = vmatpush1.bf16.msra.mxu0 %v42
  %64 = vmatprep.subr.bf16.mxu0 0
  %65 = vmatpush1.bf16.msra.mxu0 %v43
  %66 = vmatprep.subr.bf16.mxu0 0
  %67 = vmatpush1.bf16.msra.mxu0 %v44
  %68 = vmatprep.subr.bf16.mxu0 0
  %69 = vmatpush1.bf16.msra.mxu0 0
  %70 = vmatprep.subr.bf16.mxu0 0
  %71 = vmatpush1.bf16.msra.mxu0 0
  %72 = vmatprep.subr.bf16.mxu0 0
  %73 = vmatpush1.bf16.msra.mxu0 0
  %74 = vmatprep.subr.bf16.mxu0 0
  %75 = vmatpush1.bf16.msra.mxu0 0
  %76 = vmatprep.subr.bf16.mxu0 0
  %77 = vmatpush1.bf16.msra.mxu0 0
  %78 = vmatprep.subr.bf16.mxu0 0
  %79 = vmatpush1.bf16.msra.mxu0 0
  %80 = vmatprep.subr.bf16.mxu0 0
  %81 = vmatpush1.bf16.msra.mxu0 0
  %82 = vmatprep.subr.bf16.mxu0 0
  %83 = vmatpush1.bf16.msra.mxu0 0
  %84 = vmatprep.mubr.bf16.mxu0 0
  %85 = vmatmul.mubr.bf16.gmra.mrb[0].mxu0 %v19
  %v86 = vpop.f32.mrb[0].mxu0
  %v87 = vadd.f32 %v50, %v86
  %v88 = vpop.f32.mrb[0].mxu0
  %v89 = vpop.f32.mrb[0].mxu0
  %v90 = vadd.f32 %v50, %v89
  %v91 = vpop.f32.mrb[0].mxu0
  %92 = vmatprep.mubr.bf16.mxu0 0
  %93 = vmatmul.mubr.bf16.gmra.mrb[0].mxu0 %v20
  %v94 = vpop.f32.mrb[0].mxu0
  %v95 = vadd.f32 %v50, %v94
  %v96 = vpop.f32.mrb[0].mxu0
  %v97 = vpop.f32.mrb[0].mxu0
  %v98 = vadd.f32 %v50, %v97
  %v99 = vpop.f32.mrb[0].mxu0
  %100 = vdwg.mxu0
  %v101 = vpack.c.bf16 %v90, %v87
  %v102 = vpack.c.bf16 %v98, %v95
  %v105 = vunpack.c.l.b16 %v101
  %v106 = vunpack.c.h.b16 %v101
  %v107 = vunpack.c.l.b16 %v102
  %v108 = vunpack.c.h.b16 %v102
  %v109 = vpack.c.b16 %v105, %v105
  %v110 = vpack.c.b16 %v106, %v106
  %v111 = vpack.c.b16 %v107, %v107
  %v112 = vpack.c.b16 %v108, %v108
  %117 = vst [vmem:[%s3] sm:$0xf] %v109
  %118 = vst [vmem:[%s3 + $0x4] sm:$0xf] %v110
  %119 = vst [vmem:[%s3 + $0x8] sm:$0xf] %v111
  %120 = vst [vmem:[%s3 + $0xc] sm:$0xf] %v112
  // Predicated region
  $region14: #{bidaf_forward.32} parent=0 // pred_check
    _
  $region15: #{bidaf_forward.32} parent=0 // pred_check_branch
    %122 = sbr.rel (0) target = $region17
  $region16: #{bidaf_forward.32} parent=0 // pred_region
    _
  $region17: #{bidaf_forward.32} parent=0 // pred_fallthru
    _
  // Predicated region
  $region18: #{bidaf_forward.32} parent=0 // pred_check
    _
  $region19: #{bidaf_forward.32} parent=0 // pred_check_branch
    %124 = sbr.rel (0) target = $region21
  $region20: #{bidaf_forward.32} parent=0 // pred_region
    _
  $region21: #{bidaf_forward.32} parent=0 // pred_fallthru
    _

// kernel: bidaf_forward.39
$region0: #{bidaf_forward.39}
  #allocation0 [shape = 'u32[]', space=smem, size = 0x4, offset = 0x4, fixed_abs, tag = 'smem constant byte address 0x4 - core index']
  #allocation1 [shape = 'u32[144,128]{1,0:T(1,128)}', space=vmem, size = 0x12000, scoped, tag = 'internal scratch']
  #allocation2 [shape = 'f32[1,1]{1,0:T(1,128)S(1)}', space=vmem, size = 0x200, scoped, tag = 'scoped memory for bidaf_forward.39']
  %s0 = inlined_call_operand.vmem [shape: f32[2,16,128], index: 0, kind: input, shape index: {}]
  %s1 = inlined_call_operand.vmem [shape: f32[2,16,32], index: 1, kind: input, shape index: {}]
  %s2 = inlined_call_operand.vmem [shape: f32[2,1,16], index: 2, kind: input, shape index: {}]
  %s3 = inlined_call_operand.vmem [shape: f32[1,128], index: 3, kind: input, shape index: {}]
  %s4 = inlined_call_operand.vmem [shape: f32[1,32], index: 4, kind: input, shape index: {}]
  %s5 = inlined_call_operand.<no memory space> [shape: f32[1,1], index: 5, kind: input, shape index: {}]
  %s6 = inlined_call_operand.hbm [shape: f32[2,1,16], index: 6, kind: output, shape index: {}]
  %s7 = sld [smem:[#allocation0]]
  $region57: #{bidaf_forward.39} parent=0
    _
  %s9 = ssub.s32 1, %s7
  %s10 = scalar_select 0, %s9, %s7
  %v11 = vstv %s5
  %12 = vst [vmem:[#allocation2] sm:$0x1] %v11
  $region1: #{bidaf_forward.39} parent=0
    #allocation3 [shape = 'u8[1024]{0}', space=vmem, size = 0x400, scoped, tag = 'output window, operand 0']
    #allocation4 [shape = 's32[2]{0}', space=sflag, size = 0x8, scoped, tag = 'scoped memory for bidaf_forward.39']
    %13 = vsyncpa [#allocation4], 0
    %s14 = scalar_lea.sflag [#allocation4], 1
    %15 = vsyncpa %s14, 0
    loop: start=0, step=1, limit=4
    $region2: #{bidaf_forward.39} parent=1 // loop_pre_header
      _
    $region3: #{bidaf_forward.39} parent=1 // loop_header
      %s17 = sphi 0, %s21
      %p18 = scmp.ge.s32.totalorder %s17, 4
      %s27 = sphi 0, %s29
      %s30 = sphi 0, %s27
      %s31 = sphi 0, %s30
      %s47 = sphi 0, %s31
      %s53 = sphi 0, %s55
      %s56 = sphi 0, %s53
      %s57 = sphi 0, %s56
      %s73 = sphi 0, %s57
      %s79 = sphi 0, %s81
      %s82 = sphi 0, %s79
      %s83 = sphi 0, %s82
      %s99 = sphi 0, %s83
      %s103 = sphi 0, %s103
      %s105 = sphi 0, %s103
      %s106 = sphi 0, %s105
      %s120 = sphi 0, %s106
      %s124 = sphi 0, %s124
      %s126 = sphi 0, %s124
      %s127 = sphi 0, %s126
      %s141 = sphi 0, %s127
      %s145 = sphi 0, %s145
      %s147 = sphi 0, %s145
      %s148 = sphi 0, %s147
      %s162 = sphi 0, %s148
      %s168 = sphi 0, %s170
      %s171 = sphi 0, %s168
      %s172 = sphi 0, %s171
      %s188 = sphi 0, %s172
    $region4: #{bidaf_forward.39} parent=1 // loop_header_branch
      %20 = sbr.rel (%p18) target = $region8
    $region5: #{bidaf_forward.39} parent=1 // loop_body
      %s22 = ssub.s32 %s17, 1
      %s23 = ssub.s32 %s17, 2
      %s24 = sadd.s32 %s17, 1
      %s25 = ssub.s32 %s17, %s24
      %p26 = scmp.eq.s32.totalorder %s25, 0
      %s28 = sadd.s32 %s27, 1
      %s29 = scalar_select %p26, %s27, %s28
      %p32 = pneg %p26
      %p33 = scmp.eq.s32.totalorder %s17, 1
      %p34 = por %p32, %p33
      %p35 = scmp.ne.s32.totalorder %s27, %s30
      %p36 = scmp.eq.s32.totalorder %s17, 0
      %p37 = por %p35, %p36
      %p38 = scmp.ne.s32.totalorder %s27, %s30
      %p39 = scmp.eq.s32.totalorder %s22, 1
      %p40 = por %p38, %p39
      %p41 = scmp.ne.s32.totalorder %s30, %s31
      %p42 = scmp.eq.s32.totalorder %s22, 0
      %p43 = por %p41, %p42
      %p44 = scmp.ne.s32.totalorder %s30, %s31
      %p45 = scmp.eq.s32.totalorder %s23, 1
      %p46 = por %p44, %p45
      %p48 = scmp.ne.s32.totalorder %s31, %s47
      %p49 = scmp.eq.s32.totalorder %s23, 0
      %p50 = por %p48, %p49
      %s51 = ssub.s32 %s17, %s24
      %p52 = scmp.eq.s32.totalorder %s51, 0
      %s54 = sadd.s32 %s53, 1
      %s55 = scalar_select %p52, %s53, %s54
      %p58 = pneg %p52
      %p59 = scmp.eq.s32.totalorder %s17, 1
      %p60 = por %p58, %p59
      %p61 = scmp.ne.s32.totalorder %s53, %s56
      %p62 = scmp.eq.s32.totalorder %s17, 0
      %p63 = por %p61, %p62
      %p64 = scmp.ne.s32.totalorder %s53, %s56
      %p65 = scmp.eq.s32.totalorder %s22, 1
      %p66 = por %p64, %p65
      %p67 = scmp.ne.s32.totalorder %s56, %s57
      %p68 = scmp.eq.s32.totalorder %s22, 0
      %p69 = por %p67, %p68
      %p70 = scmp.ne.s32.totalorder %s56, %s57
      %p71 = scmp.eq.s32.totalorder %s23, 1
      %p72 = por %p70, %p71
      %p74 = scmp.ne.s32.totalorder %s57, %s73
      %p75 = scmp.eq.s32.totalorder %s23, 0
      %p76 = por %p74, %p75
      %s77 = ssub.s32 %s17, %s24
      %p78 = scmp.eq.s32.totalorder %s77, 0
      %s80 = sadd.s32 %s79, 1
      %s81 = scalar_select %p78, %s79, %s80
      %p84 = pneg %p78
      %p85 = scmp.eq.s32.totalorder %s17, 1
      %p86 = por %p84, %p85
      %p87 = scmp.ne.s32.totalorder %s79, %s82
      %p88 = scmp.eq.s32.totalorder %s17, 0
      %p89 = por %p87, %p88
      %p90 = scmp.ne.s32.totalorder %s79, %s82
      %p91 = scmp.eq.s32.totalorder %s22, 1
      %p92 = por %p90, %p91
      %p93 = scmp.ne.s32.totalorder %s82, %s83
      %p94 = scmp.eq.s32.totalorder %s22, 0
      %p95 = por %p93, %p94
      %p96 = scmp.ne.s32.totalorder %s82, %s83
      %p97 = scmp.eq.s32.totalorder %s23, 1
      %p98 = por %p96, %p97
      %p100 = scmp.ne.s32.totalorder %s83, %s99
      %p101 = scmp.eq.s32.totalorder %s23, 0
      %p102 = por %p100, %p101
      %s104 = sadd.s32 %s103, 1
      %p107 = scmp.eq.s32.totalorder %s17, 1
      %p108 = scmp.ne.s32.totalorder %s103, %s105
      %p109 = scmp.eq.s32.totalorder %s17, 0
      %p110 = por %p108, %p109
      %p111 = scmp.ne.s32.totalorder %s103, %s105
      %p112 = scmp.eq.s32.totalorder %s22, 1
      %p113 = por %p111, %p112
      %p114 = scmp.ne.s32.totalorder %s105, %s106
      %p115 = scmp.eq.s32.totalorder %s22, 0
      %p116 = por %p114, %p115
      %p117 = scmp.ne.s32.totalorder %s105, %s106
      %p118 = scmp.eq.s32.totalorder %s23, 1
      %p119 = por %p117, %p118
      %p121 = scmp.ne.s32.totalorder %s106, %s120
      %p122 = scmp.eq.s32.totalorder %s23, 0
      %p123 = por %p121, %p122
      %s125 = sadd.s32 %s124, 1
      %p128 = scmp.eq.s32.totalorder %s17, 1
      %p129 = scmp.ne.s32.totalorder %s124, %s126
      %p130 = scmp.eq.s32.totalorder %s17, 0
      %p131 = por %p129, %p130
      %p132 = scmp.ne.s32.totalorder %s124, %s126
      %p133 = scmp.eq.s32.totalorder %s22, 1
      %p134 = por %p132, %p133
      %p135 = scmp.ne.s32.totalorder %s126, %s127
      %p136 = scmp.eq.s32.totalorder %s22, 0
      %p137 = por %p135, %p136
      %p138 = scmp.ne.s32.totalorder %s126, %s127
      %p139 = scmp.eq.s32.totalorder %s23, 1
      %p140 = por %p138, %p139
      %p142 = scmp.ne.s32.totalorder %s127, %s141
      %p143 = scmp.eq.s32.totalorder %s23, 0
      %p144 = por %p142, %p143
      %s146 = sadd.s32 %s145, 1
      %p149 = scmp.eq.s32.totalorder %s17, 1
      %p150 = scmp.ne.s32.totalorder %s145, %s147
      %p151 = scmp.eq.s32.totalorder %s17, 0
      %p152 = por %p150, %p151
      %p153 = scmp.ne.s32.totalorder %s145, %s147
      %p154 = scmp.eq.s32.totalorder %s22, 1
      %p155 = por %p153, %p154
      %p156 = scmp.ne.s32.totalorder %s147, %s148
      %p157 = scmp.eq.s32.totalorder %s22, 0
      %p158 = por %p156, %p157
      %p159 = scmp.ne.s32.totalorder %s147, %s148
      %p160 = scmp.eq.s32.totalorder %s23, 1
      %p161 = por %p159, %p160
      %p163 = scmp.ne.s32.totalorder %s148, %s162
      %p164 = scmp.eq.s32.totalorder %s23, 0
      %p165 = por %p163, %p164
      %s166 = ssub.s32 %s17, %s24
      %p167 = scmp.eq.s32.totalorder %s166, 0
      %s169 = sadd.s32 %s168, 1
      %s170 = scalar_select %p167, %s168, %s169
      %p173 = pneg %p167
      %p174 = scmp.eq.s32.totalorder %s17, 1
      %p175 = por %p173, %p174
      %p176 = scmp.ne.s32.totalorder %s168, %s171
      %p177 = scmp.eq.s32.totalorder %s17, 0
      %p178 = por %p176, %p177
      %p179 = scmp.ne.s32.totalorder %s168, %s171
      %p180 = scmp.eq.s32.totalorder %s22, 1
      %p181 = por %p179, %p180
      %p182 = scmp.ne.s32.totalorder %s171, %s172
      %p183 = scmp.eq.s32.totalorder %s22, 0
      %p184 = por %p182, %p183
      %p185 = scmp.ne.s32.totalorder %s171, %s172
      %p186 = scmp.eq.s32.totalorder %s23, 1
      %p187 = por %p185, %p186
      %p189 = scmp.ne.s32.totalorder %s172, %s188
      %p190 = scmp.eq.s32.totalorder %s23, 0
      %p191 = por %p189, %p190
      %p192 = scmp.le.s32.totalorder 1, %s17
      %p193 = scmp.lt.s32.totalorder %s17, 3
      %p194 = pnand %p192, %p193
      %p195 = pneg %p194
      // Predicated region
      $region9: #{bidaf_forward.39} parent=5 // pred_check
        _
      $region10: #{bidaf_forward.39} parent=5 // pred_check_branch
        %197 = sbr.rel (%p194) target = $region12
      $region11: #{bidaf_forward.39} parent=5 // pred_region
        %s198 = ssub.s32 %s17, 1
        // Predicated region
        $region13: #{bidaf_forward.39} parent=11 // pred_check
          %p199 = pneg %p116
        $region14: #{bidaf_forward.39} parent=11 // pred_check_branch
          %201 = sbr.rel (%p199) target = $region16
        $region15: #{bidaf_forward.39} parent=11 // pred_region
          _
        $region16: #{bidaf_forward.39} parent=11 // pred_fallthru
          _
        // Predicated region
        $region17: #{bidaf_forward.39} parent=11 // pred_check
          %p202 = pneg %p137
        $region18: #{bidaf_forward.39} parent=11 // pred_check_branch
          %204 = sbr.rel (%p202) target = $region20
        $region19: #{bidaf_forward.39} parent=11 // pred_region
          _
        $region20: #{bidaf_forward.39} parent=11 // pred_fallthru
          _
        // Predicated region
        $region21: #{bidaf_forward.39} parent=11 // pred_check
          %p205 = pneg %p158
        $region22: #{bidaf_forward.39} parent=11 // pred_check_branch
          %207 = sbr.rel (%p205) target = $region24
        $region23: #{bidaf_forward.39} parent=11 // pred_region
          _
        $region24: #{bidaf_forward.39} parent=11 // pred_fallthru
          _
      $region12: #{bidaf_forward.39} parent=5 // pred_fallthru
        _
      %p208 = scmp.lt.s32.totalorder %s17, 2
      // Predicated region
      $region25: #{bidaf_forward.39} parent=5 // pred_check
        %p209 = pneg %p208
      $region26: #{bidaf_forward.39} parent=5 // pred_check_branch
        %211 = sbr.rel (%p209) target = $region28
      $region27: #{bidaf_forward.39} parent=5 // pred_region
        // Predicated region
        $region29: #{bidaf_forward.39} parent=27 // pred_check
          %p212 = pneg %p37
        $region30: #{bidaf_forward.39} parent=27 // pred_check_branch
          %214 = sbr.rel (%p212) target = $region32
        $region31: #{bidaf_forward.39} parent=27 // pred_region
          %p215 = scmp.lt.s32.totalorder %s17, 1
          %s216 = scalar_select %p215, %s17, 1
          %s217 = smul.addr %s216, 2
          %s218 = smul.addr %s217, 8
          %s219 = scalar_lea.vmem %s0, %s218
        $region32: #{bidaf_forward.39} parent=27 // pred_fallthru
          _
        // Predicated region
        $region33: #{bidaf_forward.39} parent=27 // pred_check
          %p220 = pneg %p63
        $region34: #{bidaf_forward.39} parent=27 // pred_check_branch
          %222 = sbr.rel (%p220) target = $region36
        $region35: #{bidaf_forward.39} parent=27 // pred_region
          %p223 = scmp.lt.s32.totalorder %s17, 1
          %s224 = scalar_select %p223, %s17, 1
          %s225 = smul.addr %s224, 2
          %s226 = smul.addr %s225, 8
          %s227 = scalar_lea.vmem %s1, %s226
        $region36: #{bidaf_forward.39} parent=27 // pred_fallthru
          _
        // Predicated region
        $region37: #{bidaf_forward.39} parent=27 // pred_check
          %p228 = pneg %p89
        $region38: #{bidaf_forward.39} parent=27 // pred_check_branch
          %230 = sbr.rel (%p228) target = $region40
        $region39: #{bidaf_forward.39} parent=27 // pred_region
          %p231 = scmp.lt.s32.totalorder %s17, 1
          %s232 = scalar_select %p231, %s17, 1
          %s233 = scalar_lea.vmem %s2, %s232
        $region40: #{bidaf_forward.39} parent=27 // pred_fallthru
          _
      $region28: #{bidaf_forward.39} parent=5 // pred_fallthru
        _
      %p234 = scmp.le.s32.totalorder 1, %s17
      %p235 = scmp.lt.s32.totalorder %s17, 3
      %p236 = pnand %p234, %p235
      %p237 = pneg %p236
      // Predicated region
      $region41: #{bidaf_forward.39} parent=5 // pred_check
        _
      $region42: #{bidaf_forward.39} parent=5 // pred_check_branch
        %239 = sbr.rel (%p236) target = $region44
      $region43: #{bidaf_forward.39} parent=5 // pred_region
        %s240 = ssub.s32 %s17, 1
        %p241 = scmp.lt.s32.totalorder %s22, 1
        %s242 = scalar_select %p241, %s22, 1
        %s243 = smul.addr %s242, 2
        %s244 = smul.addr %s243, 8
        %s245 = scalar_lea.vmem %s0, %s244
        %p246 = pneg %p43
        %p247 = pneg %p40
        %p248 = scmp.lt.s32.totalorder %s22, 1
        %s249 = scalar_select %p248, %s22, 1
        %s250 = smul.addr %s249, 2
        %s251 = smul.addr %s250, 8
        %s252 = scalar_lea.vmem %s1, %s251
        %p253 = pneg %p69
        %p254 = pneg %p66
        %p255 = scmp.lt.s32.totalorder %s22, 1
        %s256 = scalar_select %p255, %s22, 1
        %s257 = scalar_lea.vmem %s2, %s256
        %p258 = pneg %p95
        %p259 = pneg %p92
        %p260 = pneg %p116
        %p261 = pneg %p113
        %p262 = pneg %p137
        %p263 = pneg %p134
        %p264 = pneg %p158
        %p265 = pneg %p155
        %p266 = pneg %p184
        %p267 = pneg %p181
        %s268 = sand.u32 %s171, 1
        %s269 = scalar_lea.sflag [#allocation4], %s268
        %s270 = sand.u32 %s171, 1
        %s271 = scalar_lea.vmem [#allocation3], %s270
        %p272 = scmp.lt.s32.totalorder %s22, 1
        %s273 = scalar_select %p272, %s22, 1
        %s274 = smul.addr %s273, 2
        %s275 = smul.addr %s274, 8
        %s276 = scalar_lea.vmem %s0, %s275
        %p277 = scmp.lt.s32.totalorder %s22, 1
        %s278 = scalar_select %p277, %s22, 1
        %s279 = smul.addr %s278, 2
        %s280 = smul.addr %s279, 8
        %s281 = scalar_lea.vmem %s1, %s280
        %p282 = scmp.lt.s32.totalorder %s22, 1
        %s283 = scalar_select %p282, %s22, 1
        %s284 = scalar_lea.vmem %s2, %s283
        %v285 = vld [vmem:[%s276] sm:$0xff]
        %v286 = vld [vmem:[%s276 + $0x8] sm:$0xff]
        %v287 = vld [vmem:[%s281] sm:$0xff]
        %v288 = vld [vmem:[%s281 + $0x8] sm:$0xff]
        %v289 = vld [vmem:[%s284] sm:$0x1]
        %v290 = vld [vmem:[%s3] sm:$0x1]
        %v292 = vlaneseq
        %v293 = vshrl.u32 %v292, 7
        %v294 = vsub.s32 0, %v293
        %v295 = vrot.slane %v290, %v294
        %v297 = vmul.f32 %v285, %v295
        %v298 = vmul.f32 %v286, %v295
        %299 = vadd.xlane.f32.xlu0 %v297
        %v300 = vpop.xlane.xlu0 %299
        %301 = vadd.xlane.f32.xlu0 %v298
        %v302 = vpop.xlane.xlu0 %301
        %v303 = vld [vmem:[%s4] sm:$0x1]
        %v305 = vlaneseq
        %v306 = vshrl.u32 %v305, 7
        %v307 = vsub.s32 0, %v306
        %v308 = vrot.slane %v303, %v307
        %v310 = vmul.f32 %v287, %v308
        %v311 = vmul.f32 %v288, %v308
        %vm312 = vcmask 261120
        %v313 = vsel %vm312, %v310, 0.0
        %314 = vadd.xlane.f32.xlu0 %v313
        %v315 = vpop.xlane.xlu0 %314
        %v316 = vsel %vm312, %v311, 0.0
        %317 = vadd.xlane.f32.xlu0 %v316
        %v318 = vpop.xlane.xlu0 %317
        %v319 = vadd.f32 %v300, %v315
        %v320 = vadd.f32 %v302, %v318
        %321 = vxpose.xlu0.b32.start [1/16] %v319, 128
        %322 = vxpose.xlu0.b32.cont [2/16] %v320, 128
        %323 = vxpose.xlu0.b32.cont [3/16] 0.0, 128
        %324 = vxpose.xlu0.b32.cont [4/16] 0.0, 128
        %325 = vxpose.xlu0.b32.cont [5/16] 0.0, 128
        %326 = vxpose.xlu0.b32.cont [6/16] 0.0, 128
        %327 = vxpose.xlu0.b32.cont [7/16] 0.0, 128
        %328 = vxpose.xlu0.b32.cont [8/16] 0.0, 128
        %329 = vxpose.xlu0.b32.cont [9/16] 0.0, 128
        %330 = vxpose.xlu0.b32.cont [10/16] 0.0, 128
        %331 = vxpose.xlu0.b32.cont [11/16] 0.0, 128
        %332 = vxpose.xlu0.b32.cont [12/16] 0.0, 128
        %333 = vxpose.xlu0.b32.cont [13/16] 0.0, 128
        %334 = vxpose.xlu0.b32.cont [14/16] 0.0, 128
        %335 = vxpose.xlu0.b32.cont [15/16] 0.0, 128
        %336 = vxpose.xlu0.b32.end [16/16] 0.0, 128
        %v337 = vpop.trf.xlu0
        %v338 = vpop.trf.xlu0
        %v339 = vpop.trf.xlu0
        %v340 = vpop.trf.xlu0
        %v341 = vpop.trf.xlu0
        %v342 = vpop.trf.xlu0
        %v343 = vpop.trf.xlu0
        %v344 = vpop.trf.xlu0
        %v345 = vpop.trf.xlu0
        %v346 = vpop.trf.xlu0
        %v347 = vpop.trf.xlu0
        %v348 = vpop.trf.xlu0
        %v349 = vpop.trf.xlu0
        %v350 = vpop.trf.xlu0
        %v351 = vpop.trf.xlu0
        %v352 = vpop.trf.xlu0
        %v353 = vld [vmem:[#allocation2] sm:$0x1]
        %355 = vset.pattern.permute.xlu0 0
        %356 = vperm.xlu0 %355, %v353
        %v357 = vpop.permute.xlu0 %356
        %v359 = vlaneseq
        %v360 = vshrl.u32 %v359, 7
        %v361 = vsub.s32 0, %v360
        %v362 = vrot.slane %v357, %v361
        %v363 = vadd.f32 %v337, %v362
        %vm364 = vcmp.gt.f32.partialorder %v289, 0.0
        %v365 = vsel %vm364, %v363, -1e+30
        %vm366 = vcmask 122880
        %v367 = vsel %vm366, %v365, -inf
        %368 = vmax.xlane.f32.xlu0 %v367
        %v369 = vpop.xlane.xlu0 %368
        %v370 = vsub.f32 %v365, %v369
        %v371 = vmul.f32 %v370, 1.442695
        %v372 = vpow.pop %v371
        %v373 = vsel %vm366, %v372, 0.0
        %374 = vadd.xlane.f32.xlu0 %v373
        %v375 = vpop.xlane.xlu0 %374
        %v376 = vlog2.pop %v375
        %v377 = vmul.f32 %v376, 0.6931472
        %v378 = vsub.f32 %v370, %v377
        %379 = vst.msk [vmem:[%s271] sm:$0x1] %vm366, %v378
        %s380 = sand.u32 %s171, 1
        %s381 = scalar_lea.sflag [#allocation4], %s380
        %s382 = sand.u32 %s171, 1
        %s383 = scalar_lea.vmem [#allocation3], %s382
        // Predicated region
        $region45: #{bidaf_forward.39} parent=43 // pred_check
          %p384 = pneg %p181
        $region46: #{bidaf_forward.39} parent=43 // pred_check_branch
          %386 = sbr.rel (%p384) target = $region48
        $region47: #{bidaf_forward.39} parent=43 // pred_region
          %s388 = ssub.s32 16, 16
          %389 = vsyncadd %s381, %s388
          %s390 = smul.addr %s22, 16
          %s391 = scalar_lea.hbm %s6, %s390
          %s393 = sshll.u32 %s383, 4
          %s394 = int_to_ptr.vmem [resolvable:$true] %s393
          %396 = dma.vmem_to_hbm [thread:$0]  %s394, 16, %s391, %s381
        $region48: #{bidaf_forward.39} parent=43 // pred_fallthru
          _
      $region44: #{bidaf_forward.39} parent=5 // pred_fallthru
        _
      %p397 = scmp.le.s32.totalorder 2, %s17
      // Predicated region
      $region49: #{bidaf_forward.39} parent=5 // pred_check
        %p398 = pneg %p397
      $region50: #{bidaf_forward.39} parent=5 // pred_check_branch
        %400 = sbr.rel (%p398) target = $region52
      $region51: #{bidaf_forward.39} parent=5 // pred_region
        %s401 = ssub.s32 %s17, 2
        // Predicated region
        $region53: #{bidaf_forward.39} parent=51 // pred_check
          %p402 = pneg %p187
        $region54: #{bidaf_forward.39} parent=51 // pred_check_branch
          %404 = sbr.rel (%p402) target = $region56
        $region55: #{bidaf_forward.39} parent=51 // pred_region
          %s405 = sand.u32 %s172, 1
          %s406 = scalar_lea.sflag [#allocation4], %s405
          %s407 = sand.u32 %s172, 1
          %s408 = scalar_lea.vmem [#allocation3], %s407
          %409 = dma.done %s406, 16
        $region56: #{bidaf_forward.39} parent=51 // pred_fallthru
          _
      $region52: #{bidaf_forward.39} parent=5 // pred_fallthru
        _
    $region6: #{bidaf_forward.39} parent=1 // loop_footer
      %s21 = sadd.s32 1, %s17
    $region7: #{bidaf_forward.39} parent=1 // loop_footer_branch
      %16 = sbr.rel target = $region3
    $region8: #{bidaf_forward.39} parent=1 // loop_exit
      _
    %410 = vsyncpa [#allocation4], 1
    %s411 = scalar_lea.sflag [#allocation4], 1
    %412 = vsyncpa %s411, 1

</llo_original>
